<compile_context>
chip_gen: v7x
topology: tpu7x:2x2x1
jax: 0.10.0
libtpu: 0.0.40
codegen_flags: <defaults>
</compile_context>

<pallas_src>
import functools

import jax
import jax.numpy as jnp
from jax import lax
from jax.experimental import pallas as pl
from jax.experimental.pallas import tpu as pltpu


# ----------------------------------------------------------------------------
# Fused kernel:
#   SE (pool + FC1 + ReLU + FC2 + LeakyReLU)  ->  gate
#   SE-gated rows written once into a single zero-padded (halo=2) buffer
#   folded (1 + 27 + 125)-tap convolution, lane-dense register accumulation
#   BatchNorm3d(1) (batch stats, biased var, one pass) + residual*0.1 + LeakyReLU
# ----------------------------------------------------------------------------
def fused_kernel(xp_ref, w_se1_ref, b_se1_ref, w_se2t_ref, b_se2_ref,
                 bias_ref, mask_ref, w3_ref, w5_ref, misc_ref,
                 out_ref,
                 scr_ref, *, H, W, Wp, QL):
    N, D, L = xp_ref.shape
    C = D
    C1 = w_se1_ref.shape[0]
    HALO = 2

    w1_eff = misc_ref[0]
    gamma = misc_ref[1]
    beta = misc_ref[2]
    eps = misc_ref[3]

    xp = xp_ref[...]                                          # (N, D, L), lane-dense

    # --- SE branch: AdaptiveAvgPool2d(1) + two tiny FCs, VPU only ------------
    pooled = jnp.sum(xp, axis=2) * (1.0 / float(H * W))       # (N, C); halo cols are 0
    s = jnp.zeros((N, C), jnp.float32) + b_se2_ref[...]       # (N, C)
    for j in range(C1):                                       # C1 = C // 16 (tiny)
        hj = jnp.sum(pooled * w_se1_ref[j:j + 1, :], axis=1,
                     keepdims=True) + b_se1_ref[j]            # (N, 1)
        hj = jnp.maximum(hj, 0.0)                             # ReLU
        s = s + hj * w_se2t_ref[j:j + 1, :]                   # (N, C)
    se = jnp.where(s >= 0.0, s, 0.01 * s)                     # LeakyReLU(0.01)

    # --- SE gate + ONE shared zero-padded halo buffer for both tap loops -----
    xse_rows = xp * se[:, :, None]                            # (N, D, L); halo cols stay 0
    zhalo = jnp.zeros((N, HALO, L), jnp.float32)
    scr_ref[:, 0:HALO, :] = zhalo                             # depth halo (front)
    scr_ref[:, HALO + D:HALO + D + HALO, :] = zhalo           # depth halo (back)
    scr_ref[:, HALO:HALO + D, :] = xse_rows                   # interior rows, full width

    # xse in the accumulator's flat q = h*Wp + w layout (kept live for residual)
    q0 = HALO * Wp + HALO
    xse_q = xp_ref[:, :, q0:q0 + QL] * se[:, :, None]         # (N, D, QL)

    # --- folded conv: 1 + 27 + 125 taps, register accumulation ---------------
    # bias_ref = wf-folded constant bias + position-dependent b21/b31 boundary map
    acc = w1_eff * xse_q + bias_ref[...]                      # (N, D, QL)

    # branch3x3 (3x3x3, pad=1): reads the shared buffer at a +1 halo offset
    for kh in range(3):
        for kw in range(3):
            oo = (kh + 1) * Wp + (kw + 1)
            for kd in range(3):
                t = (kd * 3 + kh) * 3 + kw
                acc = acc + w3_ref[t] * scr_ref[:, kd + 1:kd + 1 + D, oo:oo + QL]

    # branch5x5 (5x5x5, pad=2)
    for kh in range(5):
        for kw in range(5):
            oo = kh * Wp + kw
            for kd in range(5):
                t = (kd * 5 + kh) * 5 + kw
                acc = acc + w5_ref[t] * scr_ref[:, kd:kd + D, oo:oo + QL]

    # --- BatchNorm3d(1), training mode: one-pass batch stats (biased var) ----
    inv_cnt = 1.0 / float(N * D * H * W)
    am = acc * mask_ref[...]                                  # zero halo/garbage lanes
    am2 = jnp.sum(am, axis=0)                                 # (D, QL)
    sq2 = jnp.sum(am * am, axis=0)                            # (D, QL)
    mean = jnp.sum(am2) * inv_cnt
    var = jnp.sum(sq2) * inv_cnt - mean * mean
    s_hat = (acc - mean) * lax.rsqrt(var + eps) * gamma + beta

    # --- residual + scale + LeakyReLU (lane-dense, unmasked store) -----------
    o = xse_q + 0.1 * s_hat
    out_ref[...] = jnp.where(o >= 0.0, o, 0.01 * o)


# ----------------------------------------------------------------------------
# Wrapper: exact folding of conv1x1 (wf) and the 1x1x1 stems into the branch
# taps + position-dependent bias map, lane-dense layout, single pallas_call.
# ----------------------------------------------------------------------------
def inception_res_block_se(x5, params):
    N, Cin, D, H, W = x5.shape
    assert Cin == 1, "module expects a single input channel"
    C = params["w1"].shape[0]
    assert D == C, "module requires depth == in_channels (SE treats depth as channels)"

    HALO = 2
    Hp, Wp = H + 2 * HALO, W + 2 * HALO
    Dp = D + 2 * HALO
    QL = 128                                                   # acc / output lane width
    assert (H - 1) * Wp + (W - 1) < QL, "spatial tile too large for QL=128 layout"
    L = max(Hp * Wp, 2 * HALO * Wp + 2 * HALO + QL)            # padded row length (180)

    # ---- lane-dense, H/W-prepadded input rows (zeros in halo + tail) --------
    x4 = x5.reshape(N, D, H, W).astype(jnp.float32)
    xp = jnp.pad(x4, ((0, 0), (0, 0), (HALO, HALO), (HALO, HALO)))   # (N, D, Hp, Wp)
    xp = jnp.pad(xp.reshape(N, D, Hp * Wp), ((0, 0), (0, 0), (0, L - Hp * Wp)))

    # ---- fold conv1x1 (wf) + the 1x1x1 stems into the tap weights (exact) ---
    wf = params["wf"].astype(jnp.float32)
    wf1, wf3, wf5 = wf[:C], wf[C:2 * C], wf[2 * C:]
    w1_eff = jnp.sum(wf1 * params["w1"])
    w3_f = jnp.einsum("c,cdhw->dhw", wf3, params["w3"].astype(jnp.float32))   # (3,3,3)
    w5_f = jnp.einsum("c,cdhw->dhw", wf5, params["w5"].astype(jnp.float32))   # (5,5,5)
    w3_eff = (params["w21"] * w3_f).reshape(27)
    w5_eff = (params["w31"] * w5_f).reshape(125)
    b_const = (params["bf"]
               + jnp.sum(wf1 * params["b1"])
               + jnp.sum(wf3 * params["b3"])
               + jnp.sum(wf5 * params["b5"]))

    # position-dependent bias from the zero-padded stem biases b21 / b31:
    # conv(interior indicator; folded taps) -- correct at the boundaries.
    ones = jnp.ones((1, 1, D, H, W), jnp.float32)

    def iconv(kern, pad):
        k = kern.reshape((1, 1) + kern.shape)
        return lax.conv_general_dilated(
            ones, k, (1, 1, 1), [(pad, pad)] * 3,
            dimension_numbers=("NCDHW", "OIDHW", "NCDHW"))[0, 0]

    bias_dhw = b_const + params["b21"] * iconv(w3_f, 1) + params["b31"] * iconv(w5_f, 2)

    # embed bias map and validity mask into the kernel's flat q = h*Wp + w layout
    bias_map = jnp.zeros((D, H, Wp), jnp.float32).at[:, :, :W].set(bias_dhw)
    bias_map = jnp.pad(bias_map.reshape(D, H * Wp), ((0, 0), (0, QL - H * Wp)))
    mask = jnp.zeros((1, H, Wp), jnp.float32).at[:, :, :W].set(1.0)
    mask = jnp.pad(mask.reshape(1, H * Wp), ((0, 0), (0, QL - H * Wp)))

    misc = jnp.stack([w1_eff, params["gamma"], params["beta"],
                      params["eps"]]).astype(jnp.float32)

    VMEM = pl.BlockSpec(memory_space=pltpu.MemorySpace.VMEM)
    SMEM = pl.BlockSpec(memory_space=pltpu.MemorySpace.SMEM)

    kernel = functools.partial(fused_kernel, H=H, W=W, Wp=Wp, QL=QL)

    out = pl.pallas_call(
        kernel,
        out_shape=jax.ShapeDtypeStruct((N, D, QL), jnp.float32),
        in_specs=[VMEM,   # xp           (N, D, L)   lane-dense, prepadded rows
                  VMEM,   # w_se1        (C1, C)
                  SMEM,   # b_se1        (C1,)
                  VMEM,   # w_se2^T      (C1, C)
                  VMEM,   # b_se2        (1, C)
                  VMEM,   # bias map     (D, QL)
                  VMEM,   # valid mask   (1, QL)
                  SMEM,   # w3_eff       (27,)
                  SMEM,   # w5_eff       (125,)
                  SMEM],  # misc scalars (4,)
        out_specs=VMEM,
        scratch_shapes=[pltpu.VMEM((N, Dp, L), jnp.float32)],   # shared padded xse buffer
    )(xp,
      params["w_se1"].astype(jnp.float32),
      params["b_se1"].astype(jnp.float32),
      params["w_se2"].T.astype(jnp.float32),
      params["b_se2"].reshape(1, C).astype(jnp.float32),
      bias_map, mask,
      w3_eff.astype(jnp.float32), w5_eff.astype(jnp.float32), misc)

    # slice the valid columns back out of the padded-width layout (glue)
    out = out[:, :, :H * Wp].reshape(N, D, H, Wp)[:, :, :, :W]
    return out.reshape(N, 1, D, H, W)


# ----------------------------------------------------------------------------
# Pure-JAX reference (mirrors the PyTorch forward) for validation.
# ----------------------------------------------------------------------------
def reference(x5, p):
    N, _, D, H, W = x5.shape
    C = p["w1"].shape[0]

    xv = x5.reshape(N, D, H, W)
    pooled = xv.mean(axis=(2, 3))                                  # (N, C)
    h = jnp.maximum(pooled @ p["w_se1"].T + p["b_se1"], 0.0)
    s = h @ p["w_se2"].T + p["b_se2"]
    se = jnp.where(s >= 0.0, s, 0.01 * s)
    xg = x5 * se.reshape(N, 1, D, 1, 1)

    def conv3d(inp, w, b, pad):
        out = lax.conv_general_dilated(
            inp, w, window_strides=(1, 1, 1), padding=[(pad, pad)] * 3,
            dimension_numbers=("NCDHW", "OIDHW", "NCDHW"))
        return out + b.reshape(1, -1, 1, 1, 1)

    x1 = conv3d(xg, p["w1"].reshape(C, 1, 1, 1, 1), p["b1"], 0)
    t2 = conv3d(xg, p["w21"].reshape(1, 1, 1, 1, 1), p["b21"].reshape(1), 0)
    x2 = conv3d(t2, p["w3"].reshape(C, 1, 3, 3, 3), p["b3"], 1)
    t3 = conv3d(xg, p["w31"].reshape(1, 1, 1, 1, 1), p["b31"].reshape(1), 0)
    x3 = conv3d(t3, p["w5"].reshape(C, 1, 5, 5, 5), p["b5"], 2)
    cat = jnp.concatenate([x1, x2, x3], axis=1)
    o = conv3d(cat, p["wf"].reshape(1, 3 * C, 1, 1, 1), p["bf"].reshape(1), 0)

    mu = o.mean()
    var = ((o - mu) ** 2).mean()
    o = (o - mu) / jnp.sqrt(var + p["eps"]) * p["gamma"] + p["beta"]
    o = xg + 0.1 * o
    return jnp.where(o >= 0.0, o, 0.01 * o)


# ----------------------------------------------------------------------------
if __name__ == "__main__":
    N, C, H, W = 2, 16, 8, 8          # in_channels = 16 => SE bottleneck 16//16 = 1
    D = C                             # module requires depth == in_channels
    C1 = C // 16

    key = jax.random.PRNGKey(0)
    ks = jax.random.split(key, 20)

    def rnd(k, shape, scale=0.1):
        return (scale * jax.random.normal(k, shape)).astype(jnp.float32)

    params = dict(
        # SE: Conv2d(C, C//16, 1) + Conv2d(C//16, C, 1)
        w_se1=rnd(ks[0], (C1, C)), b_se1=rnd(ks[1], (C1,)),
        w_se2=rnd(ks[2], (C, C1)), b_se2=rnd(ks[3], (C,)),
        # branch1x1: Conv3d(1, C, 1)
        w1=rnd(ks[4], (C,)), b1=rnd(ks[5], (C,)),
        # branch2_1 / branch3_1: Conv3d(1, 1, 1)
        w21=rnd(ks[6], ()), b21=rnd(ks[7], ()),
        w31=rnd(ks[8], ()), b31=rnd(ks[9], ()),
        # branch3x3: Conv3d(1, C, 3, pad=1); branch5x5: Conv3d(1, C, 5, pad=2)
        w3=rnd(ks[10], (C, 3, 3, 3)), b3=rnd(ks[11], (C,)),
        w5=rnd(ks[12], (C, 5, 5, 5)), b5=rnd(ks[13], (C,)),
        # conv1x1: Conv3d(3C, 1, 1)
        wf=rnd(ks[14], (3 * C,)), bf=rnd(ks[15], ()),
        # BatchNorm3d(1)
        gamma=jnp.asarray(0.9, jnp.float32),
        beta=jnp.asarray(0.05, jnp.float32),
        eps=jnp.asarray(1e-5, jnp.float32),
    )

    x = jax.random.normal(ks[16], (N, 1, D, H, W), jnp.float32)

    fn = jax.jit(lambda xx: inception_res_block_se(xx, params))
    out = jax.block_until_ready(fn(x))

    ref = jax.block_until_ready(reference(x, params))
    err = float(jnp.max(jnp.abs(out - ref)))

    assert out.shape == (N, 1, D, H, W)
    assert bool(jnp.all(jnp.isfinite(out)))
    assert err < 1e-3, f"mismatch vs reference: max abs err = {err}"

    print("KERNEL_OK")
</pallas_src>

<mosaic_0001>
module attributes {stable_mosaic.version = 11 : i64} {
  func.func @fused_kernel(%arg0: memref<2x16x180xf32, #tpu.memory_space<vmem>>, %arg1: memref<1x16xf32, #tpu.memory_space<vmem>>, %arg2: memref<1xf32, #tpu.memory_space<smem>>, %arg3: memref<1x16xf32, #tpu.memory_space<vmem>>, %arg4: memref<1x16xf32, #tpu.memory_space<vmem>>, %arg5: memref<16x128xf32, #tpu.memory_space<vmem>>, %arg6: memref<1x128xf32, #tpu.memory_space<vmem>>, %arg7: memref<27xf32, #tpu.memory_space<smem>>, %arg8: memref<125xf32, #tpu.memory_space<smem>>, %arg9: memref<4xf32, #tpu.memory_space<smem>>, %arg10: memref<2x16x128xf32, #tpu.memory_space<vmem>>, %arg11: memref<2x20x180xf32, #tpu.memory_space<vmem>>) attributes {dimension_semantics = [], scalar_prefetch = 0 : i64, scratch_operands = 1 : i64, tpu.core_type = #tpu.core_type<tc>} {
    %c0 = arith.constant 0 : index
    %0 = memref.load %arg9[%c0] : memref<4xf32, #tpu.memory_space<smem>>
    %c1 = arith.constant 1 : index
    %1 = memref.load %arg9[%c1] : memref<4xf32, #tpu.memory_space<smem>>
    %c2 = arith.constant 2 : index
    %2 = memref.load %arg9[%c2] : memref<4xf32, #tpu.memory_space<smem>>
    %c3 = arith.constant 3 : index
    %3 = memref.load %arg9[%c3] : memref<4xf32, #tpu.memory_space<smem>>
    %c0_0 = arith.constant 0 : index
    %c0_1 = arith.constant 0 : index
    %c0_2 = arith.constant 0 : index
    %4 = vector.load %arg0[%c0_0, %c0_1, %c0_2] : memref<2x16x180xf32, #tpu.memory_space<vmem>>, vector<2x16x180xf32>
    %cst = arith.constant dense<0.000000e+00> : vector<2x16xf32>
    %5 = vector.multi_reduction <add>, %4, %cst [2] : vector<2x16x180xf32> to vector<2x16xf32>
    %cst_3 = arith.constant 1.562500e-02 : f32
    %6 = vector.broadcast %cst_3 : f32 to vector<2x16xf32>
    %7 = arith.mulf %5, %6 : vector<2x16xf32>
    %cst_4 = arith.constant 0.000000e+00 : f32
    %8 = vector.broadcast %cst_4 : f32 to vector<2x16xf32>
    %c0_5 = arith.constant 0 : index
    %c0_6 = arith.constant 0 : index
    %9 = vector.load %arg4[%c0_5, %c0_6] : memref<1x16xf32, #tpu.memory_space<vmem>>, vector<1x16xf32>
    %10 = vector.broadcast %9 : vector<1x16xf32> to vector<2x16xf32>
    %11 = arith.addf %8, %10 : vector<2x16xf32>
    %c0_7 = arith.constant 0 : index
    %c0_8 = arith.constant 0 : index
    %12 = vector.load %arg1[%c0_7, %c0_8] : memref<1x16xf32, #tpu.memory_space<vmem>>, vector<1x16xf32>
    %13 = vector.broadcast %12 : vector<1x16xf32> to vector<2x16xf32>
    %14 = arith.mulf %7, %13 : vector<2x16xf32>
    %cst_9 = arith.constant dense<0.000000e+00> : vector<2xf32>
    %15 = vector.multi_reduction <add>, %14, %cst_9 [1] : vector<2x16xf32> to vector<2xf32>
    %16 = vector.shape_cast %15 : vector<2xf32> to vector<2x1xf32>
    %c0_10 = arith.constant 0 : index
    %17 = memref.load %arg2[%c0_10] : memref<1xf32, #tpu.memory_space<smem>>
    %18 = vector.broadcast %17 : f32 to vector<2x1xf32>
    %19 = arith.addf %16, %18 : vector<2x1xf32>
    %cst_11 = arith.constant 0.000000e+00 : f32
    %20 = vector.broadcast %cst_11 : f32 to vector<2x1xf32>
    %21 = arith.maximumf %19, %20 : vector<2x1xf32>
    %c0_12 = arith.constant 0 : index
    %c0_13 = arith.constant 0 : index
    %22 = vector.load %arg3[%c0_12, %c0_13] : memref<1x16xf32, #tpu.memory_space<vmem>>, vector<1x16xf32>
    %23 = vector.broadcast %21 : vector<2x1xf32> to vector<2x16xf32>
    %24 = vector.broadcast %22 : vector<1x16xf32> to vector<2x16xf32>
    %25 = arith.mulf %23, %24 : vector<2x16xf32>
    %26 = arith.addf %11, %25 : vector<2x16xf32>
    %cst_14 = arith.constant 0.000000e+00 : f32
    %27 = vector.broadcast %cst_14 : f32 to vector<2x16xf32>
    %28 = arith.cmpf oge, %26, %27 : vector<2x16xf32>
    %cst_15 = arith.constant 0.00999999977 : f32
    %29 = vector.broadcast %cst_15 : f32 to vector<2x16xf32>
    %30 = arith.mulf %29, %26 : vector<2x16xf32>
    %31 = arith.select %28, %26, %30 : vector<2x16xi1>, vector<2x16xf32>
    %32 = vector.shape_cast %31 : vector<2x16xf32> to vector<2x16x1xf32>
    %33 = vector.broadcast %32 : vector<2x16x1xf32> to vector<2x16x180xf32>
    %34 = arith.mulf %4, %33 : vector<2x16x180xf32>
    %cst_16 = arith.constant 0.000000e+00 : f32
    %35 = vector.broadcast %cst_16 : f32 to vector<2x2x180xf32>
    %c0_17 = arith.constant 0 : index
    %c0_18 = arith.constant 0 : index
    %c0_19 = arith.constant 0 : index
    %36 = vector.load %arg11[%c0_17, %c0_18, %c0_19] : memref<2x20x180xf32, #tpu.memory_space<vmem>>, vector<2x2x180xf32>
    tpu.vector_store %arg11[%c0_17, %c0_18, %c0_19], %35 {strides = array<i32>} : memref<2x20x180xf32, #tpu.memory_space<vmem>>, vector<2x2x180xf32>,
    %c0_20 = arith.constant 0 : index
    %c18 = arith.constant 18 : index
    %c0_21 = arith.constant 0 : index
    %37 = vector.load %arg11[%c0_20, %c18, %c0_21] : memref<2x20x180xf32, #tpu.memory_space<vmem>>, vector<2x2x180xf32>
    tpu.vector_store %arg11[%c0_20, %c18, %c0_21], %35 {strides = array<i32>} : memref<2x20x180xf32, #tpu.memory_space<vmem>>, vector<2x2x180xf32>,
    %c0_22 = arith.constant 0 : index
    %c2_23 = arith.constant 2 : index
    %c0_24 = arith.constant 0 : index
    %38 = vector.load %arg11[%c0_22, %c2_23, %c0_24] : memref<2x20x180xf32, #tpu.memory_space<vmem>>, vector<2x16x180xf32>
    tpu.vector_store %arg11[%c0_22, %c2_23, %c0_24], %34 {strides = array<i32>} : memref<2x20x180xf32, #tpu.memory_space<vmem>>, vector<2x16x180xf32>,
    %c0_25 = arith.constant 0 : index
    %c0_26 = arith.constant 0 : index
    %c26 = arith.constant 26 : index
    %39 = vector.load %arg0[%c0_25, %c0_26, %c26] : memref<2x16x180xf32, #tpu.memory_space<vmem>>, vector<2x16x128xf32>
    %40 = vector.shape_cast %31 : vector<2x16xf32> to vector<2x16x1xf32>
    %41 = vector.broadcast %40 : vector<2x16x1xf32> to vector<2x16x128xf32>
    %42 = arith.mulf %39, %41 : vector<2x16x128xf32>
    %43 = vector.broadcast %0 : f32 to vector<2x16x128xf32>
    %44 = arith.mulf %43, %42 : vector<2x16x128xf32>
    %c0_27 = arith.constant 0 : index
    %c0_28 = arith.constant 0 : index
    %45 = vector.load %arg5[%c0_27, %c0_28] : memref<16x128xf32, #tpu.memory_space<vmem>>, vector<16x128xf32>
    %46 = vector.shape_cast %45 : vector<16x128xf32> to vector<1x16x128xf32>
    %47 = vector.broadcast %46 : vector<1x16x128xf32> to vector<2x16x128xf32>
    %48 = arith.addf %44, %47 : vector<2x16x128xf32>
    %c0_29 = arith.constant 0 : index
    %49 = memref.load %arg7[%c0_29] : memref<27xf32, #tpu.memory_space<smem>>
    %c0_30 = arith.constant 0 : index
    %c1_31 = arith.constant 1 : index
    %c13 = arith.constant 13 : index
    %50 = vector.load %arg11[%c0_30, %c1_31, %c13] : memref<2x20x180xf32, #tpu.memory_space<vmem>>, vector<2x16x128xf32>
    %51 = vector.broadcast %49 : f32 to vector<2x16x128xf32>
    %52 = arith.mulf %51, %50 : vector<2x16x128xf32>
    %53 = arith.addf %48, %52 : vector<2x16x128xf32>
    %c9 = arith.constant 9 : index
    %54 = memref.load %arg7[%c9] : memref<27xf32, #tpu.memory_space<smem>>
    %c0_32 = arith.constant 0 : index
    %c2_33 = arith.constant 2 : index
    %c13_34 = arith.constant 13 : index
    %55 = vector.load %arg11[%c0_32, %c2_33, %c13_34] : memref<2x20x180xf32, #tpu.memory_space<vmem>>, vector<2x16x128xf32>
    %56 = vector.broadcast %54 : f32 to vector<2x16x128xf32>
    %57 = arith.mulf %56, %55 : vector<2x16x128xf32>
    %58 = arith.addf %53, %57 : vector<2x16x128xf32>
    %c18_35 = arith.constant 18 : index
    %59 = memref.load %arg7[%c18_35] : memref<27xf32, #tpu.memory_space<smem>>
    %c0_36 = arith.constant 0 : index
    %c3_37 = arith.constant 3 : index
    %c13_38 = arith.constant 13 : index
    %60 = vector.load %arg11[%c0_36, %c3_37, %c13_38] : memref<2x20x180xf32, #tpu.memory_space<vmem>>, vector<2x16x128xf32>
    %61 = vector.broadcast %59 : f32 to vector<2x16x128xf32>
    %62 = arith.mulf %61, %60 : vector<2x16x128xf32>
    %63 = arith.addf %58, %62 : vector<2x16x128xf32>
    %c1_39 = arith.constant 1 : index
    %64 = memref.load %arg7[%c1_39] : memref<27xf32, #tpu.memory_space<smem>>
    %c0_40 = arith.constant 0 : index
    %c1_41 = arith.constant 1 : index
    %c14 = arith.constant 14 : index
    %65 = vector.load %arg11[%c0_40, %c1_41, %c14] : memref<2x20x180xf32, #tpu.memory_space<vmem>>, vector<2x16x128xf32>
    %66 = vector.broadcast %64 : f32 to vector<2x16x128xf32>
    %67 = arith.mulf %66, %65 : vector<2x16x128xf32>
    %68 = arith.addf %63, %67 : vector<2x16x128xf32>
    %c10 = arith.constant 10 : index
    %69 = memref.load %arg7[%c10] : memref<27xf32, #tpu.memory_space<smem>>
    %c0_42 = arith.constant 0 : index
    %c2_43 = arith.constant 2 : index
    %c14_44 = arith.constant 14 : index
    %70 = vector.load %arg11[%c0_42, %c2_43, %c14_44] : memref<2x20x180xf32, #tpu.memory_space<vmem>>, vector<2x16x128xf32>
    %71 = vector.broadcast %69 : f32 to vector<2x16x128xf32>
    %72 = arith.mulf %71, %70 : vector<2x16x128xf32>
    %73 = arith.addf %68, %72 : vector<2x16x128xf32>
    %c19 = arith.constant 19 : index
    %74 = memref.load %arg7[%c19] : memref<27xf32, #tpu.memory_space<smem>>
    %c0_45 = arith.constant 0 : index
    %c3_46 = arith.constant 3 : index
    %c14_47 = arith.constant 14 : index
    %75 = vector.load %arg11[%c0_45, %c3_46, %c14_47] : memref<2x20x180xf32, #tpu.memory_space<vmem>>, vector<2x16x128xf32>
    %76 = vector.broadcast %74 : f32 to vector<2x16x128xf32>
    %77 = arith.mulf %76, %75 : vector<2x16x128xf32>
    %78 = arith.addf %73, %77 : vector<2x16x128xf32>
    %c2_48 = arith.constant 2 : index
    %79 = memref.load %arg7[%c2_48] : memref<27xf32, #tpu.memory_space<smem>>
    %c0_49 = arith.constant 0 : index
    %c1_50 = arith.constant 1 : index
    %c15 = arith.constant 15 : index
    %80 = vector.load %arg11[%c0_49, %c1_50, %c15] : memref<2x20x180xf32, #tpu.memory_space<vmem>>, vector<2x16x128xf32>
    %81 = vector.broadcast %79 : f32 to vector<2x16x128xf32>
    %82 = arith.mulf %81, %80 : vector<2x16x128xf32>
    %83 = arith.addf %78, %82 : vector<2x16x128xf32>
    %c11 = arith.constant 11 : index
    %84 = memref.load %arg7[%c11] : memref<27xf32, #tpu.memory_space<smem>>
    %c0_51 = arith.constant 0 : index
    %c2_52 = arith.constant 2 : index
    %c15_53 = arith.constant 15 : index
    %85 = vector.load %arg11[%c0_51, %c2_52, %c15_53] : memref<2x20x180xf32, #tpu.memory_space<vmem>>, vector<2x16x128xf32>
    %86 = vector.broadcast %84 : f32 to vector<2x16x128xf32>
    %87 = arith.mulf %86, %85 : vector<2x16x128xf32>
    %88 = arith.addf %83, %87 : vector<2x16x128xf32>
    %c20 = arith.constant 20 : index
    %89 = memref.load %arg7[%c20] : memref<27xf32, #tpu.memory_space<smem>>
    %c0_54 = arith.constant 0 : index
    %c3_55 = arith.constant 3 : index
    %c15_56 = arith.constant 15 : index
    %90 = vector.load %arg11[%c0_54, %c3_55, %c15_56] : memref<2x20x180xf32, #tpu.memory_space<vmem>>, vector<2x16x128xf32>
    %91 = vector.broadcast %89 : f32 to vector<2x16x128xf32>
    %92 = arith.mulf %91, %90 : vector<2x16x128xf32>
    %93 = arith.addf %88, %92 : vector<2x16x128xf32>
    %c3_57 = arith.constant 3 : index
    %94 = memref.load %arg7[%c3_57] : memref<27xf32, #tpu.memory_space<smem>>
    %c0_58 = arith.constant 0 : index
    %c1_59 = arith.constant 1 : index
    %c25 = arith.constant 25 : index
    %95 = vector.load %arg11[%c0_58, %c1_59, %c25] : memref<2x20x180xf32, #tpu.memory_space<vmem>>, vector<2x16x128xf32>
    %96 = vector.broadcast %94 : f32 to vector<2x16x128xf32>
    %97 = arith.mulf %96, %95 : vector<2x16x128xf32>
    %98 = arith.addf %93, %97 : vector<2x16x128xf32>
    %c12 = arith.constant 12 : index
    %99 = memref.load %arg7[%c12] : memref<27xf32, #tpu.memory_space<smem>>
    %c0_60 = arith.constant 0 : index
    %c2_61 = arith.constant 2 : index
    %c25_62 = arith.constant 25 : index
    %100 = vector.load %arg11[%c0_60, %c2_61, %c25_62] : memref<2x20x180xf32, #tpu.memory_space<vmem>>, vector<2x16x128xf32>
    %101 = vector.broadcast %99 : f32 to vector<2x16x128xf32>
    %102 = arith.mulf %101, %100 : vector<2x16x128xf32>
    %103 = arith.addf %98, %102 : vector<2x16x128xf32>
    %c21 = arith.constant 21 : index
    %104 = memref.load %arg7[%c21] : memref<27xf32, #tpu.memory_space<smem>>
    %c0_63 = arith.constant 0 : index
    %c3_64 = arith.constant 3 : index
    %c25_65 = arith.constant 25 : index
    %105 = vector.load %arg11[%c0_63, %c3_64, %c25_65] : memref<2x20x180xf32, #tpu.memory_space<vmem>>, vector<2x16x128xf32>
    %106 = vector.broadcast %104 : f32 to vector<2x16x128xf32>
    %107 = arith.mulf %106, %105 : vector<2x16x128xf32>
    %108 = arith.addf %103, %107 : vector<2x16x128xf32>
    %c4 = arith.constant 4 : index
    %109 = memref.load %arg7[%c4] : memref<27xf32, #tpu.memory_space<smem>>
    %c0_66 = arith.constant 0 : index
    %c1_67 = arith.constant 1 : index
    %c26_68 = arith.constant 26 : index
    %110 = vector.load %arg11[%c0_66, %c1_67, %c26_68] : memref<2x20x180xf32, #tpu.memory_space<vmem>>, vector<2x16x128xf32>
    %111 = vector.broadcast %109 : f32 to vector<2x16x128xf32>
    %112 = arith.mulf %111, %110 : vector<2x16x128xf32>
    %113 = arith.addf %108, %112 : vector<2x16x128xf32>
    %c13_69 = arith.constant 13 : index
    %114 = memref.load %arg7[%c13_69] : memref<27xf32, #tpu.memory_space<smem>>
    %c0_70 = arith.constant 0 : index
    %c2_71 = arith.constant 2 : index
    %c26_72 = arith.constant 26 : index
    %115 = vector.load %arg11[%c0_70, %c2_71, %c26_72] : memref<2x20x180xf32, #tpu.memory_space<vmem>>, vector<2x16x128xf32>
    %116 = vector.broadcast %114 : f32 to vector<2x16x128xf32>
    %117 = arith.mulf %116, %115 : vector<2x16x128xf32>
    %118 = arith.addf %113, %117 : vector<2x16x128xf32>
    %c22 = arith.constant 22 : index
    %119 = memref.load %arg7[%c22] : memref<27xf32, #tpu.memory_space<smem>>
    %c0_73 = arith.constant 0 : index
    %c3_74 = arith.constant 3 : index
    %c26_75 = arith.constant 26 : index
    %120 = vector.load %arg11[%c0_73, %c3_74, %c26_75] : memref<2x20x180xf32, #tpu.memory_space<vmem>>, vector<2x16x128xf32>
    %121 = vector.broadcast %119 : f32 to vector<2x16x128xf32>
    %122 = arith.mulf %121, %120 : vector<2x16x128xf32>
    %123 = arith.addf %118, %122 : vector<2x16x128xf32>
    %c5 = arith.constant 5 : index
    %124 = memref.load %arg7[%c5] : memref<27xf32, #tpu.memory_space<smem>>
    %c0_76 = arith.constant 0 : index
    %c1_77 = arith.constant 1 : index
    %c27 = arith.constant 27 : index
    %125 = vector.load %arg11[%c0_76, %c1_77, %c27] : memref<2x20x180xf32, #tpu.memory_space<vmem>>, vector<2x16x128xf32>
    %126 = vector.broadcast %124 : f32 to vector<2x16x128xf32>
    %127 = arith.mulf %126, %125 : vector<2x16x128xf32>
    %128 = arith.addf %123, %127 : vector<2x16x128xf32>
    %c14_78 = arith.constant 14 : index
    %129 = memref.load %arg7[%c14_78] : memref<27xf32, #tpu.memory_space<smem>>
    %c0_79 = arith.constant 0 : index
    %c2_80 = arith.constant 2 : index
    %c27_81 = arith.constant 27 : index
    %130 = vector.load %arg11[%c0_79, %c2_80, %c27_81] : memref<2x20x180xf32, #tpu.memory_space<vmem>>, vector<2x16x128xf32>
    %131 = vector.broadcast %129 : f32 to vector<2x16x128xf32>
    %132 = arith.mulf %131, %130 : vector<2x16x128xf32>
    %133 = arith.addf %128, %132 : vector<2x16x128xf32>
    %c23 = arith.constant 23 : index
    %134 = memref.load %arg7[%c23] : memref<27xf32, #tpu.memory_space<smem>>
    %c0_82 = arith.constant 0 : index
    %c3_83 = arith.constant 3 : index
    %c27_84 = arith.constant 27 : index
    %135 = vector.load %arg11[%c0_82, %c3_83, %c27_84] : memref<2x20x180xf32, #tpu.memory_space<vmem>>, vector<2x16x128xf32>
    %136 = vector.broadcast %134 : f32 to vector<2x16x128xf32>
    %137 = arith.mulf %136, %135 : vector<2x16x128xf32>
    %138 = arith.addf %133, %137 : vector<2x16x128xf32>
    %c6 = arith.constant 6 : index
    %139 = memref.load %arg7[%c6] : memref<27xf32, #tpu.memory_space<smem>>
    %c0_85 = arith.constant 0 : index
    %c1_86 = arith.constant 1 : index
    %c37 = arith.constant 37 : index
    %140 = vector.load %arg11[%c0_85, %c1_86, %c37] : memref<2x20x180xf32, #tpu.memory_space<vmem>>, vector<2x16x128xf32>
    %141 = vector.broadcast %139 : f32 to vector<2x16x128xf32>
    %142 = arith.mulf %141, %140 : vector<2x16x128xf32>
    %143 = arith.addf %138, %142 : vector<2x16x128xf32>
    %c15_87 = arith.constant 15 : index
    %144 = memref.load %arg7[%c15_87] : memref<27xf32, #tpu.memory_space<smem>>
    %c0_88 = arith.constant 0 : index
    %c2_89 = arith.constant 2 : index
    %c37_90 = arith.constant 37 : index
    %145 = vector.load %arg11[%c0_88, %c2_89, %c37_90] : memref<2x20x180xf32, #tpu.memory_space<vmem>>, vector<2x16x128xf32>
    %146 = vector.broadcast %144 : f32 to vector<2x16x128xf32>
    %147 = arith.mulf %146, %145 : vector<2x16x128xf32>
    %148 = arith.addf %143, %147 : vector<2x16x128xf32>
    %c24 = arith.constant 24 : index
    %149 = memref.load %arg7[%c24] : memref<27xf32, #tpu.memory_space<smem>>
    %c0_91 = arith.constant 0 : index
    %c3_92 = arith.constant 3 : index
    %c37_93 = arith.constant 37 : index
    %150 = vector.load %arg11[%c0_91, %c3_92, %c37_93] : memref<2x20x180xf32, #tpu.memory_space<vmem>>, vector<2x16x128xf32>
    %151 = vector.broadcast %149 : f32 to vector<2x16x128xf32>
    %152 = arith.mulf %151, %150 : vector<2x16x128xf32>
    %153 = arith.addf %148, %152 : vector<2x16x128xf32>
    %c7 = arith.constant 7 : index
    %154 = memref.load %arg7[%c7] : memref<27xf32, #tpu.memory_space<smem>>
    %c0_94 = arith.constant 0 : index
    %c1_95 = arith.constant 1 : index
    %c38 = arith.constant 38 : index
    %155 = vector.load %arg11[%c0_94, %c1_95, %c38] : memref<2x20x180xf32, #tpu.memory_space<vmem>>, vector<2x16x128xf32>
    %156 = vector.broadcast %154 : f32 to vector<2x16x128xf32>
    %157 = arith.mulf %156, %155 : vector<2x16x128xf32>
    %158 = arith.addf %153, %157 : vector<2x16x128xf32>
    %c16 = arith.constant 16 : index
    %159 = memref.load %arg7[%c16] : memref<27xf32, #tpu.memory_space<smem>>
    %c0_96 = arith.constant 0 : index
    %c2_97 = arith.constant 2 : index
    %c38_98 = arith.constant 38 : index
    %160 = vector.load %arg11[%c0_96, %c2_97, %c38_98] : memref<2x20x180xf32, #tpu.memory_space<vmem>>, vector<2x16x128xf32>
    %161 = vector.broadcast %159 : f32 to vector<2x16x128xf32>
    %162 = arith.mulf %161, %160 : vector<2x16x128xf32>
    %163 = arith.addf %158, %162 : vector<2x16x128xf32>
    %c25_99 = arith.constant 25 : index
    %164 = memref.load %arg7[%c25_99] : memref<27xf32, #tpu.memory_space<smem>>
    %c0_100 = arith.constant 0 : index
    %c3_101 = arith.constant 3 : index
    %c38_102 = arith.constant 38 : index
    %165 = vector.load %arg11[%c0_100, %c3_101, %c38_102] : memref<2x20x180xf32, #tpu.memory_space<vmem>>, vector<2x16x128xf32>
    %166 = vector.broadcast %164 : f32 to vector<2x16x128xf32>
    %167 = arith.mulf %166, %165 : vector<2x16x128xf32>
    %168 = arith.addf %163, %167 : vector<2x16x128xf32>
    %c8 = arith.constant 8 : index
    %169 = memref.load %arg7[%c8] : memref<27xf32, #tpu.memory_space<smem>>
    %c0_103 = arith.constant 0 : index
    %c1_104 = arith.constant 1 : index
    %c39 = arith.constant 39 : index
    %170 = vector.load %arg11[%c0_103, %c1_104, %c39] : memref<2x20x180xf32, #tpu.memory_space<vmem>>, vector<2x16x128xf32>
    %171 = vector.broadcast %169 : f32 to vector<2x16x128xf32>
    %172 = arith.mulf %171, %170 : vector<2x16x128xf32>
    %173 = arith.addf %168, %172 : vector<2x16x128xf32>
    %c17 = arith.constant 17 : index
    %174 = memref.load %arg7[%c17] : memref<27xf32, #tpu.memory_space<smem>>
    %c0_105 = arith.constant 0 : index
    %c2_106 = arith.constant 2 : index
    %c39_107 = arith.constant 39 : index
    %175 = vector.load %arg11[%c0_105, %c2_106, %c39_107] : memref<2x20x180xf32, #tpu.memory_space<vmem>>, vector<2x16x128xf32>
    %176 = vector.broadcast %174 : f32 to vector<2x16x128xf32>
    %177 = arith.mulf %176, %175 : vector<2x16x128xf32>
    %178 = arith.addf %173, %177 : vector<2x16x128xf32>
    %c26_108 = arith.constant 26 : index
    %179 = memref.load %arg7[%c26_108] : memref<27xf32, #tpu.memory_space<smem>>
    %c0_109 = arith.constant 0 : index
    %c3_110 = arith.constant 3 : index
    %c39_111 = arith.constant 39 : index
    %180 = vector.load %arg11[%c0_109, %c3_110, %c39_111] : memref<2x20x180xf32, #tpu.memory_space<vmem>>, vector<2x16x128xf32>
    %181 = vector.broadcast %179 : f32 to vector<2x16x128xf32>
    %182 = arith.mulf %181, %180 : vector<2x16x128xf32>
    %183 = arith.addf %178, %182 : vector<2x16x128xf32>
    %c0_112 = arith.constant 0 : index
    %184 = memref.load %arg8[%c0_112] : memref<125xf32, #tpu.memory_space<smem>>
    %c0_113 = arith.constant 0 : index
    %c0_114 = arith.constant 0 : index
    %c0_115 = arith.constant 0 : index
    %185 = vector.load %arg11[%c0_113, %c0_114, %c0_115] : memref<2x20x180xf32, #tpu.memory_space<vmem>>, vector<2x16x128xf32>
    %186 = vector.broadcast %184 : f32 to vector<2x16x128xf32>
    %187 = arith.mulf %186, %185 : vector<2x16x128xf32>
    %188 = arith.addf %183, %187 : vector<2x16x128xf32>
    %c25_116 = arith.constant 25 : index
    %189 = memref.load %arg8[%c25_116] : memref<125xf32, #tpu.memory_space<smem>>
    %c0_117 = arith.constant 0 : index
    %c1_118 = arith.constant 1 : index
    %c0_119 = arith.constant 0 : index
    %190 = vector.load %arg11[%c0_117, %c1_118, %c0_119] : memref<2x20x180xf32, #tpu.memory_space<vmem>>, vector<2x16x128xf32>
    %191 = vector.broadcast %189 : f32 to vector<2x16x128xf32>
    %192 = arith.mulf %191, %190 : vector<2x16x128xf32>
    %193 = arith.addf %188, %192 : vector<2x16x128xf32>
    %c50 = arith.constant 50 : index
    %194 = memref.load %arg8[%c50] : memref<125xf32, #tpu.memory_space<smem>>
    %c0_120 = arith.constant 0 : index
    %c2_121 = arith.constant 2 : index
    %c0_122 = arith.constant 0 : index
    %195 = vector.load %arg11[%c0_120, %c2_121, %c0_122] : memref<2x20x180xf32, #tpu.memory_space<vmem>>, vector<2x16x128xf32>
    %196 = vector.broadcast %194 : f32 to vector<2x16x128xf32>
    %197 = arith.mulf %196, %195 : vector<2x16x128xf32>
    %198 = arith.addf %193, %197 : vector<2x16x128xf32>
    %c75 = arith.constant 75 : index
    %199 = memref.load %arg8[%c75] : memref<125xf32, #tpu.memory_space<smem>>
    %c0_123 = arith.constant 0 : index
    %c3_124 = arith.constant 3 : index
    %c0_125 = arith.constant 0 : index
    %200 = vector.load %arg11[%c0_123, %c3_124, %c0_125] : memref<2x20x180xf32, #tpu.memory_space<vmem>>, vector<2x16x128xf32>
    %201 = vector.broadcast %199 : f32 to vector<2x16x128xf32>
    %202 = arith.mulf %201, %200 : vector<2x16x128xf32>
    %203 = arith.addf %198, %202 : vector<2x16x128xf32>
    %c100 = arith.constant 100 : index
    %204 = memref.load %arg8[%c100] : memref<125xf32, #tpu.memory_space<smem>>
    %c0_126 = arith.constant 0 : index
    %c4_127 = arith.constant 4 : index
    %c0_128 = arith.constant 0 : index
    %205 = vector.load %arg11[%c0_126, %c4_127, %c0_128] : memref<2x20x180xf32, #tpu.memory_space<vmem>>, vector<2x16x128xf32>
    %206 = vector.broadcast %204 : f32 to vector<2x16x128xf32>
    %207 = arith.mulf %206, %205 : vector<2x16x128xf32>
    %208 = arith.addf %203, %207 : vector<2x16x128xf32>
    %c1_129 = arith.constant 1 : index
    %209 = memref.load %arg8[%c1_129] : memref<125xf32, #tpu.memory_space<smem>>
    %c0_130 = arith.constant 0 : index
    %c0_131 = arith.constant 0 : index
    %c1_132 = arith.constant 1 : index
    %210 = vector.load %arg11[%c0_130, %c0_131, %c1_132] : memref<2x20x180xf32, #tpu.memory_space<vmem>>, vector<2x16x128xf32>
    %211 = vector.broadcast %209 : f32 to vector<2x16x128xf32>
    %212 = arith.mulf %211, %210 : vector<2x16x128xf32>
    %213 = arith.addf %208, %212 : vector<2x16x128xf32>
    %c26_133 = arith.constant 26 : index
    %214 = memref.load %arg8[%c26_133] : memref<125xf32, #tpu.memory_space<smem>>
    %c0_134 = arith.constant 0 : index
    %c1_135 = arith.constant 1 : index
    %c1_136 = arith.constant 1 : index
    %215 = vector.load %arg11[%c0_134, %c1_135, %c1_136] : memref<2x20x180xf32, #tpu.memory_space<vmem>>, vector<2x16x128xf32>
    %216 = vector.broadcast %214 : f32 to vector<2x16x128xf32>
    %217 = arith.mulf %216, %215 : vector<2x16x128xf32>
    %218 = arith.addf %213, %217 : vector<2x16x128xf32>
    %c51 = arith.constant 51 : index
    %219 = memref.load %arg8[%c51] : memref<125xf32, #tpu.memory_space<smem>>
    %c0_137 = arith.constant 0 : index
    %c2_138 = arith.constant 2 : index
    %c1_139 = arith.constant 1 : index
    %220 = vector.load %arg11[%c0_137, %c2_138, %c1_139] : memref<2x20x180xf32, #tpu.memory_space<vmem>>, vector<2x16x128xf32>
    %221 = vector.broadcast %219 : f32 to vector<2x16x128xf32>
    %222 = arith.mulf %221, %220 : vector<2x16x128xf32>
    %223 = arith.addf %218, %222 : vector<2x16x128xf32>
    %c76 = arith.constant 76 : index
    %224 = memref.load %arg8[%c76] : memref<125xf32, #tpu.memory_space<smem>>
    %c0_140 = arith.constant 0 : index
    %c3_141 = arith.constant 3 : index
    %c1_142 = arith.constant 1 : index
    %225 = vector.load %arg11[%c0_140, %c3_141, %c1_142] : memref<2x20x180xf32, #tpu.memory_space<vmem>>, vector<2x16x128xf32>
    %226 = vector.broadcast %224 : f32 to vector<2x16x128xf32>
    %227 = arith.mulf %226, %225 : vector<2x16x128xf32>
    %228 = arith.addf %223, %227 : vector<2x16x128xf32>
    %c101 = arith.constant 101 : index
    %229 = memref.load %arg8[%c101] : memref<125xf32, #tpu.memory_space<smem>>
    %c0_143 = arith.constant 0 : index
    %c4_144 = arith.constant 4 : index
    %c1_145 = arith.constant 1 : index
    %230 = vector.load %arg11[%c0_143, %c4_144, %c1_145] : memref<2x20x180xf32, #tpu.memory_space<vmem>>, vector<2x16x128xf32>
    %231 = vector.broadcast %229 : f32 to vector<2x16x128xf32>
    %232 = arith.mulf %231, %230 : vector<2x16x128xf32>
    %233 = arith.addf %228, %232 : vector<2x16x128xf32>
    %c2_146 = arith.constant 2 : index
    %234 = memref.load %arg8[%c2_146] : memref<125xf32, #tpu.memory_space<smem>>
    %c0_147 = arith.constant 0 : index
    %c0_148 = arith.constant 0 : index
    %c2_149 = arith.constant 2 : index
    %235 = vector.load %arg11[%c0_147, %c0_148, %c2_149] : memref<2x20x180xf32, #tpu.memory_space<vmem>>, vector<2x16x128xf32>
    %236 = vector.broadcast %234 : f32 to vector<2x16x128xf32>
    %237 = arith.mulf %236, %235 : vector<2x16x128xf32>
    %238 = arith.addf %233, %237 : vector<2x16x128xf32>
    %c27_150 = arith.constant 27 : index
    %239 = memref.load %arg8[%c27_150] : memref<125xf32, #tpu.memory_space<smem>>
    %c0_151 = arith.constant 0 : index
    %c1_152 = arith.constant 1 : index
    %c2_153 = arith.constant 2 : index
    %240 = vector.load %arg11[%c0_151, %c1_152, %c2_153] : memref<2x20x180xf32, #tpu.memory_space<vmem>>, vector<2x16x128xf32>
    %241 = vector.broadcast %239 : f32 to vector<2x16x128xf32>
    %242 = arith.mulf %241, %240 : vector<2x16x128xf32>
    %243 = arith.addf %238, %242 : vector<2x16x128xf32>
    %c52 = arith.constant 52 : index
    %244 = memref.load %arg8[%c52] : memref<125xf32, #tpu.memory_space<smem>>
    %c0_154 = arith.constant 0 : index
    %c2_155 = arith.constant 2 : index
    %c2_156 = arith.constant 2 : index
    %245 = vector.load %arg11[%c0_154, %c2_155, %c2_156] : memref<2x20x180xf32, #tpu.memory_space<vmem>>, vector<2x16x128xf32>
    %246 = vector.broadcast %244 : f32 to vector<2x16x128xf32>
    %247 = arith.mulf %246, %245 : vector<2x16x128xf32>
    %248 = arith.addf %243, %247 : vector<2x16x128xf32>
    %c77 = arith.constant 77 : index
    %249 = memref.load %arg8[%c77] : memref<125xf32, #tpu.memory_space<smem>>
    %c0_157 = arith.constant 0 : index
    %c3_158 = arith.constant 3 : index
    %c2_159 = arith.constant 2 : index
    %250 = vector.load %arg11[%c0_157, %c3_158, %c2_159] : memref<2x20x180xf32, #tpu.memory_space<vmem>>, vector<2x16x128xf32>
    %251 = vector.broadcast %249 : f32 to vector<2x16x128xf32>
    %252 = arith.mulf %251, %250 : vector<2x16x128xf32>
    %253 = arith.addf %248, %252 : vector<2x16x128xf32>
    %c102 = arith.constant 102 : index
    %254 = memref.load %arg8[%c102] : memref<125xf32, #tpu.memory_space<smem>>
    %c0_160 = arith.constant 0 : index
    %c4_161 = arith.constant 4 : index
    %c2_162 = arith.constant 2 : index
    %255 = vector.load %arg11[%c0_160, %c4_161, %c2_162] : memref<2x20x180xf32, #tpu.memory_space<vmem>>, vector<2x16x128xf32>
    %256 = vector.broadcast %254 : f32 to vector<2x16x128xf32>
    %257 = arith.mulf %256, %255 : vector<2x16x128xf32>
    %258 = arith.addf %253, %257 : vector<2x16x128xf32>
    %c3_163 = arith.constant 3 : index
    %259 = memref.load %arg8[%c3_163] : memref<125xf32, #tpu.memory_space<smem>>
    %c0_164 = arith.constant 0 : index
    %c0_165 = arith.constant 0 : index
    %c3_166 = arith.constant 3 : index
    %260 = vector.load %arg11[%c0_164, %c0_165, %c3_166] : memref<2x20x180xf32, #tpu.memory_space<vmem>>, vector<2x16x128xf32>
    %261 = vector.broadcast %259 : f32 to vector<2x16x128xf32>
    %262 = arith.mulf %261, %260 : vector<2x16x128xf32>
    %263 = arith.addf %258, %262 : vector<2x16x128xf32>
    %c28 = arith.constant 28 : index
    %264 = memref.load %arg8[%c28] : memref<125xf32, #tpu.memory_space<smem>>
    %c0_167 = arith.constant 0 : index
    %c1_168 = arith.constant 1 : index
    %c3_169 = arith.constant 3 : index
    %265 = vector.load %arg11[%c0_167, %c1_168, %c3_169] : memref<2x20x180xf32, #tpu.memory_space<vmem>>, vector<2x16x128xf32>
    %266 = vector.broadcast %264 : f32 to vector<2x16x128xf32>
    %267 = arith.mulf %266, %265 : vector<2x16x128xf32>
    %268 = arith.addf %263, %267 : vector<2x16x128xf32>
    %c53 = arith.constant 53 : index
    %269 = memref.load %arg8[%c53] : memref<125xf32, #tpu.memory_space<smem>>
    %c0_170 = arith.constant 0 : index
    %c2_171 = arith.constant 2 : index
    %c3_172 = arith.constant 3 : index
    %270 = vector.load %arg11[%c0_170, %c2_171, %c3_172] : memref<2x20x180xf32, #tpu.memory_space<vmem>>, vector<2x16x128xf32>
    %271 = vector.broadcast %269 : f32 to vector<2x16x128xf32>
    %272 = arith.mulf %271, %270 : vector<2x16x128xf32>
    %273 = arith.addf %268, %272 : vector<2x16x128xf32>
    %c78 = arith.constant 78 : index
    %274 = memref.load %arg8[%c78] : memref<125xf32, #tpu.memory_space<smem>>
    %c0_173 = arith.constant 0 : index
    %c3_174 = arith.constant 3 : index
    %c3_175 = arith.constant 3 : index
    %275 = vector.load %arg11[%c0_173, %c3_174, %c3_175] : memref<2x20x180xf32, #tpu.memory_space<vmem>>, vector<2x16x128xf32>
    %276 = vector.broadcast %274 : f32 to vector<2x16x128xf32>
    %277 = arith.mulf %276, %275 : vector<2x16x128xf32>
    %278 = arith.addf %273, %277 : vector<2x16x128xf32>
    %c103 = arith.constant 103 : index
    %279 = memref.load %arg8[%c103] : memref<125xf32, #tpu.memory_space<smem>>
    %c0_176 = arith.constant 0 : index
    %c4_177 = arith.constant 4 : index
    %c3_178 = arith.constant 3 : index
    %280 = vector.load %arg11[%c0_176, %c4_177, %c3_178] : memref<2x20x180xf32, #tpu.memory_space<vmem>>, vector<2x16x128xf32>
    %281 = vector.broadcast %279 : f32 to vector<2x16x128xf32>
    %282 = arith.mulf %281, %280 : vector<2x16x128xf32>
    %283 = arith.addf %278, %282 : vector<2x16x128xf32>
    %c4_179 = arith.constant 4 : index
    %284 = memref.load %arg8[%c4_179] : memref<125xf32, #tpu.memory_space<smem>>
    %c0_180 = arith.constant 0 : index
    %c0_181 = arith.constant 0 : index
    %c4_182 = arith.constant 4 : index
    %285 = vector.load %arg11[%c0_180, %c0_181, %c4_182] : memref<2x20x180xf32, #tpu.memory_space<vmem>>, vector<2x16x128xf32>
    %286 = vector.broadcast %284 : f32 to vector<2x16x128xf32>
    %287 = arith.mulf %286, %285 : vector<2x16x128xf32>
    %288 = arith.addf %283, %287 : vector<2x16x128xf32>
    %c29 = arith.constant 29 : index
    %289 = memref.load %arg8[%c29] : memref<125xf32, #tpu.memory_space<smem>>
    %c0_183 = arith.constant 0 : index
    %c1_184 = arith.constant 1 : index
    %c4_185 = arith.constant 4 : index
    %290 = vector.load %arg11[%c0_183, %c1_184, %c4_185] : memref<2x20x180xf32, #tpu.memory_space<vmem>>, vector<2x16x128xf32>
    %291 = vector.broadcast %289 : f32 to vector<2x16x128xf32>
    %292 = arith.mulf %291, %290 : vector<2x16x128xf32>
    %293 = arith.addf %288, %292 : vector<2x16x128xf32>
    %c54 = arith.constant 54 : index
    %294 = memref.load %arg8[%c54] : memref<125xf32, #tpu.memory_space<smem>>
    %c0_186 = arith.constant 0 : index
    %c2_187 = arith.constant 2 : index
    %c4_188 = arith.constant 4 : index
    %295 = vector.load %arg11[%c0_186, %c2_187, %c4_188] : memref<2x20x180xf32, #tpu.memory_space<vmem>>, vector<2x16x128xf32>
    %296 = vector.broadcast %294 : f32 to vector<2x16x128xf32>
    %297 = arith.mulf %296, %295 : vector<2x16x128xf32>
    %298 = arith.addf %293, %297 : vector<2x16x128xf32>
    %c79 = arith.constant 79 : index
    %299 = memref.load %arg8[%c79] : memref<125xf32, #tpu.memory_space<smem>>
    %c0_189 = arith.constant 0 : index
    %c3_190 = arith.constant 3 : index
    %c4_191 = arith.constant 4 : index
    %300 = vector.load %arg11[%c0_189, %c3_190, %c4_191] : memref<2x20x180xf32, #tpu.memory_space<vmem>>, vector<2x16x128xf32>
    %301 = vector.broadcast %299 : f32 to vector<2x16x128xf32>
    %302 = arith.mulf %301, %300 : vector<2x16x128xf32>
    %303 = arith.addf %298, %302 : vector<2x16x128xf32>
    %c104 = arith.constant 104 : index
    %304 = memref.load %arg8[%c104] : memref<125xf32, #tpu.memory_space<smem>>
    %c0_192 = arith.constant 0 : index
    %c4_193 = arith.constant 4 : index
    %c4_194 = arith.constant 4 : index
    %305 = vector.load %arg11[%c0_192, %c4_193, %c4_194] : memref<2x20x180xf32, #tpu.memory_space<vmem>>, vector<2x16x128xf32>
    %306 = vector.broadcast %304 : f32 to vector<2x16x128xf32>
    %307 = arith.mulf %306, %305 : vector<2x16x128xf32>
    %308 = arith.addf %303, %307 : vector<2x16x128xf32>
    %c5_195 = arith.constant 5 : index
    %309 = memref.load %arg8[%c5_195] : memref<125xf32, #tpu.memory_space<smem>>
    %c0_196 = arith.constant 0 : index
    %c0_197 = arith.constant 0 : index
    %c12_198 = arith.constant 12 : index
    %310 = vector.load %arg11[%c0_196, %c0_197, %c12_198] : memref<2x20x180xf32, #tpu.memory_space<vmem>>, vector<2x16x128xf32>
    %311 = vector.broadcast %309 : f32 to vector<2x16x128xf32>
    %312 = arith.mulf %311, %310 : vector<2x16x128xf32>
    %313 = arith.addf %308, %312 : vector<2x16x128xf32>
    %c30 = arith.constant 30 : index
    %314 = memref.load %arg8[%c30] : memref<125xf32, #tpu.memory_space<smem>>
    %c0_199 = arith.constant 0 : index
    %c1_200 = arith.constant 1 : index
    %c12_201 = arith.constant 12 : index
    %315 = vector.load %arg11[%c0_199, %c1_200, %c12_201] : memref<2x20x180xf32, #tpu.memory_space<vmem>>, vector<2x16x128xf32>
    %316 = vector.broadcast %314 : f32 to vector<2x16x128xf32>
    %317 = arith.mulf %316, %315 : vector<2x16x128xf32>
    %318 = arith.addf %313, %317 : vector<2x16x128xf32>
    %c55 = arith.constant 55 : index
    %319 = memref.load %arg8[%c55] : memref<125xf32, #tpu.memory_space<smem>>
    %c0_202 = arith.constant 0 : index
    %c2_203 = arith.constant 2 : index
    %c12_204 = arith.constant 12 : index
    %320 = vector.load %arg11[%c0_202, %c2_203, %c12_204] : memref<2x20x180xf32, #tpu.memory_space<vmem>>, vector<2x16x128xf32>
    %321 = vector.broadcast %319 : f32 to vector<2x16x128xf32>
    %322 = arith.mulf %321, %320 : vector<2x16x128xf32>
    %323 = arith.addf %318, %322 : vector<2x16x128xf32>
    %c80 = arith.constant 80 : index
    %324 = memref.load %arg8[%c80] : memref<125xf32, #tpu.memory_space<smem>>
    %c0_205 = arith.constant 0 : index
    %c3_206 = arith.constant 3 : index
    %c12_207 = arith.constant 12 : index
    %325 = vector.load %arg11[%c0_205, %c3_206, %c12_207] : memref<2x20x180xf32, #tpu.memory_space<vmem>>, vector<2x16x128xf32>
    %326 = vector.broadcast %324 : f32 to vector<2x16x128xf32>
    %327 = arith.mulf %326, %325 : vector<2x16x128xf32>
    %328 = arith.addf %323, %327 : vector<2x16x128xf32>
    %c105 = arith.constant 105 : index
    %329 = memref.load %arg8[%c105] : memref<125xf32, #tpu.memory_space<smem>>
    %c0_208 = arith.constant 0 : index
    %c4_209 = arith.constant 4 : index
    %c12_210 = arith.constant 12 : index
    %330 = vector.load %arg11[%c0_208, %c4_209, %c12_210] : memref<2x20x180xf32, #tpu.memory_space<vmem>>, vector<2x16x128xf32>
    %331 = vector.broadcast %329 : f32 to vector<2x16x128xf32>
    %332 = arith.mulf %331, %330 : vector<2x16x128xf32>
    %333 = arith.addf %328, %332 : vector<2x16x128xf32>
    %c6_211 = arith.constant 6 : index
    %334 = memref.load %arg8[%c6_211] : memref<125xf32, #tpu.memory_space<smem>>
    %c0_212 = arith.constant 0 : index
    %c0_213 = arith.constant 0 : index
    %c13_214 = arith.constant 13 : index
    %335 = vector.load %arg11[%c0_212, %c0_213, %c13_214] : memref<2x20x180xf32, #tpu.memory_space<vmem>>, vector<2x16x128xf32>
    %336 = vector.broadcast %334 : f32 to vector<2x16x128xf32>
    %337 = arith.mulf %336, %335 : vector<2x16x128xf32>
    %338 = arith.addf %333, %337 : vector<2x16x128xf32>
    %c31 = arith.constant 31 : index
    %339 = memref.load %arg8[%c31] : memref<125xf32, #tpu.memory_space<smem>>
    %c0_215 = arith.constant 0 : index
    %c1_216 = arith.constant 1 : index
    %c13_217 = arith.constant 13 : index
    %340 = vector.load %arg11[%c0_215, %c1_216, %c13_217] : memref<2x20x180xf32, #tpu.memory_space<vmem>>, vector<2x16x128xf32>
    %341 = vector.broadcast %339 : f32 to vector<2x16x128xf32>
    %342 = arith.mulf %341, %340 : vector<2x16x128xf32>
    %343 = arith.addf %338, %342 : vector<2x16x128xf32>
    %c56 = arith.constant 56 : index
    %344 = memref.load %arg8[%c56] : memref<125xf32, #tpu.memory_space<smem>>
    %c0_218 = arith.constant 0 : index
    %c2_219 = arith.constant 2 : index
    %c13_220 = arith.constant 13 : index
    %345 = vector.load %arg11[%c0_218, %c2_219, %c13_220] : memref<2x20x180xf32, #tpu.memory_space<vmem>>, vector<2x16x128xf32>
    %346 = vector.broadcast %344 : f32 to vector<2x16x128xf32>
    %347 = arith.mulf %346, %345 : vector<2x16x128xf32>
    %348 = arith.addf %343, %347 : vector<2x16x128xf32>
    %c81 = arith.constant 81 : index
    %349 = memref.load %arg8[%c81] : memref<125xf32, #tpu.memory_space<smem>>
    %c0_221 = arith.constant 0 : index
    %c3_222 = arith.constant 3 : index
    %c13_223 = arith.constant 13 : index
    %350 = vector.load %arg11[%c0_221, %c3_222, %c13_223] : memref<2x20x180xf32, #tpu.memory_space<vmem>>, vector<2x16x128xf32>
    %351 = vector.broadcast %349 : f32 to vector<2x16x128xf32>
    %352 = arith.mulf %351, %350 : vector<2x16x128xf32>
    %353 = arith.addf %348, %352 : vector<2x16x128xf32>
    %c106 = arith.constant 106 : index
    %354 = memref.load %arg8[%c106] : memref<125xf32, #tpu.memory_space<smem>>
    %c0_224 = arith.constant 0 : index
    %c4_225 = arith.constant 4 : index
    %c13_226 = arith.constant 13 : index
    %355 = vector.load %arg11[%c0_224, %c4_225, %c13_226] : memref<2x20x180xf32, #tpu.memory_space<vmem>>, vector<2x16x128xf32>
    %356 = vector.broadcast %354 : f32 to vector<2x16x128xf32>
    %357 = arith.mulf %356, %355 : vector<2x16x128xf32>
    %358 = arith.addf %353, %357 : vector<2x16x128xf32>
    %c7_227 = arith.constant 7 : index
    %359 = memref.load %arg8[%c7_227] : memref<125xf32, #tpu.memory_space<smem>>
    %c0_228 = arith.constant 0 : index
    %c0_229 = arith.constant 0 : index
    %c14_230 = arith.constant 14 : index
    %360 = vector.load %arg11[%c0_228, %c0_229, %c14_230] : memref<2x20x180xf32, #tpu.memory_space<vmem>>, vector<2x16x128xf32>
    %361 = vector.broadcast %359 : f32 to vector<2x16x128xf32>
    %362 = arith.mulf %361, %360 : vector<2x16x128xf32>
    %363 = arith.addf %358, %362 : vector<2x16x128xf32>
    %c32 = arith.constant 32 : index
    %364 = memref.load %arg8[%c32] : memref<125xf32, #tpu.memory_space<smem>>
    %c0_231 = arith.constant 0 : index
    %c1_232 = arith.constant 1 : index
    %c14_233 = arith.constant 14 : index
    %365 = vector.load %arg11[%c0_231, %c1_232, %c14_233] : memref<2x20x180xf32, #tpu.memory_space<vmem>>, vector<2x16x128xf32>
    %366 = vector.broadcast %364 : f32 to vector<2x16x128xf32>
    %367 = arith.mulf %366, %365 : vector<2x16x128xf32>
    %368 = arith.addf %363, %367 : vector<2x16x128xf32>
    %c57 = arith.constant 57 : index
    %369 = memref.load %arg8[%c57] : memref<125xf32, #tpu.memory_space<smem>>
    %c0_234 = arith.constant 0 : index
    %c2_235 = arith.constant 2 : index
    %c14_236 = arith.constant 14 : index
    %370 = vector.load %arg11[%c0_234, %c2_235, %c14_236] : memref<2x20x180xf32, #tpu.memory_space<vmem>>, vector<2x16x128xf32>
    %371 = vector.broadcast %369 : f32 to vector<2x16x128xf32>
    %372 = arith.mulf %371, %370 : vector<2x16x128xf32>
    %373 = arith.addf %368, %372 : vector<2x16x128xf32>
    %c82 = arith.constant 82 : index
    %374 = memref.load %arg8[%c82] : memref<125xf32, #tpu.memory_space<smem>>
    %c0_237 = arith.constant 0 : index
    %c3_238 = arith.constant 3 : index
    %c14_239 = arith.constant 14 : index
    %375 = vector.load %arg11[%c0_237, %c3_238, %c14_239] : memref<2x20x180xf32, #tpu.memory_space<vmem>>, vector<2x16x128xf32>
    %376 = vector.broadcast %374 : f32 to vector<2x16x128xf32>
    %377 = arith.mulf %376, %375 : vector<2x16x128xf32>
    %378 = arith.addf %373, %377 : vector<2x16x128xf32>
    %c107 = arith.constant 107 : index
    %379 = memref.load %arg8[%c107] : memref<125xf32, #tpu.memory_space<smem>>
    %c0_240 = arith.constant 0 : index
    %c4_241 = arith.constant 4 : index
    %c14_242 = arith.constant 14 : index
    %380 = vector.load %arg11[%c0_240, %c4_241, %c14_242] : memref<2x20x180xf32, #tpu.memory_space<vmem>>, vector<2x16x128xf32>
    %381 = vector.broadcast %379 : f32 to vector<2x16x128xf32>
    %382 = arith.mulf %381, %380 : vector<2x16x128xf32>
    %383 = arith.addf %378, %382 : vector<2x16x128xf32>
    %c8_243 = arith.constant 8 : index
    %384 = memref.load %arg8[%c8_243] : memref<125xf32, #tpu.memory_space<smem>>
    %c0_244 = arith.constant 0 : index
    %c0_245 = arith.constant 0 : index
    %c15_246 = arith.constant 15 : index
    %385 = vector.load %arg11[%c0_244, %c0_245, %c15_246] : memref<2x20x180xf32, #tpu.memory_space<vmem>>, vector<2x16x128xf32>
    %386 = vector.broadcast %384 : f32 to vector<2x16x128xf32>
    %387 = arith.mulf %386, %385 : vector<2x16x128xf32>
    %388 = arith.addf %383, %387 : vector<2x16x128xf32>
    %c33 = arith.constant 33 : index
    %389 = memref.load %arg8[%c33] : memref<125xf32, #tpu.memory_space<smem>>
    %c0_247 = arith.constant 0 : index
    %c1_248 = arith.constant 1 : index
    %c15_249 = arith.constant 15 : index
    %390 = vector.load %arg11[%c0_247, %c1_248, %c15_249] : memref<2x20x180xf32, #tpu.memory_space<vmem>>, vector<2x16x128xf32>
    %391 = vector.broadcast %389 : f32 to vector<2x16x128xf32>
    %392 = arith.mulf %391, %390 : vector<2x16x128xf32>
    %393 = arith.addf %388, %392 : vector<2x16x128xf32>
    %c58 = arith.constant 58 : index
    %394 = memref.load %arg8[%c58] : memref<125xf32, #tpu.memory_space<smem>>
    %c0_250 = arith.constant 0 : index
    %c2_251 = arith.constant 2 : index
    %c15_252 = arith.constant 15 : index
    %395 = vector.load %arg11[%c0_250, %c2_251, %c15_252] : memref<2x20x180xf32, #tpu.memory_space<vmem>>, vector<2x16x128xf32>
    %396 = vector.broadcast %394 : f32 to vector<2x16x128xf32>
    %397 = arith.mulf %396, %395 : vector<2x16x128xf32>
    %398 = arith.addf %393, %397 : vector<2x16x128xf32>
    %c83 = arith.constant 83 : index
    %399 = memref.load %arg8[%c83] : memref<125xf32, #tpu.memory_space<smem>>
    %c0_253 = arith.constant 0 : index
    %c3_254 = arith.constant 3 : index
    %c15_255 = arith.constant 15 : index
    %400 = vector.load %arg11[%c0_253, %c3_254, %c15_255] : memref<2x20x180xf32, #tpu.memory_space<vmem>>, vector<2x16x128xf32>
    %401 = vector.broadcast %399 : f32 to vector<2x16x128xf32>
    %402 = arith.mulf %401, %400 : vector<2x16x128xf32>
    %403 = arith.addf %398, %402 : vector<2x16x128xf32>
    %c108 = arith.constant 108 : index
    %404 = memref.load %arg8[%c108] : memref<125xf32, #tpu.memory_space<smem>>
    %c0_256 = arith.constant 0 : index
    %c4_257 = arith.constant 4 : index
    %c15_258 = arith.constant 15 : index
    %405 = vector.load %arg11[%c0_256, %c4_257, %c15_258] : memref<2x20x180xf32, #tpu.memory_space<vmem>>, vector<2x16x128xf32>
    %406 = vector.broadcast %404 : f32 to vector<2x16x128xf32>
    %407 = arith.mulf %406, %405 : vector<2x16x128xf32>
    %408 = arith.addf %403, %407 : vector<2x16x128xf32>
    %c9_259 = arith.constant 9 : index
    %409 = memref.load %arg8[%c9_259] : memref<125xf32, #tpu.memory_space<smem>>
    %c0_260 = arith.constant 0 : index
    %c0_261 = arith.constant 0 : index
    %c16_262 = arith.constant 16 : index
    %410 = vector.load %arg11[%c0_260, %c0_261, %c16_262] : memref<2x20x180xf32, #tpu.memory_space<vmem>>, vector<2x16x128xf32>
    %411 = vector.broadcast %409 : f32 to vector<2x16x128xf32>
    %412 = arith.mulf %411, %410 : vector<2x16x128xf32>
    %413 = arith.addf %408, %412 : vector<2x16x128xf32>
    %c34 = arith.constant 34 : index
    %414 = memref.load %arg8[%c34] : memref<125xf32, #tpu.memory_space<smem>>
    %c0_263 = arith.constant 0 : index
    %c1_264 = arith.constant 1 : index
    %c16_265 = arith.constant 16 : index
    %415 = vector.load %arg11[%c0_263, %c1_264, %c16_265] : memref<2x20x180xf32, #tpu.memory_space<vmem>>, vector<2x16x128xf32>
    %416 = vector.broadcast %414 : f32 to vector<2x16x128xf32>
    %417 = arith.mulf %416, %415 : vector<2x16x128xf32>
    %418 = arith.addf %413, %417 : vector<2x16x128xf32>
    %c59 = arith.constant 59 : index
    %419 = memref.load %arg8[%c59] : memref<125xf32, #tpu.memory_space<smem>>
    %c0_266 = arith.constant 0 : index
    %c2_267 = arith.constant 2 : index
    %c16_268 = arith.constant 16 : index
    %420 = vector.load %arg11[%c0_266, %c2_267, %c16_268] : memref<2x20x180xf32, #tpu.memory_space<vmem>>, vector<2x16x128xf32>
    %421 = vector.broadcast %419 : f32 to vector<2x16x128xf32>
    %422 = arith.mulf %421, %420 : vector<2x16x128xf32>
    %423 = arith.addf %418, %422 : vector<2x16x128xf32>
    %c84 = arith.constant 84 : index
    %424 = memref.load %arg8[%c84] : memref<125xf32, #tpu.memory_space<smem>>
    %c0_269 = arith.constant 0 : index
    %c3_270 = arith.constant 3 : index
    %c16_271 = arith.constant 16 : index
    %425 = vector.load %arg11[%c0_269, %c3_270, %c16_271] : memref<2x20x180xf32, #tpu.memory_space<vmem>>, vector<2x16x128xf32>
    %426 = vector.broadcast %424 : f32 to vector<2x16x128xf32>
    %427 = arith.mulf %426, %425 : vector<2x16x128xf32>
    %428 = arith.addf %423, %427 : vector<2x16x128xf32>
    %c109 = arith.constant 109 : index
    %429 = memref.load %arg8[%c109] : memref<125xf32, #tpu.memory_space<smem>>
    %c0_272 = arith.constant 0 : index
    %c4_273 = arith.constant 4 : index
    %c16_274 = arith.constant 16 : index
    %430 = vector.load %arg11[%c0_272, %c4_273, %c16_274] : memref<2x20x180xf32, #tpu.memory_space<vmem>>, vector<2x16x128xf32>
    %431 = vector.broadcast %429 : f32 to vector<2x16x128xf32>
    %432 = arith.mulf %431, %430 : vector<2x16x128xf32>
    %433 = arith.addf %428, %432 : vector<2x16x128xf32>
    %c10_275 = arith.constant 10 : index
    %434 = memref.load %arg8[%c10_275] : memref<125xf32, #tpu.memory_space<smem>>
    %c0_276 = arith.constant 0 : index
    %c0_277 = arith.constant 0 : index
    %c24_278 = arith.constant 24 : index
    %435 = vector.load %arg11[%c0_276, %c0_277, %c24_278] : memref<2x20x180xf32, #tpu.memory_space<vmem>>, vector<2x16x128xf32>
    %436 = vector.broadcast %434 : f32 to vector<2x16x128xf32>
    %437 = arith.mulf %436, %435 : vector<2x16x128xf32>
    %438 = arith.addf %433, %437 : vector<2x16x128xf32>
    %c35 = arith.constant 35 : index
    %439 = memref.load %arg8[%c35] : memref<125xf32, #tpu.memory_space<smem>>
    %c0_279 = arith.constant 0 : index
    %c1_280 = arith.constant 1 : index
    %c24_281 = arith.constant 24 : index
    %440 = vector.load %arg11[%c0_279, %c1_280, %c24_281] : memref<2x20x180xf32, #tpu.memory_space<vmem>>, vector<2x16x128xf32>
    %441 = vector.broadcast %439 : f32 to vector<2x16x128xf32>
    %442 = arith.mulf %441, %440 : vector<2x16x128xf32>
    %443 = arith.addf %438, %442 : vector<2x16x128xf32>
    %c60 = arith.constant 60 : index
    %444 = memref.load %arg8[%c60] : memref<125xf32, #tpu.memory_space<smem>>
    %c0_282 = arith.constant 0 : index
    %c2_283 = arith.constant 2 : index
    %c24_284 = arith.constant 24 : index
    %445 = vector.load %arg11[%c0_282, %c2_283, %c24_284] : memref<2x20x180xf32, #tpu.memory_space<vmem>>, vector<2x16x128xf32>
    %446 = vector.broadcast %444 : f32 to vector<2x16x128xf32>
    %447 = arith.mulf %446, %445 : vector<2x16x128xf32>
    %448 = arith.addf %443, %447 : vector<2x16x128xf32>
    %c85 = arith.constant 85 : index
    %449 = memref.load %arg8[%c85] : memref<125xf32, #tpu.memory_space<smem>>
    %c0_285 = arith.constant 0 : index
    %c3_286 = arith.constant 3 : index
    %c24_287 = arith.constant 24 : index
    %450 = vector.load %arg11[%c0_285, %c3_286, %c24_287] : memref<2x20x180xf32, #tpu.memory_space<vmem>>, vector<2x16x128xf32>
    %451 = vector.broadcast %449 : f32 to vector<2x16x128xf32>
    %452 = arith.mulf %451, %450 : vector<2x16x128xf32>
    %453 = arith.addf %448, %452 : vector<2x16x128xf32>
    %c110 = arith.constant 110 : index
    %454 = memref.load %arg8[%c110] : memref<125xf32, #tpu.memory_space<smem>>
    %c0_288 = arith.constant 0 : index
    %c4_289 = arith.constant 4 : index
    %c24_290 = arith.constant 24 : index
    %455 = vector.load %arg11[%c0_288, %c4_289, %c24_290] : memref<2x20x180xf32, #tpu.memory_space<vmem>>, vector<2x16x128xf32>
    %456 = vector.broadcast %454 : f32 to vector<2x16x128xf32>
    %457 = arith.mulf %456, %455 : vector<2x16x128xf32>
    %458 = arith.addf %453, %457 : vector<2x16x128xf32>
    %c11_291 = arith.constant 11 : index
    %459 = memref.load %arg8[%c11_291] : memref<125xf32, #tpu.memory_space<smem>>
    %c0_292 = arith.constant 0 : index
    %c0_293 = arith.constant 0 : index
    %c25_294 = arith.constant 25 : index
    %460 = vector.load %arg11[%c0_292, %c0_293, %c25_294] : memref<2x20x180xf32, #tpu.memory_space<vmem>>, vector<2x16x128xf32>
    %461 = vector.broadcast %459 : f32 to vector<2x16x128xf32>
    %462 = arith.mulf %461, %460 : vector<2x16x128xf32>
    %463 = arith.addf %458, %462 : vector<2x16x128xf32>
    %c36 = arith.constant 36 : index
    %464 = memref.load %arg8[%c36] : memref<125xf32, #tpu.memory_space<smem>>
    %c0_295 = arith.constant 0 : index
    %c1_296 = arith.constant 1 : index
    %c25_297 = arith.constant 25 : index
    %465 = vector.load %arg11[%c0_295, %c1_296, %c25_297] : memref<2x20x180xf32, #tpu.memory_space<vmem>>, vector<2x16x128xf32>
    %466 = vector.broadcast %464 : f32 to vector<2x16x128xf32>
    %467 = arith.mulf %466, %465 : vector<2x16x128xf32>
    %468 = arith.addf %463, %467 : vector<2x16x128xf32>
    %c61 = arith.constant 61 : index
    %469 = memref.load %arg8[%c61] : memref<125xf32, #tpu.memory_space<smem>>
    %c0_298 = arith.constant 0 : index
    %c2_299 = arith.constant 2 : index
    %c25_300 = arith.constant 25 : index
    %470 = vector.load %arg11[%c0_298, %c2_299, %c25_300] : memref<2x20x180xf32, #tpu.memory_space<vmem>>, vector<2x16x128xf32>
    %471 = vector.broadcast %469 : f32 to vector<2x16x128xf32>
    %472 = arith.mulf %471, %470 : vector<2x16x128xf32>
    %473 = arith.addf %468, %472 : vector<2x16x128xf32>
    %c86 = arith.constant 86 : index
    %474 = memref.load %arg8[%c86] : memref<125xf32, #tpu.memory_space<smem>>
    %c0_301 = arith.constant 0 : index
    %c3_302 = arith.constant 3 : index
    %c25_303 = arith.constant 25 : index
    %475 = vector.load %arg11[%c0_301, %c3_302, %c25_303] : memref<2x20x180xf32, #tpu.memory_space<vmem>>, vector<2x16x128xf32>
    %476 = vector.broadcast %474 : f32 to vector<2x16x128xf32>
    %477 = arith.mulf %476, %475 : vector<2x16x128xf32>
    %478 = arith.addf %473, %477 : vector<2x16x128xf32>
    %c111 = arith.constant 111 : index
    %479 = memref.load %arg8[%c111] : memref<125xf32, #tpu.memory_space<smem>>
    %c0_304 = arith.constant 0 : index
    %c4_305 = arith.constant 4 : index
    %c25_306 = arith.constant 25 : index
    %480 = vector.load %arg11[%c0_304, %c4_305, %c25_306] : memref<2x20x180xf32, #tpu.memory_space<vmem>>, vector<2x16x128xf32>
    %481 = vector.broadcast %479 : f32 to vector<2x16x128xf32>
    %482 = arith.mulf %481, %480 : vector<2x16x128xf32>
    %483 = arith.addf %478, %482 : vector<2x16x128xf32>
    %c12_307 = arith.constant 12 : index
    %484 = memref.load %arg8[%c12_307] : memref<125xf32, #tpu.memory_space<smem>>
    %c0_308 = arith.constant 0 : index
    %c0_309 = arith.constant 0 : index
    %c26_310 = arith.constant 26 : index
    %485 = vector.load %arg11[%c0_308, %c0_309, %c26_310] : memref<2x20x180xf32, #tpu.memory_space<vmem>>, vector<2x16x128xf32>
    %486 = vector.broadcast %484 : f32 to vector<2x16x128xf32>
    %487 = arith.mulf %486, %485 : vector<2x16x128xf32>
    %488 = arith.addf %483, %487 : vector<2x16x128xf32>
    %c37_311 = arith.constant 37 : index
    %489 = memref.load %arg8[%c37_311] : memref<125xf32, #tpu.memory_space<smem>>
    %c0_312 = arith.constant 0 : index
    %c1_313 = arith.constant 1 : index
    %c26_314 = arith.constant 26 : index
    %490 = vector.load %arg11[%c0_312, %c1_313, %c26_314] : memref<2x20x180xf32, #tpu.memory_space<vmem>>, vector<2x16x128xf32>
    %491 = vector.broadcast %489 : f32 to vector<2x16x128xf32>
    %492 = arith.mulf %491, %490 : vector<2x16x128xf32>
    %493 = arith.addf %488, %492 : vector<2x16x128xf32>
    %c62 = arith.constant 62 : index
    %494 = memref.load %arg8[%c62] : memref<125xf32, #tpu.memory_space<smem>>
    %c0_315 = arith.constant 0 : index
    %c2_316 = arith.constant 2 : index
    %c26_317 = arith.constant 26 : index
    %495 = vector.load %arg11[%c0_315, %c2_316, %c26_317] : memref<2x20x180xf32, #tpu.memory_space<vmem>>, vector<2x16x128xf32>
    %496 = vector.broadcast %494 : f32 to vector<2x16x128xf32>
    %497 = arith.mulf %496, %495 : vector<2x16x128xf32>
    %498 = arith.addf %493, %497 : vector<2x16x128xf32>
    %c87 = arith.constant 87 : index
    %499 = memref.load %arg8[%c87] : memref<125xf32, #tpu.memory_space<smem>>
    %c0_318 = arith.constant 0 : index
    %c3_319 = arith.constant 3 : index
    %c26_320 = arith.constant 26 : index
    %500 = vector.load %arg11[%c0_318, %c3_319, %c26_320] : memref<2x20x180xf32, #tpu.memory_space<vmem>>, vector<2x16x128xf32>
    %501 = vector.broadcast %499 : f32 to vector<2x16x128xf32>
    %502 = arith.mulf %501, %500 : vector<2x16x128xf32>
    %503 = arith.addf %498, %502 : vector<2x16x128xf32>
    %c112 = arith.constant 112 : index
    %504 = memref.load %arg8[%c112] : memref<125xf32, #tpu.memory_space<smem>>
    %c0_321 = arith.constant 0 : index
    %c4_322 = arith.constant 4 : index
    %c26_323 = arith.constant 26 : index
    %505 = vector.load %arg11[%c0_321, %c4_322, %c26_323] : memref<2x20x180xf32, #tpu.memory_space<vmem>>, vector<2x16x128xf32>
    %506 = vector.broadcast %504 : f32 to vector<2x16x128xf32>
    %507 = arith.mulf %506, %505 : vector<2x16x128xf32>
    %508 = arith.addf %503, %507 : vector<2x16x128xf32>
    %c13_324 = arith.constant 13 : index
    %509 = memref.load %arg8[%c13_324] : memref<125xf32, #tpu.memory_space<smem>>
    %c0_325 = arith.constant 0 : index
    %c0_326 = arith.constant 0 : index
    %c27_327 = arith.constant 27 : index
    %510 = vector.load %arg11[%c0_325, %c0_326, %c27_327] : memref<2x20x180xf32, #tpu.memory_space<vmem>>, vector<2x16x128xf32>
    %511 = vector.broadcast %509 : f32 to vector<2x16x128xf32>
    %512 = arith.mulf %511, %510 : vector<2x16x128xf32>
    %513 = arith.addf %508, %512 : vector<2x16x128xf32>
    %c38_328 = arith.constant 38 : index
    %514 = memref.load %arg8[%c38_328] : memref<125xf32, #tpu.memory_space<smem>>
    %c0_329 = arith.constant 0 : index
    %c1_330 = arith.constant 1 : index
    %c27_331 = arith.constant 27 : index
    %515 = vector.load %arg11[%c0_329, %c1_330, %c27_331] : memref<2x20x180xf32, #tpu.memory_space<vmem>>, vector<2x16x128xf32>
    %516 = vector.broadcast %514 : f32 to vector<2x16x128xf32>
    %517 = arith.mulf %516, %515 : vector<2x16x128xf32>
    %518 = arith.addf %513, %517 : vector<2x16x128xf32>
    %c63 = arith.constant 63 : index
    %519 = memref.load %arg8[%c63] : memref<125xf32, #tpu.memory_space<smem>>
    %c0_332 = arith.constant 0 : index
    %c2_333 = arith.constant 2 : index
    %c27_334 = arith.constant 27 : index
    %520 = vector.load %arg11[%c0_332, %c2_333, %c27_334] : memref<2x20x180xf32, #tpu.memory_space<vmem>>, vector<2x16x128xf32>
    %521 = vector.broadcast %519 : f32 to vector<2x16x128xf32>
    %522 = arith.mulf %521, %520 : vector<2x16x128xf32>
    %523 = arith.addf %518, %522 : vector<2x16x128xf32>
    %c88 = arith.constant 88 : index
    %524 = memref.load %arg8[%c88] : memref<125xf32, #tpu.memory_space<smem>>
    %c0_335 = arith.constant 0 : index
    %c3_336 = arith.constant 3 : index
    %c27_337 = arith.constant 27 : index
    %525 = vector.load %arg11[%c0_335, %c3_336, %c27_337] : memref<2x20x180xf32, #tpu.memory_space<vmem>>, vector<2x16x128xf32>
    %526 = vector.broadcast %524 : f32 to vector<2x16x128xf32>
    %527 = arith.mulf %526, %525 : vector<2x16x128xf32>
    %528 = arith.addf %523, %527 : vector<2x16x128xf32>
    %c113 = arith.constant 113 : index
    %529 = memref.load %arg8[%c113] : memref<125xf32, #tpu.memory_space<smem>>
    %c0_338 = arith.constant 0 : index
    %c4_339 = arith.constant 4 : index
    %c27_340 = arith.constant 27 : index
    %530 = vector.load %arg11[%c0_338, %c4_339, %c27_340] : memref<2x20x180xf32, #tpu.memory_space<vmem>>, vector<2x16x128xf32>
    %531 = vector.broadcast %529 : f32 to vector<2x16x128xf32>
    %532 = arith.mulf %531, %530 : vector<2x16x128xf32>
    %533 = arith.addf %528, %532 : vector<2x16x128xf32>
    %c14_341 = arith.constant 14 : index
    %534 = memref.load %arg8[%c14_341] : memref<125xf32, #tpu.memory_space<smem>>
    %c0_342 = arith.constant 0 : index
    %c0_343 = arith.constant 0 : index
    %c28_344 = arith.constant 28 : index
    %535 = vector.load %arg11[%c0_342, %c0_343, %c28_344] : memref<2x20x180xf32, #tpu.memory_space<vmem>>, vector<2x16x128xf32>
    %536 = vector.broadcast %534 : f32 to vector<2x16x128xf32>
    %537 = arith.mulf %536, %535 : vector<2x16x128xf32>
    %538 = arith.addf %533, %537 : vector<2x16x128xf32>
    %c39_345 = arith.constant 39 : index
    %539 = memref.load %arg8[%c39_345] : memref<125xf32, #tpu.memory_space<smem>>
    %c0_346 = arith.constant 0 : index
    %c1_347 = arith.constant 1 : index
    %c28_348 = arith.constant 28 : index
    %540 = vector.load %arg11[%c0_346, %c1_347, %c28_348] : memref<2x20x180xf32, #tpu.memory_space<vmem>>, vector<2x16x128xf32>
    %541 = vector.broadcast %539 : f32 to vector<2x16x128xf32>
    %542 = arith.mulf %541, %540 : vector<2x16x128xf32>
    %543 = arith.addf %538, %542 : vector<2x16x128xf32>
    %c64 = arith.constant 64 : index
    %544 = memref.load %arg8[%c64] : memref<125xf32, #tpu.memory_space<smem>>
    %c0_349 = arith.constant 0 : index
    %c2_350 = arith.constant 2 : index
    %c28_351 = arith.constant 28 : index
    %545 = vector.load %arg11[%c0_349, %c2_350, %c28_351] : memref<2x20x180xf32, #tpu.memory_space<vmem>>, vector<2x16x128xf32>
    %546 = vector.broadcast %544 : f32 to vector<2x16x128xf32>
    %547 = arith.mulf %546, %545 : vector<2x16x128xf32>
    %548 = arith.addf %543, %547 : vector<2x16x128xf32>
    %c89 = arith.constant 89 : index
    %549 = memref.load %arg8[%c89] : memref<125xf32, #tpu.memory_space<smem>>
    %c0_352 = arith.constant 0 : index
    %c3_353 = arith.constant 3 : index
    %c28_354 = arith.constant 28 : index
    %550 = vector.load %arg11[%c0_352, %c3_353, %c28_354] : memref<2x20x180xf32, #tpu.memory_space<vmem>>, vector<2x16x128xf32>
    %551 = vector.broadcast %549 : f32 to vector<2x16x128xf32>
    %552 = arith.mulf %551, %550 : vector<2x16x128xf32>
    %553 = arith.addf %548, %552 : vector<2x16x128xf32>
    %c114 = arith.constant 114 : index
    %554 = memref.load %arg8[%c114] : memref<125xf32, #tpu.memory_space<smem>>
    %c0_355 = arith.constant 0 : index
    %c4_356 = arith.constant 4 : index
    %c28_357 = arith.constant 28 : index
    %555 = vector.load %arg11[%c0_355, %c4_356, %c28_357] : memref<2x20x180xf32, #tpu.memory_space<vmem>>, vector<2x16x128xf32>
    %556 = vector.broadcast %554 : f32 to vector<2x16x128xf32>
    %557 = arith.mulf %556, %555 : vector<2x16x128xf32>
    %558 = arith.addf %553, %557 : vector<2x16x128xf32>
    %c15_358 = arith.constant 15 : index
    %559 = memref.load %arg8[%c15_358] : memref<125xf32, #tpu.memory_space<smem>>
    %c0_359 = arith.constant 0 : index
    %c0_360 = arith.constant 0 : index
    %c36_361 = arith.constant 36 : index
    %560 = vector.load %arg11[%c0_359, %c0_360, %c36_361] : memref<2x20x180xf32, #tpu.memory_space<vmem>>, vector<2x16x128xf32>
    %561 = vector.broadcast %559 : f32 to vector<2x16x128xf32>
    %562 = arith.mulf %561, %560 : vector<2x16x128xf32>
    %563 = arith.addf %558, %562 : vector<2x16x128xf32>
    %c40 = arith.constant 40 : index
    %564 = memref.load %arg8[%c40] : memref<125xf32, #tpu.memory_space<smem>>
    %c0_362 = arith.constant 0 : index
    %c1_363 = arith.constant 1 : index
    %c36_364 = arith.constant 36 : index
    %565 = vector.load %arg11[%c0_362, %c1_363, %c36_364] : memref<2x20x180xf32, #tpu.memory_space<vmem>>, vector<2x16x128xf32>
    %566 = vector.broadcast %564 : f32 to vector<2x16x128xf32>
    %567 = arith.mulf %566, %565 : vector<2x16x128xf32>
    %568 = arith.addf %563, %567 : vector<2x16x128xf32>
    %c65 = arith.constant 65 : index
    %569 = memref.load %arg8[%c65] : memref<125xf32, #tpu.memory_space<smem>>
    %c0_365 = arith.constant 0 : index
    %c2_366 = arith.constant 2 : index
    %c36_367 = arith.constant 36 : index
    %570 = vector.load %arg11[%c0_365, %c2_366, %c36_367] : memref<2x20x180xf32, #tpu.memory_space<vmem>>, vector<2x16x128xf32>
    %571 = vector.broadcast %569 : f32 to vector<2x16x128xf32>
    %572 = arith.mulf %571, %570 : vector<2x16x128xf32>
    %573 = arith.addf %568, %572 : vector<2x16x128xf32>
    %c90 = arith.constant 90 : index
    %574 = memref.load %arg8[%c90] : memref<125xf32, #tpu.memory_space<smem>>
    %c0_368 = arith.constant 0 : index
    %c3_369 = arith.constant 3 : index
    %c36_370 = arith.constant 36 : index
    %575 = vector.load %arg11[%c0_368, %c3_369, %c36_370] : memref<2x20x180xf32, #tpu.memory_space<vmem>>, vector<2x16x128xf32>
    %576 = vector.broadcast %574 : f32 to vector<2x16x128xf32>
    %577 = arith.mulf %576, %575 : vector<2x16x128xf32>
    %578 = arith.addf %573, %577 : vector<2x16x128xf32>
    %c115 = arith.constant 115 : index
    %579 = memref.load %arg8[%c115] : memref<125xf32, #tpu.memory_space<smem>>
    %c0_371 = arith.constant 0 : index
    %c4_372 = arith.constant 4 : index
    %c36_373 = arith.constant 36 : index
    %580 = vector.load %arg11[%c0_371, %c4_372, %c36_373] : memref<2x20x180xf32, #tpu.memory_space<vmem>>, vector<2x16x128xf32>
    %581 = vector.broadcast %579 : f32 to vector<2x16x128xf32>
    %582 = arith.mulf %581, %580 : vector<2x16x128xf32>
    %583 = arith.addf %578, %582 : vector<2x16x128xf32>
    %c16_374 = arith.constant 16 : index
    %584 = memref.load %arg8[%c16_374] : memref<125xf32, #tpu.memory_space<smem>>
    %c0_375 = arith.constant 0 : index
    %c0_376 = arith.constant 0 : index
    %c37_377 = arith.constant 37 : index
    %585 = vector.load %arg11[%c0_375, %c0_376, %c37_377] : memref<2x20x180xf32, #tpu.memory_space<vmem>>, vector<2x16x128xf32>
    %586 = vector.broadcast %584 : f32 to vector<2x16x128xf32>
    %587 = arith.mulf %586, %585 : vector<2x16x128xf32>
    %588 = arith.addf %583, %587 : vector<2x16x128xf32>
    %c41 = arith.constant 41 : index
    %589 = memref.load %arg8[%c41] : memref<125xf32, #tpu.memory_space<smem>>
    %c0_378 = arith.constant 0 : index
    %c1_379 = arith.constant 1 : index
    %c37_380 = arith.constant 37 : index
    %590 = vector.load %arg11[%c0_378, %c1_379, %c37_380] : memref<2x20x180xf32, #tpu.memory_space<vmem>>, vector<2x16x128xf32>
    %591 = vector.broadcast %589 : f32 to vector<2x16x128xf32>
    %592 = arith.mulf %591, %590 : vector<2x16x128xf32>
    %593 = arith.addf %588, %592 : vector<2x16x128xf32>
    %c66 = arith.constant 66 : index
    %594 = memref.load %arg8[%c66] : memref<125xf32, #tpu.memory_space<smem>>
    %c0_381 = arith.constant 0 : index
    %c2_382 = arith.constant 2 : index
    %c37_383 = arith.constant 37 : index
    %595 = vector.load %arg11[%c0_381, %c2_382, %c37_383] : memref<2x20x180xf32, #tpu.memory_space<vmem>>, vector<2x16x128xf32>
    %596 = vector.broadcast %594 : f32 to vector<2x16x128xf32>
    %597 = arith.mulf %596, %595 : vector<2x16x128xf32>
    %598 = arith.addf %593, %597 : vector<2x16x128xf32>
    %c91 = arith.constant 91 : index
    %599 = memref.load %arg8[%c91] : memref<125xf32, #tpu.memory_space<smem>>
    %c0_384 = arith.constant 0 : index
    %c3_385 = arith.constant 3 : index
    %c37_386 = arith.constant 37 : index
    %600 = vector.load %arg11[%c0_384, %c3_385, %c37_386] : memref<2x20x180xf32, #tpu.memory_space<vmem>>, vector<2x16x128xf32>
    %601 = vector.broadcast %599 : f32 to vector<2x16x128xf32>
    %602 = arith.mulf %601, %600 : vector<2x16x128xf32>
    %603 = arith.addf %598, %602 : vector<2x16x128xf32>
    %c116 = arith.constant 116 : index
    %604 = memref.load %arg8[%c116] : memref<125xf32, #tpu.memory_space<smem>>
    %c0_387 = arith.constant 0 : index
    %c4_388 = arith.constant 4 : index
    %c37_389 = arith.constant 37 : index
    %605 = vector.load %arg11[%c0_387, %c4_388, %c37_389] : memref<2x20x180xf32, #tpu.memory_space<vmem>>, vector<2x16x128xf32>
    %606 = vector.broadcast %604 : f32 to vector<2x16x128xf32>
    %607 = arith.mulf %606, %605 : vector<2x16x128xf32>
    %608 = arith.addf %603, %607 : vector<2x16x128xf32>
    %c17_390 = arith.constant 17 : index
    %609 = memref.load %arg8[%c17_390] : memref<125xf32, #tpu.memory_space<smem>>
    %c0_391 = arith.constant 0 : index
    %c0_392 = arith.constant 0 : index
    %c38_393 = arith.constant 38 : index
    %610 = vector.load %arg11[%c0_391, %c0_392, %c38_393] : memref<2x20x180xf32, #tpu.memory_space<vmem>>, vector<2x16x128xf32>
    %611 = vector.broadcast %609 : f32 to vector<2x16x128xf32>
    %612 = arith.mulf %611, %610 : vector<2x16x128xf32>
    %613 = arith.addf %608, %612 : vector<2x16x128xf32>
    %c42 = arith.constant 42 : index
    %614 = memref.load %arg8[%c42] : memref<125xf32, #tpu.memory_space<smem>>
    %c0_394 = arith.constant 0 : index
    %c1_395 = arith.constant 1 : index
    %c38_396 = arith.constant 38 : index
    %615 = vector.load %arg11[%c0_394, %c1_395, %c38_396] : memref<2x20x180xf32, #tpu.memory_space<vmem>>, vector<2x16x128xf32>
    %616 = vector.broadcast %614 : f32 to vector<2x16x128xf32>
    %617 = arith.mulf %616, %615 : vector<2x16x128xf32>
    %618 = arith.addf %613, %617 : vector<2x16x128xf32>
    %c67 = arith.constant 67 : index
    %619 = memref.load %arg8[%c67] : memref<125xf32, #tpu.memory_space<smem>>
    %c0_397 = arith.constant 0 : index
    %c2_398 = arith.constant 2 : index
    %c38_399 = arith.constant 38 : index
    %620 = vector.load %arg11[%c0_397, %c2_398, %c38_399] : memref<2x20x180xf32, #tpu.memory_space<vmem>>, vector<2x16x128xf32>
    %621 = vector.broadcast %619 : f32 to vector<2x16x128xf32>
    %622 = arith.mulf %621, %620 : vector<2x16x128xf32>
    %623 = arith.addf %618, %622 : vector<2x16x128xf32>
    %c92 = arith.constant 92 : index
    %624 = memref.load %arg8[%c92] : memref<125xf32, #tpu.memory_space<smem>>
    %c0_400 = arith.constant 0 : index
    %c3_401 = arith.constant 3 : index
    %c38_402 = arith.constant 38 : index
    %625 = vector.load %arg11[%c0_400, %c3_401, %c38_402] : memref<2x20x180xf32, #tpu.memory_space<vmem>>, vector<2x16x128xf32>
    %626 = vector.broadcast %624 : f32 to vector<2x16x128xf32>
    %627 = arith.mulf %626, %625 : vector<2x16x128xf32>
    %628 = arith.addf %623, %627 : vector<2x16x128xf32>
    %c117 = arith.constant 117 : index
    %629 = memref.load %arg8[%c117] : memref<125xf32, #tpu.memory_space<smem>>
    %c0_403 = arith.constant 0 : index
    %c4_404 = arith.constant 4 : index
    %c38_405 = arith.constant 38 : index
    %630 = vector.load %arg11[%c0_403, %c4_404, %c38_405] : memref<2x20x180xf32, #tpu.memory_space<vmem>>, vector<2x16x128xf32>
    %631 = vector.broadcast %629 : f32 to vector<2x16x128xf32>
    %632 = arith.mulf %631, %630 : vector<2x16x128xf32>
    %633 = arith.addf %628, %632 : vector<2x16x128xf32>
    %c18_406 = arith.constant 18 : index
    %634 = memref.load %arg8[%c18_406] : memref<125xf32, #tpu.memory_space<smem>>
    %c0_407 = arith.constant 0 : index
    %c0_408 = arith.constant 0 : index
    %c39_409 = arith.constant 39 : index
    %635 = vector.load %arg11[%c0_407, %c0_408, %c39_409] : memref<2x20x180xf32, #tpu.memory_space<vmem>>, vector<2x16x128xf32>
    %636 = vector.broadcast %634 : f32 to vector<2x16x128xf32>
    %637 = arith.mulf %636, %635 : vector<2x16x128xf32>
    %638 = arith.addf %633, %637 : vector<2x16x128xf32>
    %c43 = arith.constant 43 : index
    %639 = memref.load %arg8[%c43] : memref<125xf32, #tpu.memory_space<smem>>
    %c0_410 = arith.constant 0 : index
    %c1_411 = arith.constant 1 : index
    %c39_412 = arith.constant 39 : index
    %640 = vector.load %arg11[%c0_410, %c1_411, %c39_412] : memref<2x20x180xf32, #tpu.memory_space<vmem>>, vector<2x16x128xf32>
    %641 = vector.broadcast %639 : f32 to vector<2x16x128xf32>
    %642 = arith.mulf %641, %640 : vector<2x16x128xf32>
    %643 = arith.addf %638, %642 : vector<2x16x128xf32>
    %c68 = arith.constant 68 : index
    %644 = memref.load %arg8[%c68] : memref<125xf32, #tpu.memory_space<smem>>
    %c0_413 = arith.constant 0 : index
    %c2_414 = arith.constant 2 : index
    %c39_415 = arith.constant 39 : index
    %645 = vector.load %arg11[%c0_413, %c2_414, %c39_415] : memref<2x20x180xf32, #tpu.memory_space<vmem>>, vector<2x16x128xf32>
    %646 = vector.broadcast %644 : f32 to vector<2x16x128xf32>
    %647 = arith.mulf %646, %645 : vector<2x16x128xf32>
    %648 = arith.addf %643, %647 : vector<2x16x128xf32>
    %c93 = arith.constant 93 : index
    %649 = memref.load %arg8[%c93] : memref<125xf32, #tpu.memory_space<smem>>
    %c0_416 = arith.constant 0 : index
    %c3_417 = arith.constant 3 : index
    %c39_418 = arith.constant 39 : index
    %650 = vector.load %arg11[%c0_416, %c3_417, %c39_418] : memref<2x20x180xf32, #tpu.memory_space<vmem>>, vector<2x16x128xf32>
    %651 = vector.broadcast %649 : f32 to vector<2x16x128xf32>
    %652 = arith.mulf %651, %650 : vector<2x16x128xf32>
    %653 = arith.addf %648, %652 : vector<2x16x128xf32>
    %c118 = arith.constant 118 : index
    %654 = memref.load %arg8[%c118] : memref<125xf32, #tpu.memory_space<smem>>
    %c0_419 = arith.constant 0 : index
    %c4_420 = arith.constant 4 : index
    %c39_421 = arith.constant 39 : index
    %655 = vector.load %arg11[%c0_419, %c4_420, %c39_421] : memref<2x20x180xf32, #tpu.memory_space<vmem>>, vector<2x16x128xf32>
    %656 = vector.broadcast %654 : f32 to vector<2x16x128xf32>
    %657 = arith.mulf %656, %655 : vector<2x16x128xf32>
    %658 = arith.addf %653, %657 : vector<2x16x128xf32>
    %c19_422 = arith.constant 19 : index
    %659 = memref.load %arg8[%c19_422] : memref<125xf32, #tpu.memory_space<smem>>
    %c0_423 = arith.constant 0 : index
    %c0_424 = arith.constant 0 : index
    %c40_425 = arith.constant 40 : index
    %660 = vector.load %arg11[%c0_423, %c0_424, %c40_425] : memref<2x20x180xf32, #tpu.memory_space<vmem>>, vector<2x16x128xf32>
    %661 = vector.broadcast %659 : f32 to vector<2x16x128xf32>
    %662 = arith.mulf %661, %660 : vector<2x16x128xf32>
    %663 = arith.addf %658, %662 : vector<2x16x128xf32>
    %c44 = arith.constant 44 : index
    %664 = memref.load %arg8[%c44] : memref<125xf32, #tpu.memory_space<smem>>
    %c0_426 = arith.constant 0 : index
    %c1_427 = arith.constant 1 : index
    %c40_428 = arith.constant 40 : index
    %665 = vector.load %arg11[%c0_426, %c1_427, %c40_428] : memref<2x20x180xf32, #tpu.memory_space<vmem>>, vector<2x16x128xf32>
    %666 = vector.broadcast %664 : f32 to vector<2x16x128xf32>
    %667 = arith.mulf %666, %665 : vector<2x16x128xf32>
    %668 = arith.addf %663, %667 : vector<2x16x128xf32>
    %c69 = arith.constant 69 : index
    %669 = memref.load %arg8[%c69] : memref<125xf32, #tpu.memory_space<smem>>
    %c0_429 = arith.constant 0 : index
    %c2_430 = arith.constant 2 : index
    %c40_431 = arith.constant 40 : index
    %670 = vector.load %arg11[%c0_429, %c2_430, %c40_431] : memref<2x20x180xf32, #tpu.memory_space<vmem>>, vector<2x16x128xf32>
    %671 = vector.broadcast %669 : f32 to vector<2x16x128xf32>
    %672 = arith.mulf %671, %670 : vector<2x16x128xf32>
    %673 = arith.addf %668, %672 : vector<2x16x128xf32>
    %c94 = arith.constant 94 : index
    %674 = memref.load %arg8[%c94] : memref<125xf32, #tpu.memory_space<smem>>
    %c0_432 = arith.constant 0 : index
    %c3_433 = arith.constant 3 : index
    %c40_434 = arith.constant 40 : index
    %675 = vector.load %arg11[%c0_432, %c3_433, %c40_434] : memref<2x20x180xf32, #tpu.memory_space<vmem>>, vector<2x16x128xf32>
    %676 = vector.broadcast %674 : f32 to vector<2x16x128xf32>
    %677 = arith.mulf %676, %675 : vector<2x16x128xf32>
    %678 = arith.addf %673, %677 : vector<2x16x128xf32>
    %c119 = arith.constant 119 : index
    %679 = memref.load %arg8[%c119] : memref<125xf32, #tpu.memory_space<smem>>
    %c0_435 = arith.constant 0 : index
    %c4_436 = arith.constant 4 : index
    %c40_437 = arith.constant 40 : index
    %680 = vector.load %arg11[%c0_435, %c4_436, %c40_437] : memref<2x20x180xf32, #tpu.memory_space<vmem>>, vector<2x16x128xf32>
    %681 = vector.broadcast %679 : f32 to vector<2x16x128xf32>
    %682 = arith.mulf %681, %680 : vector<2x16x128xf32>
    %683 = arith.addf %678, %682 : vector<2x16x128xf32>
    %c20_438 = arith.constant 20 : index
    %684 = memref.load %arg8[%c20_438] : memref<125xf32, #tpu.memory_space<smem>>
    %c0_439 = arith.constant 0 : index
    %c0_440 = arith.constant 0 : index
    %c48 = arith.constant 48 : index
    %685 = vector.load %arg11[%c0_439, %c0_440, %c48] : memref<2x20x180xf32, #tpu.memory_space<vmem>>, vector<2x16x128xf32>
    %686 = vector.broadcast %684 : f32 to vector<2x16x128xf32>
    %687 = arith.mulf %686, %685 : vector<2x16x128xf32>
    %688 = arith.addf %683, %687 : vector<2x16x128xf32>
    %c45 = arith.constant 45 : index
    %689 = memref.load %arg8[%c45] : memref<125xf32, #tpu.memory_space<smem>>
    %c0_441 = arith.constant 0 : index
    %c1_442 = arith.constant 1 : index
    %c48_443 = arith.constant 48 : index
    %690 = vector.load %arg11[%c0_441, %c1_442, %c48_443] : memref<2x20x180xf32, #tpu.memory_space<vmem>>, vector<2x16x128xf32>
    %691 = vector.broadcast %689 : f32 to vector<2x16x128xf32>
    %692 = arith.mulf %691, %690 : vector<2x16x128xf32>
    %693 = arith.addf %688, %692 : vector<2x16x128xf32>
    %c70 = arith.constant 70 : index
    %694 = memref.load %arg8[%c70] : memref<125xf32, #tpu.memory_space<smem>>
    %c0_444 = arith.constant 0 : index
    %c2_445 = arith.constant 2 : index
    %c48_446 = arith.constant 48 : index
    %695 = vector.load %arg11[%c0_444, %c2_445, %c48_446] : memref<2x20x180xf32, #tpu.memory_space<vmem>>, vector<2x16x128xf32>
    %696 = vector.broadcast %694 : f32 to vector<2x16x128xf32>
    %697 = arith.mulf %696, %695 : vector<2x16x128xf32>
    %698 = arith.addf %693, %697 : vector<2x16x128xf32>
    %c95 = arith.constant 95 : index
    %699 = memref.load %arg8[%c95] : memref<125xf32, #tpu.memory_space<smem>>
    %c0_447 = arith.constant 0 : index
    %c3_448 = arith.constant 3 : index
    %c48_449 = arith.constant 48 : index
    %700 = vector.load %arg11[%c0_447, %c3_448, %c48_449] : memref<2x20x180xf32, #tpu.memory_space<vmem>>, vector<2x16x128xf32>
    %701 = vector.broadcast %699 : f32 to vector<2x16x128xf32>
    %702 = arith.mulf %701, %700 : vector<2x16x128xf32>
    %703 = arith.addf %698, %702 : vector<2x16x128xf32>
    %c120 = arith.constant 120 : index
    %704 = memref.load %arg8[%c120] : memref<125xf32, #tpu.memory_space<smem>>
    %c0_450 = arith.constant 0 : index
    %c4_451 = arith.constant 4 : index
    %c48_452 = arith.constant 48 : index
    %705 = vector.load %arg11[%c0_450, %c4_451, %c48_452] : memref<2x20x180xf32, #tpu.memory_space<vmem>>, vector<2x16x128xf32>
    %706 = vector.broadcast %704 : f32 to vector<2x16x128xf32>
    %707 = arith.mulf %706, %705 : vector<2x16x128xf32>
    %708 = arith.addf %703, %707 : vector<2x16x128xf32>
    %c21_453 = arith.constant 21 : index
    %709 = memref.load %arg8[%c21_453] : memref<125xf32, #tpu.memory_space<smem>>
    %c0_454 = arith.constant 0 : index
    %c0_455 = arith.constant 0 : index
    %c49 = arith.constant 49 : index
    %710 = vector.load %arg11[%c0_454, %c0_455, %c49] : memref<2x20x180xf32, #tpu.memory_space<vmem>>, vector<2x16x128xf32>
    %711 = vector.broadcast %709 : f32 to vector<2x16x128xf32>
    %712 = arith.mulf %711, %710 : vector<2x16x128xf32>
    %713 = arith.addf %708, %712 : vector<2x16x128xf32>
    %c46 = arith.constant 46 : index
    %714 = memref.load %arg8[%c46] : memref<125xf32, #tpu.memory_space<smem>>
    %c0_456 = arith.constant 0 : index
    %c1_457 = arith.constant 1 : index
    %c49_458 = arith.constant 49 : index
    %715 = vector.load %arg11[%c0_456, %c1_457, %c49_458] : memref<2x20x180xf32, #tpu.memory_space<vmem>>, vector<2x16x128xf32>
    %716 = vector.broadcast %714 : f32 to vector<2x16x128xf32>
    %717 = arith.mulf %716, %715 : vector<2x16x128xf32>
    %718 = arith.addf %713, %717 : vector<2x16x128xf32>
    %c71 = arith.constant 71 : index
    %719 = memref.load %arg8[%c71] : memref<125xf32, #tpu.memory_space<smem>>
    %c0_459 = arith.constant 0 : index
    %c2_460 = arith.constant 2 : index
    %c49_461 = arith.constant 49 : index
    %720 = vector.load %arg11[%c0_459, %c2_460, %c49_461] : memref<2x20x180xf32, #tpu.memory_space<vmem>>, vector<2x16x128xf32>
    %721 = vector.broadcast %719 : f32 to vector<2x16x128xf32>
    %722 = arith.mulf %721, %720 : vector<2x16x128xf32>
    %723 = arith.addf %718, %722 : vector<2x16x128xf32>
    %c96 = arith.constant 96 : index
    %724 = memref.load %arg8[%c96] : memref<125xf32, #tpu.memory_space<smem>>
    %c0_462 = arith.constant 0 : index
    %c3_463 = arith.constant 3 : index
    %c49_464 = arith.constant 49 : index
    %725 = vector.load %arg11[%c0_462, %c3_463, %c49_464] : memref<2x20x180xf32, #tpu.memory_space<vmem>>, vector<2x16x128xf32>
    %726 = vector.broadcast %724 : f32 to vector<2x16x128xf32>
    %727 = arith.mulf %726, %725 : vector<2x16x128xf32>
    %728 = arith.addf %723, %727 : vector<2x16x128xf32>
    %c121 = arith.constant 121 : index
    %729 = memref.load %arg8[%c121] : memref<125xf32, #tpu.memory_space<smem>>
    %c0_465 = arith.constant 0 : index
    %c4_466 = arith.constant 4 : index
    %c49_467 = arith.constant 49 : index
    %730 = vector.load %arg11[%c0_465, %c4_466, %c49_467] : memref<2x20x180xf32, #tpu.memory_space<vmem>>, vector<2x16x128xf32>
    %731 = vector.broadcast %729 : f32 to vector<2x16x128xf32>
    %732 = arith.mulf %731, %730 : vector<2x16x128xf32>
    %733 = arith.addf %728, %732 : vector<2x16x128xf32>
    %c22_468 = arith.constant 22 : index
    %734 = memref.load %arg8[%c22_468] : memref<125xf32, #tpu.memory_space<smem>>
    %c0_469 = arith.constant 0 : index
    %c0_470 = arith.constant 0 : index
    %c50_471 = arith.constant 50 : index
    %735 = vector.load %arg11[%c0_469, %c0_470, %c50_471] : memref<2x20x180xf32, #tpu.memory_space<vmem>>, vector<2x16x128xf32>
    %736 = vector.broadcast %734 : f32 to vector<2x16x128xf32>
    %737 = arith.mulf %736, %735 : vector<2x16x128xf32>
    %738 = arith.addf %733, %737 : vector<2x16x128xf32>
    %c47 = arith.constant 47 : index
    %739 = memref.load %arg8[%c47] : memref<125xf32, #tpu.memory_space<smem>>
    %c0_472 = arith.constant 0 : index
    %c1_473 = arith.constant 1 : index
    %c50_474 = arith.constant 50 : index
    %740 = vector.load %arg11[%c0_472, %c1_473, %c50_474] : memref<2x20x180xf32, #tpu.memory_space<vmem>>, vector<2x16x128xf32>
    %741 = vector.broadcast %739 : f32 to vector<2x16x128xf32>
    %742 = arith.mulf %741, %740 : vector<2x16x128xf32>
    %743 = arith.addf %738, %742 : vector<2x16x128xf32>
    %c72 = arith.constant 72 : index
    %744 = memref.load %arg8[%c72] : memref<125xf32, #tpu.memory_space<smem>>
    %c0_475 = arith.constant 0 : index
    %c2_476 = arith.constant 2 : index
    %c50_477 = arith.constant 50 : index
    %745 = vector.load %arg11[%c0_475, %c2_476, %c50_477] : memref<2x20x180xf32, #tpu.memory_space<vmem>>, vector<2x16x128xf32>
    %746 = vector.broadcast %744 : f32 to vector<2x16x128xf32>
    %747 = arith.mulf %746, %745 : vector<2x16x128xf32>
    %748 = arith.addf %743, %747 : vector<2x16x128xf32>
    %c97 = arith.constant 97 : index
    %749 = memref.load %arg8[%c97] : memref<125xf32, #tpu.memory_space<smem>>
    %c0_478 = arith.constant 0 : index
    %c3_479 = arith.constant 3 : index
    %c50_480 = arith.constant 50 : index
    %750 = vector.load %arg11[%c0_478, %c3_479, %c50_480] : memref<2x20x180xf32, #tpu.memory_space<vmem>>, vector<2x16x128xf32>
    %751 = vector.broadcast %749 : f32 to vector<2x16x128xf32>
    %752 = arith.mulf %751, %750 : vector<2x16x128xf32>
    %753 = arith.addf %748, %752 : vector<2x16x128xf32>
    %c122 = arith.constant 122 : index
    %754 = memref.load %arg8[%c122] : memref<125xf32, #tpu.memory_space<smem>>
    %c0_481 = arith.constant 0 : index
    %c4_482 = arith.constant 4 : index
    %c50_483 = arith.constant 50 : index
    %755 = vector.load %arg11[%c0_481, %c4_482, %c50_483] : memref<2x20x180xf32, #tpu.memory_space<vmem>>, vector<2x16x128xf32>
    %756 = vector.broadcast %754 : f32 to vector<2x16x128xf32>
    %757 = arith.mulf %756, %755 : vector<2x16x128xf32>
    %758 = arith.addf %753, %757 : vector<2x16x128xf32>
    %c23_484 = arith.constant 23 : index
    %759 = memref.load %arg8[%c23_484] : memref<125xf32, #tpu.memory_space<smem>>
    %c0_485 = arith.constant 0 : index
    %c0_486 = arith.constant 0 : index
    %c51_487 = arith.constant 51 : index
    %760 = vector.load %arg11[%c0_485, %c0_486, %c51_487] : memref<2x20x180xf32, #tpu.memory_space<vmem>>, vector<2x16x128xf32>
    %761 = vector.broadcast %759 : f32 to vector<2x16x128xf32>
    %762 = arith.mulf %761, %760 : vector<2x16x128xf32>
    %763 = arith.addf %758, %762 : vector<2x16x128xf32>
    %c48_488 = arith.constant 48 : index
    %764 = memref.load %arg8[%c48_488] : memref<125xf32, #tpu.memory_space<smem>>
    %c0_489 = arith.constant 0 : index
    %c1_490 = arith.constant 1 : index
    %c51_491 = arith.constant 51 : index
    %765 = vector.load %arg11[%c0_489, %c1_490, %c51_491] : memref<2x20x180xf32, #tpu.memory_space<vmem>>, vector<2x16x128xf32>
    %766 = vector.broadcast %764 : f32 to vector<2x16x128xf32>
    %767 = arith.mulf %766, %765 : vector<2x16x128xf32>
    %768 = arith.addf %763, %767 : vector<2x16x128xf32>
    %c73 = arith.constant 73 : index
    %769 = memref.load %arg8[%c73] : memref<125xf32, #tpu.memory_space<smem>>
    %c0_492 = arith.constant 0 : index
    %c2_493 = arith.constant 2 : index
    %c51_494 = arith.constant 51 : index
    %770 = vector.load %arg11[%c0_492, %c2_493, %c51_494] : memref<2x20x180xf32, #tpu.memory_space<vmem>>, vector<2x16x128xf32>
    %771 = vector.broadcast %769 : f32 to vector<2x16x128xf32>
    %772 = arith.mulf %771, %770 : vector<2x16x128xf32>
    %773 = arith.addf %768, %772 : vector<2x16x128xf32>
    %c98 = arith.constant 98 : index
    %774 = memref.load %arg8[%c98] : memref<125xf32, #tpu.memory_space<smem>>
    %c0_495 = arith.constant 0 : index
    %c3_496 = arith.constant 3 : index
    %c51_497 = arith.constant 51 : index
    %775 = vector.load %arg11[%c0_495, %c3_496, %c51_497] : memref<2x20x180xf32, #tpu.memory_space<vmem>>, vector<2x16x128xf32>
    %776 = vector.broadcast %774 : f32 to vector<2x16x128xf32>
    %777 = arith.mulf %776, %775 : vector<2x16x128xf32>
    %778 = arith.addf %773, %777 : vector<2x16x128xf32>
    %c123 = arith.constant 123 : index
    %779 = memref.load %arg8[%c123] : memref<125xf32, #tpu.memory_space<smem>>
    %c0_498 = arith.constant 0 : index
    %c4_499 = arith.constant 4 : index
    %c51_500 = arith.constant 51 : index
    %780 = vector.load %arg11[%c0_498, %c4_499, %c51_500] : memref<2x20x180xf32, #tpu.memory_space<vmem>>, vector<2x16x128xf32>
    %781 = vector.broadcast %779 : f32 to vector<2x16x128xf32>
    %782 = arith.mulf %781, %780 : vector<2x16x128xf32>
    %783 = arith.addf %778, %782 : vector<2x16x128xf32>
    %c24_501 = arith.constant 24 : index
    %784 = memref.load %arg8[%c24_501] : memref<125xf32, #tpu.memory_space<smem>>
    %c0_502 = arith.constant 0 : index
    %c0_503 = arith.constant 0 : index
    %c52_504 = arith.constant 52 : index
    %785 = vector.load %arg11[%c0_502, %c0_503, %c52_504] : memref<2x20x180xf32, #tpu.memory_space<vmem>>, vector<2x16x128xf32>
    %786 = vector.broadcast %784 : f32 to vector<2x16x128xf32>
    %787 = arith.mulf %786, %785 : vector<2x16x128xf32>
    %788 = arith.addf %783, %787 : vector<2x16x128xf32>
    %c49_505 = arith.constant 49 : index
    %789 = memref.load %arg8[%c49_505] : memref<125xf32, #tpu.memory_space<smem>>
    %c0_506 = arith.constant 0 : index
    %c1_507 = arith.constant 1 : index
    %c52_508 = arith.constant 52 : index
    %790 = vector.load %arg11[%c0_506, %c1_507, %c52_508] : memref<2x20x180xf32, #tpu.memory_space<vmem>>, vector<2x16x128xf32>
    %791 = vector.broadcast %789 : f32 to vector<2x16x128xf32>
    %792 = arith.mulf %791, %790 : vector<2x16x128xf32>
    %793 = arith.addf %788, %792 : vector<2x16x128xf32>
    %c74 = arith.constant 74 : index
    %794 = memref.load %arg8[%c74] : memref<125xf32, #tpu.memory_space<smem>>
    %c0_509 = arith.constant 0 : index
    %c2_510 = arith.constant 2 : index
    %c52_511 = arith.constant 52 : index
    %795 = vector.load %arg11[%c0_509, %c2_510, %c52_511] : memref<2x20x180xf32, #tpu.memory_space<vmem>>, vector<2x16x128xf32>
    %796 = vector.broadcast %794 : f32 to vector<2x16x128xf32>
    %797 = arith.mulf %796, %795 : vector<2x16x128xf32>
    %798 = arith.addf %793, %797 : vector<2x16x128xf32>
    %c99 = arith.constant 99 : index
    %799 = memref.load %arg8[%c99] : memref<125xf32, #tpu.memory_space<smem>>
    %c0_512 = arith.constant 0 : index
    %c3_513 = arith.constant 3 : index
    %c52_514 = arith.constant 52 : index
    %800 = vector.load %arg11[%c0_512, %c3_513, %c52_514] : memref<2x20x180xf32, #tpu.memory_space<vmem>>, vector<2x16x128xf32>
    %801 = vector.broadcast %799 : f32 to vector<2x16x128xf32>
    %802 = arith.mulf %801, %800 : vector<2x16x128xf32>
    %803 = arith.addf %798, %802 : vector<2x16x128xf32>
    %c124 = arith.constant 124 : index
    %804 = memref.load %arg8[%c124] : memref<125xf32, #tpu.memory_space<smem>>
    %c0_515 = arith.constant 0 : index
    %c4_516 = arith.constant 4 : index
    %c52_517 = arith.constant 52 : index
    %805 = vector.load %arg11[%c0_515, %c4_516, %c52_517] : memref<2x20x180xf32, #tpu.memory_space<vmem>>, vector<2x16x128xf32>
    %806 = vector.broadcast %804 : f32 to vector<2x16x128xf32>
    %807 = arith.mulf %806, %805 : vector<2x16x128xf32>
    %808 = arith.addf %803, %807 : vector<2x16x128xf32>
    %c0_518 = arith.constant 0 : index
    %c0_519 = arith.constant 0 : index
    %809 = vector.load %arg6[%c0_518, %c0_519] : memref<1x128xf32, #tpu.memory_space<vmem>>, vector<1x128xf32>
    %810 = vector.shape_cast %809 : vector<1x128xf32> to vector<1x1x128xf32>
    %811 = vector.broadcast %810 : vector<1x1x128xf32> to vector<2x16x128xf32>
    %812 = arith.mulf %808, %811 : vector<2x16x128xf32>
    %cst_520 = arith.constant dense<0.000000e+00> : vector<16x128xf32>
    %813 = vector.multi_reduction <add>, %812, %cst_520 [0] : vector<2x16x128xf32> to vector<16x128xf32>
    %814 = arith.mulf %812, %812 : vector<2x16x128xf32>
    %cst_521 = arith.constant dense<0.000000e+00> : vector<16x128xf32>
    %815 = vector.multi_reduction <add>, %814, %cst_521 [0] : vector<2x16x128xf32> to vector<16x128xf32>
    %816 = vector.shape_cast %813 : vector<16x128xf32> to vector<1x16x128xf32>
    %cst_522 = arith.constant dense<0.000000e+00> : vector<1xf32>
    %817 = vector.multi_reduction <add>, %816, %cst_522 [1, 2] : vector<1x16x128xf32> to vector<1xf32>
    %818 = vector.shape_cast %817 : vector<1xf32> to vector<1x1x1xf32>
    %819 = vector.extract %818[0, 0, 0] : f32 from vector<1x1x1xf32>
    %cst_523 = arith.constant 4.8828125E-4 : f32
    %820 = arith.mulf %819, %cst_523 : f32
    %821 = vector.shape_cast %815 : vector<16x128xf32> to vector<1x16x128xf32>
    %cst_524 = arith.constant dense<0.000000e+00> : vector<1xf32>
    %822 = vector.multi_reduction <add>, %821, %cst_524 [1, 2] : vector<1x16x128xf32> to vector<1xf32>
    %823 = vector.shape_cast %822 : vector<1xf32> to vector<1x1x1xf32>
    %824 = vector.extract %823[0, 0, 0] : f32 from vector<1x1x1xf32>
    %cst_525 = arith.constant 4.8828125E-4 : f32
    %825 = arith.mulf %824, %cst_525 : f32
    %826 = arith.mulf %820, %820 : f32
    %827 = arith.subf %825, %826 : f32
    %828 = vector.broadcast %820 : f32 to vector<2x16x128xf32>
    %829 = arith.subf %808, %828 : vector<2x16x128xf32>
    %830 = arith.addf %827, %3 : f32
    %831 = math.rsqrt %830 : f32
    %832 = vector.broadcast %831 : f32 to vector<2x16x128xf32>
    %833 = arith.mulf %829, %832 : vector<2x16x128xf32>
    %834 = vector.broadcast %1 : f32 to vector<2x16x128xf32>
    %835 = arith.mulf %833, %834 : vector<2x16x128xf32>
    %836 = vector.broadcast %2 : f32 to vector<2x16x128xf32>
    %837 = arith.addf %835, %836 : vector<2x16x128xf32>
    %cst_526 = arith.constant 1.000000e-01 : f32
    %838 = vector.broadcast %cst_526 : f32 to vector<2x16x128xf32>
    %839 = arith.mulf %838, %837 : vector<2x16x128xf32>
    %840 = arith.addf %42, %839 : vector<2x16x128xf32>
    %cst_527 = arith.constant 0.000000e+00 : f32
    %841 = vector.broadcast %cst_527 : f32 to vector<2x16x128xf32>
    %842 = arith.cmpf oge, %840, %841 : vector<2x16x128xf32>
    %cst_528 = arith.constant 0.00999999977 : f32
    %843 = vector.broadcast %cst_528 : f32 to vector<2x16x128xf32>
    %844 = arith.mulf %843, %840 : vector<2x16x128xf32>
    %845 = arith.select %842, %840, %844 : vector<2x16x128xi1>, vector<2x16x128xf32>
    %c0_529 = arith.constant 0 : index
    %c0_530 = arith.constant 0 : index
    %c0_531 = arith.constant 0 : index
    %846 = vector.load %arg10[%c0_529, %c0_530, %c0_531] : memref<2x16x128xf32, #tpu.memory_space<vmem>>, vector<2x16x128xf32>
    tpu.vector_store %arg10[%c0_529, %c0_530, %c0_531], %845 {strides = array<i32>} : memref<2x16x128xf32, #tpu.memory_space<vmem>>, vector<2x16x128xf32>,
    return
  }
}

</mosaic_0001>

<llo_original>
// kernel: _lambda_.1
$region0: #{_lambda_.1}
  #allocation0 [shape = 'u32[]', space=smem, size = 0x4, offset = 0x4, fixed_abs, tag = 'smem constant byte address 0x4 - core index']
  #allocation1 [shape = 'u32[144,128]{1,0:T(1,128)}', space=vmem, size = 0x12000, scoped, tag = 'internal scratch']
  #allocation2 [shape = 'f32[2,20,180]{2,1,0:T(8,128)}', space=vmem, size = 0xc000, scoped, tag = 'scratch operand']
  #allocation3 [shape = 'f32[1]{0:T(128)S(6)}', space=smem, size = 0x200, scoped, tag = 'scoped memory for _lambda_.1']
  %s0 = inlined_call_operand.vmem [shape: f32[2,16,180], index: 0, kind: input, shape index: {}]
  %s1 = inlined_call_operand.vmem [shape: f32[1,16], index: 1, kind: input, shape index: {}]
  %s2 = inlined_call_operand.<no memory space> [shape: f32[1], index: 2, kind: input, shape index: {}]
  %s3 = inlined_call_operand.vmem [shape: f32[1,16], index: 3, kind: input, shape index: {}]
  %s4 = inlined_call_operand.vmem [shape: f32[1,16], index: 4, kind: input, shape index: {}]
  %s5 = inlined_call_operand.vmem [shape: f32[16,128], index: 5, kind: input, shape index: {}]
  %s6 = inlined_call_operand.vmem [shape: f32[1,128], index: 6, kind: input, shape index: {}]
  %s7 = inlined_call_operand.vmem [shape: f32[27], index: 7, kind: input, shape index: {}]
  %s8 = inlined_call_operand.vmem [shape: f32[125], index: 8, kind: input, shape index: {}]
  %s9 = inlined_call_operand.vmem [shape: f32[4], index: 9, kind: input, shape index: {}]
  %s10 = inlined_call_operand.vmem [shape: f32[2,16,128], index: 10, kind: output, shape index: {}]
  %s11 = sld [smem:[#allocation0]]
  $region62: #{_lambda_.1} parent=0
    _
  %s13 = ssub.s32 1, %s11
  %s14 = scalar_select 0, %s13, %s11
  %15 = sst [smem:[#allocation3]] %s2
  $region1: #{_lambda_.1} parent=0
    #allocation4 [shape = 'u8[512]{0}', space=smem, size = 0x200, scoped, tag = 'input window, operand 7, single buffered']
    #allocation5 [shape = 's32[1]{0}', space=sflag, size = 0x4, scoped, tag = 'scoped memory for _lambda_.1']
    #allocation6 [shape = 'u8[512]{0}', space=smem, size = 0x200, scoped, tag = 'input window, operand 8, single buffered']
    #allocation7 [shape = 's32[1]{0}', space=sflag, size = 0x4, scoped, tag = 'scoped memory for _lambda_.1']
    #allocation8 [shape = 'u8[512]{0}', space=smem, size = 0x200, scoped, tag = 'input window, operand 9, single buffered']
    %16 = vsyncpa [#allocation5], 0
    %17 = vsyncpa [#allocation7], 0
    // Predicated region
    $region2: #{_lambda_.1} parent=1 // pred_check
      _
    $region3: #{_lambda_.1} parent=1 // pred_check_branch
      %19 = sbr.rel (0) target = $region5
    $region4: #{_lambda_.1} parent=1 // pred_region
      _
    $region5: #{_lambda_.1} parent=1 // pred_fallthru
      _
    // Predicated region
    $region6: #{_lambda_.1} parent=1 // pred_check
      _
    $region7: #{_lambda_.1} parent=1 // pred_check_branch
      %21 = sbr.rel (0) target = $region9
    $region8: #{_lambda_.1} parent=1 // pred_region
      _
    $region9: #{_lambda_.1} parent=1 // pred_fallthru
      _
    // Predicated region
    $region10: #{_lambda_.1} parent=1 // pred_check
      _
    $region11: #{_lambda_.1} parent=1 // pred_check_branch
      %23 = sbr.rel (0) target = $region13
    $region12: #{_lambda_.1} parent=1 // pred_region
      _
    $region13: #{_lambda_.1} parent=1 // pred_fallthru
      _
    // Predicated region
    $region14: #{_lambda_.1} parent=1 // pred_check
      _
    $region15: #{_lambda_.1} parent=1 // pred_check_branch
      %25 = sbr.rel (0) target = $region17
    $region16: #{_lambda_.1} parent=1 // pred_region
      _
    $region17: #{_lambda_.1} parent=1 // pred_fallthru
      _
    // Predicated region
    $region18: #{_lambda_.1} parent=1 // pred_check
      _
    $region19: #{_lambda_.1} parent=1 // pred_check_branch
      %27 = sbr.rel (0) target = $region21
    $region20: #{_lambda_.1} parent=1 // pred_region
      _
    $region21: #{_lambda_.1} parent=1 // pred_fallthru
      _
    // Predicated region
    $region22: #{_lambda_.1} parent=1 // pred_check
      _
    $region23: #{_lambda_.1} parent=1 // pred_check_branch
      %29 = sbr.rel (0) target = $region25
    $region24: #{_lambda_.1} parent=1 // pred_region
      _
    $region25: #{_lambda_.1} parent=1 // pred_fallthru
      _
    // Predicated region
    $region26: #{_lambda_.1} parent=1 // pred_check
      _
    $region27: #{_lambda_.1} parent=1 // pred_check_branch
      %31 = sbr.rel (0) target = $region29
    $region28: #{_lambda_.1} parent=1 // pred_region
      _
    $region29: #{_lambda_.1} parent=1 // pred_fallthru
      _
    // Predicated region
    $region30: #{_lambda_.1} parent=1 // pred_check
      _
    $region31: #{_lambda_.1} parent=1 // pred_check_branch
      %33 = sbr.rel (0) target = $region33
    $region32: #{_lambda_.1} parent=1 // pred_region
      %s35 = ssub.s32 16, 16
      %36 = vsyncadd [#allocation5], %s35
      %s38 = sshll.u32 %s7, 4
      %s39 = int_to_ptr.vmem [resolvable:$true] %s38
      %41 = dma.vmem_to_smem %s39, 16, [#allocation4], [#allocation5]
    $region33: #{_lambda_.1} parent=1 // pred_fallthru
      _
    // Predicated region
    $region34: #{_lambda_.1} parent=1 // pred_check
      _
    $region35: #{_lambda_.1} parent=1 // pred_check_branch
      %43 = sbr.rel (0) target = $region37
    $region36: #{_lambda_.1} parent=1 // pred_region
      %s45 = ssub.s32 16, 16
      %46 = vsyncadd [#allocation7], %s45
      %s48 = sshll.u32 %s8, 4
      %s49 = int_to_ptr.vmem [resolvable:$true] %s48
      %51 = dma.vmem_to_smem %s49, 16, [#allocation6], [#allocation7]
    $region37: #{_lambda_.1} parent=1 // pred_fallthru
      _
    // Predicated region
    $region38: #{_lambda_.1} parent=1 // pred_check
      _
    $region39: #{_lambda_.1} parent=1 // pred_check_branch
      %53 = sbr.rel (0) target = $region41
    $region40: #{_lambda_.1} parent=1 // pred_region
      %s55 = ssub.s32 16, 16
      %56 = vsyncadd [#allocation7], %s55
      %s58 = sshll.u32 %s9, 4
      %s59 = int_to_ptr.vmem [resolvable:$true] %s58
      %61 = dma.vmem_to_smem %s59, 16, [#allocation8], [#allocation7]
    $region41: #{_lambda_.1} parent=1 // pred_fallthru
      _
    // Predicated region
    $region42: #{_lambda_.1} parent=1 // pred_check
      _
    $region43: #{_lambda_.1} parent=1 // pred_check_branch
      %63 = sbr.rel (0) target = $region45
    $region44: #{_lambda_.1} parent=1 // pred_region
      %64 = dma.done [#allocation5], 16
    $region45: #{_lambda_.1} parent=1 // pred_fallthru
      _
    // Predicated region
    $region46: #{_lambda_.1} parent=1 // pred_check
      _
    $region47: #{_lambda_.1} parent=1 // pred_check_branch
      %66 = sbr.rel (0) target = $region49
    $region48: #{_lambda_.1} parent=1 // pred_region
      %67 = dma.done [#allocation7], 16
    $region49: #{_lambda_.1} parent=1 // pred_fallthru
      _
    // Predicated region
    $region50: #{_lambda_.1} parent=1 // pred_check
      _
    $region51: #{_lambda_.1} parent=1 // pred_check_branch
      %69 = sbr.rel (0) target = $region53
    $region52: #{_lambda_.1} parent=1 // pred_region
      %70 = dma.done [#allocation7], 16
    $region53: #{_lambda_.1} parent=1 // pred_fallthru
      _
    %71 = sfence
    %s72 = sld [smem:[#allocation8]]
    %s73 = sld [smem:[#allocation8 + $0x1]]
    %s74 = sld [smem:[#allocation8 + $0x2]]
    %s75 = sld [smem:[#allocation8 + $0x3]]
    %v76 = vld [vmem:[%s0] sm:$0xff]
    %v77 = vld [vmem:[%s0 + $0x8] sm:$0xff]
    %v78 = vld [vmem:[%s0 + $0x10] sm:$0xff]
    %v79 = vld [vmem:[%s0 + $0x18] sm:$0xff]
    %v80 = vld [vmem:[%s0 + $0x20] sm:$0xff]
    %v81 = vld [vmem:[%s0 + $0x28] sm:$0xff]
    %v82 = vld [vmem:[%s0 + $0x30] sm:$0xff]
    %v83 = vld [vmem:[%s0 + $0x38] sm:$0xff]
    %vm84 = vcmask 424960
    %v85 = vsel %vm84, %v77, 0.0
    %v86 = vadd.f32 %v76, %v85
    %87 = vadd.xlane.f32.xlu0 %v86
    %v88 = vpop.xlane.xlu0 %87
    %v89 = vsel %vm84, %v79, 0.0
    %v90 = vadd.f32 %v78, %v89
    %91 = vadd.xlane.f32.xlu0 %v90
    %v92 = vpop.xlane.xlu0 %91
    %v93 = vsel %vm84, %v81, 0.0
    %v94 = vadd.f32 %v80, %v93
    %95 = vadd.xlane.f32.xlu0 %v94
    %v96 = vpop.xlane.xlu0 %95
    %v97 = vsel %vm84, %v83, 0.0
    %v98 = vadd.f32 %v82, %v97
    %99 = vadd.xlane.f32.xlu0 %v98
    %v100 = vpop.xlane.xlu0 %99
    %v101 = vmul.f32 %v88, 0.015625
    %v102 = vmul.f32 %v92, 0.015625
    %v103 = vmul.f32 %v96, 0.015625
    %v104 = vmul.f32 %v100, 0.015625
    %v105 = vld [vmem:[%s4] sm:$0x1]
    %v107 = vlaneseq
    %v108 = vshrl.u32 %v107, 7
    %v109 = vsub.s32 0, %v108
    %v110 = vrot.slane %v105, %v109
    %v112 = vadd.f32 %v110, 0.0
    %v113 = vld [vmem:[%s1] sm:$0x1]
    %v115 = vlaneseq
    %v116 = vshrl.u32 %v115, 7
    %v117 = vsub.s32 0, %v116
    %v118 = vrot.slane %v113, %v117
    %120 = vbcast.lane.b32.xlu0 %v118, 256
    %v121 = vpop.permute.xlu0 %120
    %s123 = sor.u32 256, 8
    %124 = vbcast.lane.b32.xlu0 %v118, %s123
    %v125 = vpop.permute.xlu0 %124
    %v128 = vmul.f32 %v101, %v121
    %v129 = vmul.f32 %v102, %v125
    %v130 = vmul.f32 %v103, %v121
    %v131 = vmul.f32 %v104, %v125
    %136 = vset.pattern.permute.xlu0 0
    %137 = vperm.xlu0 %136, %v128
    %v138 = vpop.permute.xlu0 %137
    %139 = vset.pattern.permute.xlu0 0
    %140 = vperm.xlu0 %139, %v129
    %v141 = vpop.permute.xlu0 %140
    %142 = vset.pattern.permute.xlu0 0
    %143 = vperm.xlu0 %142, %v130
    %v144 = vpop.permute.xlu0 %143
    %145 = vset.pattern.permute.xlu0 0
    %146 = vperm.xlu0 %145, %v131
    %v147 = vpop.permute.xlu0 %146
    %v148 = vlaneseq
    %v149 = vand.u32 %v148, 127
    %v150 = vlaneseq
    %v151 = vshrl.u32 %v150, 7
    %v152 = vsub.s32 %v149, %v151
    %v153 = vrot.slane %v138, %v152
    %v154 = vadd.s32 %v149, 4294967288
    %v155 = vlaneseq
    %v156 = vshrl.u32 %v155, 7
    %v157 = vsub.s32 %v154, %v156
    %v158 = vrot.slane %v141, %v157
    %vm159 = vcmask 130112
    %v160 = vsel %vm159, %v158, %v153
    %v161 = vlaneseq
    %v162 = vshrl.u32 %v161, 7
    %v163 = vsub.s32 %v149, %v162
    %v164 = vrot.slane %v144, %v163
    %v165 = vlaneseq
    %v166 = vshrl.u32 %v165, 7
    %v167 = vsub.s32 %v154, %v166
    %v168 = vrot.slane %v147, %v167
    %v169 = vsel %vm159, %v168, %v164
    %vm170 = vcmask 1041409
    %v171 = vsel %vm170, %v169, %v160
    %vm173 = vcmask 123904
    %v174 = vsel %vm173, %v171, 0.0
    %175 = vadd.xlane.f32.xlu0 %v174
    %v176 = vpop.xlane.xlu0 %175
    %s177 = sld [smem:[#allocation3]]
    %v178 = vstv %s177
    %v179 = vadd.f32 %v176, %v178
    %v180 = vmax.f32 %v179, 0.0
    %v181 = vld [vmem:[%s3] sm:$0x1]
    %v183 = vlaneseq
    %v184 = vshrl.u32 %v183, 7
    %v185 = vsub.s32 0, %v184
    %v186 = vrot.slane %v181, %v185
    %v188 = vmul.f32 %v180, %v186
    %v189 = vadd.f32 %v112, %v188
    %vm190 = vcmp.ge.f32.partialorder %v189, 0.0
    %v191 = vmul.f32 %v189, 0.01
    %v192 = vsel %vm190, %v189, %v191
    %v193 = vlaneseq
    %v194 = vshrl.u32 %v193, 7
    %v195 = vsub.s32 0, %v194
    %v196 = vrot.slane %v192, %v195
    %198 = vbcast.lane.b32.xlu0 %v196, 256
    %v199 = vpop.permute.xlu0 %198
    %s201 = sor.u32 256, 8
    %202 = vbcast.lane.b32.xlu0 %v196, %s201
    %v203 = vpop.permute.xlu0 %202
    %v204 = vlaneseq
    %v205 = vshrl.u32 %v204, 7
    %v206 = vsub.s32 1, %v205
    %v207 = vrot.slane %v192, %v206
    %209 = vbcast.lane.b32.xlu0 %v207, 256
    %v210 = vpop.permute.xlu0 %209
    %s212 = sor.u32 256, 8
    %213 = vbcast.lane.b32.xlu0 %v207, %s212
    %v214 = vpop.permute.xlu0 %213
    %v215 = vmul.f32 %v76, %v199
    %v216 = vmul.f32 %v77, %v199
    %v217 = vmul.f32 %v78, %v203
    %v218 = vmul.f32 %v79, %v203
    %v219 = vmul.f32 %v80, %v210
    %v220 = vmul.f32 %v81, %v210
    %v221 = vmul.f32 %v82, %v214
    %v222 = vmul.f32 %v83, %v214
    %223 = vst [vmem:[#allocation2] sm:$0x3] 0.0
    %vm224 = vcmask 418816
    %225 = vst.msk [vmem:[#allocation2 + $0x8] sm:$0x3] %vm224, 0.0
    %226 = vst [vmem:[#allocation2 + $0x30] sm:$0x3] 0.0
    %227 = vst.msk [vmem:[#allocation2 + $0x38] sm:$0x3] %vm224, 0.0
    %228 = vst [vmem:[#allocation2 + $0x20] sm:$0xc] 0.0
    %vm229 = vcmask 420866
    %230 = vst.msk [vmem:[#allocation2 + $0x28] sm:$0xc] %vm229, 0.0
    %231 = vst [vmem:[#allocation2 + $0x50] sm:$0xc] 0.0
    %232 = vst.msk [vmem:[#allocation2 + $0x58] sm:$0xc] %vm229, 0.0
    %vm241 = vcmask 1041408
    %v242 = vrot.slane %v215, 6
    %v243 = vrot.slane %v216, 6
    %v244 = vrot.slane %v217, 6
    %v245 = vsel %vm241, %v242, %v244
    %v246 = vrot.slane %v218, 6
    %v247 = vsel %vm241, %v243, %v246
    %v248 = vrot.slane %v219, 6
    %v249 = vrot.slane %v220, 6
    %v250 = vrot.slane %v221, 6
    %v251 = vsel %vm241, %v248, %v250
    %v252 = vrot.slane %v222, 6
    %v253 = vsel %vm241, %v249, %v252
    %266 = vst [vmem:[#allocation2] sm:$0xfc] %v242
    %vm267 = vcmask 424962
    %268 = vst.msk [vmem:[#allocation2 + $0x8] sm:$0xfc] %vm267, %v243
    %269 = vst [vmem:[#allocation2 + $0x10] sm:$0xff] %v245
    %270 = vst.msk [vmem:[#allocation2 + $0x18] sm:$0xff] %vm84, %v247
    %271 = vst [vmem:[#allocation2 + $0x20] sm:$0x3] %v244
    %272 = vst.msk [vmem:[#allocation2 + $0x28] sm:$0x3] %vm224, %v246
    %273 = vst [vmem:[#allocation2 + $0x30] sm:$0xfc] %v248
    %274 = vst.msk [vmem:[#allocation2 + $0x38] sm:$0xfc] %vm267, %v249
    %275 = vst [vmem:[#allocation2 + $0x40] sm:$0xff] %v251
    %276 = vst.msk [vmem:[#allocation2 + $0x48] sm:$0xff] %vm84, %v253
    %277 = vst [vmem:[#allocation2 + $0x50] sm:$0x3] %v250
    %278 = vst.msk [vmem:[#allocation2 + $0x58] sm:$0x3] %vm224, %v252
    %v279 = vld [vmem:[%s0] sm:$0xff]
    %v280 = vld [vmem:[%s0 + $0x8] sm:$0xff]
    %v281 = vld [vmem:[%s0 + $0x10] sm:$0xff]
    %v282 = vld [vmem:[%s0 + $0x18] sm:$0xff]
    %v283 = vld [vmem:[%s0 + $0x20] sm:$0xff]
    %v284 = vld [vmem:[%s0 + $0x28] sm:$0xff]
    %v285 = vld [vmem:[%s0 + $0x30] sm:$0xff]
    %v286 = vld [vmem:[%s0 + $0x38] sm:$0xff]
    %v287 = vmul.f32 %v279, %v199
    %v288 = vmul.f32 %v280, %v199
    %v289 = vmul.f32 %v281, %v203
    %v290 = vmul.f32 %v282, %v203
    %v291 = vmul.f32 %v283, %v210
    %v292 = vmul.f32 %v284, %v210
    %v293 = vmul.f32 %v285, %v214
    %v294 = vmul.f32 %v286, %v214
    %v295 = vstv %s72
    %v296 = vmul.f32 %v295, %v287
    %v297 = vmul.f32 %v295, %v288
    %v298 = vmul.f32 %v295, %v289
    %v299 = vmul.f32 %v295, %v290
    %v300 = vmul.f32 %v295, %v291
    %v301 = vmul.f32 %v295, %v292
    %v302 = vmul.f32 %v295, %v293
    %v303 = vmul.f32 %v295, %v294
    %v304 = vld [vmem:[%s5] sm:$0xff]
    %v305 = vld [vmem:[%s5 + $0x8] sm:$0xff]
    %308 = vrot.lane.b32.xlu0 %v304, 26
    %v309 = vpop.permute.xlu0 %308
    %310 = vrot.lane.b32.xlu0 %v305, 26
    %v311 = vpop.permute.xlu0 %310
    %v314 = vadd.f32 %v296, %v309
    %v315 = vadd.f32 %v297, %v309
    %v316 = vadd.f32 %v298, %v311
    %v317 = vadd.f32 %v299, %v311
    %v318 = vadd.f32 %v300, %v309
    %v319 = vadd.f32 %v301, %v309
    %v320 = vadd.f32 %v302, %v311
    %v321 = vadd.f32 %v303, %v311
    %s322 = sld [smem:[#allocation4]]
    %v323 = vld [vmem:[#allocation2] sm:$0xfe]
    %v324 = vld [vmem:[#allocation2 + $0x8] sm:$0xfe]
    %v325 = vld [vmem:[#allocation2 + $0x10] sm:$0xff]
    %v326 = vld [vmem:[#allocation2 + $0x18] sm:$0xff]
    %v327 = vld [vmem:[#allocation2 + $0x20] sm:$0x1]
    %v328 = vld [vmem:[#allocation2 + $0x28] sm:$0x1]
    %v329 = vld [vmem:[#allocation2 + $0x30] sm:$0xfe]
    %v330 = vld [vmem:[#allocation2 + $0x38] sm:$0xfe]
    %v331 = vld [vmem:[#allocation2 + $0x40] sm:$0xff]
    %v332 = vld [vmem:[#allocation2 + $0x48] sm:$0xff]
    %v333 = vld [vmem:[#allocation2 + $0x50] sm:$0x1]
    %v334 = vld [vmem:[#allocation2 + $0x58] sm:$0x1]
    %v335 = vstv %s322
    %v336 = vmul.f32 %v335, %v323
    %v337 = vmul.f32 %v335, %v324
    %v338 = vmul.f32 %v335, %v325
    %v339 = vmul.f32 %v335, %v326
    %v340 = vmul.f32 %v335, %v327
    %v341 = vmul.f32 %v335, %v328
    %v342 = vmul.f32 %v335, %v329
    %v343 = vmul.f32 %v335, %v330
    %v344 = vmul.f32 %v335, %v331
    %v345 = vmul.f32 %v335, %v332
    %v346 = vmul.f32 %v335, %v333
    %v347 = vmul.f32 %v335, %v334
    %vm360 = vcmask 1046528
    %v361 = vrot.slane %v336, 1
    %v362 = vrot.slane %v338, 1
    %v363 = vsel %vm360, %v361, %v362
    %v364 = vrot.slane %v337, 1
    %v365 = vrot.slane %v339, 1
    %v366 = vsel %vm360, %v364, %v365
    %v367 = vrot.slane %v340, 1
    %v368 = vsel %vm360, %v362, %v367
    %v369 = vrot.slane %v341, 1
    %v370 = vsel %vm360, %v365, %v369
    %v371 = vrot.slane %v342, 1
    %v372 = vrot.slane %v344, 1
    %v373 = vsel %vm360, %v371, %v372
    %v374 = vrot.slane %v343, 1
    %v375 = vrot.slane %v345, 1
    %v376 = vsel %vm360, %v374, %v375
    %v377 = vrot.slane %v346, 1
    %v378 = vsel %vm360, %v372, %v377
    %v379 = vrot.slane %v347, 1
    %v380 = vsel %vm360, %v375, %v379
    %381 = vrot.lane.b32.xlu0 %v363, 13
    %v382 = vpop.permute.xlu0 %381
    %383 = vrot.lane.b32.xlu0 %v366, 13
    %v384 = vpop.permute.xlu0 %383
    %385 = vrot.lane.b32.xlu0 %v368, 13
    %v386 = vpop.permute.xlu0 %385
    %387 = vrot.lane.b32.xlu0 %v370, 13
    %v388 = vpop.permute.xlu0 %387
    %389 = vrot.lane.b32.xlu0 %v373, 13
    %v390 = vpop.permute.xlu0 %389
    %391 = vrot.lane.b32.xlu0 %v376, 13
    %v392 = vpop.permute.xlu0 %391
    %393 = vrot.lane.b32.xlu0 %v378, 13
    %v394 = vpop.permute.xlu0 %393
    %395 = vrot.lane.b32.xlu0 %v380, 13
    %v396 = vpop.permute.xlu0 %395
    %vm397 = vcmask 105472
    %v398 = vsel %vm397, %v382, %v384
    %v399 = vsel %vm397, %v386, %v388
    %v400 = vsel %vm397, %v390, %v392
    %v401 = vsel %vm397, %v394, %v396
    %v410 = vadd.f32 %v314, %v382
    %v411 = vadd.f32 %v315, %v398
    %v412 = vadd.f32 %v316, %v386
    %v413 = vadd.f32 %v317, %v399
    %v414 = vadd.f32 %v318, %v390
    %v415 = vadd.f32 %v319, %v400
    %v416 = vadd.f32 %v320, %v394
    %v417 = vadd.f32 %v321, %v401
    %s418 = sld [smem:[#allocation4 + $0x9]]
    %v419 = vld [vmem:[#allocation2] sm:$0xfc]
    %v420 = vld [vmem:[#allocation2 + $0x8] sm:$0xfc]
    %v421 = vld [vmem:[#allocation2 + $0x20] sm:$0x3]
    %v422 = vld [vmem:[#allocation2 + $0x28] sm:$0x3]
    %v423 = vld [vmem:[#allocation2 + $0x30] sm:$0xfc]
    %v424 = vld [vmem:[#allocation2 + $0x38] sm:$0xfc]
    %v425 = vld [vmem:[#allocation2 + $0x50] sm:$0x3]
    %v426 = vld [vmem:[#allocation2 + $0x58] sm:$0x3]
    %v427 = vstv %s418
    %v428 = vmul.f32 %v427, %v419
    %v429 = vmul.f32 %v427, %v420
    %v430 = vmul.f32 %v427, %v325
    %v431 = vmul.f32 %v427, %v326
    %v432 = vmul.f32 %v427, %v421
    %v433 = vmul.f32 %v427, %v422
    %v434 = vmul.f32 %v427, %v423
    %v435 = vmul.f32 %v427, %v424
    %v436 = vmul.f32 %v427, %v331
    %v437 = vmul.f32 %v427, %v332
    %v438 = vmul.f32 %v427, %v425
    %v439 = vmul.f32 %v427, %v426
    %vm452 = vcmask 1045504
    %v453 = vrot.slane %v428, 2
    %v454 = vrot.slane %v430, 2
    %v455 = vsel %vm452, %v453, %v454
    %v456 = vrot.slane %v429, 2
    %v457 = vrot.slane %v431, 2
    %v458 = vsel %vm452, %v456, %v457
    %v459 = vrot.slane %v432, 2
    %v460 = vsel %vm452, %v454, %v459
    %v461 = vrot.slane %v433, 2
    %v462 = vsel %vm452, %v457, %v461
    %v463 = vrot.slane %v434, 2
    %v464 = vrot.slane %v436, 2
    %v465 = vsel %vm452, %v463, %v464
    %v466 = vrot.slane %v435, 2
    %v467 = vrot.slane %v437, 2
    %v468 = vsel %vm452, %v466, %v467
    %v469 = vrot.slane %v438, 2
    %v470 = vsel %vm452, %v464, %v469
    %v471 = vrot.slane %v439, 2
    %v472 = vsel %vm452, %v467, %v471
    %473 = vrot.lane.b32.xlu0 %v455, 13
    %v474 = vpop.permute.xlu0 %473
    %475 = vrot.lane.b32.xlu0 %v458, 13
    %v476 = vpop.permute.xlu0 %475
    %477 = vrot.lane.b32.xlu0 %v460, 13
    %v478 = vpop.permute.xlu0 %477
    %479 = vrot.lane.b32.xlu0 %v462, 13
    %v480 = vpop.permute.xlu0 %479
    %481 = vrot.lane.b32.xlu0 %v465, 13
    %v482 = vpop.permute.xlu0 %481
    %483 = vrot.lane.b32.xlu0 %v468, 13
    %v484 = vpop.permute.xlu0 %483
    %485 = vrot.lane.b32.xlu0 %v470, 13
    %v486 = vpop.permute.xlu0 %485
    %487 = vrot.lane.b32.xlu0 %v472, 13
    %v488 = vpop.permute.xlu0 %487
    %v489 = vsel %vm397, %v474, %v476
    %v490 = vsel %vm397, %v478, %v480
    %v491 = vsel %vm397, %v482, %v484
    %v492 = vsel %vm397, %v486, %v488
    %v501 = vadd.f32 %v410, %v474
    %v502 = vadd.f32 %v411, %v489
    %v503 = vadd.f32 %v412, %v478
    %v504 = vadd.f32 %v413, %v490
    %v505 = vadd.f32 %v414, %v482
    %v506 = vadd.f32 %v415, %v491
    %v507 = vadd.f32 %v416, %v486
    %v508 = vadd.f32 %v417, %v492
    %s509 = sld [smem:[#allocation4 + $0x12]]
    %v510 = vld [vmem:[#allocation2] sm:$0xf8]
    %v511 = vld [vmem:[#allocation2 + $0x8] sm:$0xf8]
    %v512 = vld [vmem:[#allocation2 + $0x20] sm:$0x7]
    %v513 = vld [vmem:[#allocation2 + $0x28] sm:$0x7]
    %v514 = vld [vmem:[#allocation2 + $0x30] sm:$0xf8]
    %v515 = vld [vmem:[#allocation2 + $0x38] sm:$0xf8]
    %v516 = vld [vmem:[#allocation2 + $0x50] sm:$0x7]
    %v517 = vld [vmem:[#allocation2 + $0x58] sm:$0x7]
    %v518 = vstv %s509
    %v519 = vmul.f32 %v518, %v510
    %v520 = vmul.f32 %v518, %v511
    %v521 = vmul.f32 %v518, %v325
    %v522 = vmul.f32 %v518, %v326
    %v523 = vmul.f32 %v518, %v512
    %v524 = vmul.f32 %v518, %v513
    %v525 = vmul.f32 %v518, %v514
    %v526 = vmul.f32 %v518, %v515
    %v527 = vmul.f32 %v518, %v331
    %v528 = vmul.f32 %v518, %v332
    %v529 = vmul.f32 %v518, %v516
    %v530 = vmul.f32 %v518, %v517
    %vm543 = vcmask 1044480
    %v544 = vrot.slane %v519, 3
    %v545 = vrot.slane %v521, 3
    %v546 = vsel %vm543, %v544, %v545
    %v547 = vrot.slane %v520, 3
    %v548 = vrot.slane %v522, 3
    %v549 = vsel %vm543, %v547, %v548
    %v550 = vrot.slane %v523, 3
    %v551 = vsel %vm543, %v545, %v550
    %v552 = vrot.slane %v524, 3
    %v553 = vsel %vm543, %v548, %v552
    %v554 = vrot.slane %v525, 3
    %v555 = vrot.slane %v527, 3
    %v556 = vsel %vm543, %v554, %v555
    %v557 = vrot.slane %v526, 3
    %v558 = vrot.slane %v528, 3
    %v559 = vsel %vm543, %v557, %v558
    %v560 = vrot.slane %v529, 3
    %v561 = vsel %vm543, %v555, %v560
    %v562 = vrot.slane %v530, 3
    %v563 = vsel %vm543, %v558, %v562
    %564 = vrot.lane.b32.xlu0 %v546, 13
    %v565 = vpop.permute.xlu0 %564
    %566 = vrot.lane.b32.xlu0 %v549, 13
    %v567 = vpop.permute.xlu0 %566
    %568 = vrot.lane.b32.xlu0 %v551, 13
    %v569 = vpop.permute.xlu0 %568
    %570 = vrot.lane.b32.xlu0 %v553, 13
    %v571 = vpop.permute.xlu0 %570
    %572 = vrot.lane.b32.xlu0 %v556, 13
    %v573 = vpop.permute.xlu0 %572
    %574 = vrot.lane.b32.xlu0 %v559, 13
    %v575 = vpop.permute.xlu0 %574
    %576 = vrot.lane.b32.xlu0 %v561, 13
    %v577 = vpop.permute.xlu0 %576
    %578 = vrot.lane.b32.xlu0 %v563, 13
    %v579 = vpop.permute.xlu0 %578
    %v580 = vsel %vm397, %v565, %v567
    %v581 = vsel %vm397, %v569, %v571
    %v582 = vsel %vm397, %v573, %v575
    %v583 = vsel %vm397, %v577, %v579
    %v592 = vadd.f32 %v501, %v565
    %v593 = vadd.f32 %v502, %v580
    %v594 = vadd.f32 %v503, %v569
    %v595 = vadd.f32 %v504, %v581
    %v596 = vadd.f32 %v505, %v573
    %v597 = vadd.f32 %v506, %v582
    %v598 = vadd.f32 %v507, %v577
    %v599 = vadd.f32 %v508, %v583
    %s600 = sld [smem:[#allocation4 + $0x1]]
    %v601 = vstv %s600
    %v602 = vmul.f32 %v601, %v323
    %v603 = vmul.f32 %v601, %v324
    %v604 = vmul.f32 %v601, %v325
    %v605 = vmul.f32 %v601, %v326
    %v606 = vmul.f32 %v601, %v327
    %v607 = vmul.f32 %v601, %v328
    %v608 = vmul.f32 %v601, %v329
    %v609 = vmul.f32 %v601, %v330
    %v610 = vmul.f32 %v601, %v331
    %v611 = vmul.f32 %v601, %v332
    %v612 = vmul.f32 %v601, %v333
    %v613 = vmul.f32 %v601, %v334
    %v626 = vrot.slane %v602, 1
    %v627 = vrot.slane %v604, 1
    %v628 = vsel %vm360, %v626, %v627
    %v629 = vrot.slane %v603, 1
    %v630 = vrot.slane %v605, 1
    %v631 = vsel %vm360, %v629, %v630
    %v632 = vrot.slane %v606, 1
    %v633 = vsel %vm360, %v627, %v632
    %v634 = vrot.slane %v607, 1
    %v635 = vsel %vm360, %v630, %v634
    %v636 = vrot.slane %v608, 1
    %v637 = vrot.slane %v610, 1
    %v638 = vsel %vm360, %v636, %v637
    %v639 = vrot.slane %v609, 1
    %v640 = vrot.slane %v611, 1
    %v641 = vsel %vm360, %v639, %v640
    %v642 = vrot.slane %v612, 1
    %v643 = vsel %vm360, %v637, %v642
    %v644 = vrot.slane %v613, 1
    %v645 = vsel %vm360, %v640, %v644
    %646 = vrot.lane.b32.xlu0 %v628, 12
    %v647 = vpop.permute.xlu0 %646
    %648 = vrot.lane.b32.xlu0 %v631, 12
    %v649 = vpop.permute.xlu0 %648
    %650 = vrot.lane.b32.xlu0 %v633, 12
    %v651 = vpop.permute.xlu0 %650
    %652 = vrot.lane.b32.xlu0 %v635, 12
    %v653 = vpop.permute.xlu0 %652
    %654 = vrot.lane.b32.xlu0 %v638, 12
    %v655 = vpop.permute.xlu0 %654
    %656 = vrot.lane.b32.xlu0 %v641, 12
    %v657 = vpop.permute.xlu0 %656
    %658 = vrot.lane.b32.xlu0 %v643, 12
    %v659 = vpop.permute.xlu0 %658
    %660 = vrot.lane.b32.xlu0 %v645, 12
    %v661 = vpop.permute.xlu0 %660
    %vm662 = vcmask 97280
    %v663 = vsel %vm662, %v647, %v649
    %v664 = vsel %vm662, %v651, %v653
    %v665 = vsel %vm662, %v655, %v657
    %v666 = vsel %vm662, %v659, %v661
    %v675 = vadd.f32 %v592, %v647
    %v676 = vadd.f32 %v593, %v663
    %v677 = vadd.f32 %v594, %v651
    %v678 = vadd.f32 %v595, %v664
    %v679 = vadd.f32 %v596, %v655
    %v680 = vadd.f32 %v597, %v665
    %v681 = vadd.f32 %v598, %v659
    %v682 = vadd.f32 %v599, %v666
    %s683 = sld [smem:[#allocation4 + $0xa]]
    %v684 = vstv %s683
    %v685 = vmul.f32 %v684, %v419
    %v686 = vmul.f32 %v684, %v420
    %v687 = vmul.f32 %v684, %v325
    %v688 = vmul.f32 %v684, %v326
    %v689 = vmul.f32 %v684, %v421
    %v690 = vmul.f32 %v684, %v422
    %v691 = vmul.f32 %v684, %v423
    %v692 = vmul.f32 %v684, %v424
    %v693 = vmul.f32 %v684, %v331
    %v694 = vmul.f32 %v684, %v332
    %v695 = vmul.f32 %v684, %v425
    %v696 = vmul.f32 %v684, %v426
    %v709 = vrot.slane %v685, 2
    %v710 = vrot.slane %v687, 2
    %v711 = vsel %vm452, %v709, %v710
    %v712 = vrot.slane %v686, 2
    %v713 = vrot.slane %v688, 2
    %v714 = vsel %vm452, %v712, %v713
    %v715 = vrot.slane %v689, 2
    %v716 = vsel %vm452, %v710, %v715
    %v717 = vrot.slane %v690, 2
    %v718 = vsel %vm452, %v713, %v717
    %v719 = vrot.slane %v691, 2
    %v720 = vrot.slane %v693, 2
    %v721 = vsel %vm452, %v719, %v720
    %v722 = vrot.slane %v692, 2
    %v723 = vrot.slane %v694, 2
    %v724 = vsel %vm452, %v722, %v723
    %v725 = vrot.slane %v695, 2
    %v726 = vsel %vm452, %v720, %v725
    %v727 = vrot.slane %v696, 2
    %v728 = vsel %vm452, %v723, %v727
    %729 = vrot.lane.b32.xlu0 %v711, 12
    %v730 = vpop.permute.xlu0 %729
    %731 = vrot.lane.b32.xlu0 %v714, 12
    %v732 = vpop.permute.xlu0 %731
    %733 = vrot.lane.b32.xlu0 %v716, 12
    %v734 = vpop.permute.xlu0 %733
    %735 = vrot.lane.b32.xlu0 %v718, 12
    %v736 = vpop.permute.xlu0 %735
    %737 = vrot.lane.b32.xlu0 %v721, 12
    %v738 = vpop.permute.xlu0 %737
    %739 = vrot.lane.b32.xlu0 %v724, 12
    %v740 = vpop.permute.xlu0 %739
    %741 = vrot.lane.b32.xlu0 %v726, 12
    %v742 = vpop.permute.xlu0 %741
    %743 = vrot.lane.b32.xlu0 %v728, 12
    %v744 = vpop.permute.xlu0 %743
    %v745 = vsel %vm662, %v730, %v732
    %v746 = vsel %vm662, %v734, %v736
    %v747 = vsel %vm662, %v738, %v740
    %v748 = vsel %vm662, %v742, %v744
    %v757 = vadd.f32 %v675, %v730
    %v758 = vadd.f32 %v676, %v745
    %v759 = vadd.f32 %v677, %v734
    %v760 = vadd.f32 %v678, %v746
    %v761 = vadd.f32 %v679, %v738
    %v762 = vadd.f32 %v680, %v747
    %v763 = vadd.f32 %v681, %v742
    %v764 = vadd.f32 %v682, %v748
    %s765 = sld [smem:[#allocation4 + $0x13]]
    %v766 = vstv %s765
    %v767 = vmul.f32 %v766, %v510
    %v768 = vmul.f32 %v766, %v511
    %v769 = vmul.f32 %v766, %v325
    %v770 = vmul.f32 %v766, %v326
    %v771 = vmul.f32 %v766, %v512
    %v772 = vmul.f32 %v766, %v513
    %v773 = vmul.f32 %v766, %v514
    %v774 = vmul.f32 %v766, %v515
    %v775 = vmul.f32 %v766, %v331
    %v776 = vmul.f32 %v766, %v332
    %v777 = vmul.f32 %v766, %v516
    %v778 = vmul.f32 %v766, %v517
    %v791 = vrot.slane %v767, 3
    %v792 = vrot.slane %v769, 3
    %v793 = vsel %vm543, %v791, %v792
    %v794 = vrot.slane %v768, 3
    %v795 = vrot.slane %v770, 3
    %v796 = vsel %vm543, %v794, %v795
    %v797 = vrot.slane %v771, 3
    %v798 = vsel %vm543, %v792, %v797
    %v799 = vrot.slane %v772, 3
    %v800 = vsel %vm543, %v795, %v799
    %v801 = vrot.slane %v773, 3
    %v802 = vrot.slane %v775, 3
    %v803 = vsel %vm543, %v801, %v802
    %v804 = vrot.slane %v774, 3
    %v805 = vrot.slane %v776, 3
    %v806 = vsel %vm543, %v804, %v805
    %v807 = vrot.slane %v777, 3
    %v808 = vsel %vm543, %v802, %v807
    %v809 = vrot.slane %v778, 3
    %v810 = vsel %vm543, %v805, %v809
    %811 = vrot.lane.b32.xlu0 %v793, 12
    %v812 = vpop.permute.xlu0 %811
    %813 = vrot.lane.b32.xlu0 %v796, 12
    %v814 = vpop.permute.xlu0 %813
    %815 = vrot.lane.b32.xlu0 %v798, 12
    %v816 = vpop.permute.xlu0 %815
    %817 = vrot.lane.b32.xlu0 %v800, 12
    %v818 = vpop.permute.xlu0 %817
    %819 = vrot.lane.b32.xlu0 %v803, 12
    %v820 = vpop.permute.xlu0 %819
    %821 = vrot.lane.b32.xlu0 %v806, 12
    %v822 = vpop.permute.xlu0 %821
    %823 = vrot.lane.b32.xlu0 %v808, 12
    %v824 = vpop.permute.xlu0 %823
    %825 = vrot.lane.b32.xlu0 %v810, 12
    %v826 = vpop.permute.xlu0 %825
    %v827 = vsel %vm662, %v812, %v814
    %v828 = vsel %vm662, %v816, %v818
    %v829 = vsel %vm662, %v820, %v822
    %v830 = vsel %vm662, %v824, %v826
    %v839 = vadd.f32 %v757, %v812
    %v840 = vadd.f32 %v758, %v827
    %v841 = vadd.f32 %v759, %v816
    %v842 = vadd.f32 %v760, %v828
    %v843 = vadd.f32 %v761, %v820
    %v844 = vadd.f32 %v762, %v829
    %v845 = vadd.f32 %v763, %v824
    %v846 = vadd.f32 %v764, %v830
    %s847 = sld [smem:[#allocation4 + $0x2]]
    %v848 = vstv %s847
    %v849 = vmul.f32 %v848, %v323
    %v850 = vmul.f32 %v848, %v324
    %v851 = vmul.f32 %v848, %v325
    %v852 = vmul.f32 %v848, %v326
    %v853 = vmul.f32 %v848, %v327
    %v854 = vmul.f32 %v848, %v328
    %v855 = vmul.f32 %v848, %v329
    %v856 = vmul.f32 %v848, %v330
    %v857 = vmul.f32 %v848, %v331
    %v858 = vmul.f32 %v848, %v332
    %v859 = vmul.f32 %v848, %v333
    %v860 = vmul.f32 %v848, %v334
    %v873 = vrot.slane %v849, 1
    %v874 = vrot.slane %v851, 1
    %v875 = vsel %vm360, %v873, %v874
    %v876 = vrot.slane %v850, 1
    %v877 = vrot.slane %v852, 1
    %v878 = vsel %vm360, %v876, %v877
    %v879 = vrot.slane %v853, 1
    %v880 = vsel %vm360, %v874, %v879
    %v881 = vrot.slane %v854, 1
    %v882 = vsel %vm360, %v877, %v881
    %v883 = vrot.slane %v855, 1
    %v884 = vrot.slane %v857, 1
    %v885 = vsel %vm360, %v883, %v884
    %v886 = vrot.slane %v856, 1
    %v887 = vrot.slane %v858, 1
    %v888 = vsel %vm360, %v886, %v887
    %v889 = vrot.slane %v859, 1
    %v890 = vsel %vm360, %v884, %v889
    %v891 = vrot.slane %v860, 1
    %v892 = vsel %vm360, %v887, %v891
    %893 = vrot.lane.b32.xlu0 %v875, 11
    %v894 = vpop.permute.xlu0 %893
    %895 = vrot.lane.b32.xlu0 %v878, 11
    %v896 = vpop.permute.xlu0 %895
    %897 = vrot.lane.b32.xlu0 %v880, 11
    %v898 = vpop.permute.xlu0 %897
    %899 = vrot.lane.b32.xlu0 %v882, 11
    %v900 = vpop.permute.xlu0 %899
    %901 = vrot.lane.b32.xlu0 %v885, 11
    %v902 = vpop.permute.xlu0 %901
    %903 = vrot.lane.b32.xlu0 %v888, 11
    %v904 = vpop.permute.xlu0 %903
    %905 = vrot.lane.b32.xlu0 %v890, 11
    %v906 = vpop.permute.xlu0 %905
    %907 = vrot.lane.b32.xlu0 %v892, 11
    %v908 = vpop.permute.xlu0 %907
    %vm909 = vcmask 89088
    %v910 = vsel %vm909, %v894, %v896
    %v911 = vsel %vm909, %v898, %v900
    %v912 = vsel %vm909, %v902, %v904
    %v913 = vsel %vm909, %v906, %v908
    %v922 = vadd.f32 %v839, %v894
    %v923 = vadd.f32 %v840, %v910
    %v924 = vadd.f32 %v841, %v898
    %v925 = vadd.f32 %v842, %v911
    %v926 = vadd.f32 %v843, %v902
    %v927 = vadd.f32 %v844, %v912
    %v928 = vadd.f32 %v845, %v906
    %v929 = vadd.f32 %v846, %v913
    %s930 = sld [smem:[#allocation4 + $0xb]]
    %v931 = vstv %s930
    %v932 = vmul.f32 %v931, %v419
    %v933 = vmul.f32 %v931, %v420
    %v934 = vmul.f32 %v931, %v325
    %v935 = vmul.f32 %v931, %v326
    %v936 = vmul.f32 %v931, %v421
    %v937 = vmul.f32 %v931, %v422
    %v938 = vmul.f32 %v931, %v423
    %v939 = vmul.f32 %v931, %v424
    %v940 = vmul.f32 %v931, %v331
    %v941 = vmul.f32 %v931, %v332
    %v942 = vmul.f32 %v931, %v425
    %v943 = vmul.f32 %v931, %v426
    %v956 = vrot.slane %v932, 2
    %v957 = vrot.slane %v934, 2
    %v958 = vsel %vm452, %v956, %v957
    %v959 = vrot.slane %v933, 2
    %v960 = vrot.slane %v935, 2
    %v961 = vsel %vm452, %v959, %v960
    %v962 = vrot.slane %v936, 2
    %v963 = vsel %vm452, %v957, %v962
    %v964 = vrot.slane %v937, 2
    %v965 = vsel %vm452, %v960, %v964
    %v966 = vrot.slane %v938, 2
    %v967 = vrot.slane %v940, 2
    %v968 = vsel %vm452, %v966, %v967
    %v969 = vrot.slane %v939, 2
    %v970 = vrot.slane %v941, 2
    %v971 = vsel %vm452, %v969, %v970
    %v972 = vrot.slane %v942, 2
    %v973 = vsel %vm452, %v967, %v972
    %v974 = vrot.slane %v943, 2
    %v975 = vsel %vm452, %v970, %v974
    %976 = vrot.lane.b32.xlu0 %v958, 11
    %v977 = vpop.permute.xlu0 %976
    %978 = vrot.lane.b32.xlu0 %v961, 11
    %v979 = vpop.permute.xlu0 %978
    %980 = vrot.lane.b32.xlu0 %v963, 11
    %v981 = vpop.permute.xlu0 %980
    %982 = vrot.lane.b32.xlu0 %v965, 11
    %v983 = vpop.permute.xlu0 %982
    %984 = vrot.lane.b32.xlu0 %v968, 11
    %v985 = vpop.permute.xlu0 %984
    %986 = vrot.lane.b32.xlu0 %v971, 11
    %v987 = vpop.permute.xlu0 %986
    %988 = vrot.lane.b32.xlu0 %v973, 11
    %v989 = vpop.permute.xlu0 %988
    %990 = vrot.lane.b32.xlu0 %v975, 11
    %v991 = vpop.permute.xlu0 %990
    %v992 = vsel %vm909, %v977, %v979
    %v993 = vsel %vm909, %v981, %v983
    %v994 = vsel %vm909, %v985, %v987
    %v995 = vsel %vm909, %v989, %v991
    %v1004 = vadd.f32 %v922, %v977
    %v1005 = vadd.f32 %v923, %v992
    %v1006 = vadd.f32 %v924, %v981
    %v1007 = vadd.f32 %v925, %v993
    %v1008 = vadd.f32 %v926, %v985
    %v1009 = vadd.f32 %v927, %v994
    %v1010 = vadd.f32 %v928, %v989
    %v1011 = vadd.f32 %v929, %v995
    %s1012 = sld [smem:[#allocation4 + $0x14]]
    %v1013 = vstv %s1012
    %v1014 = vmul.f32 %v1013, %v510
    %v1015 = vmul.f32 %v1013, %v511
    %v1016 = vmul.f32 %v1013, %v325
    %v1017 = vmul.f32 %v1013, %v326
    %v1018 = vmul.f32 %v1013, %v512
    %v1019 = vmul.f32 %v1013, %v513
    %v1020 = vmul.f32 %v1013, %v514
    %v1021 = vmul.f32 %v1013, %v515
    %v1022 = vmul.f32 %v1013, %v331
    %v1023 = vmul.f32 %v1013, %v332
    %v1024 = vmul.f32 %v1013, %v516
    %v1025 = vmul.f32 %v1013, %v517
    %v1038 = vrot.slane %v1014, 3
    %v1039 = vrot.slane %v1016, 3
    %v1040 = vsel %vm543, %v1038, %v1039
    %v1041 = vrot.slane %v1015, 3
    %v1042 = vrot.slane %v1017, 3
    %v1043 = vsel %vm543, %v1041, %v1042
    %v1044 = vrot.slane %v1018, 3
    %v1045 = vsel %vm543, %v1039, %v1044
    %v1046 = vrot.slane %v1019, 3
    %v1047 = vsel %vm543, %v1042, %v1046
    %v1048 = vrot.slane %v1020, 3
    %v1049 = vrot.slane %v1022, 3
    %v1050 = vsel %vm543, %v1048, %v1049
    %v1051 = vrot.slane %v1021, 3
    %v1052 = vrot.slane %v1023, 3
    %v1053 = vsel %vm543, %v1051, %v1052
    %v1054 = vrot.slane %v1024, 3
    %v1055 = vsel %vm543, %v1049, %v1054
    %v1056 = vrot.slane %v1025, 3
    %v1057 = vsel %vm543, %v1052, %v1056
    %1058 = vrot.lane.b32.xlu0 %v1040, 11
    %v1059 = vpop.permute.xlu0 %1058
    %1060 = vrot.lane.b32.xlu0 %v1043, 11
    %v1061 = vpop.permute.xlu0 %1060
    %1062 = vrot.lane.b32.xlu0 %v1045, 11
    %v1063 = vpop.permute.xlu0 %1062
    %1064 = vrot.lane.b32.xlu0 %v1047, 11
    %v1065 = vpop.permute.xlu0 %1064
    %1066 = vrot.lane.b32.xlu0 %v1050, 11
    %v1067 = vpop.permute.xlu0 %1066
    %1068 = vrot.lane.b32.xlu0 %v1053, 11
    %v1069 = vpop.permute.xlu0 %1068
    %1070 = vrot.lane.b32.xlu0 %v1055, 11
    %v1071 = vpop.permute.xlu0 %1070
    %1072 = vrot.lane.b32.xlu0 %v1057, 11
    %v1073 = vpop.permute.xlu0 %1072
    %v1074 = vsel %vm909, %v1059, %v1061
    %v1075 = vsel %vm909, %v1063, %v1065
    %v1076 = vsel %vm909, %v1067, %v1069
    %v1077 = vsel %vm909, %v1071, %v1073
    %v1086 = vadd.f32 %v1004, %v1059
    %v1087 = vadd.f32 %v1005, %v1074
    %v1088 = vadd.f32 %v1006, %v1063
    %v1089 = vadd.f32 %v1007, %v1075
    %v1090 = vadd.f32 %v1008, %v1067
    %v1091 = vadd.f32 %v1009, %v1076
    %v1092 = vadd.f32 %v1010, %v1071
    %v1093 = vadd.f32 %v1011, %v1077
    %s1094 = sld [smem:[#allocation4 + $0x3]]
    %v1095 = vstv %s1094
    %v1096 = vmul.f32 %v1095, %v323
    %v1097 = vmul.f32 %v1095, %v324
    %v1098 = vmul.f32 %v1095, %v325
    %v1099 = vmul.f32 %v1095, %v326
    %v1100 = vmul.f32 %v1095, %v327
    %v1101 = vmul.f32 %v1095, %v328
    %v1102 = vmul.f32 %v1095, %v329
    %v1103 = vmul.f32 %v1095, %v330
    %v1104 = vmul.f32 %v1095, %v331
    %v1105 = vmul.f32 %v1095, %v332
    %v1106 = vmul.f32 %v1095, %v333
    %v1107 = vmul.f32 %v1095, %v334
    %v1120 = vrot.slane %v1096, 1
    %v1121 = vrot.slane %v1098, 1
    %v1122 = vsel %vm360, %v1120, %v1121
    %v1123 = vrot.slane %v1097, 1
    %v1124 = vrot.slane %v1099, 1
    %v1125 = vsel %vm360, %v1123, %v1124
    %v1126 = vrot.slane %v1100, 1
    %v1127 = vsel %vm360, %v1121, %v1126
    %v1128 = vrot.slane %v1101, 1
    %v1129 = vsel %vm360, %v1124, %v1128
    %v1130 = vrot.slane %v1102, 1
    %v1131 = vrot.slane %v1104, 1
    %v1132 = vsel %vm360, %v1130, %v1131
    %v1133 = vrot.slane %v1103, 1
    %v1134 = vrot.slane %v1105, 1
    %v1135 = vsel %vm360, %v1133, %v1134
    %v1136 = vrot.slane %v1106, 1
    %v1137 = vsel %vm360, %v1131, %v1136
    %v1138 = vrot.slane %v1107, 1
    %v1139 = vsel %vm360, %v1134, %v1138
    %1140 = vrot.lane.b32.xlu0 %v1122, 1
    %v1141 = vpop.permute.xlu0 %1140
    %1142 = vrot.lane.b32.xlu0 %v1125, 1
    %v1143 = vpop.permute.xlu0 %1142
    %1144 = vrot.lane.b32.xlu0 %v1127, 1
    %v1145 = vpop.permute.xlu0 %1144
    %1146 = vrot.lane.b32.xlu0 %v1129, 1
    %v1147 = vpop.permute.xlu0 %1146
    %1148 = vrot.lane.b32.xlu0 %v1132, 1
    %v1149 = vpop.permute.xlu0 %1148
    %1150 = vrot.lane.b32.xlu0 %v1135, 1
    %v1151 = vpop.permute.xlu0 %1150
    %1152 = vrot.lane.b32.xlu0 %v1137, 1
    %v1153 = vpop.permute.xlu0 %1152
    %1154 = vrot.lane.b32.xlu0 %v1139, 1
    %v1155 = vpop.permute.xlu0 %1154
    %vm1156 = vcmask 7168
    %v1157 = vsel %vm1156, %v1141, %v1143
    %v1158 = vsel %vm1156, %v1145, %v1147
    %v1159 = vsel %vm1156, %v1149, %v1151
    %v1160 = vsel %vm1156, %v1153, %v1155
    %v1169 = vadd.f32 %v1086, %v1141
    %v1170 = vadd.f32 %v1087, %v1157
    %v1171 = vadd.f32 %v1088, %v1145
    %v1172 = vadd.f32 %v1089, %v1158
    %v1173 = vadd.f32 %v1090, %v1149
    %v1174 = vadd.f32 %v1091, %v1159
    %v1175 = vadd.f32 %v1092, %v1153
    %v1176 = vadd.f32 %v1093, %v1160
    %s1177 = sld [smem:[#allocation4 + $0xc]]
    %v1178 = vstv %s1177
    %v1179 = vmul.f32 %v1178, %v419
    %v1180 = vmul.f32 %v1178, %v420
    %v1181 = vmul.f32 %v1178, %v325
    %v1182 = vmul.f32 %v1178, %v326
    %v1183 = vmul.f32 %v1178, %v421
    %v1184 = vmul.f32 %v1178, %v422
    %v1185 = vmul.f32 %v1178, %v423
    %v1186 = vmul.f32 %v1178, %v424
    %v1187 = vmul.f32 %v1178, %v331
    %v1188 = vmul.f32 %v1178, %v332
    %v1189 = vmul.f32 %v1178, %v425
    %v1190 = vmul.f32 %v1178, %v426
    %v1203 = vrot.slane %v1179, 2
    %v1204 = vrot.slane %v1181, 2
    %v1205 = vsel %vm452, %v1203, %v1204
    %v1206 = vrot.slane %v1180, 2
    %v1207 = vrot.slane %v1182, 2
    %v1208 = vsel %vm452, %v1206, %v1207
    %v1209 = vrot.slane %v1183, 2
    %v1210 = vsel %vm452, %v1204, %v1209
    %v1211 = vrot.slane %v1184, 2
    %v1212 = vsel %vm452, %v1207, %v1211
    %v1213 = vrot.slane %v1185, 2
    %v1214 = vrot.slane %v1187, 2
    %v1215 = vsel %vm452, %v1213, %v1214
    %v1216 = vrot.slane %v1186, 2
    %v1217 = vrot.slane %v1188, 2
    %v1218 = vsel %vm452, %v1216, %v1217
    %v1219 = vrot.slane %v1189, 2
    %v1220 = vsel %vm452, %v1214, %v1219
    %v1221 = vrot.slane %v1190, 2
    %v1222 = vsel %vm452, %v1217, %v1221
    %1223 = vrot.lane.b32.xlu0 %v1205, 1
    %v1224 = vpop.permute.xlu0 %1223
    %1225 = vrot.lane.b32.xlu0 %v1208, 1
    %v1226 = vpop.permute.xlu0 %1225
    %1227 = vrot.lane.b32.xlu0 %v1210, 1
    %v1228 = vpop.permute.xlu0 %1227
    %1229 = vrot.lane.b32.xlu0 %v1212, 1
    %v1230 = vpop.permute.xlu0 %1229
    %1231 = vrot.lane.b32.xlu0 %v1215, 1
    %v1232 = vpop.permute.xlu0 %1231
    %1233 = vrot.lane.b32.xlu0 %v1218, 1
    %v1234 = vpop.permute.xlu0 %1233
    %1235 = vrot.lane.b32.xlu0 %v1220, 1
    %v1236 = vpop.permute.xlu0 %1235
    %1237 = vrot.lane.b32.xlu0 %v1222, 1
    %v1238 = vpop.permute.xlu0 %1237
    %v1239 = vsel %vm1156, %v1224, %v1226
    %v1240 = vsel %vm1156, %v1228, %v1230
    %v1241 = vsel %vm1156, %v1232, %v1234
    %v1242 = vsel %vm1156, %v1236, %v1238
    %v1251 = vadd.f32 %v1169, %v1224
    %v1252 = vadd.f32 %v1170, %v1239
    %v1253 = vadd.f32 %v1171, %v1228
    %v1254 = vadd.f32 %v1172, %v1240
    %v1255 = vadd.f32 %v1173, %v1232
    %v1256 = vadd.f32 %v1174, %v1241
    %v1257 = vadd.f32 %v1175, %v1236
    %v1258 = vadd.f32 %v1176, %v1242
    %s1259 = sld [smem:[#allocation4 + $0x15]]
    %v1260 = vstv %s1259
    %v1261 = vmul.f32 %v1260, %v510
    %v1262 = vmul.f32 %v1260, %v511
    %v1263 = vmul.f32 %v1260, %v325
    %v1264 = vmul.f32 %v1260, %v326
    %v1265 = vmul.f32 %v1260, %v512
    %v1266 = vmul.f32 %v1260, %v513
    %v1267 = vmul.f32 %v1260, %v514
    %v1268 = vmul.f32 %v1260, %v515
    %v1269 = vmul.f32 %v1260, %v331
    %v1270 = vmul.f32 %v1260, %v332
    %v1271 = vmul.f32 %v1260, %v516
    %v1272 = vmul.f32 %v1260, %v517
    %v1285 = vrot.slane %v1261, 3
    %v1286 = vrot.slane %v1263, 3
    %v1287 = vsel %vm543, %v1285, %v1286
    %v1288 = vrot.slane %v1262, 3
    %v1289 = vrot.slane %v1264, 3
    %v1290 = vsel %vm543, %v1288, %v1289
    %v1291 = vrot.slane %v1265, 3
    %v1292 = vsel %vm543, %v1286, %v1291
    %v1293 = vrot.slane %v1266, 3
    %v1294 = vsel %vm543, %v1289, %v1293
    %v1295 = vrot.slane %v1267, 3
    %v1296 = vrot.slane %v1269, 3
    %v1297 = vsel %vm543, %v1295, %v1296
    %v1298 = vrot.slane %v1268, 3
    %v1299 = vrot.slane %v1270, 3
    %v1300 = vsel %vm543, %v1298, %v1299
    %v1301 = vrot.slane %v1271, 3
    %v1302 = vsel %vm543, %v1296, %v1301
    %v1303 = vrot.slane %v1272, 3
    %v1304 = vsel %vm543, %v1299, %v1303
    %1305 = vrot.lane.b32.xlu0 %v1287, 1
    %v1306 = vpop.permute.xlu0 %1305
    %1307 = vrot.lane.b32.xlu0 %v1290, 1
    %v1308 = vpop.permute.xlu0 %1307
    %1309 = vrot.lane.b32.xlu0 %v1292, 1
    %v1310 = vpop.permute.xlu0 %1309
    %1311 = vrot.lane.b32.xlu0 %v1294, 1
    %v1312 = vpop.permute.xlu0 %1311
    %1313 = vrot.lane.b32.xlu0 %v1297, 1
    %v1314 = vpop.permute.xlu0 %1313
    %1315 = vrot.lane.b32.xlu0 %v1300, 1
    %v1316 = vpop.permute.xlu0 %1315
    %1317 = vrot.lane.b32.xlu0 %v1302, 1
    %v1318 = vpop.permute.xlu0 %1317
    %1319 = vrot.lane.b32.xlu0 %v1304, 1
    %v1320 = vpop.permute.xlu0 %1319
    %v1321 = vsel %vm1156, %v1306, %v1308
    %v1322 = vsel %vm1156, %v1310, %v1312
    %v1323 = vsel %vm1156, %v1314, %v1316
    %v1324 = vsel %vm1156, %v1318, %v1320
    %v1333 = vadd.f32 %v1251, %v1306
    %v1334 = vadd.f32 %v1252, %v1321
    %v1335 = vadd.f32 %v1253, %v1310
    %v1336 = vadd.f32 %v1254, %v1322
    %v1337 = vadd.f32 %v1255, %v1314
    %v1338 = vadd.f32 %v1256, %v1323
    %v1339 = vadd.f32 %v1257, %v1318
    %v1340 = vadd.f32 %v1258, %v1324
    %s1341 = sld [smem:[#allocation4 + $0x4]]
    %v1342 = vstv %s1341
    %v1343 = vmul.f32 %v1342, %v323
    %v1344 = vmul.f32 %v1342, %v324
    %v1345 = vmul.f32 %v1342, %v325
    %v1346 = vmul.f32 %v1342, %v326
    %v1347 = vmul.f32 %v1342, %v327
    %v1348 = vmul.f32 %v1342, %v328
    %v1349 = vmul.f32 %v1342, %v329
    %v1350 = vmul.f32 %v1342, %v330
    %v1351 = vmul.f32 %v1342, %v331
    %v1352 = vmul.f32 %v1342, %v332
    %v1353 = vmul.f32 %v1342, %v333
    %v1354 = vmul.f32 %v1342, %v334
    %v1367 = vrot.slane %v1343, 1
    %v1368 = vrot.slane %v1345, 1
    %v1369 = vsel %vm360, %v1367, %v1368
    %v1370 = vrot.slane %v1344, 1
    %v1371 = vrot.slane %v1346, 1
    %v1372 = vsel %vm360, %v1370, %v1371
    %v1373 = vrot.slane %v1347, 1
    %v1374 = vsel %vm360, %v1368, %v1373
    %v1375 = vrot.slane %v1348, 1
    %v1376 = vsel %vm360, %v1371, %v1375
    %v1377 = vrot.slane %v1349, 1
    %v1378 = vrot.slane %v1351, 1
    %v1379 = vsel %vm360, %v1377, %v1378
    %v1380 = vrot.slane %v1350, 1
    %v1381 = vrot.slane %v1352, 1
    %v1382 = vsel %vm360, %v1380, %v1381
    %v1383 = vrot.slane %v1353, 1
    %v1384 = vsel %vm360, %v1378, %v1383
    %v1385 = vrot.slane %v1354, 1
    %v1386 = vsel %vm360, %v1381, %v1385
    %v1395 = vadd.f32 %v1333, %v1369
    %v1396 = vadd.f32 %v1334, %v1372
    %v1397 = vadd.f32 %v1335, %v1374
    %v1398 = vadd.f32 %v1336, %v1376
    %v1399 = vadd.f32 %v1337, %v1379
    %v1400 = vadd.f32 %v1338, %v1382
    %v1401 = vadd.f32 %v1339, %v1384
    %v1402 = vadd.f32 %v1340, %v1386
    %s1403 = sld [smem:[#allocation4 + $0xd]]
    %v1404 = vstv %s1403
    %v1405 = vmul.f32 %v1404, %v419
    %v1406 = vmul.f32 %v1404, %v420
    %v1407 = vmul.f32 %v1404, %v325
    %v1408 = vmul.f32 %v1404, %v326
    %v1409 = vmul.f32 %v1404, %v421
    %v1410 = vmul.f32 %v1404, %v422
    %v1411 = vmul.f32 %v1404, %v423
    %v1412 = vmul.f32 %v1404, %v424
    %v1413 = vmul.f32 %v1404, %v331
    %v1414 = vmul.f32 %v1404, %v332
    %v1415 = vmul.f32 %v1404, %v425
    %v1416 = vmul.f32 %v1404, %v426
    %v1429 = vrot.slane %v1405, 2
    %v1430 = vrot.slane %v1407, 2
    %v1431 = vsel %vm452, %v1429, %v1430
    %v1432 = vrot.slane %v1406, 2
    %v1433 = vrot.slane %v1408, 2
    %v1434 = vsel %vm452, %v1432, %v1433
    %v1435 = vrot.slane %v1409, 2
    %v1436 = vsel %vm452, %v1430, %v1435
    %v1437 = vrot.slane %v1410, 2
    %v1438 = vsel %vm452, %v1433, %v1437
    %v1439 = vrot.slane %v1411, 2
    %v1440 = vrot.slane %v1413, 2
    %v1441 = vsel %vm452, %v1439, %v1440
    %v1442 = vrot.slane %v1412, 2
    %v1443 = vrot.slane %v1414, 2
    %v1444 = vsel %vm452, %v1442, %v1443
    %v1445 = vrot.slane %v1415, 2
    %v1446 = vsel %vm452, %v1440, %v1445
    %v1447 = vrot.slane %v1416, 2
    %v1448 = vsel %vm452, %v1443, %v1447
    %v1457 = vadd.f32 %v1395, %v1431
    %v1458 = vadd.f32 %v1396, %v1434
    %v1459 = vadd.f32 %v1397, %v1436
    %v1460 = vadd.f32 %v1398, %v1438
    %v1461 = vadd.f32 %v1399, %v1441
    %v1462 = vadd.f32 %v1400, %v1444
    %v1463 = vadd.f32 %v1401, %v1446
    %v1464 = vadd.f32 %v1402, %v1448
    %s1465 = sld [smem:[#allocation4 + $0x16]]
    %v1466 = vstv %s1465
    %v1467 = vmul.f32 %v1466, %v510
    %v1468 = vmul.f32 %v1466, %v511
    %v1469 = vmul.f32 %v1466, %v325
    %v1470 = vmul.f32 %v1466, %v326
    %v1471 = vmul.f32 %v1466, %v512
    %v1472 = vmul.f32 %v1466, %v513
    %v1473 = vmul.f32 %v1466, %v514
    %v1474 = vmul.f32 %v1466, %v515
    %v1475 = vmul.f32 %v1466, %v331
    %v1476 = vmul.f32 %v1466, %v332
    %v1477 = vmul.f32 %v1466, %v516
    %v1478 = vmul.f32 %v1466, %v517
    %v1491 = vrot.slane %v1467, 3
    %v1492 = vrot.slane %v1469, 3
    %v1493 = vsel %vm543, %v1491, %v1492
    %v1494 = vrot.slane %v1468, 3
    %v1495 = vrot.slane %v1470, 3
    %v1496 = vsel %vm543, %v1494, %v1495
    %v1497 = vrot.slane %v1471, 3
    %v1498 = vsel %vm543, %v1492, %v1497
    %v1499 = vrot.slane %v1472, 3
    %v1500 = vsel %vm543, %v1495, %v1499
    %v1501 = vrot.slane %v1473, 3
    %v1502 = vrot.slane %v1475, 3
    %v1503 = vsel %vm543, %v1501, %v1502
    %v1504 = vrot.slane %v1474, 3
    %v1505 = vrot.slane %v1476, 3
    %v1506 = vsel %vm543, %v1504, %v1505
    %v1507 = vrot.slane %v1477, 3
    %v1508 = vsel %vm543, %v1502, %v1507
    %v1509 = vrot.slane %v1478, 3
    %v1510 = vsel %vm543, %v1505, %v1509
    %v1519 = vadd.f32 %v1457, %v1493
    %v1520 = vadd.f32 %v1458, %v1496
    %v1521 = vadd.f32 %v1459, %v1498
    %v1522 = vadd.f32 %v1460, %v1500
    %v1523 = vadd.f32 %v1461, %v1503
    %v1524 = vadd.f32 %v1462, %v1506
    %v1525 = vadd.f32 %v1463, %v1508
    %v1526 = vadd.f32 %v1464, %v1510
    %s1527 = sld [smem:[#allocation4 + $0x5]]
    %v1528 = vstv %s1527
    %v1529 = vmul.f32 %v1528, %v323
    %v1530 = vmul.f32 %v1528, %v324
    %v1531 = vmul.f32 %v1528, %v325
    %v1532 = vmul.f32 %v1528, %v326
    %v1533 = vmul.f32 %v1528, %v327
    %v1534 = vmul.f32 %v1528, %v328
    %v1535 = vmul.f32 %v1528, %v329
    %v1536 = vmul.f32 %v1528, %v330
    %v1537 = vmul.f32 %v1528, %v331
    %v1538 = vmul.f32 %v1528, %v332
    %v1539 = vmul.f32 %v1528, %v333
    %v1540 = vmul.f32 %v1528, %v334
    %v1553 = vrot.slane %v1529, 1
    %v1554 = vrot.slane %v1531, 1
    %v1555 = vsel %vm360, %v1553, %v1554
    %v1556 = vrot.slane %v1530, 1
    %v1557 = vrot.slane %v1532, 1
    %v1558 = vsel %vm360, %v1556, %v1557
    %v1559 = vrot.slane %v1533, 1
    %v1560 = vsel %vm360, %v1554, %v1559
    %v1561 = vrot.slane %v1534, 1
    %v1562 = vsel %vm360, %v1557, %v1561
    %v1563 = vrot.slane %v1535, 1
    %v1564 = vrot.slane %v1537, 1
    %v1565 = vsel %vm360, %v1563, %v1564
    %v1566 = vrot.slane %v1536, 1
    %v1567 = vrot.slane %v1538, 1
    %v1568 = vsel %vm360, %v1566, %v1567
    %v1569 = vrot.slane %v1539, 1
    %v1570 = vsel %vm360, %v1564, %v1569
    %v1571 = vrot.slane %v1540, 1
    %v1572 = vsel %vm360, %v1567, %v1571
    %1573 = vrot.lane.b32.xlu0 %v1555, 127
    %v1574 = vpop.permute.xlu0 %1573
    %1575 = vrot.lane.b32.xlu0 %v1558, 127
    %v1576 = vpop.permute.xlu0 %1575
    %1577 = vrot.lane.b32.xlu0 %v1560, 127
    %v1578 = vpop.permute.xlu0 %1577
    %1579 = vrot.lane.b32.xlu0 %v1562, 127
    %v1580 = vpop.permute.xlu0 %1579
    %1581 = vrot.lane.b32.xlu0 %v1565, 127
    %v1582 = vpop.permute.xlu0 %1581
    %1583 = vrot.lane.b32.xlu0 %v1568, 127
    %v1584 = vpop.permute.xlu0 %1583
    %1585 = vrot.lane.b32.xlu0 %v1570, 127
    %v1586 = vpop.permute.xlu0 %1585
    %1587 = vrot.lane.b32.xlu0 %v1572, 127
    %v1588 = vpop.permute.xlu0 %1587
    %vm1589 = vcmask 1039360
    %v1590 = vsel %vm1589, %v1574, %v1576
    %v1591 = vsel %vm1589, %v1578, %v1580
    %v1592 = vsel %vm1589, %v1582, %v1584
    %v1593 = vsel %vm1589, %v1586, %v1588
    %v1602 = vadd.f32 %v1519, %v1590
    %v1603 = vadd.f32 %v1520, %v1576
    %v1604 = vadd.f32 %v1521, %v1591
    %v1605 = vadd.f32 %v1522, %v1580
    %v1606 = vadd.f32 %v1523, %v1592
    %v1607 = vadd.f32 %v1524, %v1584
    %v1608 = vadd.f32 %v1525, %v1593
    %v1609 = vadd.f32 %v1526, %v1588
    %s1610 = sld [smem:[#allocation4 + $0xe]]
    %v1611 = vstv %s1610
    %v1612 = vmul.f32 %v1611, %v419
    %v1613 = vmul.f32 %v1611, %v420
    %v1614 = vmul.f32 %v1611, %v325
    %v1615 = vmul.f32 %v1611, %v326
    %v1616 = vmul.f32 %v1611, %v421
    %v1617 = vmul.f32 %v1611, %v422
    %v1618 = vmul.f32 %v1611, %v423
    %v1619 = vmul.f32 %v1611, %v424
    %v1620 = vmul.f32 %v1611, %v331
    %v1621 = vmul.f32 %v1611, %v332
    %v1622 = vmul.f32 %v1611, %v425
    %v1623 = vmul.f32 %v1611, %v426
    %v1636 = vrot.slane %v1612, 2
    %v1637 = vrot.slane %v1614, 2
    %v1638 = vsel %vm452, %v1636, %v1637
    %v1639 = vrot.slane %v1613, 2
    %v1640 = vrot.slane %v1615, 2
    %v1641 = vsel %vm452, %v1639, %v1640
    %v1642 = vrot.slane %v1616, 2
    %v1643 = vsel %vm452, %v1637, %v1642
    %v1644 = vrot.slane %v1617, 2
    %v1645 = vsel %vm452, %v1640, %v1644
    %v1646 = vrot.slane %v1618, 2
    %v1647 = vrot.slane %v1620, 2
    %v1648 = vsel %vm452, %v1646, %v1647
    %v1649 = vrot.slane %v1619, 2
    %v1650 = vrot.slane %v1621, 2
    %v1651 = vsel %vm452, %v1649, %v1650
    %v1652 = vrot.slane %v1622, 2
    %v1653 = vsel %vm452, %v1647, %v1652
    %v1654 = vrot.slane %v1623, 2
    %v1655 = vsel %vm452, %v1650, %v1654
    %1656 = vrot.lane.b32.xlu0 %v1638, 127
    %v1657 = vpop.permute.xlu0 %1656
    %1658 = vrot.lane.b32.xlu0 %v1641, 127
    %v1659 = vpop.permute.xlu0 %1658
    %1660 = vrot.lane.b32.xlu0 %v1643, 127
    %v1661 = vpop.permute.xlu0 %1660
    %1662 = vrot.lane.b32.xlu0 %v1645, 127
    %v1663 = vpop.permute.xlu0 %1662
    %1664 = vrot.lane.b32.xlu0 %v1648, 127
    %v1665 = vpop.permute.xlu0 %1664
    %1666 = vrot.lane.b32.xlu0 %v1651, 127
    %v1667 = vpop.permute.xlu0 %1666
    %1668 = vrot.lane.b32.xlu0 %v1653, 127
    %v1669 = vpop.permute.xlu0 %1668
    %1670 = vrot.lane.b32.xlu0 %v1655, 127
    %v1671 = vpop.permute.xlu0 %1670
    %v1672 = vsel %vm1589, %v1657, %v1659
    %v1673 = vsel %vm1589, %v1661, %v1663
    %v1674 = vsel %vm1589, %v1665, %v1667
    %v1675 = vsel %vm1589, %v1669, %v1671
    %v1684 = vadd.f32 %v1602, %v1672
    %v1685 = vadd.f32 %v1603, %v1659
    %v1686 = vadd.f32 %v1604, %v1673
    %v1687 = vadd.f32 %v1605, %v1663
    %v1688 = vadd.f32 %v1606, %v1674
    %v1689 = vadd.f32 %v1607, %v1667
    %v1690 = vadd.f32 %v1608, %v1675
    %v1691 = vadd.f32 %v1609, %v1671
    %s1692 = sld [smem:[#allocation4 + $0x17]]
    %v1693 = vstv %s1692
    %v1694 = vmul.f32 %v1693, %v510
    %v1695 = vmul.f32 %v1693, %v511
    %v1696 = vmul.f32 %v1693, %v325
    %v1697 = vmul.f32 %v1693, %v326
    %v1698 = vmul.f32 %v1693, %v512
    %v1699 = vmul.f32 %v1693, %v513
    %v1700 = vmul.f32 %v1693, %v514
    %v1701 = vmul.f32 %v1693, %v515
    %v1702 = vmul.f32 %v1693, %v331
    %v1703 = vmul.f32 %v1693, %v332
    %v1704 = vmul.f32 %v1693, %v516
    %v1705 = vmul.f32 %v1693, %v517
    %v1718 = vrot.slane %v1694, 3
    %v1719 = vrot.slane %v1696, 3
    %v1720 = vsel %vm543, %v1718, %v1719
    %v1721 = vrot.slane %v1695, 3
    %v1722 = vrot.slane %v1697, 3
    %v1723 = vsel %vm543, %v1721, %v1722
    %v1724 = vrot.slane %v1698, 3
    %v1725 = vsel %vm543, %v1719, %v1724
    %v1726 = vrot.slane %v1699, 3
    %v1727 = vsel %vm543, %v1722, %v1726
    %v1728 = vrot.slane %v1700, 3
    %v1729 = vrot.slane %v1702, 3
    %v1730 = vsel %vm543, %v1728, %v1729
    %v1731 = vrot.slane %v1701, 3
    %v1732 = vrot.slane %v1703, 3
    %v1733 = vsel %vm543, %v1731, %v1732
    %v1734 = vrot.slane %v1704, 3
    %v1735 = vsel %vm543, %v1729, %v1734
    %v1736 = vrot.slane %v1705, 3
    %v1737 = vsel %vm543, %v1732, %v1736
    %1738 = vrot.lane.b32.xlu0 %v1720, 127
    %v1739 = vpop.permute.xlu0 %1738
    %1740 = vrot.lane.b32.xlu0 %v1723, 127
    %v1741 = vpop.permute.xlu0 %1740
    %1742 = vrot.lane.b32.xlu0 %v1725, 127
    %v1743 = vpop.permute.xlu0 %1742
    %1744 = vrot.lane.b32.xlu0 %v1727, 127
    %v1745 = vpop.permute.xlu0 %1744
    %1746 = vrot.lane.b32.xlu0 %v1730, 127
    %v1747 = vpop.permute.xlu0 %1746
    %1748 = vrot.lane.b32.xlu0 %v1733, 127
    %v1749 = vpop.permute.xlu0 %1748
    %1750 = vrot.lane.b32.xlu0 %v1735, 127
    %v1751 = vpop.permute.xlu0 %1750
    %1752 = vrot.lane.b32.xlu0 %v1737, 127
    %v1753 = vpop.permute.xlu0 %1752
    %v1754 = vsel %vm1589, %v1739, %v1741
    %v1755 = vsel %vm1589, %v1743, %v1745
    %v1756 = vsel %vm1589, %v1747, %v1749
    %v1757 = vsel %vm1589, %v1751, %v1753
    %v1766 = vadd.f32 %v1684, %v1754
    %v1767 = vadd.f32 %v1685, %v1741
    %v1768 = vadd.f32 %v1686, %v1755
    %v1769 = vadd.f32 %v1687, %v1745
    %v1770 = vadd.f32 %v1688, %v1756
    %v1771 = vadd.f32 %v1689, %v1749
    %v1772 = vadd.f32 %v1690, %v1757
    %v1773 = vadd.f32 %v1691, %v1753
    %s1774 = sld [smem:[#allocation4 + $0x6]]
    %v1775 = vstv %s1774
    %v1776 = vmul.f32 %v1775, %v323
    %v1777 = vmul.f32 %v1775, %v324
    %v1778 = vmul.f32 %v1775, %v325
    %v1779 = vmul.f32 %v1775, %v326
    %v1780 = vmul.f32 %v1775, %v327
    %v1781 = vmul.f32 %v1775, %v328
    %v1782 = vmul.f32 %v1775, %v329
    %v1783 = vmul.f32 %v1775, %v330
    %v1784 = vmul.f32 %v1775, %v331
    %v1785 = vmul.f32 %v1775, %v332
    %v1786 = vmul.f32 %v1775, %v333
    %v1787 = vmul.f32 %v1775, %v334
    %v1800 = vrot.slane %v1776, 1
    %v1801 = vrot.slane %v1778, 1
    %v1802 = vsel %vm360, %v1800, %v1801
    %v1803 = vrot.slane %v1777, 1
    %v1804 = vrot.slane %v1779, 1
    %v1805 = vsel %vm360, %v1803, %v1804
    %v1806 = vrot.slane %v1780, 1
    %v1807 = vsel %vm360, %v1801, %v1806
    %v1808 = vrot.slane %v1781, 1
    %v1809 = vsel %vm360, %v1804, %v1808
    %v1810 = vrot.slane %v1782, 1
    %v1811 = vrot.slane %v1784, 1
    %v1812 = vsel %vm360, %v1810, %v1811
    %v1813 = vrot.slane %v1783, 1
    %v1814 = vrot.slane %v1785, 1
    %v1815 = vsel %vm360, %v1813, %v1814
    %v1816 = vrot.slane %v1786, 1
    %v1817 = vsel %vm360, %v1811, %v1816
    %v1818 = vrot.slane %v1787, 1
    %v1819 = vsel %vm360, %v1814, %v1818
    %1820 = vrot.lane.b32.xlu0 %v1802, 117
    %v1821 = vpop.permute.xlu0 %1820
    %1822 = vrot.lane.b32.xlu0 %v1805, 117
    %v1823 = vpop.permute.xlu0 %1822
    %1824 = vrot.lane.b32.xlu0 %v1807, 117
    %v1825 = vpop.permute.xlu0 %1824
    %1826 = vrot.lane.b32.xlu0 %v1809, 117
    %v1827 = vpop.permute.xlu0 %1826
    %1828 = vrot.lane.b32.xlu0 %v1812, 117
    %v1829 = vpop.permute.xlu0 %1828
    %1830 = vrot.lane.b32.xlu0 %v1815, 117
    %v1831 = vpop.permute.xlu0 %1830
    %1832 = vrot.lane.b32.xlu0 %v1817, 117
    %v1833 = vpop.permute.xlu0 %1832
    %1834 = vrot.lane.b32.xlu0 %v1819, 117
    %v1835 = vpop.permute.xlu0 %1834
    %vm1836 = vcmask 957440
    %v1837 = vsel %vm1836, %v1821, %v1823
    %v1838 = vsel %vm1836, %v1825, %v1827
    %v1839 = vsel %vm1836, %v1829, %v1831
    %v1840 = vsel %vm1836, %v1833, %v1835
    %v1849 = vadd.f32 %v1766, %v1837
    %v1850 = vadd.f32 %v1767, %v1823
    %v1851 = vadd.f32 %v1768, %v1838
    %v1852 = vadd.f32 %v1769, %v1827
    %v1853 = vadd.f32 %v1770, %v1839
    %v1854 = vadd.f32 %v1771, %v1831
    %v1855 = vadd.f32 %v1772, %v1840
    %v1856 = vadd.f32 %v1773, %v1835
    %s1857 = sld [smem:[#allocation4 + $0xf]]
    %v1858 = vstv %s1857
    %v1859 = vmul.f32 %v1858, %v419
    %v1860 = vmul.f32 %v1858, %v420
    %v1861 = vmul.f32 %v1858, %v325
    %v1862 = vmul.f32 %v1858, %v326
    %v1863 = vmul.f32 %v1858, %v421
    %v1864 = vmul.f32 %v1858, %v422
    %v1865 = vmul.f32 %v1858, %v423
    %v1866 = vmul.f32 %v1858, %v424
    %v1867 = vmul.f32 %v1858, %v331
    %v1868 = vmul.f32 %v1858, %v332
    %v1869 = vmul.f32 %v1858, %v425
    %v1870 = vmul.f32 %v1858, %v426
    %v1883 = vrot.slane %v1859, 2
    %v1884 = vrot.slane %v1861, 2
    %v1885 = vsel %vm452, %v1883, %v1884
    %v1886 = vrot.slane %v1860, 2
    %v1887 = vrot.slane %v1862, 2
    %v1888 = vsel %vm452, %v1886, %v1887
    %v1889 = vrot.slane %v1863, 2
    %v1890 = vsel %vm452, %v1884, %v1889
    %v1891 = vrot.slane %v1864, 2
    %v1892 = vsel %vm452, %v1887, %v1891
    %v1893 = vrot.slane %v1865, 2
    %v1894 = vrot.slane %v1867, 2
    %v1895 = vsel %vm452, %v1893, %v1894
    %v1896 = vrot.slane %v1866, 2
    %v1897 = vrot.slane %v1868, 2
    %v1898 = vsel %vm452, %v1896, %v1897
    %v1899 = vrot.slane %v1869, 2
    %v1900 = vsel %vm452, %v1894, %v1899
    %v1901 = vrot.slane %v1870, 2
    %v1902 = vsel %vm452, %v1897, %v1901
    %1903 = vrot.lane.b32.xlu0 %v1885, 117
    %v1904 = vpop.permute.xlu0 %1903
    %1905 = vrot.lane.b32.xlu0 %v1888, 117
    %v1906 = vpop.permute.xlu0 %1905
    %1907 = vrot.lane.b32.xlu0 %v1890, 117
    %v1908 = vpop.permute.xlu0 %1907
    %1909 = vrot.lane.b32.xlu0 %v1892, 117
    %v1910 = vpop.permute.xlu0 %1909
    %1911 = vrot.lane.b32.xlu0 %v1895, 117
    %v1912 = vpop.permute.xlu0 %1911
    %1913 = vrot.lane.b32.xlu0 %v1898, 117
    %v1914 = vpop.permute.xlu0 %1913
    %1915 = vrot.lane.b32.xlu0 %v1900, 117
    %v1916 = vpop.permute.xlu0 %1915
    %1917 = vrot.lane.b32.xlu0 %v1902, 117
    %v1918 = vpop.permute.xlu0 %1917
    %v1919 = vsel %vm1836, %v1904, %v1906
    %v1920 = vsel %vm1836, %v1908, %v1910
    %v1921 = vsel %vm1836, %v1912, %v1914
    %v1922 = vsel %vm1836, %v1916, %v1918
    %v1931 = vadd.f32 %v1849, %v1919
    %v1932 = vadd.f32 %v1850, %v1906
    %v1933 = vadd.f32 %v1851, %v1920
    %v1934 = vadd.f32 %v1852, %v1910
    %v1935 = vadd.f32 %v1853, %v1921
    %v1936 = vadd.f32 %v1854, %v1914
    %v1937 = vadd.f32 %v1855, %v1922
    %v1938 = vadd.f32 %v1856, %v1918
    %s1939 = sld [smem:[#allocation4 + $0x18]]
    %v1940 = vstv %s1939
    %v1941 = vmul.f32 %v1940, %v510
    %v1942 = vmul.f32 %v1940, %v511
    %v1943 = vmul.f32 %v1940, %v325
    %v1944 = vmul.f32 %v1940, %v326
    %v1945 = vmul.f32 %v1940, %v512
    %v1946 = vmul.f32 %v1940, %v513
    %v1947 = vmul.f32 %v1940, %v514
    %v1948 = vmul.f32 %v1940, %v515
    %v1949 = vmul.f32 %v1940, %v331
    %v1950 = vmul.f32 %v1940, %v332
    %v1951 = vmul.f32 %v1940, %v516
    %v1952 = vmul.f32 %v1940, %v517
    %v1965 = vrot.slane %v1941, 3
    %v1966 = vrot.slane %v1943, 3
    %v1967 = vsel %vm543, %v1965, %v1966
    %v1968 = vrot.slane %v1942, 3
    %v1969 = vrot.slane %v1944, 3
    %v1970 = vsel %vm543, %v1968, %v1969
    %v1971 = vrot.slane %v1945, 3
    %v1972 = vsel %vm543, %v1966, %v1971
    %v1973 = vrot.slane %v1946, 3
    %v1974 = vsel %vm543, %v1969, %v1973
    %v1975 = vrot.slane %v1947, 3
    %v1976 = vrot.slane %v1949, 3
    %v1977 = vsel %vm543, %v1975, %v1976
    %v1978 = vrot.slane %v1948, 3
    %v1979 = vrot.slane %v1950, 3
    %v1980 = vsel %vm543, %v1978, %v1979
    %v1981 = vrot.slane %v1951, 3
    %v1982 = vsel %vm543, %v1976, %v1981
    %v1983 = vrot.slane %v1952, 3
    %v1984 = vsel %vm543, %v1979, %v1983
    %1985 = vrot.lane.b32.xlu0 %v1967, 117
    %v1986 = vpop.permute.xlu0 %1985
    %1987 = vrot.lane.b32.xlu0 %v1970, 117
    %v1988 = vpop.permute.xlu0 %1987
    %1989 = vrot.lane.b32.xlu0 %v1972, 117
    %v1990 = vpop.permute.xlu0 %1989
    %1991 = vrot.lane.b32.xlu0 %v1974, 117
    %v1992 = vpop.permute.xlu0 %1991
    %1993 = vrot.lane.b32.xlu0 %v1977, 117
    %v1994 = vpop.permute.xlu0 %1993
    %1995 = vrot.lane.b32.xlu0 %v1980, 117
    %v1996 = vpop.permute.xlu0 %1995
    %1997 = vrot.lane.b32.xlu0 %v1982, 117
    %v1998 = vpop.permute.xlu0 %1997
    %1999 = vrot.lane.b32.xlu0 %v1984, 117
    %v2000 = vpop.permute.xlu0 %1999
    %v2001 = vsel %vm1836, %v1986, %v1988
    %v2002 = vsel %vm1836, %v1990, %v1992
    %v2003 = vsel %vm1836, %v1994, %v1996
    %v2004 = vsel %vm1836, %v1998, %v2000
    %v2013 = vadd.f32 %v1931, %v2001
    %v2014 = vadd.f32 %v1932, %v1988
    %v2015 = vadd.f32 %v1933, %v2002
    %v2016 = vadd.f32 %v1934, %v1992
    %v2017 = vadd.f32 %v1935, %v2003
    %v2018 = vadd.f32 %v1936, %v1996
    %v2019 = vadd.f32 %v1937, %v2004
    %v2020 = vadd.f32 %v1938, %v2000
    %s2021 = sld [smem:[#allocation4 + $0x7]]
    %v2022 = vstv %s2021
    %v2023 = vmul.f32 %v2022, %v323
    %v2024 = vmul.f32 %v2022, %v324
    %v2025 = vmul.f32 %v2022, %v325
    %v2026 = vmul.f32 %v2022, %v326
    %v2027 = vmul.f32 %v2022, %v327
    %v2028 = vmul.f32 %v2022, %v328
    %v2029 = vmul.f32 %v2022, %v329
    %v2030 = vmul.f32 %v2022, %v330
    %v2031 = vmul.f32 %v2022, %v331
    %v2032 = vmul.f32 %v2022, %v332
    %v2033 = vmul.f32 %v2022, %v333
    %v2034 = vmul.f32 %v2022, %v334
    %v2047 = vrot.slane %v2023, 1
    %v2048 = vrot.slane %v2025, 1
    %v2049 = vsel %vm360, %v2047, %v2048
    %v2050 = vrot.slane %v2024, 1
    %v2051 = vrot.slane %v2026, 1
    %v2052 = vsel %vm360, %v2050, %v2051
    %v2053 = vrot.slane %v2027, 1
    %v2054 = vsel %vm360, %v2048, %v2053
    %v2055 = vrot.slane %v2028, 1
    %v2056 = vsel %vm360, %v2051, %v2055
    %v2057 = vrot.slane %v2029, 1
    %v2058 = vrot.slane %v2031, 1
    %v2059 = vsel %vm360, %v2057, %v2058
    %v2060 = vrot.slane %v2030, 1
    %v2061 = vrot.slane %v2032, 1
    %v2062 = vsel %vm360, %v2060, %v2061
    %v2063 = vrot.slane %v2033, 1
    %v2064 = vsel %vm360, %v2058, %v2063
    %v2065 = vrot.slane %v2034, 1
    %v2066 = vsel %vm360, %v2061, %v2065
    %2067 = vrot.lane.b32.xlu0 %v2049, 116
    %v2068 = vpop.permute.xlu0 %2067
    %2069 = vrot.lane.b32.xlu0 %v2052, 116
    %v2070 = vpop.permute.xlu0 %2069
    %2071 = vrot.lane.b32.xlu0 %v2054, 116
    %v2072 = vpop.permute.xlu0 %2071
    %2073 = vrot.lane.b32.xlu0 %v2056, 116
    %v2074 = vpop.permute.xlu0 %2073
    %2075 = vrot.lane.b32.xlu0 %v2059, 116
    %v2076 = vpop.permute.xlu0 %2075
    %2077 = vrot.lane.b32.xlu0 %v2062, 116
    %v2078 = vpop.permute.xlu0 %2077
    %2079 = vrot.lane.b32.xlu0 %v2064, 116
    %v2080 = vpop.permute.xlu0 %2079
    %2081 = vrot.lane.b32.xlu0 %v2066, 116
    %v2082 = vpop.permute.xlu0 %2081
    %vm2083 = vcmask 949248
    %v2084 = vsel %vm2083, %v2068, %v2070
    %v2085 = vsel %vm2083, %v2072, %v2074
    %v2086 = vsel %vm2083, %v2076, %v2078
    %v2087 = vsel %vm2083, %v2080, %v2082
    %v2096 = vadd.f32 %v2013, %v2084
    %v2097 = vadd.f32 %v2014, %v2070
    %v2098 = vadd.f32 %v2015, %v2085
    %v2099 = vadd.f32 %v2016, %v2074
    %v2100 = vadd.f32 %v2017, %v2086
    %v2101 = vadd.f32 %v2018, %v2078
    %v2102 = vadd.f32 %v2019, %v2087
    %v2103 = vadd.f32 %v2020, %v2082
    %s2104 = sld [smem:[#allocation4 + $0x10]]
    %v2105 = vstv %s2104
    %v2106 = vmul.f32 %v2105, %v419
    %v2107 = vmul.f32 %v2105, %v420
    %v2108 = vmul.f32 %v2105, %v325
    %v2109 = vmul.f32 %v2105, %v326
    %v2110 = vmul.f32 %v2105, %v421
    %v2111 = vmul.f32 %v2105, %v422
    %v2112 = vmul.f32 %v2105, %v423
    %v2113 = vmul.f32 %v2105, %v424
    %v2114 = vmul.f32 %v2105, %v331
    %v2115 = vmul.f32 %v2105, %v332
    %v2116 = vmul.f32 %v2105, %v425
    %v2117 = vmul.f32 %v2105, %v426
    %v2130 = vrot.slane %v2106, 2
    %v2131 = vrot.slane %v2108, 2
    %v2132 = vsel %vm452, %v2130, %v2131
    %v2133 = vrot.slane %v2107, 2
    %v2134 = vrot.slane %v2109, 2
    %v2135 = vsel %vm452, %v2133, %v2134
    %v2136 = vrot.slane %v2110, 2
    %v2137 = vsel %vm452, %v2131, %v2136
    %v2138 = vrot.slane %v2111, 2
    %v2139 = vsel %vm452, %v2134, %v2138
    %v2140 = vrot.slane %v2112, 2
    %v2141 = vrot.slane %v2114, 2
    %v2142 = vsel %vm452, %v2140, %v2141
    %v2143 = vrot.slane %v2113, 2
    %v2144 = vrot.slane %v2115, 2
    %v2145 = vsel %vm452, %v2143, %v2144
    %v2146 = vrot.slane %v2116, 2
    %v2147 = vsel %vm452, %v2141, %v2146
    %v2148 = vrot.slane %v2117, 2
    %v2149 = vsel %vm452, %v2144, %v2148
    %2150 = vrot.lane.b32.xlu0 %v2132, 116
    %v2151 = vpop.permute.xlu0 %2150
    %2152 = vrot.lane.b32.xlu0 %v2135, 116
    %v2153 = vpop.permute.xlu0 %2152
    %2154 = vrot.lane.b32.xlu0 %v2137, 116
    %v2155 = vpop.permute.xlu0 %2154
    %2156 = vrot.lane.b32.xlu0 %v2139, 116
    %v2157 = vpop.permute.xlu0 %2156
    %2158 = vrot.lane.b32.xlu0 %v2142, 116
    %v2159 = vpop.permute.xlu0 %2158
    %2160 = vrot.lane.b32.xlu0 %v2145, 116
    %v2161 = vpop.permute.xlu0 %2160
    %2162 = vrot.lane.b32.xlu0 %v2147, 116
    %v2163 = vpop.permute.xlu0 %2162
    %2164 = vrot.lane.b32.xlu0 %v2149, 116
    %v2165 = vpop.permute.xlu0 %2164
    %v2166 = vsel %vm2083, %v2151, %v2153
    %v2167 = vsel %vm2083, %v2155, %v2157
    %v2168 = vsel %vm2083, %v2159, %v2161
    %v2169 = vsel %vm2083, %v2163, %v2165
    %v2178 = vadd.f32 %v2096, %v2166
    %v2179 = vadd.f32 %v2097, %v2153
    %v2180 = vadd.f32 %v2098, %v2167
    %v2181 = vadd.f32 %v2099, %v2157
    %v2182 = vadd.f32 %v2100, %v2168
    %v2183 = vadd.f32 %v2101, %v2161
    %v2184 = vadd.f32 %v2102, %v2169
    %v2185 = vadd.f32 %v2103, %v2165
    %s2186 = sld [smem:[#allocation4 + $0x19]]
    %v2187 = vstv %s2186
    %v2188 = vmul.f32 %v2187, %v510
    %v2189 = vmul.f32 %v2187, %v511
    %v2190 = vmul.f32 %v2187, %v325
    %v2191 = vmul.f32 %v2187, %v326
    %v2192 = vmul.f32 %v2187, %v512
    %v2193 = vmul.f32 %v2187, %v513
    %v2194 = vmul.f32 %v2187, %v514
    %v2195 = vmul.f32 %v2187, %v515
    %v2196 = vmul.f32 %v2187, %v331
    %v2197 = vmul.f32 %v2187, %v332
    %v2198 = vmul.f32 %v2187, %v516
    %v2199 = vmul.f32 %v2187, %v517
    %v2212 = vrot.slane %v2188, 3
    %v2213 = vrot.slane %v2190, 3
    %v2214 = vsel %vm543, %v2212, %v2213
    %v2215 = vrot.slane %v2189, 3
    %v2216 = vrot.slane %v2191, 3
    %v2217 = vsel %vm543, %v2215, %v2216
    %v2218 = vrot.slane %v2192, 3
    %v2219 = vsel %vm543, %v2213, %v2218
    %v2220 = vrot.slane %v2193, 3
    %v2221 = vsel %vm543, %v2216, %v2220
    %v2222 = vrot.slane %v2194, 3
    %v2223 = vrot.slane %v2196, 3
    %v2224 = vsel %vm543, %v2222, %v2223
    %v2225 = vrot.slane %v2195, 3
    %v2226 = vrot.slane %v2197, 3
    %v2227 = vsel %vm543, %v2225, %v2226
    %v2228 = vrot.slane %v2198, 3
    %v2229 = vsel %vm543, %v2223, %v2228
    %v2230 = vrot.slane %v2199, 3
    %v2231 = vsel %vm543, %v2226, %v2230
    %2232 = vrot.lane.b32.xlu0 %v2214, 116
    %v2233 = vpop.permute.xlu0 %2232
    %2234 = vrot.lane.b32.xlu0 %v2217, 116
    %v2235 = vpop.permute.xlu0 %2234
    %2236 = vrot.lane.b32.xlu0 %v2219, 116
    %v2237 = vpop.permute.xlu0 %2236
    %2238 = vrot.lane.b32.xlu0 %v2221, 116
    %v2239 = vpop.permute.xlu0 %2238
    %2240 = vrot.lane.b32.xlu0 %v2224, 116
    %v2241 = vpop.permute.xlu0 %2240
    %2242 = vrot.lane.b32.xlu0 %v2227, 116
    %v2243 = vpop.permute.xlu0 %2242
    %2244 = vrot.lane.b32.xlu0 %v2229, 116
    %v2245 = vpop.permute.xlu0 %2244
    %2246 = vrot.lane.b32.xlu0 %v2231, 116
    %v2247 = vpop.permute.xlu0 %2246
    %v2248 = vsel %vm2083, %v2233, %v2235
    %v2249 = vsel %vm2083, %v2237, %v2239
    %v2250 = vsel %vm2083, %v2241, %v2243
    %v2251 = vsel %vm2083, %v2245, %v2247
    %v2260 = vadd.f32 %v2178, %v2248
    %v2261 = vadd.f32 %v2179, %v2235
    %v2262 = vadd.f32 %v2180, %v2249
    %v2263 = vadd.f32 %v2181, %v2239
    %v2264 = vadd.f32 %v2182, %v2250
    %v2265 = vadd.f32 %v2183, %v2243
    %v2266 = vadd.f32 %v2184, %v2251
    %v2267 = vadd.f32 %v2185, %v2247
    %s2268 = sld [smem:[#allocation4 + $0x8]]
    %v2269 = vstv %s2268
    %v2270 = vmul.f32 %v2269, %v323
    %v2271 = vmul.f32 %v2269, %v324
    %v2272 = vmul.f32 %v2269, %v325
    %v2273 = vmul.f32 %v2269, %v326
    %v2274 = vmul.f32 %v2269, %v327
    %v2275 = vmul.f32 %v2269, %v328
    %v2276 = vmul.f32 %v2269, %v329
    %v2277 = vmul.f32 %v2269, %v330
    %v2278 = vmul.f32 %v2269, %v331
    %v2279 = vmul.f32 %v2269, %v332
    %v2280 = vmul.f32 %v2269, %v333
    %v2281 = vmul.f32 %v2269, %v334
    %v2294 = vrot.slane %v2270, 1
    %v2295 = vrot.slane %v2272, 1
    %v2296 = vsel %vm360, %v2294, %v2295
    %v2297 = vrot.slane %v2271, 1
    %v2298 = vrot.slane %v2273, 1
    %v2299 = vsel %vm360, %v2297, %v2298
    %v2300 = vrot.slane %v2274, 1
    %v2301 = vsel %vm360, %v2295, %v2300
    %v2302 = vrot.slane %v2275, 1
    %v2303 = vsel %vm360, %v2298, %v2302
    %v2304 = vrot.slane %v2276, 1
    %v2305 = vrot.slane %v2278, 1
    %v2306 = vsel %vm360, %v2304, %v2305
    %v2307 = vrot.slane %v2277, 1
    %v2308 = vrot.slane %v2279, 1
    %v2309 = vsel %vm360, %v2307, %v2308
    %v2310 = vrot.slane %v2280, 1
    %v2311 = vsel %vm360, %v2305, %v2310
    %v2312 = vrot.slane %v2281, 1
    %v2313 = vsel %vm360, %v2308, %v2312
    %2314 = vrot.lane.b32.xlu0 %v2296, 115
    %v2315 = vpop.permute.xlu0 %2314
    %2316 = vrot.lane.b32.xlu0 %v2299, 115
    %v2317 = vpop.permute.xlu0 %2316
    %2318 = vrot.lane.b32.xlu0 %v2301, 115
    %v2319 = vpop.permute.xlu0 %2318
    %2320 = vrot.lane.b32.xlu0 %v2303, 115
    %v2321 = vpop.permute.xlu0 %2320
    %2322 = vrot.lane.b32.xlu0 %v2306, 115
    %v2323 = vpop.permute.xlu0 %2322
    %2324 = vrot.lane.b32.xlu0 %v2309, 115
    %v2325 = vpop.permute.xlu0 %2324
    %2326 = vrot.lane.b32.xlu0 %v2311, 115
    %v2327 = vpop.permute.xlu0 %2326
    %2328 = vrot.lane.b32.xlu0 %v2313, 115
    %v2329 = vpop.permute.xlu0 %2328
    %vm2330 = vcmask 941056
    %v2331 = vsel %vm2330, %v2315, %v2317
    %v2332 = vsel %vm2330, %v2319, %v2321
    %v2333 = vsel %vm2330, %v2323, %v2325
    %v2334 = vsel %vm2330, %v2327, %v2329
    %v2343 = vadd.f32 %v2260, %v2331
    %v2344 = vadd.f32 %v2261, %v2317
    %v2345 = vadd.f32 %v2262, %v2332
    %v2346 = vadd.f32 %v2263, %v2321
    %v2347 = vadd.f32 %v2264, %v2333
    %v2348 = vadd.f32 %v2265, %v2325
    %v2349 = vadd.f32 %v2266, %v2334
    %v2350 = vadd.f32 %v2267, %v2329
    %s2351 = sld [smem:[#allocation4 + $0x11]]
    %v2352 = vstv %s2351
    %v2353 = vmul.f32 %v2352, %v419
    %v2354 = vmul.f32 %v2352, %v420
    %v2355 = vmul.f32 %v2352, %v325
    %v2356 = vmul.f32 %v2352, %v326
    %v2357 = vmul.f32 %v2352, %v421
    %v2358 = vmul.f32 %v2352, %v422
    %v2359 = vmul.f32 %v2352, %v423
    %v2360 = vmul.f32 %v2352, %v424
    %v2361 = vmul.f32 %v2352, %v331
    %v2362 = vmul.f32 %v2352, %v332
    %v2363 = vmul.f32 %v2352, %v425
    %v2364 = vmul.f32 %v2352, %v426
    %v2377 = vrot.slane %v2353, 2
    %v2378 = vrot.slane %v2355, 2
    %v2379 = vsel %vm452, %v2377, %v2378
    %v2380 = vrot.slane %v2354, 2
    %v2381 = vrot.slane %v2356, 2
    %v2382 = vsel %vm452, %v2380, %v2381
    %v2383 = vrot.slane %v2357, 2
    %v2384 = vsel %vm452, %v2378, %v2383
    %v2385 = vrot.slane %v2358, 2
    %v2386 = vsel %vm452, %v2381, %v2385
    %v2387 = vrot.slane %v2359, 2
    %v2388 = vrot.slane %v2361, 2
    %v2389 = vsel %vm452, %v2387, %v2388
    %v2390 = vrot.slane %v2360, 2
    %v2391 = vrot.slane %v2362, 2
    %v2392 = vsel %vm452, %v2390, %v2391
    %v2393 = vrot.slane %v2363, 2
    %v2394 = vsel %vm452, %v2388, %v2393
    %v2395 = vrot.slane %v2364, 2
    %v2396 = vsel %vm452, %v2391, %v2395
    %2397 = vrot.lane.b32.xlu0 %v2379, 115
    %v2398 = vpop.permute.xlu0 %2397
    %2399 = vrot.lane.b32.xlu0 %v2382, 115
    %v2400 = vpop.permute.xlu0 %2399
    %2401 = vrot.lane.b32.xlu0 %v2384, 115
    %v2402 = vpop.permute.xlu0 %2401
    %2403 = vrot.lane.b32.xlu0 %v2386, 115
    %v2404 = vpop.permute.xlu0 %2403
    %2405 = vrot.lane.b32.xlu0 %v2389, 115
    %v2406 = vpop.permute.xlu0 %2405
    %2407 = vrot.lane.b32.xlu0 %v2392, 115
    %v2408 = vpop.permute.xlu0 %2407
    %2409 = vrot.lane.b32.xlu0 %v2394, 115
    %v2410 = vpop.permute.xlu0 %2409
    %2411 = vrot.lane.b32.xlu0 %v2396, 115
    %v2412 = vpop.permute.xlu0 %2411
    %v2413 = vsel %vm2330, %v2398, %v2400
    %v2414 = vsel %vm2330, %v2402, %v2404
    %v2415 = vsel %vm2330, %v2406, %v2408
    %v2416 = vsel %vm2330, %v2410, %v2412
    %v2425 = vadd.f32 %v2343, %v2413
    %v2426 = vadd.f32 %v2344, %v2400
    %v2427 = vadd.f32 %v2345, %v2414
    %v2428 = vadd.f32 %v2346, %v2404
    %v2429 = vadd.f32 %v2347, %v2415
    %v2430 = vadd.f32 %v2348, %v2408
    %v2431 = vadd.f32 %v2349, %v2416
    %v2432 = vadd.f32 %v2350, %v2412
    %s2433 = sld [smem:[#allocation4 + $0x1a]]
    %v2434 = vstv %s2433
    %v2435 = vmul.f32 %v2434, %v510
    %v2436 = vmul.f32 %v2434, %v511
    %v2437 = vmul.f32 %v2434, %v325
    %v2438 = vmul.f32 %v2434, %v326
    %v2439 = vmul.f32 %v2434, %v512
    %v2440 = vmul.f32 %v2434, %v513
    %v2441 = vmul.f32 %v2434, %v514
    %v2442 = vmul.f32 %v2434, %v515
    %v2443 = vmul.f32 %v2434, %v331
    %v2444 = vmul.f32 %v2434, %v332
    %v2445 = vmul.f32 %v2434, %v516
    %v2446 = vmul.f32 %v2434, %v517
    %v2459 = vrot.slane %v2435, 3
    %v2460 = vrot.slane %v2437, 3
    %v2461 = vsel %vm543, %v2459, %v2460
    %v2462 = vrot.slane %v2436, 3
    %v2463 = vrot.slane %v2438, 3
    %v2464 = vsel %vm543, %v2462, %v2463
    %v2465 = vrot.slane %v2439, 3
    %v2466 = vsel %vm543, %v2460, %v2465
    %v2467 = vrot.slane %v2440, 3
    %v2468 = vsel %vm543, %v2463, %v2467
    %v2469 = vrot.slane %v2441, 3
    %v2470 = vrot.slane %v2443, 3
    %v2471 = vsel %vm543, %v2469, %v2470
    %v2472 = vrot.slane %v2442, 3
    %v2473 = vrot.slane %v2444, 3
    %v2474 = vsel %vm543, %v2472, %v2473
    %v2475 = vrot.slane %v2445, 3
    %v2476 = vsel %vm543, %v2470, %v2475
    %v2477 = vrot.slane %v2446, 3
    %v2478 = vsel %vm543, %v2473, %v2477
    %2479 = vrot.lane.b32.xlu0 %v2461, 115
    %v2480 = vpop.permute.xlu0 %2479
    %2481 = vrot.lane.b32.xlu0 %v2464, 115
    %v2482 = vpop.permute.xlu0 %2481
    %2483 = vrot.lane.b32.xlu0 %v2466, 115
    %v2484 = vpop.permute.xlu0 %2483
    %2485 = vrot.lane.b32.xlu0 %v2468, 115
    %v2486 = vpop.permute.xlu0 %2485
    %2487 = vrot.lane.b32.xlu0 %v2471, 115
    %v2488 = vpop.permute.xlu0 %2487
    %2489 = vrot.lane.b32.xlu0 %v2474, 115
    %v2490 = vpop.permute.xlu0 %2489
    %2491 = vrot.lane.b32.xlu0 %v2476, 115
    %v2492 = vpop.permute.xlu0 %2491
    %2493 = vrot.lane.b32.xlu0 %v2478, 115
    %v2494 = vpop.permute.xlu0 %2493
    %v2495 = vsel %vm2330, %v2480, %v2482
    %v2496 = vsel %vm2330, %v2484, %v2486
    %v2497 = vsel %vm2330, %v2488, %v2490
    %v2498 = vsel %vm2330, %v2492, %v2494
    %v2507 = vadd.f32 %v2425, %v2495
    %v2508 = vadd.f32 %v2426, %v2482
    %v2509 = vadd.f32 %v2427, %v2496
    %v2510 = vadd.f32 %v2428, %v2486
    %v2511 = vadd.f32 %v2429, %v2497
    %v2512 = vadd.f32 %v2430, %v2490
    %v2513 = vadd.f32 %v2431, %v2498
    %v2514 = vadd.f32 %v2432, %v2494
    %s2515 = sld [smem:[#allocation6]]
    %v2516 = vld [vmem:[#allocation2] sm:$0xff]
    %v2517 = vld [vmem:[#allocation2 + $0x10] sm:$0xff]
    %v2518 = vld [vmem:[#allocation2 + $0x30] sm:$0xff]
    %v2519 = vld [vmem:[#allocation2 + $0x40] sm:$0xff]
    %v2520 = vstv %s2515
    %v2521 = vmul.f32 %v2520, %v2516
    %v2522 = vmul.f32 %v2520, %v2517
    %v2523 = vmul.f32 %v2520, %v2518
    %v2524 = vmul.f32 %v2520, %v2519
    %2529 = vrot.lane.b32.xlu0 %v2521, 26
    %v2530 = vpop.permute.xlu0 %2529
    %2531 = vrot.lane.b32.xlu0 %v2522, 26
    %v2532 = vpop.permute.xlu0 %2531
    %2533 = vrot.lane.b32.xlu0 %v2523, 26
    %v2534 = vpop.permute.xlu0 %2533
    %2535 = vrot.lane.b32.xlu0 %v2524, 26
    %v2536 = vpop.permute.xlu0 %2535
    %v2541 = vadd.f32 %v2507, %v2530
    %v2542 = vadd.f32 %v2508, %v2530
    %v2543 = vadd.f32 %v2509, %v2532
    %v2544 = vadd.f32 %v2510, %v2532
    %v2545 = vadd.f32 %v2511, %v2534
    %v2546 = vadd.f32 %v2512, %v2534
    %v2547 = vadd.f32 %v2513, %v2536
    %v2548 = vadd.f32 %v2514, %v2536
    %s2549 = sld [smem:[#allocation6 + $0x19]]
    %v2550 = vld [vmem:[#allocation2] sm:$0xfe]
    %v2551 = vld [vmem:[#allocation2 + $0x10] sm:$0xff]
    %v2552 = vld [vmem:[#allocation2 + $0x20] sm:$0x1]
    %v2553 = vld [vmem:[#allocation2 + $0x30] sm:$0xfe]
    %v2554 = vld [vmem:[#allocation2 + $0x40] sm:$0xff]
    %v2555 = vld [vmem:[#allocation2 + $0x50] sm:$0x1]
    %v2556 = vstv %s2549
    %v2557 = vmul.f32 %v2556, %v2550
    %v2558 = vmul.f32 %v2556, %v2551
    %v2559 = vmul.f32 %v2556, %v2552
    %v2560 = vmul.f32 %v2556, %v2553
    %v2561 = vmul.f32 %v2556, %v2554
    %v2562 = vmul.f32 %v2556, %v2555
    %v2569 = vrot.slane %v2557, 1
    %v2570 = vrot.slane %v2558, 1
    %v2571 = vsel %vm360, %v2569, %v2570
    %v2572 = vrot.slane %v2559, 1
    %v2573 = vsel %vm360, %v2570, %v2572
    %v2574 = vrot.slane %v2560, 1
    %v2575 = vrot.slane %v2561, 1
    %v2576 = vsel %vm360, %v2574, %v2575
    %v2577 = vrot.slane %v2562, 1
    %v2578 = vsel %vm360, %v2575, %v2577
    %2579 = vrot.lane.b32.xlu0 %v2571, 26
    %v2580 = vpop.permute.xlu0 %2579
    %2581 = vrot.lane.b32.xlu0 %v2573, 26
    %v2582 = vpop.permute.xlu0 %2581
    %2583 = vrot.lane.b32.xlu0 %v2576, 26
    %v2584 = vpop.permute.xlu0 %2583
    %2585 = vrot.lane.b32.xlu0 %v2578, 26
    %v2586 = vpop.permute.xlu0 %2585
    %v2591 = vadd.f32 %v2541, %v2580
    %v2592 = vadd.f32 %v2542, %v2580
    %v2593 = vadd.f32 %v2543, %v2582
    %v2594 = vadd.f32 %v2544, %v2582
    %v2595 = vadd.f32 %v2545, %v2584
    %v2596 = vadd.f32 %v2546, %v2584
    %v2597 = vadd.f32 %v2547, %v2586
    %v2598 = vadd.f32 %v2548, %v2586
    %s2599 = sld [smem:[#allocation6 + $0x32]]
    %v2600 = vld [vmem:[#allocation2] sm:$0xfc]
    %v2601 = vld [vmem:[#allocation2 + $0x20] sm:$0x3]
    %v2602 = vld [vmem:[#allocation2 + $0x30] sm:$0xfc]
    %v2603 = vld [vmem:[#allocation2 + $0x50] sm:$0x3]
    %v2604 = vstv %s2599
    %v2605 = vmul.f32 %v2604, %v2600
    %v2606 = vmul.f32 %v2604, %v2551
    %v2607 = vmul.f32 %v2604, %v2601
    %v2608 = vmul.f32 %v2604, %v2602
    %v2609 = vmul.f32 %v2604, %v2554
    %v2610 = vmul.f32 %v2604, %v2603
    %v2617 = vrot.slane %v2605, 2
    %v2618 = vrot.slane %v2606, 2
    %v2619 = vsel %vm452, %v2617, %v2618
    %v2620 = vrot.slane %v2607, 2
    %v2621 = vsel %vm452, %v2618, %v2620
    %v2622 = vrot.slane %v2608, 2
    %v2623 = vrot.slane %v2609, 2
    %v2624 = vsel %vm452, %v2622, %v2623
    %v2625 = vrot.slane %v2610, 2
    %v2626 = vsel %vm452, %v2623, %v2625
    %2627 = vrot.lane.b32.xlu0 %v2619, 26
    %v2628 = vpop.permute.xlu0 %2627
    %2629 = vrot.lane.b32.xlu0 %v2621, 26
    %v2630 = vpop.permute.xlu0 %2629
    %2631 = vrot.lane.b32.xlu0 %v2624, 26
    %v2632 = vpop.permute.xlu0 %2631
    %2633 = vrot.lane.b32.xlu0 %v2626, 26
    %v2634 = vpop.permute.xlu0 %2633
    %v2639 = vadd.f32 %v2591, %v2628
    %v2640 = vadd.f32 %v2592, %v2628
    %v2641 = vadd.f32 %v2593, %v2630
    %v2642 = vadd.f32 %v2594, %v2630
    %v2643 = vadd.f32 %v2595, %v2632
    %v2644 = vadd.f32 %v2596, %v2632
    %v2645 = vadd.f32 %v2597, %v2634
    %v2646 = vadd.f32 %v2598, %v2634
    %s2647 = sld [smem:[#allocation6 + $0x4b]]
    %v2648 = vld [vmem:[#allocation2] sm:$0xf8]
    %v2649 = vld [vmem:[#allocation2 + $0x20] sm:$0x7]
    %v2650 = vld [vmem:[#allocation2 + $0x30] sm:$0xf8]
    %v2651 = vld [vmem:[#allocation2 + $0x50] sm:$0x7]
    %v2652 = vstv %s2647
    %v2653 = vmul.f32 %v2652, %v2648
    %v2654 = vmul.f32 %v2652, %v2551
    %v2655 = vmul.f32 %v2652, %v2649
    %v2656 = vmul.f32 %v2652, %v2650
    %v2657 = vmul.f32 %v2652, %v2554
    %v2658 = vmul.f32 %v2652, %v2651
    %v2665 = vrot.slane %v2653, 3
    %v2666 = vrot.slane %v2654, 3
    %v2667 = vsel %vm543, %v2665, %v2666
    %v2668 = vrot.slane %v2655, 3
    %v2669 = vsel %vm543, %v2666, %v2668
    %v2670 = vrot.slane %v2656, 3
    %v2671 = vrot.slane %v2657, 3
    %v2672 = vsel %vm543, %v2670, %v2671
    %v2673 = vrot.slane %v2658, 3
    %v2674 = vsel %vm543, %v2671, %v2673
    %2675 = vrot.lane.b32.xlu0 %v2667, 26
    %v2676 = vpop.permute.xlu0 %2675
    %2677 = vrot.lane.b32.xlu0 %v2669, 26
    %v2678 = vpop.permute.xlu0 %2677
    %2679 = vrot.lane.b32.xlu0 %v2672, 26
    %v2680 = vpop.permute.xlu0 %2679
    %2681 = vrot.lane.b32.xlu0 %v2674, 26
    %v2682 = vpop.permute.xlu0 %2681
    %v2687 = vadd.f32 %v2639, %v2676
    %v2688 = vadd.f32 %v2640, %v2676
    %v2689 = vadd.f32 %v2641, %v2678
    %v2690 = vadd.f32 %v2642, %v2678
    %v2691 = vadd.f32 %v2643, %v2680
    %v2692 = vadd.f32 %v2644, %v2680
    %v2693 = vadd.f32 %v2645, %v2682
    %v2694 = vadd.f32 %v2646, %v2682
    %s2695 = sld [smem:[#allocation6 + $0x64]]
    %v2696 = vld [vmem:[#allocation2] sm:$0xf0]
    %v2697 = vld [vmem:[#allocation2 + $0x20] sm:$0xf]
    %v2698 = vld [vmem:[#allocation2 + $0x30] sm:$0xf0]
    %v2699 = vld [vmem:[#allocation2 + $0x50] sm:$0xf]
    %v2700 = vstv %s2695
    %v2701 = vmul.f32 %v2700, %v2696
    %v2702 = vmul.f32 %v2700, %v2551
    %v2703 = vmul.f32 %v2700, %v2697
    %v2704 = vmul.f32 %v2700, %v2698
    %v2705 = vmul.f32 %v2700, %v2554
    %v2706 = vmul.f32 %v2700, %v2699
    %vm2713 = vcmask 1043456
    %v2714 = vrot.slane %v2701, 4
    %v2715 = vrot.slane %v2702, 4
    %v2716 = vsel %vm2713, %v2714, %v2715
    %v2717 = vrot.slane %v2703, 4
    %v2718 = vsel %vm2713, %v2715, %v2717
    %v2719 = vrot.slane %v2704, 4
    %v2720 = vrot.slane %v2705, 4
    %v2721 = vsel %vm2713, %v2719, %v2720
    %v2722 = vrot.slane %v2706, 4
    %v2723 = vsel %vm2713, %v2720, %v2722
    %2724 = vrot.lane.b32.xlu0 %v2716, 26
    %v2725 = vpop.permute.xlu0 %2724
    %2726 = vrot.lane.b32.xlu0 %v2718, 26
    %v2727 = vpop.permute.xlu0 %2726
    %2728 = vrot.lane.b32.xlu0 %v2721, 26
    %v2729 = vpop.permute.xlu0 %2728
    %2730 = vrot.lane.b32.xlu0 %v2723, 26
    %v2731 = vpop.permute.xlu0 %2730
    %v2736 = vadd.f32 %v2687, %v2725
    %v2737 = vadd.f32 %v2688, %v2725
    %v2738 = vadd.f32 %v2689, %v2727
    %v2739 = vadd.f32 %v2690, %v2727
    %v2740 = vadd.f32 %v2691, %v2729
    %v2741 = vadd.f32 %v2692, %v2729
    %v2742 = vadd.f32 %v2693, %v2731
    %v2743 = vadd.f32 %v2694, %v2731
    %s2744 = sld [smem:[#allocation6 + $0x1]]
    %v2745 = vld [vmem:[#allocation2] sm:$0xff]
    %v2746 = vld [vmem:[#allocation2 + $0x8] sm:$0xff]
    %v2747 = vld [vmem:[#allocation2 + $0x10] sm:$0xff]
    %v2748 = vld [vmem:[#allocation2 + $0x18] sm:$0xff]
    %v2749 = vld [vmem:[#allocation2 + $0x30] sm:$0xff]
    %v2750 = vld [vmem:[#allocation2 + $0x38] sm:$0xff]
    %v2751 = vld [vmem:[#allocation2 + $0x40] sm:$0xff]
    %v2752 = vld [vmem:[#allocation2 + $0x48] sm:$0xff]
    %v2753 = vstv %s2744
    %v2754 = vmul.f32 %v2753, %v2745
    %v2755 = vmul.f32 %v2753, %v2746
    %v2756 = vmul.f32 %v2753, %v2747
    %v2757 = vmul.f32 %v2753, %v2748
    %v2758 = vmul.f32 %v2753, %v2749
    %v2759 = vmul.f32 %v2753, %v2750
    %v2760 = vmul.f32 %v2753, %v2751
    %v2761 = vmul.f32 %v2753, %v2752
    %2770 = vrot.lane.b32.xlu0 %v2754, 25
    %v2771 = vpop.permute.xlu0 %2770
    %2772 = vrot.lane.b32.xlu0 %v2755, 25
    %v2773 = vpop.permute.xlu0 %2772
    %2774 = vrot.lane.b32.xlu0 %v2756, 25
    %v2775 = vpop.permute.xlu0 %2774
    %2776 = vrot.lane.b32.xlu0 %v2757, 25
    %v2777 = vpop.permute.xlu0 %2776
    %2778 = vrot.lane.b32.xlu0 %v2758, 25
    %v2779 = vpop.permute.xlu0 %2778
    %2780 = vrot.lane.b32.xlu0 %v2759, 25
    %v2781 = vpop.permute.xlu0 %2780
    %2782 = vrot.lane.b32.xlu0 %v2760, 25
    %v2783 = vpop.permute.xlu0 %2782
    %2784 = vrot.lane.b32.xlu0 %v2761, 25
    %v2785 = vpop.permute.xlu0 %2784
    %vm2786 = vcmask 203776
    %v2787 = vsel %vm2786, %v2771, %v2773
    %v2788 = vsel %vm2786, %v2775, %v2777
    %v2789 = vsel %vm2786, %v2779, %v2781
    %v2790 = vsel %vm2786, %v2783, %v2785
    %v2799 = vadd.f32 %v2736, %v2771
    %v2800 = vadd.f32 %v2737, %v2787
    %v2801 = vadd.f32 %v2738, %v2775
    %v2802 = vadd.f32 %v2739, %v2788
    %v2803 = vadd.f32 %v2740, %v2779
    %v2804 = vadd.f32 %v2741, %v2789
    %v2805 = vadd.f32 %v2742, %v2783
    %v2806 = vadd.f32 %v2743, %v2790
    %s2807 = sld [smem:[#allocation6 + $0x1a]]
    %v2808 = vstv %s2807
    %v2809 = vmul.f32 %v2808, %v323
    %v2810 = vmul.f32 %v2808, %v324
    %v2811 = vmul.f32 %v2808, %v325
    %v2812 = vmul.f32 %v2808, %v326
    %v2813 = vmul.f32 %v2808, %v327
    %v2814 = vmul.f32 %v2808, %v328
    %v2815 = vmul.f32 %v2808, %v329
    %v2816 = vmul.f32 %v2808, %v330
    %v2817 = vmul.f32 %v2808, %v331
    %v2818 = vmul.f32 %v2808, %v332
    %v2819 = vmul.f32 %v2808, %v333
    %v2820 = vmul.f32 %v2808, %v334
    %v2833 = vrot.slane %v2809, 1
    %v2834 = vrot.slane %v2811, 1
    %v2835 = vsel %vm360, %v2833, %v2834
    %v2836 = vrot.slane %v2810, 1
    %v2837 = vrot.slane %v2812, 1
    %v2838 = vsel %vm360, %v2836, %v2837
    %v2839 = vrot.slane %v2813, 1
    %v2840 = vsel %vm360, %v2834, %v2839
    %v2841 = vrot.slane %v2814, 1
    %v2842 = vsel %vm360, %v2837, %v2841
    %v2843 = vrot.slane %v2815, 1
    %v2844 = vrot.slane %v2817, 1
    %v2845 = vsel %vm360, %v2843, %v2844
    %v2846 = vrot.slane %v2816, 1
    %v2847 = vrot.slane %v2818, 1
    %v2848 = vsel %vm360, %v2846, %v2847
    %v2849 = vrot.slane %v2819, 1
    %v2850 = vsel %vm360, %v2844, %v2849
    %v2851 = vrot.slane %v2820, 1
    %v2852 = vsel %vm360, %v2847, %v2851
    %2853 = vrot.lane.b32.xlu0 %v2835, 25
    %v2854 = vpop.permute.xlu0 %2853
    %2855 = vrot.lane.b32.xlu0 %v2838, 25
    %v2856 = vpop.permute.xlu0 %2855
    %2857 = vrot.lane.b32.xlu0 %v2840, 25
    %v2858 = vpop.permute.xlu0 %2857
    %2859 = vrot.lane.b32.xlu0 %v2842, 25
    %v2860 = vpop.permute.xlu0 %2859
    %2861 = vrot.lane.b32.xlu0 %v2845, 25
    %v2862 = vpop.permute.xlu0 %2861
    %2863 = vrot.lane.b32.xlu0 %v2848, 25
    %v2864 = vpop.permute.xlu0 %2863
    %2865 = vrot.lane.b32.xlu0 %v2850, 25
    %v2866 = vpop.permute.xlu0 %2865
    %2867 = vrot.lane.b32.xlu0 %v2852, 25
    %v2868 = vpop.permute.xlu0 %2867
    %v2869 = vsel %vm2786, %v2854, %v2856
    %v2870 = vsel %vm2786, %v2858, %v2860
    %v2871 = vsel %vm2786, %v2862, %v2864
    %v2872 = vsel %vm2786, %v2866, %v2868
    %v2881 = vadd.f32 %v2799, %v2854
    %v2882 = vadd.f32 %v2800, %v2869
    %v2883 = vadd.f32 %v2801, %v2858
    %v2884 = vadd.f32 %v2802, %v2870
    %v2885 = vadd.f32 %v2803, %v2862
    %v2886 = vadd.f32 %v2804, %v2871
    %v2887 = vadd.f32 %v2805, %v2866
    %v2888 = vadd.f32 %v2806, %v2872
    %s2889 = sld [smem:[#allocation6 + $0x33]]
    %v2890 = vstv %s2889
    %v2891 = vmul.f32 %v2890, %v419
    %v2892 = vmul.f32 %v2890, %v420
    %v2893 = vmul.f32 %v2890, %v325
    %v2894 = vmul.f32 %v2890, %v326
    %v2895 = vmul.f32 %v2890, %v421
    %v2896 = vmul.f32 %v2890, %v422
    %v2897 = vmul.f32 %v2890, %v423
    %v2898 = vmul.f32 %v2890, %v424
    %v2899 = vmul.f32 %v2890, %v331
    %v2900 = vmul.f32 %v2890, %v332
    %v2901 = vmul.f32 %v2890, %v425
    %v2902 = vmul.f32 %v2890, %v426
    %v2915 = vrot.slane %v2891, 2
    %v2916 = vrot.slane %v2893, 2
    %v2917 = vsel %vm452, %v2915, %v2916
    %v2918 = vrot.slane %v2892, 2
    %v2919 = vrot.slane %v2894, 2
    %v2920 = vsel %vm452, %v2918, %v2919
    %v2921 = vrot.slane %v2895, 2
    %v2922 = vsel %vm452, %v2916, %v2921
    %v2923 = vrot.slane %v2896, 2
    %v2924 = vsel %vm452, %v2919, %v2923
    %v2925 = vrot.slane %v2897, 2
    %v2926 = vrot.slane %v2899, 2
    %v2927 = vsel %vm452, %v2925, %v2926
    %v2928 = vrot.slane %v2898, 2
    %v2929 = vrot.slane %v2900, 2
    %v2930 = vsel %vm452, %v2928, %v2929
    %v2931 = vrot.slane %v2901, 2
    %v2932 = vsel %vm452, %v2926, %v2931
    %v2933 = vrot.slane %v2902, 2
    %v2934 = vsel %vm452, %v2929, %v2933
    %2935 = vrot.lane.b32.xlu0 %v2917, 25
    %v2936 = vpop.permute.xlu0 %2935
    %2937 = vrot.lane.b32.xlu0 %v2920, 25
    %v2938 = vpop.permute.xlu0 %2937
    %2939 = vrot.lane.b32.xlu0 %v2922, 25
    %v2940 = vpop.permute.xlu0 %2939
    %2941 = vrot.lane.b32.xlu0 %v2924, 25
    %v2942 = vpop.permute.xlu0 %2941
    %2943 = vrot.lane.b32.xlu0 %v2927, 25
    %v2944 = vpop.permute.xlu0 %2943
    %2945 = vrot.lane.b32.xlu0 %v2930, 25
    %v2946 = vpop.permute.xlu0 %2945
    %2947 = vrot.lane.b32.xlu0 %v2932, 25
    %v2948 = vpop.permute.xlu0 %2947
    %2949 = vrot.lane.b32.xlu0 %v2934, 25
    %v2950 = vpop.permute.xlu0 %2949
    %v2951 = vsel %vm2786, %v2936, %v2938
    %v2952 = vsel %vm2786, %v2940, %v2942
    %v2953 = vsel %vm2786, %v2944, %v2946
    %v2954 = vsel %vm2786, %v2948, %v2950
    %v2963 = vadd.f32 %v2881, %v2936
    %v2964 = vadd.f32 %v2882, %v2951
    %v2965 = vadd.f32 %v2883, %v2940
    %v2966 = vadd.f32 %v2884, %v2952
    %v2967 = vadd.f32 %v2885, %v2944
    %v2968 = vadd.f32 %v2886, %v2953
    %v2969 = vadd.f32 %v2887, %v2948
    %v2970 = vadd.f32 %v2888, %v2954
    %s2971 = sld [smem:[#allocation6 + $0x4c]]
    %v2972 = vstv %s2971
    %v2973 = vmul.f32 %v2972, %v510
    %v2974 = vmul.f32 %v2972, %v511
    %v2975 = vmul.f32 %v2972, %v325
    %v2976 = vmul.f32 %v2972, %v326
    %v2977 = vmul.f32 %v2972, %v512
    %v2978 = vmul.f32 %v2972, %v513
    %v2979 = vmul.f32 %v2972, %v514
    %v2980 = vmul.f32 %v2972, %v515
    %v2981 = vmul.f32 %v2972, %v331
    %v2982 = vmul.f32 %v2972, %v332
    %v2983 = vmul.f32 %v2972, %v516
    %v2984 = vmul.f32 %v2972, %v517
    %v2997 = vrot.slane %v2973, 3
    %v2998 = vrot.slane %v2975, 3
    %v2999 = vsel %vm543, %v2997, %v2998
    %v3000 = vrot.slane %v2974, 3
    %v3001 = vrot.slane %v2976, 3
    %v3002 = vsel %vm543, %v3000, %v3001
    %v3003 = vrot.slane %v2977, 3
    %v3004 = vsel %vm543, %v2998, %v3003
    %v3005 = vrot.slane %v2978, 3
    %v3006 = vsel %vm543, %v3001, %v3005
    %v3007 = vrot.slane %v2979, 3
    %v3008 = vrot.slane %v2981, 3
    %v3009 = vsel %vm543, %v3007, %v3008
    %v3010 = vrot.slane %v2980, 3
    %v3011 = vrot.slane %v2982, 3
    %v3012 = vsel %vm543, %v3010, %v3011
    %v3013 = vrot.slane %v2983, 3
    %v3014 = vsel %vm543, %v3008, %v3013
    %v3015 = vrot.slane %v2984, 3
    %v3016 = vsel %vm543, %v3011, %v3015
    %3017 = vrot.lane.b32.xlu0 %v2999, 25
    %v3018 = vpop.permute.xlu0 %3017
    %3019 = vrot.lane.b32.xlu0 %v3002, 25
    %v3020 = vpop.permute.xlu0 %3019
    %3021 = vrot.lane.b32.xlu0 %v3004, 25
    %v3022 = vpop.permute.xlu0 %3021
    %3023 = vrot.lane.b32.xlu0 %v3006, 25
    %v3024 = vpop.permute.xlu0 %3023
    %3025 = vrot.lane.b32.xlu0 %v3009, 25
    %v3026 = vpop.permute.xlu0 %3025
    %3027 = vrot.lane.b32.xlu0 %v3012, 25
    %v3028 = vpop.permute.xlu0 %3027
    %3029 = vrot.lane.b32.xlu0 %v3014, 25
    %v3030 = vpop.permute.xlu0 %3029
    %3031 = vrot.lane.b32.xlu0 %v3016, 25
    %v3032 = vpop.permute.xlu0 %3031
    %v3033 = vsel %vm2786, %v3018, %v3020
    %v3034 = vsel %vm2786, %v3022, %v3024
    %v3035 = vsel %vm2786, %v3026, %v3028
    %v3036 = vsel %vm2786, %v3030, %v3032
    %v3045 = vadd.f32 %v2963, %v3018
    %v3046 = vadd.f32 %v2964, %v3033
    %v3047 = vadd.f32 %v2965, %v3022
    %v3048 = vadd.f32 %v2966, %v3034
    %v3049 = vadd.f32 %v2967, %v3026
    %v3050 = vadd.f32 %v2968, %v3035
    %v3051 = vadd.f32 %v2969, %v3030
    %v3052 = vadd.f32 %v2970, %v3036
    %s3053 = sld [smem:[#allocation6 + $0x65]]
    %v3054 = vld [vmem:[#allocation2] sm:$0xf0]
    %v3055 = vld [vmem:[#allocation2 + $0x8] sm:$0xf0]
    %v3056 = vld [vmem:[#allocation2 + $0x20] sm:$0xf]
    %v3057 = vld [vmem:[#allocation2 + $0x28] sm:$0xf]
    %v3058 = vld [vmem:[#allocation2 + $0x30] sm:$0xf0]
    %v3059 = vld [vmem:[#allocation2 + $0x38] sm:$0xf0]
    %v3060 = vld [vmem:[#allocation2 + $0x50] sm:$0xf]
    %v3061 = vld [vmem:[#allocation2 + $0x58] sm:$0xf]
    %v3062 = vstv %s3053
    %v3063 = vmul.f32 %v3062, %v3054
    %v3064 = vmul.f32 %v3062, %v3055
    %v3065 = vmul.f32 %v3062, %v325
    %v3066 = vmul.f32 %v3062, %v326
    %v3067 = vmul.f32 %v3062, %v3056
    %v3068 = vmul.f32 %v3062, %v3057
    %v3069 = vmul.f32 %v3062, %v3058
    %v3070 = vmul.f32 %v3062, %v3059
    %v3071 = vmul.f32 %v3062, %v331
    %v3072 = vmul.f32 %v3062, %v332
    %v3073 = vmul.f32 %v3062, %v3060
    %v3074 = vmul.f32 %v3062, %v3061
    %v3087 = vrot.slane %v3063, 4
    %v3088 = vrot.slane %v3065, 4
    %v3089 = vsel %vm2713, %v3087, %v3088
    %v3090 = vrot.slane %v3064, 4
    %v3091 = vrot.slane %v3066, 4
    %v3092 = vsel %vm2713, %v3090, %v3091
    %v3093 = vrot.slane %v3067, 4
    %v3094 = vsel %vm2713, %v3088, %v3093
    %v3095 = vrot.slane %v3068, 4
    %v3096 = vsel %vm2713, %v3091, %v3095
    %v3097 = vrot.slane %v3069, 4
    %v3098 = vrot.slane %v3071, 4
    %v3099 = vsel %vm2713, %v3097, %v3098
    %v3100 = vrot.slane %v3070, 4
    %v3101 = vrot.slane %v3072, 4
    %v3102 = vsel %vm2713, %v3100, %v3101
    %v3103 = vrot.slane %v3073, 4
    %v3104 = vsel %vm2713, %v3098, %v3103
    %v3105 = vrot.slane %v3074, 4
    %v3106 = vsel %vm2713, %v3101, %v3105
    %3107 = vrot.lane.b32.xlu0 %v3089, 25
    %v3108 = vpop.permute.xlu0 %3107
    %3109 = vrot.lane.b32.xlu0 %v3092, 25
    %v3110 = vpop.permute.xlu0 %3109
    %3111 = vrot.lane.b32.xlu0 %v3094, 25
    %v3112 = vpop.permute.xlu0 %3111
    %3113 = vrot.lane.b32.xlu0 %v3096, 25
    %v3114 = vpop.permute.xlu0 %3113
    %3115 = vrot.lane.b32.xlu0 %v3099, 25
    %v3116 = vpop.permute.xlu0 %3115
    %3117 = vrot.lane.b32.xlu0 %v3102, 25
    %v3118 = vpop.permute.xlu0 %3117
    %3119 = vrot.lane.b32.xlu0 %v3104, 25
    %v3120 = vpop.permute.xlu0 %3119
    %3121 = vrot.lane.b32.xlu0 %v3106, 25
    %v3122 = vpop.permute.xlu0 %3121
    %v3123 = vsel %vm2786, %v3108, %v3110
    %v3124 = vsel %vm2786, %v3112, %v3114
    %v3125 = vsel %vm2786, %v3116, %v3118
    %v3126 = vsel %vm2786, %v3120, %v3122
    %v3135 = vadd.f32 %v3045, %v3108
    %v3136 = vadd.f32 %v3046, %v3123
    %v3137 = vadd.f32 %v3047, %v3112
    %v3138 = vadd.f32 %v3048, %v3124
    %v3139 = vadd.f32 %v3049, %v3116
    %v3140 = vadd.f32 %v3050, %v3125
    %v3141 = vadd.f32 %v3051, %v3120
    %v3142 = vadd.f32 %v3052, %v3126
    %s3143 = sld [smem:[#allocation6 + $0x2]]
    %v3144 = vstv %s3143
    %v3145 = vmul.f32 %v3144, %v2745
    %v3146 = vmul.f32 %v3144, %v2746
    %v3147 = vmul.f32 %v3144, %v2747
    %v3148 = vmul.f32 %v3144, %v2748
    %v3149 = vmul.f32 %v3144, %v2749
    %v3150 = vmul.f32 %v3144, %v2750
    %v3151 = vmul.f32 %v3144, %v2751
    %v3152 = vmul.f32 %v3144, %v2752
    %3161 = vrot.lane.b32.xlu0 %v3145, 24
    %v3162 = vpop.permute.xlu0 %3161
    %3163 = vrot.lane.b32.xlu0 %v3146, 24
    %v3164 = vpop.permute.xlu0 %3163
    %3165 = vrot.lane.b32.xlu0 %v3147, 24
    %v3166 = vpop.permute.xlu0 %3165
    %3167 = vrot.lane.b32.xlu0 %v3148, 24
    %v3168 = vpop.permute.xlu0 %3167
    %3169 = vrot.lane.b32.xlu0 %v3149, 24
    %v3170 = vpop.permute.xlu0 %3169
    %3171 = vrot.lane.b32.xlu0 %v3150, 24
    %v3172 = vpop.permute.xlu0 %3171
    %3173 = vrot.lane.b32.xlu0 %v3151, 24
    %v3174 = vpop.permute.xlu0 %3173
    %3175 = vrot.lane.b32.xlu0 %v3152, 24
    %v3176 = vpop.permute.xlu0 %3175
    %vm3177 = vcmask 195584
    %v3178 = vsel %vm3177, %v3162, %v3164
    %v3179 = vsel %vm3177, %v3166, %v3168
    %v3180 = vsel %vm3177, %v3170, %v3172
    %v3181 = vsel %vm3177, %v3174, %v3176
    %v3190 = vadd.f32 %v3135, %v3162
    %v3191 = vadd.f32 %v3136, %v3178
    %v3192 = vadd.f32 %v3137, %v3166
    %v3193 = vadd.f32 %v3138, %v3179
    %v3194 = vadd.f32 %v3139, %v3170
    %v3195 = vadd.f32 %v3140, %v3180
    %v3196 = vadd.f32 %v3141, %v3174
    %v3197 = vadd.f32 %v3142, %v3181
    %s3198 = sld [smem:[#allocation6 + $0x1b]]
    %v3199 = vstv %s3198
    %v3200 = vmul.f32 %v3199, %v323
    %v3201 = vmul.f32 %v3199, %v324
    %v3202 = vmul.f32 %v3199, %v325
    %v3203 = vmul.f32 %v3199, %v326
    %v3204 = vmul.f32 %v3199, %v327
    %v3205 = vmul.f32 %v3199, %v328
    %v3206 = vmul.f32 %v3199, %v329
    %v3207 = vmul.f32 %v3199, %v330
    %v3208 = vmul.f32 %v3199, %v331
    %v3209 = vmul.f32 %v3199, %v332
    %v3210 = vmul.f32 %v3199, %v333
    %v3211 = vmul.f32 %v3199, %v334
    %v3224 = vrot.slane %v3200, 1
    %v3225 = vrot.slane %v3202, 1
    %v3226 = vsel %vm360, %v3224, %v3225
    %v3227 = vrot.slane %v3201, 1
    %v3228 = vrot.slane %v3203, 1
    %v3229 = vsel %vm360, %v3227, %v3228
    %v3230 = vrot.slane %v3204, 1
    %v3231 = vsel %vm360, %v3225, %v3230
    %v3232 = vrot.slane %v3205, 1
    %v3233 = vsel %vm360, %v3228, %v3232
    %v3234 = vrot.slane %v3206, 1
    %v3235 = vrot.slane %v3208, 1
    %v3236 = vsel %vm360, %v3234, %v3235
    %v3237 = vrot.slane %v3207, 1
    %v3238 = vrot.slane %v3209, 1
    %v3239 = vsel %vm360, %v3237, %v3238
    %v3240 = vrot.slane %v3210, 1
    %v3241 = vsel %vm360, %v3235, %v3240
    %v3242 = vrot.slane %v3211, 1
    %v3243 = vsel %vm360, %v3238, %v3242
    %3244 = vrot.lane.b32.xlu0 %v3226, 24
    %v3245 = vpop.permute.xlu0 %3244
    %3246 = vrot.lane.b32.xlu0 %v3229, 24
    %v3247 = vpop.permute.xlu0 %3246
    %3248 = vrot.lane.b32.xlu0 %v3231, 24
    %v3249 = vpop.permute.xlu0 %3248
    %3250 = vrot.lane.b32.xlu0 %v3233, 24
    %v3251 = vpop.permute.xlu0 %3250
    %3252 = vrot.lane.b32.xlu0 %v3236, 24
    %v3253 = vpop.permute.xlu0 %3252
    %3254 = vrot.lane.b32.xlu0 %v3239, 24
    %v3255 = vpop.permute.xlu0 %3254
    %3256 = vrot.lane.b32.xlu0 %v3241, 24
    %v3257 = vpop.permute.xlu0 %3256
    %3258 = vrot.lane.b32.xlu0 %v3243, 24
    %v3259 = vpop.permute.xlu0 %3258
    %v3260 = vsel %vm3177, %v3245, %v3247
    %v3261 = vsel %vm3177, %v3249, %v3251
    %v3262 = vsel %vm3177, %v3253, %v3255
    %v3263 = vsel %vm3177, %v3257, %v3259
    %v3272 = vadd.f32 %v3190, %v3245
    %v3273 = vadd.f32 %v3191, %v3260
    %v3274 = vadd.f32 %v3192, %v3249
    %v3275 = vadd.f32 %v3193, %v3261
    %v3276 = vadd.f32 %v3194, %v3253
    %v3277 = vadd.f32 %v3195, %v3262
    %v3278 = vadd.f32 %v3196, %v3257
    %v3279 = vadd.f32 %v3197, %v3263
    %s3280 = sld [smem:[#allocation6 + $0x34]]
    %v3281 = vstv %s3280
    %v3282 = vmul.f32 %v3281, %v419
    %v3283 = vmul.f32 %v3281, %v420
    %v3284 = vmul.f32 %v3281, %v325
    %v3285 = vmul.f32 %v3281, %v326
    %v3286 = vmul.f32 %v3281, %v421
    %v3287 = vmul.f32 %v3281, %v422
    %v3288 = vmul.f32 %v3281, %v423
    %v3289 = vmul.f32 %v3281, %v424
    %v3290 = vmul.f32 %v3281, %v331
    %v3291 = vmul.f32 %v3281, %v332
    %v3292 = vmul.f32 %v3281, %v425
    %v3293 = vmul.f32 %v3281, %v426
    %v3306 = vrot.slane %v3282, 2
    %v3307 = vrot.slane %v3284, 2
    %v3308 = vsel %vm452, %v3306, %v3307
    %v3309 = vrot.slane %v3283, 2
    %v3310 = vrot.slane %v3285, 2
    %v3311 = vsel %vm452, %v3309, %v3310
    %v3312 = vrot.slane %v3286, 2
    %v3313 = vsel %vm452, %v3307, %v3312
    %v3314 = vrot.slane %v3287, 2
    %v3315 = vsel %vm452, %v3310, %v3314
    %v3316 = vrot.slane %v3288, 2
    %v3317 = vrot.slane %v3290, 2
    %v3318 = vsel %vm452, %v3316, %v3317
    %v3319 = vrot.slane %v3289, 2
    %v3320 = vrot.slane %v3291, 2
    %v3321 = vsel %vm452, %v3319, %v3320
    %v3322 = vrot.slane %v3292, 2
    %v3323 = vsel %vm452, %v3317, %v3322
    %v3324 = vrot.slane %v3293, 2
    %v3325 = vsel %vm452, %v3320, %v3324
    %3326 = vrot.lane.b32.xlu0 %v3308, 24
    %v3327 = vpop.permute.xlu0 %3326
    %3328 = vrot.lane.b32.xlu0 %v3311, 24
    %v3329 = vpop.permute.xlu0 %3328
    %3330 = vrot.lane.b32.xlu0 %v3313, 24
    %v3331 = vpop.permute.xlu0 %3330
    %3332 = vrot.lane.b32.xlu0 %v3315, 24
    %v3333 = vpop.permute.xlu0 %3332
    %3334 = vrot.lane.b32.xlu0 %v3318, 24
    %v3335 = vpop.permute.xlu0 %3334
    %3336 = vrot.lane.b32.xlu0 %v3321, 24
    %v3337 = vpop.permute.xlu0 %3336
    %3338 = vrot.lane.b32.xlu0 %v3323, 24
    %v3339 = vpop.permute.xlu0 %3338
    %3340 = vrot.lane.b32.xlu0 %v3325, 24
    %v3341 = vpop.permute.xlu0 %3340
    %v3342 = vsel %vm3177, %v3327, %v3329
    %v3343 = vsel %vm3177, %v3331, %v3333
    %v3344 = vsel %vm3177, %v3335, %v3337
    %v3345 = vsel %vm3177, %v3339, %v3341
    %v3354 = vadd.f32 %v3272, %v3327
    %v3355 = vadd.f32 %v3273, %v3342
    %v3356 = vadd.f32 %v3274, %v3331
    %v3357 = vadd.f32 %v3275, %v3343
    %v3358 = vadd.f32 %v3276, %v3335
    %v3359 = vadd.f32 %v3277, %v3344
    %v3360 = vadd.f32 %v3278, %v3339
    %v3361 = vadd.f32 %v3279, %v3345
    %s3362 = sld [smem:[#allocation6 + $0x4d]]
    %v3363 = vstv %s3362
    %v3364 = vmul.f32 %v3363, %v510
    %v3365 = vmul.f32 %v3363, %v511
    %v3366 = vmul.f32 %v3363, %v325
    %v3367 = vmul.f32 %v3363, %v326
    %v3368 = vmul.f32 %v3363, %v512
    %v3369 = vmul.f32 %v3363, %v513
    %v3370 = vmul.f32 %v3363, %v514
    %v3371 = vmul.f32 %v3363, %v515
    %v3372 = vmul.f32 %v3363, %v331
    %v3373 = vmul.f32 %v3363, %v332
    %v3374 = vmul.f32 %v3363, %v516
    %v3375 = vmul.f32 %v3363, %v517
    %v3388 = vrot.slane %v3364, 3
    %v3389 = vrot.slane %v3366, 3
    %v3390 = vsel %vm543, %v3388, %v3389
    %v3391 = vrot.slane %v3365, 3
    %v3392 = vrot.slane %v3367, 3
    %v3393 = vsel %vm543, %v3391, %v3392
    %v3394 = vrot.slane %v3368, 3
    %v3395 = vsel %vm543, %v3389, %v3394
    %v3396 = vrot.slane %v3369, 3
    %v3397 = vsel %vm543, %v3392, %v3396
    %v3398 = vrot.slane %v3370, 3
    %v3399 = vrot.slane %v3372, 3
    %v3400 = vsel %vm543, %v3398, %v3399
    %v3401 = vrot.slane %v3371, 3
    %v3402 = vrot.slane %v3373, 3
    %v3403 = vsel %vm543, %v3401, %v3402
    %v3404 = vrot.slane %v3374, 3
    %v3405 = vsel %vm543, %v3399, %v3404
    %v3406 = vrot.slane %v3375, 3
    %v3407 = vsel %vm543, %v3402, %v3406
    %3408 = vrot.lane.b32.xlu0 %v3390, 24
    %v3409 = vpop.permute.xlu0 %3408
    %3410 = vrot.lane.b32.xlu0 %v3393, 24
    %v3411 = vpop.permute.xlu0 %3410
    %3412 = vrot.lane.b32.xlu0 %v3395, 24
    %v3413 = vpop.permute.xlu0 %3412
    %3414 = vrot.lane.b32.xlu0 %v3397, 24
    %v3415 = vpop.permute.xlu0 %3414
    %3416 = vrot.lane.b32.xlu0 %v3400, 24
    %v3417 = vpop.permute.xlu0 %3416
    %3418 = vrot.lane.b32.xlu0 %v3403, 24
    %v3419 = vpop.permute.xlu0 %3418
    %3420 = vrot.lane.b32.xlu0 %v3405, 24
    %v3421 = vpop.permute.xlu0 %3420
    %3422 = vrot.lane.b32.xlu0 %v3407, 24
    %v3423 = vpop.permute.xlu0 %3422
    %v3424 = vsel %vm3177, %v3409, %v3411
    %v3425 = vsel %vm3177, %v3413, %v3415
    %v3426 = vsel %vm3177, %v3417, %v3419
    %v3427 = vsel %vm3177, %v3421, %v3423
    %v3436 = vadd.f32 %v3354, %v3409
    %v3437 = vadd.f32 %v3355, %v3424
    %v3438 = vadd.f32 %v3356, %v3413
    %v3439 = vadd.f32 %v3357, %v3425
    %v3440 = vadd.f32 %v3358, %v3417
    %v3441 = vadd.f32 %v3359, %v3426
    %v3442 = vadd.f32 %v3360, %v3421
    %v3443 = vadd.f32 %v3361, %v3427
    %s3444 = sld [smem:[#allocation6 + $0x66]]
    %v3445 = vstv %s3444
    %v3446 = vmul.f32 %v3445, %v3054
    %v3447 = vmul.f32 %v3445, %v3055
    %v3448 = vmul.f32 %v3445, %v325
    %v3449 = vmul.f32 %v3445, %v326
    %v3450 = vmul.f32 %v3445, %v3056
    %v3451 = vmul.f32 %v3445, %v3057
    %v3452 = vmul.f32 %v3445, %v3058
    %v3453 = vmul.f32 %v3445, %v3059
    %v3454 = vmul.f32 %v3445, %v331
    %v3455 = vmul.f32 %v3445, %v332
    %v3456 = vmul.f32 %v3445, %v3060
    %v3457 = vmul.f32 %v3445, %v3061
    %v3470 = vrot.slane %v3446, 4
    %v3471 = vrot.slane %v3448, 4
    %v3472 = vsel %vm2713, %v3470, %v3471
    %v3473 = vrot.slane %v3447, 4
    %v3474 = vrot.slane %v3449, 4
    %v3475 = vsel %vm2713, %v3473, %v3474
    %v3476 = vrot.slane %v3450, 4
    %v3477 = vsel %vm2713, %v3471, %v3476
    %v3478 = vrot.slane %v3451, 4
    %v3479 = vsel %vm2713, %v3474, %v3478
    %v3480 = vrot.slane %v3452, 4
    %v3481 = vrot.slane %v3454, 4
    %v3482 = vsel %vm2713, %v3480, %v3481
    %v3483 = vrot.slane %v3453, 4
    %v3484 = vrot.slane %v3455, 4
    %v3485 = vsel %vm2713, %v3483, %v3484
    %v3486 = vrot.slane %v3456, 4
    %v3487 = vsel %vm2713, %v3481, %v3486
    %v3488 = vrot.slane %v3457, 4
    %v3489 = vsel %vm2713, %v3484, %v3488
    %3490 = vrot.lane.b32.xlu0 %v3472, 24
    %v3491 = vpop.permute.xlu0 %3490
    %3492 = vrot.lane.b32.xlu0 %v3475, 24
    %v3493 = vpop.permute.xlu0 %3492
    %3494 = vrot.lane.b32.xlu0 %v3477, 24
    %v3495 = vpop.permute.xlu0 %3494
    %3496 = vrot.lane.b32.xlu0 %v3479, 24
    %v3497 = vpop.permute.xlu0 %3496
    %3498 = vrot.lane.b32.xlu0 %v3482, 24
    %v3499 = vpop.permute.xlu0 %3498
    %3500 = vrot.lane.b32.xlu0 %v3485, 24
    %v3501 = vpop.permute.xlu0 %3500
    %3502 = vrot.lane.b32.xlu0 %v3487, 24
    %v3503 = vpop.permute.xlu0 %3502
    %3504 = vrot.lane.b32.xlu0 %v3489, 24
    %v3505 = vpop.permute.xlu0 %3504
    %v3506 = vsel %vm3177, %v3491, %v3493
    %v3507 = vsel %vm3177, %v3495, %v3497
    %v3508 = vsel %vm3177, %v3499, %v3501
    %v3509 = vsel %vm3177, %v3503, %v3505
    %v3518 = vadd.f32 %v3436, %v3491
    %v3519 = vadd.f32 %v3437, %v3506
    %v3520 = vadd.f32 %v3438, %v3495
    %v3521 = vadd.f32 %v3439, %v3507
    %v3522 = vadd.f32 %v3440, %v3499
    %v3523 = vadd.f32 %v3441, %v3508
    %v3524 = vadd.f32 %v3442, %v3503
    %v3525 = vadd.f32 %v3443, %v3509
    %s3526 = sld [smem:[#allocation6 + $0x3]]
    %v3527 = vstv %s3526
    %v3528 = vmul.f32 %v3527, %v2745
    %v3529 = vmul.f32 %v3527, %v2746
    %v3530 = vmul.f32 %v3527, %v2747
    %v3531 = vmul.f32 %v3527, %v2748
    %v3532 = vmul.f32 %v3527, %v2749
    %v3533 = vmul.f32 %v3527, %v2750
    %v3534 = vmul.f32 %v3527, %v2751
    %v3535 = vmul.f32 %v3527, %v2752
    %3544 = vrot.lane.b32.xlu0 %v3528, 23
    %v3545 = vpop.permute.xlu0 %3544
    %3546 = vrot.lane.b32.xlu0 %v3529, 23
    %v3547 = vpop.permute.xlu0 %3546
    %3548 = vrot.lane.b32.xlu0 %v3530, 23
    %v3549 = vpop.permute.xlu0 %3548
    %3550 = vrot.lane.b32.xlu0 %v3531, 23
    %v3551 = vpop.permute.xlu0 %3550
    %3552 = vrot.lane.b32.xlu0 %v3532, 23
    %v3553 = vpop.permute.xlu0 %3552
    %3554 = vrot.lane.b32.xlu0 %v3533, 23
    %v3555 = vpop.permute.xlu0 %3554
    %3556 = vrot.lane.b32.xlu0 %v3534, 23
    %v3557 = vpop.permute.xlu0 %3556
    %3558 = vrot.lane.b32.xlu0 %v3535, 23
    %v3559 = vpop.permute.xlu0 %3558
    %vm3560 = vcmask 187392
    %v3561 = vsel %vm3560, %v3545, %v3547
    %v3562 = vsel %vm3560, %v3549, %v3551
    %v3563 = vsel %vm3560, %v3553, %v3555
    %v3564 = vsel %vm3560, %v3557, %v3559
    %v3573 = vadd.f32 %v3518, %v3545
    %v3574 = vadd.f32 %v3519, %v3561
    %v3575 = vadd.f32 %v3520, %v3549
    %v3576 = vadd.f32 %v3521, %v3562
    %v3577 = vadd.f32 %v3522, %v3553
    %v3578 = vadd.f32 %v3523, %v3563
    %v3579 = vadd.f32 %v3524, %v3557
    %v3580 = vadd.f32 %v3525, %v3564
    %s3581 = sld [smem:[#allocation6 + $0x1c]]
    %v3582 = vstv %s3581
    %v3583 = vmul.f32 %v3582, %v323
    %v3584 = vmul.f32 %v3582, %v324
    %v3585 = vmul.f32 %v3582, %v325
    %v3586 = vmul.f32 %v3582, %v326
    %v3587 = vmul.f32 %v3582, %v327
    %v3588 = vmul.f32 %v3582, %v328
    %v3589 = vmul.f32 %v3582, %v329
    %v3590 = vmul.f32 %v3582, %v330
    %v3591 = vmul.f32 %v3582, %v331
    %v3592 = vmul.f32 %v3582, %v332
    %v3593 = vmul.f32 %v3582, %v333
    %v3594 = vmul.f32 %v3582, %v334
    %v3607 = vrot.slane %v3583, 1
    %v3608 = vrot.slane %v3585, 1
    %v3609 = vsel %vm360, %v3607, %v3608
    %v3610 = vrot.slane %v3584, 1
    %v3611 = vrot.slane %v3586, 1
    %v3612 = vsel %vm360, %v3610, %v3611
    %v3613 = vrot.slane %v3587, 1
    %v3614 = vsel %vm360, %v3608, %v3613
    %v3615 = vrot.slane %v3588, 1
    %v3616 = vsel %vm360, %v3611, %v3615
    %v3617 = vrot.slane %v3589, 1
    %v3618 = vrot.slane %v3591, 1
    %v3619 = vsel %vm360, %v3617, %v3618
    %v3620 = vrot.slane %v3590, 1
    %v3621 = vrot.slane %v3592, 1
    %v3622 = vsel %vm360, %v3620, %v3621
    %v3623 = vrot.slane %v3593, 1
    %v3624 = vsel %vm360, %v3618, %v3623
    %v3625 = vrot.slane %v3594, 1
    %v3626 = vsel %vm360, %v3621, %v3625
    %3627 = vrot.lane.b32.xlu0 %v3609, 23
    %v3628 = vpop.permute.xlu0 %3627
    %3629 = vrot.lane.b32.xlu0 %v3612, 23
    %v3630 = vpop.permute.xlu0 %3629
    %3631 = vrot.lane.b32.xlu0 %v3614, 23
    %v3632 = vpop.permute.xlu0 %3631
    %3633 = vrot.lane.b32.xlu0 %v3616, 23
    %v3634 = vpop.permute.xlu0 %3633
    %3635 = vrot.lane.b32.xlu0 %v3619, 23
    %v3636 = vpop.permute.xlu0 %3635
    %3637 = vrot.lane.b32.xlu0 %v3622, 23
    %v3638 = vpop.permute.xlu0 %3637
    %3639 = vrot.lane.b32.xlu0 %v3624, 23
    %v3640 = vpop.permute.xlu0 %3639
    %3641 = vrot.lane.b32.xlu0 %v3626, 23
    %v3642 = vpop.permute.xlu0 %3641
    %v3643 = vsel %vm3560, %v3628, %v3630
    %v3644 = vsel %vm3560, %v3632, %v3634
    %v3645 = vsel %vm3560, %v3636, %v3638
    %v3646 = vsel %vm3560, %v3640, %v3642
    %v3655 = vadd.f32 %v3573, %v3628
    %v3656 = vadd.f32 %v3574, %v3643
    %v3657 = vadd.f32 %v3575, %v3632
    %v3658 = vadd.f32 %v3576, %v3644
    %v3659 = vadd.f32 %v3577, %v3636
    %v3660 = vadd.f32 %v3578, %v3645
    %v3661 = vadd.f32 %v3579, %v3640
    %v3662 = vadd.f32 %v3580, %v3646
    %s3663 = sld [smem:[#allocation6 + $0x35]]
    %v3664 = vstv %s3663
    %v3665 = vmul.f32 %v3664, %v419
    %v3666 = vmul.f32 %v3664, %v420
    %v3667 = vmul.f32 %v3664, %v325
    %v3668 = vmul.f32 %v3664, %v326
    %v3669 = vmul.f32 %v3664, %v421
    %v3670 = vmul.f32 %v3664, %v422
    %v3671 = vmul.f32 %v3664, %v423
    %v3672 = vmul.f32 %v3664, %v424
    %v3673 = vmul.f32 %v3664, %v331
    %v3674 = vmul.f32 %v3664, %v332
    %v3675 = vmul.f32 %v3664, %v425
    %v3676 = vmul.f32 %v3664, %v426
    %v3689 = vrot.slane %v3665, 2
    %v3690 = vrot.slane %v3667, 2
    %v3691 = vsel %vm452, %v3689, %v3690
    %v3692 = vrot.slane %v3666, 2
    %v3693 = vrot.slane %v3668, 2
    %v3694 = vsel %vm452, %v3692, %v3693
    %v3695 = vrot.slane %v3669, 2
    %v3696 = vsel %vm452, %v3690, %v3695
    %v3697 = vrot.slane %v3670, 2
    %v3698 = vsel %vm452, %v3693, %v3697
    %v3699 = vrot.slane %v3671, 2
    %v3700 = vrot.slane %v3673, 2
    %v3701 = vsel %vm452, %v3699, %v3700
    %v3702 = vrot.slane %v3672, 2
    %v3703 = vrot.slane %v3674, 2
    %v3704 = vsel %vm452, %v3702, %v3703
    %v3705 = vrot.slane %v3675, 2
    %v3706 = vsel %vm452, %v3700, %v3705
    %v3707 = vrot.slane %v3676, 2
    %v3708 = vsel %vm452, %v3703, %v3707
    %3709 = vrot.lane.b32.xlu0 %v3691, 23
    %v3710 = vpop.permute.xlu0 %3709
    %3711 = vrot.lane.b32.xlu0 %v3694, 23
    %v3712 = vpop.permute.xlu0 %3711
    %3713 = vrot.lane.b32.xlu0 %v3696, 23
    %v3714 = vpop.permute.xlu0 %3713
    %3715 = vrot.lane.b32.xlu0 %v3698, 23
    %v3716 = vpop.permute.xlu0 %3715
    %3717 = vrot.lane.b32.xlu0 %v3701, 23
    %v3718 = vpop.permute.xlu0 %3717
    %3719 = vrot.lane.b32.xlu0 %v3704, 23
    %v3720 = vpop.permute.xlu0 %3719
    %3721 = vrot.lane.b32.xlu0 %v3706, 23
    %v3722 = vpop.permute.xlu0 %3721
    %3723 = vrot.lane.b32.xlu0 %v3708, 23
    %v3724 = vpop.permute.xlu0 %3723
    %v3725 = vsel %vm3560, %v3710, %v3712
    %v3726 = vsel %vm3560, %v3714, %v3716
    %v3727 = vsel %vm3560, %v3718, %v3720
    %v3728 = vsel %vm3560, %v3722, %v3724
    %v3737 = vadd.f32 %v3655, %v3710
    %v3738 = vadd.f32 %v3656, %v3725
    %v3739 = vadd.f32 %v3657, %v3714
    %v3740 = vadd.f32 %v3658, %v3726
    %v3741 = vadd.f32 %v3659, %v3718
    %v3742 = vadd.f32 %v3660, %v3727
    %v3743 = vadd.f32 %v3661, %v3722
    %v3744 = vadd.f32 %v3662, %v3728
    %s3745 = sld [smem:[#allocation6 + $0x4e]]
    %v3746 = vstv %s3745
    %v3747 = vmul.f32 %v3746, %v510
    %v3748 = vmul.f32 %v3746, %v511
    %v3749 = vmul.f32 %v3746, %v325
    %v3750 = vmul.f32 %v3746, %v326
    %v3751 = vmul.f32 %v3746, %v512
    %v3752 = vmul.f32 %v3746, %v513
    %v3753 = vmul.f32 %v3746, %v514
    %v3754 = vmul.f32 %v3746, %v515
    %v3755 = vmul.f32 %v3746, %v331
    %v3756 = vmul.f32 %v3746, %v332
    %v3757 = vmul.f32 %v3746, %v516
    %v3758 = vmul.f32 %v3746, %v517
    %v3771 = vrot.slane %v3747, 3
    %v3772 = vrot.slane %v3749, 3
    %v3773 = vsel %vm543, %v3771, %v3772
    %v3774 = vrot.slane %v3748, 3
    %v3775 = vrot.slane %v3750, 3
    %v3776 = vsel %vm543, %v3774, %v3775
    %v3777 = vrot.slane %v3751, 3
    %v3778 = vsel %vm543, %v3772, %v3777
    %v3779 = vrot.slane %v3752, 3
    %v3780 = vsel %vm543, %v3775, %v3779
    %v3781 = vrot.slane %v3753, 3
    %v3782 = vrot.slane %v3755, 3
    %v3783 = vsel %vm543, %v3781, %v3782
    %v3784 = vrot.slane %v3754, 3
    %v3785 = vrot.slane %v3756, 3
    %v3786 = vsel %vm543, %v3784, %v3785
    %v3787 = vrot.slane %v3757, 3
    %v3788 = vsel %vm543, %v3782, %v3787
    %v3789 = vrot.slane %v3758, 3
    %v3790 = vsel %vm543, %v3785, %v3789
    %3791 = vrot.lane.b32.xlu0 %v3773, 23
    %v3792 = vpop.permute.xlu0 %3791
    %3793 = vrot.lane.b32.xlu0 %v3776, 23
    %v3794 = vpop.permute.xlu0 %3793
    %3795 = vrot.lane.b32.xlu0 %v3778, 23
    %v3796 = vpop.permute.xlu0 %3795
    %3797 = vrot.lane.b32.xlu0 %v3780, 23
    %v3798 = vpop.permute.xlu0 %3797
    %3799 = vrot.lane.b32.xlu0 %v3783, 23
    %v3800 = vpop.permute.xlu0 %3799
    %3801 = vrot.lane.b32.xlu0 %v3786, 23
    %v3802 = vpop.permute.xlu0 %3801
    %3803 = vrot.lane.b32.xlu0 %v3788, 23
    %v3804 = vpop.permute.xlu0 %3803
    %3805 = vrot.lane.b32.xlu0 %v3790, 23
    %v3806 = vpop.permute.xlu0 %3805
    %v3807 = vsel %vm3560, %v3792, %v3794
    %v3808 = vsel %vm3560, %v3796, %v3798
    %v3809 = vsel %vm3560, %v3800, %v3802
    %v3810 = vsel %vm3560, %v3804, %v3806
    %v3819 = vadd.f32 %v3737, %v3792
    %v3820 = vadd.f32 %v3738, %v3807
    %v3821 = vadd.f32 %v3739, %v3796
    %v3822 = vadd.f32 %v3740, %v3808
    %v3823 = vadd.f32 %v3741, %v3800
    %v3824 = vadd.f32 %v3742, %v3809
    %v3825 = vadd.f32 %v3743, %v3804
    %v3826 = vadd.f32 %v3744, %v3810
    %s3827 = sld [smem:[#allocation6 + $0x67]]
    %v3828 = vstv %s3827
    %v3829 = vmul.f32 %v3828, %v3054
    %v3830 = vmul.f32 %v3828, %v3055
    %v3831 = vmul.f32 %v3828, %v325
    %v3832 = vmul.f32 %v3828, %v326
    %v3833 = vmul.f32 %v3828, %v3056
    %v3834 = vmul.f32 %v3828, %v3057
    %v3835 = vmul.f32 %v3828, %v3058
    %v3836 = vmul.f32 %v3828, %v3059
    %v3837 = vmul.f32 %v3828, %v331
    %v3838 = vmul.f32 %v3828, %v332
    %v3839 = vmul.f32 %v3828, %v3060
    %v3840 = vmul.f32 %v3828, %v3061
    %v3853 = vrot.slane %v3829, 4
    %v3854 = vrot.slane %v3831, 4
    %v3855 = vsel %vm2713, %v3853, %v3854
    %v3856 = vrot.slane %v3830, 4
    %v3857 = vrot.slane %v3832, 4
    %v3858 = vsel %vm2713, %v3856, %v3857
    %v3859 = vrot.slane %v3833, 4
    %v3860 = vsel %vm2713, %v3854, %v3859
    %v3861 = vrot.slane %v3834, 4
    %v3862 = vsel %vm2713, %v3857, %v3861
    %v3863 = vrot.slane %v3835, 4
    %v3864 = vrot.slane %v3837, 4
    %v3865 = vsel %vm2713, %v3863, %v3864
    %v3866 = vrot.slane %v3836, 4
    %v3867 = vrot.slane %v3838, 4
    %v3868 = vsel %vm2713, %v3866, %v3867
    %v3869 = vrot.slane %v3839, 4
    %v3870 = vsel %vm2713, %v3864, %v3869
    %v3871 = vrot.slane %v3840, 4
    %v3872 = vsel %vm2713, %v3867, %v3871
    %3873 = vrot.lane.b32.xlu0 %v3855, 23
    %v3874 = vpop.permute.xlu0 %3873
    %3875 = vrot.lane.b32.xlu0 %v3858, 23
    %v3876 = vpop.permute.xlu0 %3875
    %3877 = vrot.lane.b32.xlu0 %v3860, 23
    %v3878 = vpop.permute.xlu0 %3877
    %3879 = vrot.lane.b32.xlu0 %v3862, 23
    %v3880 = vpop.permute.xlu0 %3879
    %3881 = vrot.lane.b32.xlu0 %v3865, 23
    %v3882 = vpop.permute.xlu0 %3881
    %3883 = vrot.lane.b32.xlu0 %v3868, 23
    %v3884 = vpop.permute.xlu0 %3883
    %3885 = vrot.lane.b32.xlu0 %v3870, 23
    %v3886 = vpop.permute.xlu0 %3885
    %3887 = vrot.lane.b32.xlu0 %v3872, 23
    %v3888 = vpop.permute.xlu0 %3887
    %v3889 = vsel %vm3560, %v3874, %v3876
    %v3890 = vsel %vm3560, %v3878, %v3880
    %v3891 = vsel %vm3560, %v3882, %v3884
    %v3892 = vsel %vm3560, %v3886, %v3888
    %v3901 = vadd.f32 %v3819, %v3874
    %v3902 = vadd.f32 %v3820, %v3889
    %v3903 = vadd.f32 %v3821, %v3878
    %v3904 = vadd.f32 %v3822, %v3890
    %v3905 = vadd.f32 %v3823, %v3882
    %v3906 = vadd.f32 %v3824, %v3891
    %v3907 = vadd.f32 %v3825, %v3886
    %v3908 = vadd.f32 %v3826, %v3892
    %s3909 = sld [smem:[#allocation6 + $0x4]]
    %v3910 = vstv %s3909
    %v3911 = vmul.f32 %v3910, %v2745
    %v3912 = vmul.f32 %v3910, %v2746
    %v3913 = vmul.f32 %v3910, %v2747
    %v3914 = vmul.f32 %v3910, %v2748
    %v3915 = vmul.f32 %v3910, %v2749
    %v3916 = vmul.f32 %v3910, %v2750
    %v3917 = vmul.f32 %v3910, %v2751
    %v3918 = vmul.f32 %v3910, %v2752
    %3927 = vrot.lane.b32.xlu0 %v3911, 22
    %v3928 = vpop.permute.xlu0 %3927
    %3929 = vrot.lane.b32.xlu0 %v3912, 22
    %v3930 = vpop.permute.xlu0 %3929
    %3931 = vrot.lane.b32.xlu0 %v3913, 22
    %v3932 = vpop.permute.xlu0 %3931
    %3933 = vrot.lane.b32.xlu0 %v3914, 22
    %v3934 = vpop.permute.xlu0 %3933
    %3935 = vrot.lane.b32.xlu0 %v3915, 22
    %v3936 = vpop.permute.xlu0 %3935
    %3937 = vrot.lane.b32.xlu0 %v3916, 22
    %v3938 = vpop.permute.xlu0 %3937
    %3939 = vrot.lane.b32.xlu0 %v3917, 22
    %v3940 = vpop.permute.xlu0 %3939
    %3941 = vrot.lane.b32.xlu0 %v3918, 22
    %v3942 = vpop.permute.xlu0 %3941
    %vm3943 = vcmask 179200
    %v3944 = vsel %vm3943, %v3928, %v3930
    %v3945 = vsel %vm3943, %v3932, %v3934
    %v3946 = vsel %vm3943, %v3936, %v3938
    %v3947 = vsel %vm3943, %v3940, %v3942
    %v3956 = vadd.f32 %v3901, %v3928
    %v3957 = vadd.f32 %v3902, %v3944
    %v3958 = vadd.f32 %v3903, %v3932
    %v3959 = vadd.f32 %v3904, %v3945
    %v3960 = vadd.f32 %v3905, %v3936
    %v3961 = vadd.f32 %v3906, %v3946
    %v3962 = vadd.f32 %v3907, %v3940
    %v3963 = vadd.f32 %v3908, %v3947
    %s3964 = sld [smem:[#allocation6 + $0x1d]]
    %v3965 = vstv %s3964
    %v3966 = vmul.f32 %v3965, %v323
    %v3967 = vmul.f32 %v3965, %v324
    %v3968 = vmul.f32 %v3965, %v325
    %v3969 = vmul.f32 %v3965, %v326
    %v3970 = vmul.f32 %v3965, %v327
    %v3971 = vmul.f32 %v3965, %v328
    %v3972 = vmul.f32 %v3965, %v329
    %v3973 = vmul.f32 %v3965, %v330
    %v3974 = vmul.f32 %v3965, %v331
    %v3975 = vmul.f32 %v3965, %v332
    %v3976 = vmul.f32 %v3965, %v333
    %v3977 = vmul.f32 %v3965, %v334
    %v3990 = vrot.slane %v3966, 1
    %v3991 = vrot.slane %v3968, 1
    %v3992 = vsel %vm360, %v3990, %v3991
    %v3993 = vrot.slane %v3967, 1
    %v3994 = vrot.slane %v3969, 1
    %v3995 = vsel %vm360, %v3993, %v3994
    %v3996 = vrot.slane %v3970, 1
    %v3997 = vsel %vm360, %v3991, %v3996
    %v3998 = vrot.slane %v3971, 1
    %v3999 = vsel %vm360, %v3994, %v3998
    %v4000 = vrot.slane %v3972, 1
    %v4001 = vrot.slane %v3974, 1
    %v4002 = vsel %vm360, %v4000, %v4001
    %v4003 = vrot.slane %v3973, 1
    %v4004 = vrot.slane %v3975, 1
    %v4005 = vsel %vm360, %v4003, %v4004
    %v4006 = vrot.slane %v3976, 1
    %v4007 = vsel %vm360, %v4001, %v4006
    %v4008 = vrot.slane %v3977, 1
    %v4009 = vsel %vm360, %v4004, %v4008
    %4010 = vrot.lane.b32.xlu0 %v3992, 22
    %v4011 = vpop.permute.xlu0 %4010
    %4012 = vrot.lane.b32.xlu0 %v3995, 22
    %v4013 = vpop.permute.xlu0 %4012
    %4014 = vrot.lane.b32.xlu0 %v3997, 22
    %v4015 = vpop.permute.xlu0 %4014
    %4016 = vrot.lane.b32.xlu0 %v3999, 22
    %v4017 = vpop.permute.xlu0 %4016
    %4018 = vrot.lane.b32.xlu0 %v4002, 22
    %v4019 = vpop.permute.xlu0 %4018
    %4020 = vrot.lane.b32.xlu0 %v4005, 22
    %v4021 = vpop.permute.xlu0 %4020
    %4022 = vrot.lane.b32.xlu0 %v4007, 22
    %v4023 = vpop.permute.xlu0 %4022
    %4024 = vrot.lane.b32.xlu0 %v4009, 22
    %v4025 = vpop.permute.xlu0 %4024
    %v4026 = vsel %vm3943, %v4011, %v4013
    %v4027 = vsel %vm3943, %v4015, %v4017
    %v4028 = vsel %vm3943, %v4019, %v4021
    %v4029 = vsel %vm3943, %v4023, %v4025
    %v4038 = vadd.f32 %v3956, %v4011
    %v4039 = vadd.f32 %v3957, %v4026
    %v4040 = vadd.f32 %v3958, %v4015
    %v4041 = vadd.f32 %v3959, %v4027
    %v4042 = vadd.f32 %v3960, %v4019
    %v4043 = vadd.f32 %v3961, %v4028
    %v4044 = vadd.f32 %v3962, %v4023
    %v4045 = vadd.f32 %v3963, %v4029
    %s4046 = sld [smem:[#allocation6 + $0x36]]
    %v4047 = vstv %s4046
    %v4048 = vmul.f32 %v4047, %v419
    %v4049 = vmul.f32 %v4047, %v420
    %v4050 = vmul.f32 %v4047, %v325
    %v4051 = vmul.f32 %v4047, %v326
    %v4052 = vmul.f32 %v4047, %v421
    %v4053 = vmul.f32 %v4047, %v422
    %v4054 = vmul.f32 %v4047, %v423
    %v4055 = vmul.f32 %v4047, %v424
    %v4056 = vmul.f32 %v4047, %v331
    %v4057 = vmul.f32 %v4047, %v332
    %v4058 = vmul.f32 %v4047, %v425
    %v4059 = vmul.f32 %v4047, %v426
    %v4072 = vrot.slane %v4048, 2
    %v4073 = vrot.slane %v4050, 2
    %v4074 = vsel %vm452, %v4072, %v4073
    %v4075 = vrot.slane %v4049, 2
    %v4076 = vrot.slane %v4051, 2
    %v4077 = vsel %vm452, %v4075, %v4076
    %v4078 = vrot.slane %v4052, 2
    %v4079 = vsel %vm452, %v4073, %v4078
    %v4080 = vrot.slane %v4053, 2
    %v4081 = vsel %vm452, %v4076, %v4080
    %v4082 = vrot.slane %v4054, 2
    %v4083 = vrot.slane %v4056, 2
    %v4084 = vsel %vm452, %v4082, %v4083
    %v4085 = vrot.slane %v4055, 2
    %v4086 = vrot.slane %v4057, 2
    %v4087 = vsel %vm452, %v4085, %v4086
    %v4088 = vrot.slane %v4058, 2
    %v4089 = vsel %vm452, %v4083, %v4088
    %v4090 = vrot.slane %v4059, 2
    %v4091 = vsel %vm452, %v4086, %v4090
    %4092 = vrot.lane.b32.xlu0 %v4074, 22
    %v4093 = vpop.permute.xlu0 %4092
    %4094 = vrot.lane.b32.xlu0 %v4077, 22
    %v4095 = vpop.permute.xlu0 %4094
    %4096 = vrot.lane.b32.xlu0 %v4079, 22
    %v4097 = vpop.permute.xlu0 %4096
    %4098 = vrot.lane.b32.xlu0 %v4081, 22
    %v4099 = vpop.permute.xlu0 %4098
    %4100 = vrot.lane.b32.xlu0 %v4084, 22
    %v4101 = vpop.permute.xlu0 %4100
    %4102 = vrot.lane.b32.xlu0 %v4087, 22
    %v4103 = vpop.permute.xlu0 %4102
    %4104 = vrot.lane.b32.xlu0 %v4089, 22
    %v4105 = vpop.permute.xlu0 %4104
    %4106 = vrot.lane.b32.xlu0 %v4091, 22
    %v4107 = vpop.permute.xlu0 %4106
    %v4108 = vsel %vm3943, %v4093, %v4095
    %v4109 = vsel %vm3943, %v4097, %v4099
    %v4110 = vsel %vm3943, %v4101, %v4103
    %v4111 = vsel %vm3943, %v4105, %v4107
    %v4120 = vadd.f32 %v4038, %v4093
    %v4121 = vadd.f32 %v4039, %v4108
    %v4122 = vadd.f32 %v4040, %v4097
    %v4123 = vadd.f32 %v4041, %v4109
    %v4124 = vadd.f32 %v4042, %v4101
    %v4125 = vadd.f32 %v4043, %v4110
    %v4126 = vadd.f32 %v4044, %v4105
    %v4127 = vadd.f32 %v4045, %v4111
    %s4128 = sld [smem:[#allocation6 + $0x4f]]
    %v4129 = vstv %s4128
    %v4130 = vmul.f32 %v4129, %v510
    %v4131 = vmul.f32 %v4129, %v511
    %v4132 = vmul.f32 %v4129, %v325
    %v4133 = vmul.f32 %v4129, %v326
    %v4134 = vmul.f32 %v4129, %v512
    %v4135 = vmul.f32 %v4129, %v513
    %v4136 = vmul.f32 %v4129, %v514
    %v4137 = vmul.f32 %v4129, %v515
    %v4138 = vmul.f32 %v4129, %v331
    %v4139 = vmul.f32 %v4129, %v332
    %v4140 = vmul.f32 %v4129, %v516
    %v4141 = vmul.f32 %v4129, %v517
    %v4154 = vrot.slane %v4130, 3
    %v4155 = vrot.slane %v4132, 3
    %v4156 = vsel %vm543, %v4154, %v4155
    %v4157 = vrot.slane %v4131, 3
    %v4158 = vrot.slane %v4133, 3
    %v4159 = vsel %vm543, %v4157, %v4158
    %v4160 = vrot.slane %v4134, 3
    %v4161 = vsel %vm543, %v4155, %v4160
    %v4162 = vrot.slane %v4135, 3
    %v4163 = vsel %vm543, %v4158, %v4162
    %v4164 = vrot.slane %v4136, 3
    %v4165 = vrot.slane %v4138, 3
    %v4166 = vsel %vm543, %v4164, %v4165
    %v4167 = vrot.slane %v4137, 3
    %v4168 = vrot.slane %v4139, 3
    %v4169 = vsel %vm543, %v4167, %v4168
    %v4170 = vrot.slane %v4140, 3
    %v4171 = vsel %vm543, %v4165, %v4170
    %v4172 = vrot.slane %v4141, 3
    %v4173 = vsel %vm543, %v4168, %v4172
    %4174 = vrot.lane.b32.xlu0 %v4156, 22
    %v4175 = vpop.permute.xlu0 %4174
    %4176 = vrot.lane.b32.xlu0 %v4159, 22
    %v4177 = vpop.permute.xlu0 %4176
    %4178 = vrot.lane.b32.xlu0 %v4161, 22
    %v4179 = vpop.permute.xlu0 %4178
    %4180 = vrot.lane.b32.xlu0 %v4163, 22
    %v4181 = vpop.permute.xlu0 %4180
    %4182 = vrot.lane.b32.xlu0 %v4166, 22
    %v4183 = vpop.permute.xlu0 %4182
    %4184 = vrot.lane.b32.xlu0 %v4169, 22
    %v4185 = vpop.permute.xlu0 %4184
    %4186 = vrot.lane.b32.xlu0 %v4171, 22
    %v4187 = vpop.permute.xlu0 %4186
    %4188 = vrot.lane.b32.xlu0 %v4173, 22
    %v4189 = vpop.permute.xlu0 %4188
    %v4190 = vsel %vm3943, %v4175, %v4177
    %v4191 = vsel %vm3943, %v4179, %v4181
    %v4192 = vsel %vm3943, %v4183, %v4185
    %v4193 = vsel %vm3943, %v4187, %v4189
    %v4202 = vadd.f32 %v4120, %v4175
    %v4203 = vadd.f32 %v4121, %v4190
    %v4204 = vadd.f32 %v4122, %v4179
    %v4205 = vadd.f32 %v4123, %v4191
    %v4206 = vadd.f32 %v4124, %v4183
    %v4207 = vadd.f32 %v4125, %v4192
    %v4208 = vadd.f32 %v4126, %v4187
    %v4209 = vadd.f32 %v4127, %v4193
    %s4210 = sld [smem:[#allocation6 + $0x68]]
    %v4211 = vstv %s4210
    %v4212 = vmul.f32 %v4211, %v3054
    %v4213 = vmul.f32 %v4211, %v3055
    %v4214 = vmul.f32 %v4211, %v325
    %v4215 = vmul.f32 %v4211, %v326
    %v4216 = vmul.f32 %v4211, %v3056
    %v4217 = vmul.f32 %v4211, %v3057
    %v4218 = vmul.f32 %v4211, %v3058
    %v4219 = vmul.f32 %v4211, %v3059
    %v4220 = vmul.f32 %v4211, %v331
    %v4221 = vmul.f32 %v4211, %v332
    %v4222 = vmul.f32 %v4211, %v3060
    %v4223 = vmul.f32 %v4211, %v3061
    %v4236 = vrot.slane %v4212, 4
    %v4237 = vrot.slane %v4214, 4
    %v4238 = vsel %vm2713, %v4236, %v4237
    %v4239 = vrot.slane %v4213, 4
    %v4240 = vrot.slane %v4215, 4
    %v4241 = vsel %vm2713, %v4239, %v4240
    %v4242 = vrot.slane %v4216, 4
    %v4243 = vsel %vm2713, %v4237, %v4242
    %v4244 = vrot.slane %v4217, 4
    %v4245 = vsel %vm2713, %v4240, %v4244
    %v4246 = vrot.slane %v4218, 4
    %v4247 = vrot.slane %v4220, 4
    %v4248 = vsel %vm2713, %v4246, %v4247
    %v4249 = vrot.slane %v4219, 4
    %v4250 = vrot.slane %v4221, 4
    %v4251 = vsel %vm2713, %v4249, %v4250
    %v4252 = vrot.slane %v4222, 4
    %v4253 = vsel %vm2713, %v4247, %v4252
    %v4254 = vrot.slane %v4223, 4
    %v4255 = vsel %vm2713, %v4250, %v4254
    %4256 = vrot.lane.b32.xlu0 %v4238, 22
    %v4257 = vpop.permute.xlu0 %4256
    %4258 = vrot.lane.b32.xlu0 %v4241, 22
    %v4259 = vpop.permute.xlu0 %4258
    %4260 = vrot.lane.b32.xlu0 %v4243, 22
    %v4261 = vpop.permute.xlu0 %4260
    %4262 = vrot.lane.b32.xlu0 %v4245, 22
    %v4263 = vpop.permute.xlu0 %4262
    %4264 = vrot.lane.b32.xlu0 %v4248, 22
    %v4265 = vpop.permute.xlu0 %4264
    %4266 = vrot.lane.b32.xlu0 %v4251, 22
    %v4267 = vpop.permute.xlu0 %4266
    %4268 = vrot.lane.b32.xlu0 %v4253, 22
    %v4269 = vpop.permute.xlu0 %4268
    %4270 = vrot.lane.b32.xlu0 %v4255, 22
    %v4271 = vpop.permute.xlu0 %4270
    %v4272 = vsel %vm3943, %v4257, %v4259
    %v4273 = vsel %vm3943, %v4261, %v4263
    %v4274 = vsel %vm3943, %v4265, %v4267
    %v4275 = vsel %vm3943, %v4269, %v4271
    %v4284 = vadd.f32 %v4202, %v4257
    %v4285 = vadd.f32 %v4203, %v4272
    %v4286 = vadd.f32 %v4204, %v4261
    %v4287 = vadd.f32 %v4205, %v4273
    %v4288 = vadd.f32 %v4206, %v4265
    %v4289 = vadd.f32 %v4207, %v4274
    %v4290 = vadd.f32 %v4208, %v4269
    %v4291 = vadd.f32 %v4209, %v4275
    %s4292 = sld [smem:[#allocation6 + $0x5]]
    %v4293 = vstv %s4292
    %v4294 = vmul.f32 %v4293, %v2745
    %v4295 = vmul.f32 %v4293, %v2746
    %v4296 = vmul.f32 %v4293, %v2747
    %v4297 = vmul.f32 %v4293, %v2748
    %v4298 = vmul.f32 %v4293, %v2749
    %v4299 = vmul.f32 %v4293, %v2750
    %v4300 = vmul.f32 %v4293, %v2751
    %v4301 = vmul.f32 %v4293, %v2752
    %4310 = vrot.lane.b32.xlu0 %v4294, 14
    %v4311 = vpop.permute.xlu0 %4310
    %4312 = vrot.lane.b32.xlu0 %v4295, 14
    %v4313 = vpop.permute.xlu0 %4312
    %4314 = vrot.lane.b32.xlu0 %v4296, 14
    %v4315 = vpop.permute.xlu0 %4314
    %4316 = vrot.lane.b32.xlu0 %v4297, 14
    %v4317 = vpop.permute.xlu0 %4316
    %4318 = vrot.lane.b32.xlu0 %v4298, 14
    %v4319 = vpop.permute.xlu0 %4318
    %4320 = vrot.lane.b32.xlu0 %v4299, 14
    %v4321 = vpop.permute.xlu0 %4320
    %4322 = vrot.lane.b32.xlu0 %v4300, 14
    %v4323 = vpop.permute.xlu0 %4322
    %4324 = vrot.lane.b32.xlu0 %v4301, 14
    %v4325 = vpop.permute.xlu0 %4324
    %vm4326 = vcmask 113664
    %v4327 = vsel %vm4326, %v4311, %v4313
    %v4328 = vsel %vm4326, %v4315, %v4317
    %v4329 = vsel %vm4326, %v4319, %v4321
    %v4330 = vsel %vm4326, %v4323, %v4325
    %v4339 = vadd.f32 %v4284, %v4311
    %v4340 = vadd.f32 %v4285, %v4327
    %v4341 = vadd.f32 %v4286, %v4315
    %v4342 = vadd.f32 %v4287, %v4328
    %v4343 = vadd.f32 %v4288, %v4319
    %v4344 = vadd.f32 %v4289, %v4329
    %v4345 = vadd.f32 %v4290, %v4323
    %v4346 = vadd.f32 %v4291, %v4330
    %s4347 = sld [smem:[#allocation6 + $0x1e]]
    %v4348 = vstv %s4347
    %v4349 = vmul.f32 %v4348, %v323
    %v4350 = vmul.f32 %v4348, %v324
    %v4351 = vmul.f32 %v4348, %v325
    %v4352 = vmul.f32 %v4348, %v326
    %v4353 = vmul.f32 %v4348, %v327
    %v4354 = vmul.f32 %v4348, %v328
    %v4355 = vmul.f32 %v4348, %v329
    %v4356 = vmul.f32 %v4348, %v330
    %v4357 = vmul.f32 %v4348, %v331
    %v4358 = vmul.f32 %v4348, %v332
    %v4359 = vmul.f32 %v4348, %v333
    %v4360 = vmul.f32 %v4348, %v334
    %v4373 = vrot.slane %v4349, 1
    %v4374 = vrot.slane %v4351, 1
    %v4375 = vsel %vm360, %v4373, %v4374
    %v4376 = vrot.slane %v4350, 1
    %v4377 = vrot.slane %v4352, 1
    %v4378 = vsel %vm360, %v4376, %v4377
    %v4379 = vrot.slane %v4353, 1
    %v4380 = vsel %vm360, %v4374, %v4379
    %v4381 = vrot.slane %v4354, 1
    %v4382 = vsel %vm360, %v4377, %v4381
    %v4383 = vrot.slane %v4355, 1
    %v4384 = vrot.slane %v4357, 1
    %v4385 = vsel %vm360, %v4383, %v4384
    %v4386 = vrot.slane %v4356, 1
    %v4387 = vrot.slane %v4358, 1
    %v4388 = vsel %vm360, %v4386, %v4387
    %v4389 = vrot.slane %v4359, 1
    %v4390 = vsel %vm360, %v4384, %v4389
    %v4391 = vrot.slane %v4360, 1
    %v4392 = vsel %vm360, %v4387, %v4391
    %4393 = vrot.lane.b32.xlu0 %v4375, 14
    %v4394 = vpop.permute.xlu0 %4393
    %4395 = vrot.lane.b32.xlu0 %v4378, 14
    %v4396 = vpop.permute.xlu0 %4395
    %4397 = vrot.lane.b32.xlu0 %v4380, 14
    %v4398 = vpop.permute.xlu0 %4397
    %4399 = vrot.lane.b32.xlu0 %v4382, 14
    %v4400 = vpop.permute.xlu0 %4399
    %4401 = vrot.lane.b32.xlu0 %v4385, 14
    %v4402 = vpop.permute.xlu0 %4401
    %4403 = vrot.lane.b32.xlu0 %v4388, 14
    %v4404 = vpop.permute.xlu0 %4403
    %4405 = vrot.lane.b32.xlu0 %v4390, 14
    %v4406 = vpop.permute.xlu0 %4405
    %4407 = vrot.lane.b32.xlu0 %v4392, 14
    %v4408 = vpop.permute.xlu0 %4407
    %v4409 = vsel %vm4326, %v4394, %v4396
    %v4410 = vsel %vm4326, %v4398, %v4400
    %v4411 = vsel %vm4326, %v4402, %v4404
    %v4412 = vsel %vm4326, %v4406, %v4408
    %v4421 = vadd.f32 %v4339, %v4394
    %v4422 = vadd.f32 %v4340, %v4409
    %v4423 = vadd.f32 %v4341, %v4398
    %v4424 = vadd.f32 %v4342, %v4410
    %v4425 = vadd.f32 %v4343, %v4402
    %v4426 = vadd.f32 %v4344, %v4411
    %v4427 = vadd.f32 %v4345, %v4406
    %v4428 = vadd.f32 %v4346, %v4412
    %s4429 = sld [smem:[#allocation6 + $0x37]]
    %v4430 = vstv %s4429
    %v4431 = vmul.f32 %v4430, %v419
    %v4432 = vmul.f32 %v4430, %v420
    %v4433 = vmul.f32 %v4430, %v325
    %v4434 = vmul.f32 %v4430, %v326
    %v4435 = vmul.f32 %v4430, %v421
    %v4436 = vmul.f32 %v4430, %v422
    %v4437 = vmul.f32 %v4430, %v423
    %v4438 = vmul.f32 %v4430, %v424
    %v4439 = vmul.f32 %v4430, %v331
    %v4440 = vmul.f32 %v4430, %v332
    %v4441 = vmul.f32 %v4430, %v425
    %v4442 = vmul.f32 %v4430, %v426
    %v4455 = vrot.slane %v4431, 2
    %v4456 = vrot.slane %v4433, 2
    %v4457 = vsel %vm452, %v4455, %v4456
    %v4458 = vrot.slane %v4432, 2
    %v4459 = vrot.slane %v4434, 2
    %v4460 = vsel %vm452, %v4458, %v4459
    %v4461 = vrot.slane %v4435, 2
    %v4462 = vsel %vm452, %v4456, %v4461
    %v4463 = vrot.slane %v4436, 2
    %v4464 = vsel %vm452, %v4459, %v4463
    %v4465 = vrot.slane %v4437, 2
    %v4466 = vrot.slane %v4439, 2
    %v4467 = vsel %vm452, %v4465, %v4466
    %v4468 = vrot.slane %v4438, 2
    %v4469 = vrot.slane %v4440, 2
    %v4470 = vsel %vm452, %v4468, %v4469
    %v4471 = vrot.slane %v4441, 2
    %v4472 = vsel %vm452, %v4466, %v4471
    %v4473 = vrot.slane %v4442, 2
    %v4474 = vsel %vm452, %v4469, %v4473
    %4475 = vrot.lane.b32.xlu0 %v4457, 14
    %v4476 = vpop.permute.xlu0 %4475
    %4477 = vrot.lane.b32.xlu0 %v4460, 14
    %v4478 = vpop.permute.xlu0 %4477
    %4479 = vrot.lane.b32.xlu0 %v4462, 14
    %v4480 = vpop.permute.xlu0 %4479
    %4481 = vrot.lane.b32.xlu0 %v4464, 14
    %v4482 = vpop.permute.xlu0 %4481
    %4483 = vrot.lane.b32.xlu0 %v4467, 14
    %v4484 = vpop.permute.xlu0 %4483
    %4485 = vrot.lane.b32.xlu0 %v4470, 14
    %v4486 = vpop.permute.xlu0 %4485
    %4487 = vrot.lane.b32.xlu0 %v4472, 14
    %v4488 = vpop.permute.xlu0 %4487
    %4489 = vrot.lane.b32.xlu0 %v4474, 14
    %v4490 = vpop.permute.xlu0 %4489
    %v4491 = vsel %vm4326, %v4476, %v4478
    %v4492 = vsel %vm4326, %v4480, %v4482
    %v4493 = vsel %vm4326, %v4484, %v4486
    %v4494 = vsel %vm4326, %v4488, %v4490
    %v4503 = vadd.f32 %v4421, %v4476
    %v4504 = vadd.f32 %v4422, %v4491
    %v4505 = vadd.f32 %v4423, %v4480
    %v4506 = vadd.f32 %v4424, %v4492
    %v4507 = vadd.f32 %v4425, %v4484
    %v4508 = vadd.f32 %v4426, %v4493
    %v4509 = vadd.f32 %v4427, %v4488
    %v4510 = vadd.f32 %v4428, %v4494
    %s4511 = sld [smem:[#allocation6 + $0x50]]
    %v4512 = vstv %s4511
    %v4513 = vmul.f32 %v4512, %v510
    %v4514 = vmul.f32 %v4512, %v511
    %v4515 = vmul.f32 %v4512, %v325
    %v4516 = vmul.f32 %v4512, %v326
    %v4517 = vmul.f32 %v4512, %v512
    %v4518 = vmul.f32 %v4512, %v513
    %v4519 = vmul.f32 %v4512, %v514
    %v4520 = vmul.f32 %v4512, %v515
    %v4521 = vmul.f32 %v4512, %v331
    %v4522 = vmul.f32 %v4512, %v332
    %v4523 = vmul.f32 %v4512, %v516
    %v4524 = vmul.f32 %v4512, %v517
    %v4537 = vrot.slane %v4513, 3
    %v4538 = vrot.slane %v4515, 3
    %v4539 = vsel %vm543, %v4537, %v4538
    %v4540 = vrot.slane %v4514, 3
    %v4541 = vrot.slane %v4516, 3
    %v4542 = vsel %vm543, %v4540, %v4541
    %v4543 = vrot.slane %v4517, 3
    %v4544 = vsel %vm543, %v4538, %v4543
    %v4545 = vrot.slane %v4518, 3
    %v4546 = vsel %vm543, %v4541, %v4545
    %v4547 = vrot.slane %v4519, 3
    %v4548 = vrot.slane %v4521, 3
    %v4549 = vsel %vm543, %v4547, %v4548
    %v4550 = vrot.slane %v4520, 3
    %v4551 = vrot.slane %v4522, 3
    %v4552 = vsel %vm543, %v4550, %v4551
    %v4553 = vrot.slane %v4523, 3
    %v4554 = vsel %vm543, %v4548, %v4553
    %v4555 = vrot.slane %v4524, 3
    %v4556 = vsel %vm543, %v4551, %v4555
    %4557 = vrot.lane.b32.xlu0 %v4539, 14
    %v4558 = vpop.permute.xlu0 %4557
    %4559 = vrot.lane.b32.xlu0 %v4542, 14
    %v4560 = vpop.permute.xlu0 %4559
    %4561 = vrot.lane.b32.xlu0 %v4544, 14
    %v4562 = vpop.permute.xlu0 %4561
    %4563 = vrot.lane.b32.xlu0 %v4546, 14
    %v4564 = vpop.permute.xlu0 %4563
    %4565 = vrot.lane.b32.xlu0 %v4549, 14
    %v4566 = vpop.permute.xlu0 %4565
    %4567 = vrot.lane.b32.xlu0 %v4552, 14
    %v4568 = vpop.permute.xlu0 %4567
    %4569 = vrot.lane.b32.xlu0 %v4554, 14
    %v4570 = vpop.permute.xlu0 %4569
    %4571 = vrot.lane.b32.xlu0 %v4556, 14
    %v4572 = vpop.permute.xlu0 %4571
    %v4573 = vsel %vm4326, %v4558, %v4560
    %v4574 = vsel %vm4326, %v4562, %v4564
    %v4575 = vsel %vm4326, %v4566, %v4568
    %v4576 = vsel %vm4326, %v4570, %v4572
    %v4585 = vadd.f32 %v4503, %v4558
    %v4586 = vadd.f32 %v4504, %v4573
    %v4587 = vadd.f32 %v4505, %v4562
    %v4588 = vadd.f32 %v4506, %v4574
    %v4589 = vadd.f32 %v4507, %v4566
    %v4590 = vadd.f32 %v4508, %v4575
    %v4591 = vadd.f32 %v4509, %v4570
    %v4592 = vadd.f32 %v4510, %v4576
    %s4593 = sld [smem:[#allocation6 + $0x69]]
    %v4594 = vstv %s4593
    %v4595 = vmul.f32 %v4594, %v3054
    %v4596 = vmul.f32 %v4594, %v3055
    %v4597 = vmul.f32 %v4594, %v325
    %v4598 = vmul.f32 %v4594, %v326
    %v4599 = vmul.f32 %v4594, %v3056
    %v4600 = vmul.f32 %v4594, %v3057
    %v4601 = vmul.f32 %v4594, %v3058
    %v4602 = vmul.f32 %v4594, %v3059
    %v4603 = vmul.f32 %v4594, %v331
    %v4604 = vmul.f32 %v4594, %v332
    %v4605 = vmul.f32 %v4594, %v3060
    %v4606 = vmul.f32 %v4594, %v3061
    %v4619 = vrot.slane %v4595, 4
    %v4620 = vrot.slane %v4597, 4
    %v4621 = vsel %vm2713, %v4619, %v4620
    %v4622 = vrot.slane %v4596, 4
    %v4623 = vrot.slane %v4598, 4
    %v4624 = vsel %vm2713, %v4622, %v4623
    %v4625 = vrot.slane %v4599, 4
    %v4626 = vsel %vm2713, %v4620, %v4625
    %v4627 = vrot.slane %v4600, 4
    %v4628 = vsel %vm2713, %v4623, %v4627
    %v4629 = vrot.slane %v4601, 4
    %v4630 = vrot.slane %v4603, 4
    %v4631 = vsel %vm2713, %v4629, %v4630
    %v4632 = vrot.slane %v4602, 4
    %v4633 = vrot.slane %v4604, 4
    %v4634 = vsel %vm2713, %v4632, %v4633
    %v4635 = vrot.slane %v4605, 4
    %v4636 = vsel %vm2713, %v4630, %v4635
    %v4637 = vrot.slane %v4606, 4
    %v4638 = vsel %vm2713, %v4633, %v4637
    %4639 = vrot.lane.b32.xlu0 %v4621, 14
    %v4640 = vpop.permute.xlu0 %4639
    %4641 = vrot.lane.b32.xlu0 %v4624, 14
    %v4642 = vpop.permute.xlu0 %4641
    %4643 = vrot.lane.b32.xlu0 %v4626, 14
    %v4644 = vpop.permute.xlu0 %4643
    %4645 = vrot.lane.b32.xlu0 %v4628, 14
    %v4646 = vpop.permute.xlu0 %4645
    %4647 = vrot.lane.b32.xlu0 %v4631, 14
    %v4648 = vpop.permute.xlu0 %4647
    %4649 = vrot.lane.b32.xlu0 %v4634, 14
    %v4650 = vpop.permute.xlu0 %4649
    %4651 = vrot.lane.b32.xlu0 %v4636, 14
    %v4652 = vpop.permute.xlu0 %4651
    %4653 = vrot.lane.b32.xlu0 %v4638, 14
    %v4654 = vpop.permute.xlu0 %4653
    %v4655 = vsel %vm4326, %v4640, %v4642
    %v4656 = vsel %vm4326, %v4644, %v4646
    %v4657 = vsel %vm4326, %v4648, %v4650
    %v4658 = vsel %vm4326, %v4652, %v4654
    %v4667 = vadd.f32 %v4585, %v4640
    %v4668 = vadd.f32 %v4586, %v4655
    %v4669 = vadd.f32 %v4587, %v4644
    %v4670 = vadd.f32 %v4588, %v4656
    %v4671 = vadd.f32 %v4589, %v4648
    %v4672 = vadd.f32 %v4590, %v4657
    %v4673 = vadd.f32 %v4591, %v4652
    %v4674 = vadd.f32 %v4592, %v4658
    %s4675 = sld [smem:[#allocation6 + $0x6]]
    %v4676 = vstv %s4675
    %v4677 = vmul.f32 %v4676, %v2745
    %v4678 = vmul.f32 %v4676, %v2746
    %v4679 = vmul.f32 %v4676, %v2747
    %v4680 = vmul.f32 %v4676, %v2748
    %v4681 = vmul.f32 %v4676, %v2749
    %v4682 = vmul.f32 %v4676, %v2750
    %v4683 = vmul.f32 %v4676, %v2751
    %v4684 = vmul.f32 %v4676, %v2752
    %4693 = vrot.lane.b32.xlu0 %v4677, 13
    %v4694 = vpop.permute.xlu0 %4693
    %4695 = vrot.lane.b32.xlu0 %v4678, 13
    %v4696 = vpop.permute.xlu0 %4695
    %4697 = vrot.lane.b32.xlu0 %v4679, 13
    %v4698 = vpop.permute.xlu0 %4697
    %4699 = vrot.lane.b32.xlu0 %v4680, 13
    %v4700 = vpop.permute.xlu0 %4699
    %4701 = vrot.lane.b32.xlu0 %v4681, 13
    %v4702 = vpop.permute.xlu0 %4701
    %4703 = vrot.lane.b32.xlu0 %v4682, 13
    %v4704 = vpop.permute.xlu0 %4703
    %4705 = vrot.lane.b32.xlu0 %v4683, 13
    %v4706 = vpop.permute.xlu0 %4705
    %4707 = vrot.lane.b32.xlu0 %v4684, 13
    %v4708 = vpop.permute.xlu0 %4707
    %v4709 = vsel %vm397, %v4694, %v4696
    %v4710 = vsel %vm397, %v4698, %v4700
    %v4711 = vsel %vm397, %v4702, %v4704
    %v4712 = vsel %vm397, %v4706, %v4708
    %v4721 = vadd.f32 %v4667, %v4694
    %v4722 = vadd.f32 %v4668, %v4709
    %v4723 = vadd.f32 %v4669, %v4698
    %v4724 = vadd.f32 %v4670, %v4710
    %v4725 = vadd.f32 %v4671, %v4702
    %v4726 = vadd.f32 %v4672, %v4711
    %v4727 = vadd.f32 %v4673, %v4706
    %v4728 = vadd.f32 %v4674, %v4712
    %s4729 = sld [smem:[#allocation6 + $0x1f]]
    %v4730 = vstv %s4729
    %v4731 = vmul.f32 %v4730, %v323
    %v4732 = vmul.f32 %v4730, %v324
    %v4733 = vmul.f32 %v4730, %v325
    %v4734 = vmul.f32 %v4730, %v326
    %v4735 = vmul.f32 %v4730, %v327
    %v4736 = vmul.f32 %v4730, %v328
    %v4737 = vmul.f32 %v4730, %v329
    %v4738 = vmul.f32 %v4730, %v330
    %v4739 = vmul.f32 %v4730, %v331
    %v4740 = vmul.f32 %v4730, %v332
    %v4741 = vmul.f32 %v4730, %v333
    %v4742 = vmul.f32 %v4730, %v334
    %v4755 = vrot.slane %v4731, 1
    %v4756 = vrot.slane %v4733, 1
    %v4757 = vsel %vm360, %v4755, %v4756
    %v4758 = vrot.slane %v4732, 1
    %v4759 = vrot.slane %v4734, 1
    %v4760 = vsel %vm360, %v4758, %v4759
    %v4761 = vrot.slane %v4735, 1
    %v4762 = vsel %vm360, %v4756, %v4761
    %v4763 = vrot.slane %v4736, 1
    %v4764 = vsel %vm360, %v4759, %v4763
    %v4765 = vrot.slane %v4737, 1
    %v4766 = vrot.slane %v4739, 1
    %v4767 = vsel %vm360, %v4765, %v4766
    %v4768 = vrot.slane %v4738, 1
    %v4769 = vrot.slane %v4740, 1
    %v4770 = vsel %vm360, %v4768, %v4769
    %v4771 = vrot.slane %v4741, 1
    %v4772 = vsel %vm360, %v4766, %v4771
    %v4773 = vrot.slane %v4742, 1
    %v4774 = vsel %vm360, %v4769, %v4773
    %4775 = vrot.lane.b32.xlu0 %v4757, 13
    %v4776 = vpop.permute.xlu0 %4775
    %4777 = vrot.lane.b32.xlu0 %v4760, 13
    %v4778 = vpop.permute.xlu0 %4777
    %4779 = vrot.lane.b32.xlu0 %v4762, 13
    %v4780 = vpop.permute.xlu0 %4779
    %4781 = vrot.lane.b32.xlu0 %v4764, 13
    %v4782 = vpop.permute.xlu0 %4781
    %4783 = vrot.lane.b32.xlu0 %v4767, 13
    %v4784 = vpop.permute.xlu0 %4783
    %4785 = vrot.lane.b32.xlu0 %v4770, 13
    %v4786 = vpop.permute.xlu0 %4785
    %4787 = vrot.lane.b32.xlu0 %v4772, 13
    %v4788 = vpop.permute.xlu0 %4787
    %4789 = vrot.lane.b32.xlu0 %v4774, 13
    %v4790 = vpop.permute.xlu0 %4789
    %v4791 = vsel %vm397, %v4776, %v4778
    %v4792 = vsel %vm397, %v4780, %v4782
    %v4793 = vsel %vm397, %v4784, %v4786
    %v4794 = vsel %vm397, %v4788, %v4790
    %v4803 = vadd.f32 %v4721, %v4776
    %v4804 = vadd.f32 %v4722, %v4791
    %v4805 = vadd.f32 %v4723, %v4780
    %v4806 = vadd.f32 %v4724, %v4792
    %v4807 = vadd.f32 %v4725, %v4784
    %v4808 = vadd.f32 %v4726, %v4793
    %v4809 = vadd.f32 %v4727, %v4788
    %v4810 = vadd.f32 %v4728, %v4794
    %s4811 = sld [smem:[#allocation6 + $0x38]]
    %v4812 = vstv %s4811
    %v4813 = vmul.f32 %v4812, %v419
    %v4814 = vmul.f32 %v4812, %v420
    %v4815 = vmul.f32 %v4812, %v325
    %v4816 = vmul.f32 %v4812, %v326
    %v4817 = vmul.f32 %v4812, %v421
    %v4818 = vmul.f32 %v4812, %v422
    %v4819 = vmul.f32 %v4812, %v423
    %v4820 = vmul.f32 %v4812, %v424
    %v4821 = vmul.f32 %v4812, %v331
    %v4822 = vmul.f32 %v4812, %v332
    %v4823 = vmul.f32 %v4812, %v425
    %v4824 = vmul.f32 %v4812, %v426
    %v4837 = vrot.slane %v4813, 2
    %v4838 = vrot.slane %v4815, 2
    %v4839 = vsel %vm452, %v4837, %v4838
    %v4840 = vrot.slane %v4814, 2
    %v4841 = vrot.slane %v4816, 2
    %v4842 = vsel %vm452, %v4840, %v4841
    %v4843 = vrot.slane %v4817, 2
    %v4844 = vsel %vm452, %v4838, %v4843
    %v4845 = vrot.slane %v4818, 2
    %v4846 = vsel %vm452, %v4841, %v4845
    %v4847 = vrot.slane %v4819, 2
    %v4848 = vrot.slane %v4821, 2
    %v4849 = vsel %vm452, %v4847, %v4848
    %v4850 = vrot.slane %v4820, 2
    %v4851 = vrot.slane %v4822, 2
    %v4852 = vsel %vm452, %v4850, %v4851
    %v4853 = vrot.slane %v4823, 2
    %v4854 = vsel %vm452, %v4848, %v4853
    %v4855 = vrot.slane %v4824, 2
    %v4856 = vsel %vm452, %v4851, %v4855
    %4857 = vrot.lane.b32.xlu0 %v4839, 13
    %v4858 = vpop.permute.xlu0 %4857
    %4859 = vrot.lane.b32.xlu0 %v4842, 13
    %v4860 = vpop.permute.xlu0 %4859
    %4861 = vrot.lane.b32.xlu0 %v4844, 13
    %v4862 = vpop.permute.xlu0 %4861
    %4863 = vrot.lane.b32.xlu0 %v4846, 13
    %v4864 = vpop.permute.xlu0 %4863
    %4865 = vrot.lane.b32.xlu0 %v4849, 13
    %v4866 = vpop.permute.xlu0 %4865
    %4867 = vrot.lane.b32.xlu0 %v4852, 13
    %v4868 = vpop.permute.xlu0 %4867
    %4869 = vrot.lane.b32.xlu0 %v4854, 13
    %v4870 = vpop.permute.xlu0 %4869
    %4871 = vrot.lane.b32.xlu0 %v4856, 13
    %v4872 = vpop.permute.xlu0 %4871
    %v4873 = vsel %vm397, %v4858, %v4860
    %v4874 = vsel %vm397, %v4862, %v4864
    %v4875 = vsel %vm397, %v4866, %v4868
    %v4876 = vsel %vm397, %v4870, %v4872
    %v4885 = vadd.f32 %v4803, %v4858
    %v4886 = vadd.f32 %v4804, %v4873
    %v4887 = vadd.f32 %v4805, %v4862
    %v4888 = vadd.f32 %v4806, %v4874
    %v4889 = vadd.f32 %v4807, %v4866
    %v4890 = vadd.f32 %v4808, %v4875
    %v4891 = vadd.f32 %v4809, %v4870
    %v4892 = vadd.f32 %v4810, %v4876
    %s4893 = sld [smem:[#allocation6 + $0x51]]
    %v4894 = vstv %s4893
    %v4895 = vmul.f32 %v4894, %v510
    %v4896 = vmul.f32 %v4894, %v511
    %v4897 = vmul.f32 %v4894, %v325
    %v4898 = vmul.f32 %v4894, %v326
    %v4899 = vmul.f32 %v4894, %v512
    %v4900 = vmul.f32 %v4894, %v513
    %v4901 = vmul.f32 %v4894, %v514
    %v4902 = vmul.f32 %v4894, %v515
    %v4903 = vmul.f32 %v4894, %v331
    %v4904 = vmul.f32 %v4894, %v332
    %v4905 = vmul.f32 %v4894, %v516
    %v4906 = vmul.f32 %v4894, %v517
    %v4919 = vrot.slane %v4895, 3
    %v4920 = vrot.slane %v4897, 3
    %v4921 = vsel %vm543, %v4919, %v4920
    %v4922 = vrot.slane %v4896, 3
    %v4923 = vrot.slane %v4898, 3
    %v4924 = vsel %vm543, %v4922, %v4923
    %v4925 = vrot.slane %v4899, 3
    %v4926 = vsel %vm543, %v4920, %v4925
    %v4927 = vrot.slane %v4900, 3
    %v4928 = vsel %vm543, %v4923, %v4927
    %v4929 = vrot.slane %v4901, 3
    %v4930 = vrot.slane %v4903, 3
    %v4931 = vsel %vm543, %v4929, %v4930
    %v4932 = vrot.slane %v4902, 3
    %v4933 = vrot.slane %v4904, 3
    %v4934 = vsel %vm543, %v4932, %v4933
    %v4935 = vrot.slane %v4905, 3
    %v4936 = vsel %vm543, %v4930, %v4935
    %v4937 = vrot.slane %v4906, 3
    %v4938 = vsel %vm543, %v4933, %v4937
    %4939 = vrot.lane.b32.xlu0 %v4921, 13
    %v4940 = vpop.permute.xlu0 %4939
    %4941 = vrot.lane.b32.xlu0 %v4924, 13
    %v4942 = vpop.permute.xlu0 %4941
    %4943 = vrot.lane.b32.xlu0 %v4926, 13
    %v4944 = vpop.permute.xlu0 %4943
    %4945 = vrot.lane.b32.xlu0 %v4928, 13
    %v4946 = vpop.permute.xlu0 %4945
    %4947 = vrot.lane.b32.xlu0 %v4931, 13
    %v4948 = vpop.permute.xlu0 %4947
    %4949 = vrot.lane.b32.xlu0 %v4934, 13
    %v4950 = vpop.permute.xlu0 %4949
    %4951 = vrot.lane.b32.xlu0 %v4936, 13
    %v4952 = vpop.permute.xlu0 %4951
    %4953 = vrot.lane.b32.xlu0 %v4938, 13
    %v4954 = vpop.permute.xlu0 %4953
    %v4955 = vsel %vm397, %v4940, %v4942
    %v4956 = vsel %vm397, %v4944, %v4946
    %v4957 = vsel %vm397, %v4948, %v4950
    %v4958 = vsel %vm397, %v4952, %v4954
    %v4967 = vadd.f32 %v4885, %v4940
    %v4968 = vadd.f32 %v4886, %v4955
    %v4969 = vadd.f32 %v4887, %v4944
    %v4970 = vadd.f32 %v4888, %v4956
    %v4971 = vadd.f32 %v4889, %v4948
    %v4972 = vadd.f32 %v4890, %v4957
    %v4973 = vadd.f32 %v4891, %v4952
    %v4974 = vadd.f32 %v4892, %v4958
    %s4975 = sld [smem:[#allocation6 + $0x6a]]
    %v4976 = vstv %s4975
    %v4977 = vmul.f32 %v4976, %v3054
    %v4978 = vmul.f32 %v4976, %v3055
    %v4979 = vmul.f32 %v4976, %v325
    %v4980 = vmul.f32 %v4976, %v326
    %v4981 = vmul.f32 %v4976, %v3056
    %v4982 = vmul.f32 %v4976, %v3057
    %v4983 = vmul.f32 %v4976, %v3058
    %v4984 = vmul.f32 %v4976, %v3059
    %v4985 = vmul.f32 %v4976, %v331
    %v4986 = vmul.f32 %v4976, %v332
    %v4987 = vmul.f32 %v4976, %v3060
    %v4988 = vmul.f32 %v4976, %v3061
    %v5001 = vrot.slane %v4977, 4
    %v5002 = vrot.slane %v4979, 4
    %v5003 = vsel %vm2713, %v5001, %v5002
    %v5004 = vrot.slane %v4978, 4
    %v5005 = vrot.slane %v4980, 4
    %v5006 = vsel %vm2713, %v5004, %v5005
    %v5007 = vrot.slane %v4981, 4
    %v5008 = vsel %vm2713, %v5002, %v5007
    %v5009 = vrot.slane %v4982, 4
    %v5010 = vsel %vm2713, %v5005, %v5009
    %v5011 = vrot.slane %v4983, 4
    %v5012 = vrot.slane %v4985, 4
    %v5013 = vsel %vm2713, %v5011, %v5012
    %v5014 = vrot.slane %v4984, 4
    %v5015 = vrot.slane %v4986, 4
    %v5016 = vsel %vm2713, %v5014, %v5015
    %v5017 = vrot.slane %v4987, 4
    %v5018 = vsel %vm2713, %v5012, %v5017
    %v5019 = vrot.slane %v4988, 4
    %v5020 = vsel %vm2713, %v5015, %v5019
    %5021 = vrot.lane.b32.xlu0 %v5003, 13
    %v5022 = vpop.permute.xlu0 %5021
    %5023 = vrot.lane.b32.xlu0 %v5006, 13
    %v5024 = vpop.permute.xlu0 %5023
    %5025 = vrot.lane.b32.xlu0 %v5008, 13
    %v5026 = vpop.permute.xlu0 %5025
    %5027 = vrot.lane.b32.xlu0 %v5010, 13
    %v5028 = vpop.permute.xlu0 %5027
    %5029 = vrot.lane.b32.xlu0 %v5013, 13
    %v5030 = vpop.permute.xlu0 %5029
    %5031 = vrot.lane.b32.xlu0 %v5016, 13
    %v5032 = vpop.permute.xlu0 %5031
    %5033 = vrot.lane.b32.xlu0 %v5018, 13
    %v5034 = vpop.permute.xlu0 %5033
    %5035 = vrot.lane.b32.xlu0 %v5020, 13
    %v5036 = vpop.permute.xlu0 %5035
    %v5037 = vsel %vm397, %v5022, %v5024
    %v5038 = vsel %vm397, %v5026, %v5028
    %v5039 = vsel %vm397, %v5030, %v5032
    %v5040 = vsel %vm397, %v5034, %v5036
    %v5049 = vadd.f32 %v4967, %v5022
    %v5050 = vadd.f32 %v4968, %v5037
    %v5051 = vadd.f32 %v4969, %v5026
    %v5052 = vadd.f32 %v4970, %v5038
    %v5053 = vadd.f32 %v4971, %v5030
    %v5054 = vadd.f32 %v4972, %v5039
    %v5055 = vadd.f32 %v4973, %v5034
    %v5056 = vadd.f32 %v4974, %v5040
    %s5057 = sld [smem:[#allocation6 + $0x7]]
    %v5058 = vstv %s5057
    %v5059 = vmul.f32 %v5058, %v2745
    %v5060 = vmul.f32 %v5058, %v2746
    %v5061 = vmul.f32 %v5058, %v2747
    %v5062 = vmul.f32 %v5058, %v2748
    %v5063 = vmul.f32 %v5058, %v2749
    %v5064 = vmul.f32 %v5058, %v2750
    %v5065 = vmul.f32 %v5058, %v2751
    %v5066 = vmul.f32 %v5058, %v2752
    %5075 = vrot.lane.b32.xlu0 %v5059, 12
    %v5076 = vpop.permute.xlu0 %5075
    %5077 = vrot.lane.b32.xlu0 %v5060, 12
    %v5078 = vpop.permute.xlu0 %5077
    %5079 = vrot.lane.b32.xlu0 %v5061, 12
    %v5080 = vpop.permute.xlu0 %5079
    %5081 = vrot.lane.b32.xlu0 %v5062, 12
    %v5082 = vpop.permute.xlu0 %5081
    %5083 = vrot.lane.b32.xlu0 %v5063, 12
    %v5084 = vpop.permute.xlu0 %5083
    %5085 = vrot.lane.b32.xlu0 %v5064, 12
    %v5086 = vpop.permute.xlu0 %5085
    %5087 = vrot.lane.b32.xlu0 %v5065, 12
    %v5088 = vpop.permute.xlu0 %5087
    %5089 = vrot.lane.b32.xlu0 %v5066, 12
    %v5090 = vpop.permute.xlu0 %5089
    %v5091 = vsel %vm662, %v5076, %v5078
    %v5092 = vsel %vm662, %v5080, %v5082
    %v5093 = vsel %vm662, %v5084, %v5086
    %v5094 = vsel %vm662, %v5088, %v5090
    %v5103 = vadd.f32 %v5049, %v5076
    %v5104 = vadd.f32 %v5050, %v5091
    %v5105 = vadd.f32 %v5051, %v5080
    %v5106 = vadd.f32 %v5052, %v5092
    %v5107 = vadd.f32 %v5053, %v5084
    %v5108 = vadd.f32 %v5054, %v5093
    %v5109 = vadd.f32 %v5055, %v5088
    %v5110 = vadd.f32 %v5056, %v5094
    %s5111 = sld [smem:[#allocation6 + $0x20]]
    %v5112 = vstv %s5111
    %v5113 = vmul.f32 %v5112, %v323
    %v5114 = vmul.f32 %v5112, %v324
    %v5115 = vmul.f32 %v5112, %v325
    %v5116 = vmul.f32 %v5112, %v326
    %v5117 = vmul.f32 %v5112, %v327
    %v5118 = vmul.f32 %v5112, %v328
    %v5119 = vmul.f32 %v5112, %v329
    %v5120 = vmul.f32 %v5112, %v330
    %v5121 = vmul.f32 %v5112, %v331
    %v5122 = vmul.f32 %v5112, %v332
    %v5123 = vmul.f32 %v5112, %v333
    %v5124 = vmul.f32 %v5112, %v334
    %v5137 = vrot.slane %v5113, 1
    %v5138 = vrot.slane %v5115, 1
    %v5139 = vsel %vm360, %v5137, %v5138
    %v5140 = vrot.slane %v5114, 1
    %v5141 = vrot.slane %v5116, 1
    %v5142 = vsel %vm360, %v5140, %v5141
    %v5143 = vrot.slane %v5117, 1
    %v5144 = vsel %vm360, %v5138, %v5143
    %v5145 = vrot.slane %v5118, 1
    %v5146 = vsel %vm360, %v5141, %v5145
    %v5147 = vrot.slane %v5119, 1
    %v5148 = vrot.slane %v5121, 1
    %v5149 = vsel %vm360, %v5147, %v5148
    %v5150 = vrot.slane %v5120, 1
    %v5151 = vrot.slane %v5122, 1
    %v5152 = vsel %vm360, %v5150, %v5151
    %v5153 = vrot.slane %v5123, 1
    %v5154 = vsel %vm360, %v5148, %v5153
    %v5155 = vrot.slane %v5124, 1
    %v5156 = vsel %vm360, %v5151, %v5155
    %5157 = vrot.lane.b32.xlu0 %v5139, 12
    %v5158 = vpop.permute.xlu0 %5157
    %5159 = vrot.lane.b32.xlu0 %v5142, 12
    %v5160 = vpop.permute.xlu0 %5159
    %5161 = vrot.lane.b32.xlu0 %v5144, 12
    %v5162 = vpop.permute.xlu0 %5161
    %5163 = vrot.lane.b32.xlu0 %v5146, 12
    %v5164 = vpop.permute.xlu0 %5163
    %5165 = vrot.lane.b32.xlu0 %v5149, 12
    %v5166 = vpop.permute.xlu0 %5165
    %5167 = vrot.lane.b32.xlu0 %v5152, 12
    %v5168 = vpop.permute.xlu0 %5167
    %5169 = vrot.lane.b32.xlu0 %v5154, 12
    %v5170 = vpop.permute.xlu0 %5169
    %5171 = vrot.lane.b32.xlu0 %v5156, 12
    %v5172 = vpop.permute.xlu0 %5171
    %v5173 = vsel %vm662, %v5158, %v5160
    %v5174 = vsel %vm662, %v5162, %v5164
    %v5175 = vsel %vm662, %v5166, %v5168
    %v5176 = vsel %vm662, %v5170, %v5172
    %v5185 = vadd.f32 %v5103, %v5158
    %v5186 = vadd.f32 %v5104, %v5173
    %v5187 = vadd.f32 %v5105, %v5162
    %v5188 = vadd.f32 %v5106, %v5174
    %v5189 = vadd.f32 %v5107, %v5166
    %v5190 = vadd.f32 %v5108, %v5175
    %v5191 = vadd.f32 %v5109, %v5170
    %v5192 = vadd.f32 %v5110, %v5176
    %s5193 = sld [smem:[#allocation6 + $0x39]]
    %v5194 = vstv %s5193
    %v5195 = vmul.f32 %v5194, %v419
    %v5196 = vmul.f32 %v5194, %v420
    %v5197 = vmul.f32 %v5194, %v325
    %v5198 = vmul.f32 %v5194, %v326
    %v5199 = vmul.f32 %v5194, %v421
    %v5200 = vmul.f32 %v5194, %v422
    %v5201 = vmul.f32 %v5194, %v423
    %v5202 = vmul.f32 %v5194, %v424
    %v5203 = vmul.f32 %v5194, %v331
    %v5204 = vmul.f32 %v5194, %v332
    %v5205 = vmul.f32 %v5194, %v425
    %v5206 = vmul.f32 %v5194, %v426
    %v5219 = vrot.slane %v5195, 2
    %v5220 = vrot.slane %v5197, 2
    %v5221 = vsel %vm452, %v5219, %v5220
    %v5222 = vrot.slane %v5196, 2
    %v5223 = vrot.slane %v5198, 2
    %v5224 = vsel %vm452, %v5222, %v5223
    %v5225 = vrot.slane %v5199, 2
    %v5226 = vsel %vm452, %v5220, %v5225
    %v5227 = vrot.slane %v5200, 2
    %v5228 = vsel %vm452, %v5223, %v5227
    %v5229 = vrot.slane %v5201, 2
    %v5230 = vrot.slane %v5203, 2
    %v5231 = vsel %vm452, %v5229, %v5230
    %v5232 = vrot.slane %v5202, 2
    %v5233 = vrot.slane %v5204, 2
    %v5234 = vsel %vm452, %v5232, %v5233
    %v5235 = vrot.slane %v5205, 2
    %v5236 = vsel %vm452, %v5230, %v5235
    %v5237 = vrot.slane %v5206, 2
    %v5238 = vsel %vm452, %v5233, %v5237
    %5239 = vrot.lane.b32.xlu0 %v5221, 12
    %v5240 = vpop.permute.xlu0 %5239
    %5241 = vrot.lane.b32.xlu0 %v5224, 12
    %v5242 = vpop.permute.xlu0 %5241
    %5243 = vrot.lane.b32.xlu0 %v5226, 12
    %v5244 = vpop.permute.xlu0 %5243
    %5245 = vrot.lane.b32.xlu0 %v5228, 12
    %v5246 = vpop.permute.xlu0 %5245
    %5247 = vrot.lane.b32.xlu0 %v5231, 12
    %v5248 = vpop.permute.xlu0 %5247
    %5249 = vrot.lane.b32.xlu0 %v5234, 12
    %v5250 = vpop.permute.xlu0 %5249
    %5251 = vrot.lane.b32.xlu0 %v5236, 12
    %v5252 = vpop.permute.xlu0 %5251
    %5253 = vrot.lane.b32.xlu0 %v5238, 12
    %v5254 = vpop.permute.xlu0 %5253
    %v5255 = vsel %vm662, %v5240, %v5242
    %v5256 = vsel %vm662, %v5244, %v5246
    %v5257 = vsel %vm662, %v5248, %v5250
    %v5258 = vsel %vm662, %v5252, %v5254
    %v5267 = vadd.f32 %v5185, %v5240
    %v5268 = vadd.f32 %v5186, %v5255
    %v5269 = vadd.f32 %v5187, %v5244
    %v5270 = vadd.f32 %v5188, %v5256
    %v5271 = vadd.f32 %v5189, %v5248
    %v5272 = vadd.f32 %v5190, %v5257
    %v5273 = vadd.f32 %v5191, %v5252
    %v5274 = vadd.f32 %v5192, %v5258
    %s5275 = sld [smem:[#allocation6 + $0x52]]
    %v5276 = vstv %s5275
    %v5277 = vmul.f32 %v5276, %v510
    %v5278 = vmul.f32 %v5276, %v511
    %v5279 = vmul.f32 %v5276, %v325
    %v5280 = vmul.f32 %v5276, %v326
    %v5281 = vmul.f32 %v5276, %v512
    %v5282 = vmul.f32 %v5276, %v513
    %v5283 = vmul.f32 %v5276, %v514
    %v5284 = vmul.f32 %v5276, %v515
    %v5285 = vmul.f32 %v5276, %v331
    %v5286 = vmul.f32 %v5276, %v332
    %v5287 = vmul.f32 %v5276, %v516
    %v5288 = vmul.f32 %v5276, %v517
    %v5301 = vrot.slane %v5277, 3
    %v5302 = vrot.slane %v5279, 3
    %v5303 = vsel %vm543, %v5301, %v5302
    %v5304 = vrot.slane %v5278, 3
    %v5305 = vrot.slane %v5280, 3
    %v5306 = vsel %vm543, %v5304, %v5305
    %v5307 = vrot.slane %v5281, 3
    %v5308 = vsel %vm543, %v5302, %v5307
    %v5309 = vrot.slane %v5282, 3
    %v5310 = vsel %vm543, %v5305, %v5309
    %v5311 = vrot.slane %v5283, 3
    %v5312 = vrot.slane %v5285, 3
    %v5313 = vsel %vm543, %v5311, %v5312
    %v5314 = vrot.slane %v5284, 3
    %v5315 = vrot.slane %v5286, 3
    %v5316 = vsel %vm543, %v5314, %v5315
    %v5317 = vrot.slane %v5287, 3
    %v5318 = vsel %vm543, %v5312, %v5317
    %v5319 = vrot.slane %v5288, 3
    %v5320 = vsel %vm543, %v5315, %v5319
    %5321 = vrot.lane.b32.xlu0 %v5303, 12
    %v5322 = vpop.permute.xlu0 %5321
    %5323 = vrot.lane.b32.xlu0 %v5306, 12
    %v5324 = vpop.permute.xlu0 %5323
    %5325 = vrot.lane.b32.xlu0 %v5308, 12
    %v5326 = vpop.permute.xlu0 %5325
    %5327 = vrot.lane.b32.xlu0 %v5310, 12
    %v5328 = vpop.permute.xlu0 %5327
    %5329 = vrot.lane.b32.xlu0 %v5313, 12
    %v5330 = vpop.permute.xlu0 %5329
    %5331 = vrot.lane.b32.xlu0 %v5316, 12
    %v5332 = vpop.permute.xlu0 %5331
    %5333 = vrot.lane.b32.xlu0 %v5318, 12
    %v5334 = vpop.permute.xlu0 %5333
    %5335 = vrot.lane.b32.xlu0 %v5320, 12
    %v5336 = vpop.permute.xlu0 %5335
    %v5337 = vsel %vm662, %v5322, %v5324
    %v5338 = vsel %vm662, %v5326, %v5328
    %v5339 = vsel %vm662, %v5330, %v5332
    %v5340 = vsel %vm662, %v5334, %v5336
    %v5349 = vadd.f32 %v5267, %v5322
    %v5350 = vadd.f32 %v5268, %v5337
    %v5351 = vadd.f32 %v5269, %v5326
    %v5352 = vadd.f32 %v5270, %v5338
    %v5353 = vadd.f32 %v5271, %v5330
    %v5354 = vadd.f32 %v5272, %v5339
    %v5355 = vadd.f32 %v5273, %v5334
    %v5356 = vadd.f32 %v5274, %v5340
    %s5357 = sld [smem:[#allocation6 + $0x6b]]
    %v5358 = vstv %s5357
    %v5359 = vmul.f32 %v5358, %v3054
    %v5360 = vmul.f32 %v5358, %v3055
    %v5361 = vmul.f32 %v5358, %v325
    %v5362 = vmul.f32 %v5358, %v326
    %v5363 = vmul.f32 %v5358, %v3056
    %v5364 = vmul.f32 %v5358, %v3057
    %v5365 = vmul.f32 %v5358, %v3058
    %v5366 = vmul.f32 %v5358, %v3059
    %v5367 = vmul.f32 %v5358, %v331
    %v5368 = vmul.f32 %v5358, %v332
    %v5369 = vmul.f32 %v5358, %v3060
    %v5370 = vmul.f32 %v5358, %v3061
    %v5383 = vrot.slane %v5359, 4
    %v5384 = vrot.slane %v5361, 4
    %v5385 = vsel %vm2713, %v5383, %v5384
    %v5386 = vrot.slane %v5360, 4
    %v5387 = vrot.slane %v5362, 4
    %v5388 = vsel %vm2713, %v5386, %v5387
    %v5389 = vrot.slane %v5363, 4
    %v5390 = vsel %vm2713, %v5384, %v5389
    %v5391 = vrot.slane %v5364, 4
    %v5392 = vsel %vm2713, %v5387, %v5391
    %v5393 = vrot.slane %v5365, 4
    %v5394 = vrot.slane %v5367, 4
    %v5395 = vsel %vm2713, %v5393, %v5394
    %v5396 = vrot.slane %v5366, 4
    %v5397 = vrot.slane %v5368, 4
    %v5398 = vsel %vm2713, %v5396, %v5397
    %v5399 = vrot.slane %v5369, 4
    %v5400 = vsel %vm2713, %v5394, %v5399
    %v5401 = vrot.slane %v5370, 4
    %v5402 = vsel %vm2713, %v5397, %v5401
    %5403 = vrot.lane.b32.xlu0 %v5385, 12
    %v5404 = vpop.permute.xlu0 %5403
    %5405 = vrot.lane.b32.xlu0 %v5388, 12
    %v5406 = vpop.permute.xlu0 %5405
    %5407 = vrot.lane.b32.xlu0 %v5390, 12
    %v5408 = vpop.permute.xlu0 %5407
    %5409 = vrot.lane.b32.xlu0 %v5392, 12
    %v5410 = vpop.permute.xlu0 %5409
    %5411 = vrot.lane.b32.xlu0 %v5395, 12
    %v5412 = vpop.permute.xlu0 %5411
    %5413 = vrot.lane.b32.xlu0 %v5398, 12
    %v5414 = vpop.permute.xlu0 %5413
    %5415 = vrot.lane.b32.xlu0 %v5400, 12
    %v5416 = vpop.permute.xlu0 %5415
    %5417 = vrot.lane.b32.xlu0 %v5402, 12
    %v5418 = vpop.permute.xlu0 %5417
    %v5419 = vsel %vm662, %v5404, %v5406
    %v5420 = vsel %vm662, %v5408, %v5410
    %v5421 = vsel %vm662, %v5412, %v5414
    %v5422 = vsel %vm662, %v5416, %v5418
    %v5431 = vadd.f32 %v5349, %v5404
    %v5432 = vadd.f32 %v5350, %v5419
    %v5433 = vadd.f32 %v5351, %v5408
    %v5434 = vadd.f32 %v5352, %v5420
    %v5435 = vadd.f32 %v5353, %v5412
    %v5436 = vadd.f32 %v5354, %v5421
    %v5437 = vadd.f32 %v5355, %v5416
    %v5438 = vadd.f32 %v5356, %v5422
    %s5439 = sld [smem:[#allocation6 + $0x8]]
    %v5440 = vstv %s5439
    %v5441 = vmul.f32 %v5440, %v2745
    %v5442 = vmul.f32 %v5440, %v2746
    %v5443 = vmul.f32 %v5440, %v2747
    %v5444 = vmul.f32 %v5440, %v2748
    %v5445 = vmul.f32 %v5440, %v2749
    %v5446 = vmul.f32 %v5440, %v2750
    %v5447 = vmul.f32 %v5440, %v2751
    %v5448 = vmul.f32 %v5440, %v2752
    %5457 = vrot.lane.b32.xlu0 %v5441, 11
    %v5458 = vpop.permute.xlu0 %5457
    %5459 = vrot.lane.b32.xlu0 %v5442, 11
    %v5460 = vpop.permute.xlu0 %5459
    %5461 = vrot.lane.b32.xlu0 %v5443, 11
    %v5462 = vpop.permute.xlu0 %5461
    %5463 = vrot.lane.b32.xlu0 %v5444, 11
    %v5464 = vpop.permute.xlu0 %5463
    %5465 = vrot.lane.b32.xlu0 %v5445, 11
    %v5466 = vpop.permute.xlu0 %5465
    %5467 = vrot.lane.b32.xlu0 %v5446, 11
    %v5468 = vpop.permute.xlu0 %5467
    %5469 = vrot.lane.b32.xlu0 %v5447, 11
    %v5470 = vpop.permute.xlu0 %5469
    %5471 = vrot.lane.b32.xlu0 %v5448, 11
    %v5472 = vpop.permute.xlu0 %5471
    %v5473 = vsel %vm909, %v5458, %v5460
    %v5474 = vsel %vm909, %v5462, %v5464
    %v5475 = vsel %vm909, %v5466, %v5468
    %v5476 = vsel %vm909, %v5470, %v5472
    %v5485 = vadd.f32 %v5431, %v5458
    %v5486 = vadd.f32 %v5432, %v5473
    %v5487 = vadd.f32 %v5433, %v5462
    %v5488 = vadd.f32 %v5434, %v5474
    %v5489 = vadd.f32 %v5435, %v5466
    %v5490 = vadd.f32 %v5436, %v5475
    %v5491 = vadd.f32 %v5437, %v5470
    %v5492 = vadd.f32 %v5438, %v5476
    %s5493 = sld [smem:[#allocation6 + $0x21]]
    %v5494 = vstv %s5493
    %v5495 = vmul.f32 %v5494, %v323
    %v5496 = vmul.f32 %v5494, %v324
    %v5497 = vmul.f32 %v5494, %v325
    %v5498 = vmul.f32 %v5494, %v326
    %v5499 = vmul.f32 %v5494, %v327
    %v5500 = vmul.f32 %v5494, %v328
    %v5501 = vmul.f32 %v5494, %v329
    %v5502 = vmul.f32 %v5494, %v330
    %v5503 = vmul.f32 %v5494, %v331
    %v5504 = vmul.f32 %v5494, %v332
    %v5505 = vmul.f32 %v5494, %v333
    %v5506 = vmul.f32 %v5494, %v334
    %v5519 = vrot.slane %v5495, 1
    %v5520 = vrot.slane %v5497, 1
    %v5521 = vsel %vm360, %v5519, %v5520
    %v5522 = vrot.slane %v5496, 1
    %v5523 = vrot.slane %v5498, 1
    %v5524 = vsel %vm360, %v5522, %v5523
    %v5525 = vrot.slane %v5499, 1
    %v5526 = vsel %vm360, %v5520, %v5525
    %v5527 = vrot.slane %v5500, 1
    %v5528 = vsel %vm360, %v5523, %v5527
    %v5529 = vrot.slane %v5501, 1
    %v5530 = vrot.slane %v5503, 1
    %v5531 = vsel %vm360, %v5529, %v5530
    %v5532 = vrot.slane %v5502, 1
    %v5533 = vrot.slane %v5504, 1
    %v5534 = vsel %vm360, %v5532, %v5533
    %v5535 = vrot.slane %v5505, 1
    %v5536 = vsel %vm360, %v5530, %v5535
    %v5537 = vrot.slane %v5506, 1
    %v5538 = vsel %vm360, %v5533, %v5537
    %5539 = vrot.lane.b32.xlu0 %v5521, 11
    %v5540 = vpop.permute.xlu0 %5539
    %5541 = vrot.lane.b32.xlu0 %v5524, 11
    %v5542 = vpop.permute.xlu0 %5541
    %5543 = vrot.lane.b32.xlu0 %v5526, 11
    %v5544 = vpop.permute.xlu0 %5543
    %5545 = vrot.lane.b32.xlu0 %v5528, 11
    %v5546 = vpop.permute.xlu0 %5545
    %5547 = vrot.lane.b32.xlu0 %v5531, 11
    %v5548 = vpop.permute.xlu0 %5547
    %5549 = vrot.lane.b32.xlu0 %v5534, 11
    %v5550 = vpop.permute.xlu0 %5549
    %5551 = vrot.lane.b32.xlu0 %v5536, 11
    %v5552 = vpop.permute.xlu0 %5551
    %5553 = vrot.lane.b32.xlu0 %v5538, 11
    %v5554 = vpop.permute.xlu0 %5553
    %v5555 = vsel %vm909, %v5540, %v5542
    %v5556 = vsel %vm909, %v5544, %v5546
    %v5557 = vsel %vm909, %v5548, %v5550
    %v5558 = vsel %vm909, %v5552, %v5554
    %v5567 = vadd.f32 %v5485, %v5540
    %v5568 = vadd.f32 %v5486, %v5555
    %v5569 = vadd.f32 %v5487, %v5544
    %v5570 = vadd.f32 %v5488, %v5556
    %v5571 = vadd.f32 %v5489, %v5548
    %v5572 = vadd.f32 %v5490, %v5557
    %v5573 = vadd.f32 %v5491, %v5552
    %v5574 = vadd.f32 %v5492, %v5558
    %s5575 = sld [smem:[#allocation6 + $0x3a]]
    %v5576 = vstv %s5575
    %v5577 = vmul.f32 %v5576, %v419
    %v5578 = vmul.f32 %v5576, %v420
    %v5579 = vmul.f32 %v5576, %v325
    %v5580 = vmul.f32 %v5576, %v326
    %v5581 = vmul.f32 %v5576, %v421
    %v5582 = vmul.f32 %v5576, %v422
    %v5583 = vmul.f32 %v5576, %v423
    %v5584 = vmul.f32 %v5576, %v424
    %v5585 = vmul.f32 %v5576, %v331
    %v5586 = vmul.f32 %v5576, %v332
    %v5587 = vmul.f32 %v5576, %v425
    %v5588 = vmul.f32 %v5576, %v426
    %v5601 = vrot.slane %v5577, 2
    %v5602 = vrot.slane %v5579, 2
    %v5603 = vsel %vm452, %v5601, %v5602
    %v5604 = vrot.slane %v5578, 2
    %v5605 = vrot.slane %v5580, 2
    %v5606 = vsel %vm452, %v5604, %v5605
    %v5607 = vrot.slane %v5581, 2
    %v5608 = vsel %vm452, %v5602, %v5607
    %v5609 = vrot.slane %v5582, 2
    %v5610 = vsel %vm452, %v5605, %v5609
    %v5611 = vrot.slane %v5583, 2
    %v5612 = vrot.slane %v5585, 2
    %v5613 = vsel %vm452, %v5611, %v5612
    %v5614 = vrot.slane %v5584, 2
    %v5615 = vrot.slane %v5586, 2
    %v5616 = vsel %vm452, %v5614, %v5615
    %v5617 = vrot.slane %v5587, 2
    %v5618 = vsel %vm452, %v5612, %v5617
    %v5619 = vrot.slane %v5588, 2
    %v5620 = vsel %vm452, %v5615, %v5619
    %5621 = vrot.lane.b32.xlu0 %v5603, 11
    %v5622 = vpop.permute.xlu0 %5621
    %5623 = vrot.lane.b32.xlu0 %v5606, 11
    %v5624 = vpop.permute.xlu0 %5623
    %5625 = vrot.lane.b32.xlu0 %v5608, 11
    %v5626 = vpop.permute.xlu0 %5625
    %5627 = vrot.lane.b32.xlu0 %v5610, 11
    %v5628 = vpop.permute.xlu0 %5627
    %5629 = vrot.lane.b32.xlu0 %v5613, 11
    %v5630 = vpop.permute.xlu0 %5629
    %5631 = vrot.lane.b32.xlu0 %v5616, 11
    %v5632 = vpop.permute.xlu0 %5631
    %5633 = vrot.lane.b32.xlu0 %v5618, 11
    %v5634 = vpop.permute.xlu0 %5633
    %5635 = vrot.lane.b32.xlu0 %v5620, 11
    %v5636 = vpop.permute.xlu0 %5635
    %v5637 = vsel %vm909, %v5622, %v5624
    %v5638 = vsel %vm909, %v5626, %v5628
    %v5639 = vsel %vm909, %v5630, %v5632
    %v5640 = vsel %vm909, %v5634, %v5636
    %v5649 = vadd.f32 %v5567, %v5622
    %v5650 = vadd.f32 %v5568, %v5637
    %v5651 = vadd.f32 %v5569, %v5626
    %v5652 = vadd.f32 %v5570, %v5638
    %v5653 = vadd.f32 %v5571, %v5630
    %v5654 = vadd.f32 %v5572, %v5639
    %v5655 = vadd.f32 %v5573, %v5634
    %v5656 = vadd.f32 %v5574, %v5640
    %s5657 = sld [smem:[#allocation6 + $0x53]]
    %v5658 = vstv %s5657
    %v5659 = vmul.f32 %v5658, %v510
    %v5660 = vmul.f32 %v5658, %v511
    %v5661 = vmul.f32 %v5658, %v325
    %v5662 = vmul.f32 %v5658, %v326
    %v5663 = vmul.f32 %v5658, %v512
    %v5664 = vmul.f32 %v5658, %v513
    %v5665 = vmul.f32 %v5658, %v514
    %v5666 = vmul.f32 %v5658, %v515
    %v5667 = vmul.f32 %v5658, %v331
    %v5668 = vmul.f32 %v5658, %v332
    %v5669 = vmul.f32 %v5658, %v516
    %v5670 = vmul.f32 %v5658, %v517
    %v5683 = vrot.slane %v5659, 3
    %v5684 = vrot.slane %v5661, 3
    %v5685 = vsel %vm543, %v5683, %v5684
    %v5686 = vrot.slane %v5660, 3
    %v5687 = vrot.slane %v5662, 3
    %v5688 = vsel %vm543, %v5686, %v5687
    %v5689 = vrot.slane %v5663, 3
    %v5690 = vsel %vm543, %v5684, %v5689
    %v5691 = vrot.slane %v5664, 3
    %v5692 = vsel %vm543, %v5687, %v5691
    %v5693 = vrot.slane %v5665, 3
    %v5694 = vrot.slane %v5667, 3
    %v5695 = vsel %vm543, %v5693, %v5694
    %v5696 = vrot.slane %v5666, 3
    %v5697 = vrot.slane %v5668, 3
    %v5698 = vsel %vm543, %v5696, %v5697
    %v5699 = vrot.slane %v5669, 3
    %v5700 = vsel %vm543, %v5694, %v5699
    %v5701 = vrot.slane %v5670, 3
    %v5702 = vsel %vm543, %v5697, %v5701
    %5703 = vrot.lane.b32.xlu0 %v5685, 11
    %v5704 = vpop.permute.xlu0 %5703
    %5705 = vrot.lane.b32.xlu0 %v5688, 11
    %v5706 = vpop.permute.xlu0 %5705
    %5707 = vrot.lane.b32.xlu0 %v5690, 11
    %v5708 = vpop.permute.xlu0 %5707
    %5709 = vrot.lane.b32.xlu0 %v5692, 11
    %v5710 = vpop.permute.xlu0 %5709
    %5711 = vrot.lane.b32.xlu0 %v5695, 11
    %v5712 = vpop.permute.xlu0 %5711
    %5713 = vrot.lane.b32.xlu0 %v5698, 11
    %v5714 = vpop.permute.xlu0 %5713
    %5715 = vrot.lane.b32.xlu0 %v5700, 11
    %v5716 = vpop.permute.xlu0 %5715
    %5717 = vrot.lane.b32.xlu0 %v5702, 11
    %v5718 = vpop.permute.xlu0 %5717
    %v5719 = vsel %vm909, %v5704, %v5706
    %v5720 = vsel %vm909, %v5708, %v5710
    %v5721 = vsel %vm909, %v5712, %v5714
    %v5722 = vsel %vm909, %v5716, %v5718
    %v5731 = vadd.f32 %v5649, %v5704
    %v5732 = vadd.f32 %v5650, %v5719
    %v5733 = vadd.f32 %v5651, %v5708
    %v5734 = vadd.f32 %v5652, %v5720
    %v5735 = vadd.f32 %v5653, %v5712
    %v5736 = vadd.f32 %v5654, %v5721
    %v5737 = vadd.f32 %v5655, %v5716
    %v5738 = vadd.f32 %v5656, %v5722
    %s5739 = sld [smem:[#allocation6 + $0x6c]]
    %v5740 = vstv %s5739
    %v5741 = vmul.f32 %v5740, %v3054
    %v5742 = vmul.f32 %v5740, %v3055
    %v5743 = vmul.f32 %v5740, %v325
    %v5744 = vmul.f32 %v5740, %v326
    %v5745 = vmul.f32 %v5740, %v3056
    %v5746 = vmul.f32 %v5740, %v3057
    %v5747 = vmul.f32 %v5740, %v3058
    %v5748 = vmul.f32 %v5740, %v3059
    %v5749 = vmul.f32 %v5740, %v331
    %v5750 = vmul.f32 %v5740, %v332
    %v5751 = vmul.f32 %v5740, %v3060
    %v5752 = vmul.f32 %v5740, %v3061
    %v5765 = vrot.slane %v5741, 4
    %v5766 = vrot.slane %v5743, 4
    %v5767 = vsel %vm2713, %v5765, %v5766
    %v5768 = vrot.slane %v5742, 4
    %v5769 = vrot.slane %v5744, 4
    %v5770 = vsel %vm2713, %v5768, %v5769
    %v5771 = vrot.slane %v5745, 4
    %v5772 = vsel %vm2713, %v5766, %v5771
    %v5773 = vrot.slane %v5746, 4
    %v5774 = vsel %vm2713, %v5769, %v5773
    %v5775 = vrot.slane %v5747, 4
    %v5776 = vrot.slane %v5749, 4
    %v5777 = vsel %vm2713, %v5775, %v5776
    %v5778 = vrot.slane %v5748, 4
    %v5779 = vrot.slane %v5750, 4
    %v5780 = vsel %vm2713, %v5778, %v5779
    %v5781 = vrot.slane %v5751, 4
    %v5782 = vsel %vm2713, %v5776, %v5781
    %v5783 = vrot.slane %v5752, 4
    %v5784 = vsel %vm2713, %v5779, %v5783
    %5785 = vrot.lane.b32.xlu0 %v5767, 11
    %v5786 = vpop.permute.xlu0 %5785
    %5787 = vrot.lane.b32.xlu0 %v5770, 11
    %v5788 = vpop.permute.xlu0 %5787
    %5789 = vrot.lane.b32.xlu0 %v5772, 11
    %v5790 = vpop.permute.xlu0 %5789
    %5791 = vrot.lane.b32.xlu0 %v5774, 11
    %v5792 = vpop.permute.xlu0 %5791
    %5793 = vrot.lane.b32.xlu0 %v5777, 11
    %v5794 = vpop.permute.xlu0 %5793
    %5795 = vrot.lane.b32.xlu0 %v5780, 11
    %v5796 = vpop.permute.xlu0 %5795
    %5797 = vrot.lane.b32.xlu0 %v5782, 11
    %v5798 = vpop.permute.xlu0 %5797
    %5799 = vrot.lane.b32.xlu0 %v5784, 11
    %v5800 = vpop.permute.xlu0 %5799
    %v5801 = vsel %vm909, %v5786, %v5788
    %v5802 = vsel %vm909, %v5790, %v5792
    %v5803 = vsel %vm909, %v5794, %v5796
    %v5804 = vsel %vm909, %v5798, %v5800
    %v5813 = vadd.f32 %v5731, %v5786
    %v5814 = vadd.f32 %v5732, %v5801
    %v5815 = vadd.f32 %v5733, %v5790
    %v5816 = vadd.f32 %v5734, %v5802
    %v5817 = vadd.f32 %v5735, %v5794
    %v5818 = vadd.f32 %v5736, %v5803
    %v5819 = vadd.f32 %v5737, %v5798
    %v5820 = vadd.f32 %v5738, %v5804
    %s5821 = sld [smem:[#allocation6 + $0x9]]
    %v5822 = vstv %s5821
    %v5823 = vmul.f32 %v5822, %v2745
    %v5824 = vmul.f32 %v5822, %v2746
    %v5825 = vmul.f32 %v5822, %v2747
    %v5826 = vmul.f32 %v5822, %v2748
    %v5827 = vmul.f32 %v5822, %v2749
    %v5828 = vmul.f32 %v5822, %v2750
    %v5829 = vmul.f32 %v5822, %v2751
    %v5830 = vmul.f32 %v5822, %v2752
    %5839 = vrot.lane.b32.xlu0 %v5823, 10
    %v5840 = vpop.permute.xlu0 %5839
    %5841 = vrot.lane.b32.xlu0 %v5824, 10
    %v5842 = vpop.permute.xlu0 %5841
    %5843 = vrot.lane.b32.xlu0 %v5825, 10
    %v5844 = vpop.permute.xlu0 %5843
    %5845 = vrot.lane.b32.xlu0 %v5826, 10
    %v5846 = vpop.permute.xlu0 %5845
    %5847 = vrot.lane.b32.xlu0 %v5827, 10
    %v5848 = vpop.permute.xlu0 %5847
    %5849 = vrot.lane.b32.xlu0 %v5828, 10
    %v5850 = vpop.permute.xlu0 %5849
    %5851 = vrot.lane.b32.xlu0 %v5829, 10
    %v5852 = vpop.permute.xlu0 %5851
    %5853 = vrot.lane.b32.xlu0 %v5830, 10
    %v5854 = vpop.permute.xlu0 %5853
    %vm5855 = vcmask 80896
    %v5856 = vsel %vm5855, %v5840, %v5842
    %v5857 = vsel %vm5855, %v5844, %v5846
    %v5858 = vsel %vm5855, %v5848, %v5850
    %v5859 = vsel %vm5855, %v5852, %v5854
    %v5868 = vadd.f32 %v5813, %v5840
    %v5869 = vadd.f32 %v5814, %v5856
    %v5870 = vadd.f32 %v5815, %v5844
    %v5871 = vadd.f32 %v5816, %v5857
    %v5872 = vadd.f32 %v5817, %v5848
    %v5873 = vadd.f32 %v5818, %v5858
    %v5874 = vadd.f32 %v5819, %v5852
    %v5875 = vadd.f32 %v5820, %v5859
    %s5876 = sld [smem:[#allocation6 + $0x22]]
    %v5877 = vstv %s5876
    %v5878 = vmul.f32 %v5877, %v323
    %v5879 = vmul.f32 %v5877, %v324
    %v5880 = vmul.f32 %v5877, %v325
    %v5881 = vmul.f32 %v5877, %v326
    %v5882 = vmul.f32 %v5877, %v327
    %v5883 = vmul.f32 %v5877, %v328
    %v5884 = vmul.f32 %v5877, %v329
    %v5885 = vmul.f32 %v5877, %v330
    %v5886 = vmul.f32 %v5877, %v331
    %v5887 = vmul.f32 %v5877, %v332
    %v5888 = vmul.f32 %v5877, %v333
    %v5889 = vmul.f32 %v5877, %v334
    %v5902 = vrot.slane %v5878, 1
    %v5903 = vrot.slane %v5880, 1
    %v5904 = vsel %vm360, %v5902, %v5903
    %v5905 = vrot.slane %v5879, 1
    %v5906 = vrot.slane %v5881, 1
    %v5907 = vsel %vm360, %v5905, %v5906
    %v5908 = vrot.slane %v5882, 1
    %v5909 = vsel %vm360, %v5903, %v5908
    %v5910 = vrot.slane %v5883, 1
    %v5911 = vsel %vm360, %v5906, %v5910
    %v5912 = vrot.slane %v5884, 1
    %v5913 = vrot.slane %v5886, 1
    %v5914 = vsel %vm360, %v5912, %v5913
    %v5915 = vrot.slane %v5885, 1
    %v5916 = vrot.slane %v5887, 1
    %v5917 = vsel %vm360, %v5915, %v5916
    %v5918 = vrot.slane %v5888, 1
    %v5919 = vsel %vm360, %v5913, %v5918
    %v5920 = vrot.slane %v5889, 1
    %v5921 = vsel %vm360, %v5916, %v5920
    %5922 = vrot.lane.b32.xlu0 %v5904, 10
    %v5923 = vpop.permute.xlu0 %5922
    %5924 = vrot.lane.b32.xlu0 %v5907, 10
    %v5925 = vpop.permute.xlu0 %5924
    %5926 = vrot.lane.b32.xlu0 %v5909, 10
    %v5927 = vpop.permute.xlu0 %5926
    %5928 = vrot.lane.b32.xlu0 %v5911, 10
    %v5929 = vpop.permute.xlu0 %5928
    %5930 = vrot.lane.b32.xlu0 %v5914, 10
    %v5931 = vpop.permute.xlu0 %5930
    %5932 = vrot.lane.b32.xlu0 %v5917, 10
    %v5933 = vpop.permute.xlu0 %5932
    %5934 = vrot.lane.b32.xlu0 %v5919, 10
    %v5935 = vpop.permute.xlu0 %5934
    %5936 = vrot.lane.b32.xlu0 %v5921, 10
    %v5937 = vpop.permute.xlu0 %5936
    %v5938 = vsel %vm5855, %v5923, %v5925
    %v5939 = vsel %vm5855, %v5927, %v5929
    %v5940 = vsel %vm5855, %v5931, %v5933
    %v5941 = vsel %vm5855, %v5935, %v5937
    %v5950 = vadd.f32 %v5868, %v5923
    %v5951 = vadd.f32 %v5869, %v5938
    %v5952 = vadd.f32 %v5870, %v5927
    %v5953 = vadd.f32 %v5871, %v5939
    %v5954 = vadd.f32 %v5872, %v5931
    %v5955 = vadd.f32 %v5873, %v5940
    %v5956 = vadd.f32 %v5874, %v5935
    %v5957 = vadd.f32 %v5875, %v5941
    %s5958 = sld [smem:[#allocation6 + $0x3b]]
    %v5959 = vstv %s5958
    %v5960 = vmul.f32 %v5959, %v419
    %v5961 = vmul.f32 %v5959, %v420
    %v5962 = vmul.f32 %v5959, %v325
    %v5963 = vmul.f32 %v5959, %v326
    %v5964 = vmul.f32 %v5959, %v421
    %v5965 = vmul.f32 %v5959, %v422
    %v5966 = vmul.f32 %v5959, %v423
    %v5967 = vmul.f32 %v5959, %v424
    %v5968 = vmul.f32 %v5959, %v331
    %v5969 = vmul.f32 %v5959, %v332
    %v5970 = vmul.f32 %v5959, %v425
    %v5971 = vmul.f32 %v5959, %v426
    %v5984 = vrot.slane %v5960, 2
    %v5985 = vrot.slane %v5962, 2
    %v5986 = vsel %vm452, %v5984, %v5985
    %v5987 = vrot.slane %v5961, 2
    %v5988 = vrot.slane %v5963, 2
    %v5989 = vsel %vm452, %v5987, %v5988
    %v5990 = vrot.slane %v5964, 2
    %v5991 = vsel %vm452, %v5985, %v5990
    %v5992 = vrot.slane %v5965, 2
    %v5993 = vsel %vm452, %v5988, %v5992
    %v5994 = vrot.slane %v5966, 2
    %v5995 = vrot.slane %v5968, 2
    %v5996 = vsel %vm452, %v5994, %v5995
    %v5997 = vrot.slane %v5967, 2
    %v5998 = vrot.slane %v5969, 2
    %v5999 = vsel %vm452, %v5997, %v5998
    %v6000 = vrot.slane %v5970, 2
    %v6001 = vsel %vm452, %v5995, %v6000
    %v6002 = vrot.slane %v5971, 2
    %v6003 = vsel %vm452, %v5998, %v6002
    %6004 = vrot.lane.b32.xlu0 %v5986, 10
    %v6005 = vpop.permute.xlu0 %6004
    %6006 = vrot.lane.b32.xlu0 %v5989, 10
    %v6007 = vpop.permute.xlu0 %6006
    %6008 = vrot.lane.b32.xlu0 %v5991, 10
    %v6009 = vpop.permute.xlu0 %6008
    %6010 = vrot.lane.b32.xlu0 %v5993, 10
    %v6011 = vpop.permute.xlu0 %6010
    %6012 = vrot.lane.b32.xlu0 %v5996, 10
    %v6013 = vpop.permute.xlu0 %6012
    %6014 = vrot.lane.b32.xlu0 %v5999, 10
    %v6015 = vpop.permute.xlu0 %6014
    %6016 = vrot.lane.b32.xlu0 %v6001, 10
    %v6017 = vpop.permute.xlu0 %6016
    %6018 = vrot.lane.b32.xlu0 %v6003, 10
    %v6019 = vpop.permute.xlu0 %6018
    %v6020 = vsel %vm5855, %v6005, %v6007
    %v6021 = vsel %vm5855, %v6009, %v6011
    %v6022 = vsel %vm5855, %v6013, %v6015
    %v6023 = vsel %vm5855, %v6017, %v6019
    %v6032 = vadd.f32 %v5950, %v6005
    %v6033 = vadd.f32 %v5951, %v6020
    %v6034 = vadd.f32 %v5952, %v6009
    %v6035 = vadd.f32 %v5953, %v6021
    %v6036 = vadd.f32 %v5954, %v6013
    %v6037 = vadd.f32 %v5955, %v6022
    %v6038 = vadd.f32 %v5956, %v6017
    %v6039 = vadd.f32 %v5957, %v6023
    %s6040 = sld [smem:[#allocation6 + $0x54]]
    %v6041 = vstv %s6040
    %v6042 = vmul.f32 %v6041, %v510
    %v6043 = vmul.f32 %v6041, %v511
    %v6044 = vmul.f32 %v6041, %v325
    %v6045 = vmul.f32 %v6041, %v326
    %v6046 = vmul.f32 %v6041, %v512
    %v6047 = vmul.f32 %v6041, %v513
    %v6048 = vmul.f32 %v6041, %v514
    %v6049 = vmul.f32 %v6041, %v515
    %v6050 = vmul.f32 %v6041, %v331
    %v6051 = vmul.f32 %v6041, %v332
    %v6052 = vmul.f32 %v6041, %v516
    %v6053 = vmul.f32 %v6041, %v517
    %v6066 = vrot.slane %v6042, 3
    %v6067 = vrot.slane %v6044, 3
    %v6068 = vsel %vm543, %v6066, %v6067
    %v6069 = vrot.slane %v6043, 3
    %v6070 = vrot.slane %v6045, 3
    %v6071 = vsel %vm543, %v6069, %v6070
    %v6072 = vrot.slane %v6046, 3
    %v6073 = vsel %vm543, %v6067, %v6072
    %v6074 = vrot.slane %v6047, 3
    %v6075 = vsel %vm543, %v6070, %v6074
    %v6076 = vrot.slane %v6048, 3
    %v6077 = vrot.slane %v6050, 3
    %v6078 = vsel %vm543, %v6076, %v6077
    %v6079 = vrot.slane %v6049, 3
    %v6080 = vrot.slane %v6051, 3
    %v6081 = vsel %vm543, %v6079, %v6080
    %v6082 = vrot.slane %v6052, 3
    %v6083 = vsel %vm543, %v6077, %v6082
    %v6084 = vrot.slane %v6053, 3
    %v6085 = vsel %vm543, %v6080, %v6084
    %6086 = vrot.lane.b32.xlu0 %v6068, 10
    %v6087 = vpop.permute.xlu0 %6086
    %6088 = vrot.lane.b32.xlu0 %v6071, 10
    %v6089 = vpop.permute.xlu0 %6088
    %6090 = vrot.lane.b32.xlu0 %v6073, 10
    %v6091 = vpop.permute.xlu0 %6090
    %6092 = vrot.lane.b32.xlu0 %v6075, 10
    %v6093 = vpop.permute.xlu0 %6092
    %6094 = vrot.lane.b32.xlu0 %v6078, 10
    %v6095 = vpop.permute.xlu0 %6094
    %6096 = vrot.lane.b32.xlu0 %v6081, 10
    %v6097 = vpop.permute.xlu0 %6096
    %6098 = vrot.lane.b32.xlu0 %v6083, 10
    %v6099 = vpop.permute.xlu0 %6098
    %6100 = vrot.lane.b32.xlu0 %v6085, 10
    %v6101 = vpop.permute.xlu0 %6100
    %v6102 = vsel %vm5855, %v6087, %v6089
    %v6103 = vsel %vm5855, %v6091, %v6093
    %v6104 = vsel %vm5855, %v6095, %v6097
    %v6105 = vsel %vm5855, %v6099, %v6101
    %v6114 = vadd.f32 %v6032, %v6087
    %v6115 = vadd.f32 %v6033, %v6102
    %v6116 = vadd.f32 %v6034, %v6091
    %v6117 = vadd.f32 %v6035, %v6103
    %v6118 = vadd.f32 %v6036, %v6095
    %v6119 = vadd.f32 %v6037, %v6104
    %v6120 = vadd.f32 %v6038, %v6099
    %v6121 = vadd.f32 %v6039, %v6105
    %s6122 = sld [smem:[#allocation6 + $0x6d]]
    %v6123 = vstv %s6122
    %v6124 = vmul.f32 %v6123, %v3054
    %v6125 = vmul.f32 %v6123, %v3055
    %v6126 = vmul.f32 %v6123, %v325
    %v6127 = vmul.f32 %v6123, %v326
    %v6128 = vmul.f32 %v6123, %v3056
    %v6129 = vmul.f32 %v6123, %v3057
    %v6130 = vmul.f32 %v6123, %v3058
    %v6131 = vmul.f32 %v6123, %v3059
    %v6132 = vmul.f32 %v6123, %v331
    %v6133 = vmul.f32 %v6123, %v332
    %v6134 = vmul.f32 %v6123, %v3060
    %v6135 = vmul.f32 %v6123, %v3061
    %v6148 = vrot.slane %v6124, 4
    %v6149 = vrot.slane %v6126, 4
    %v6150 = vsel %vm2713, %v6148, %v6149
    %v6151 = vrot.slane %v6125, 4
    %v6152 = vrot.slane %v6127, 4
    %v6153 = vsel %vm2713, %v6151, %v6152
    %v6154 = vrot.slane %v6128, 4
    %v6155 = vsel %vm2713, %v6149, %v6154
    %v6156 = vrot.slane %v6129, 4
    %v6157 = vsel %vm2713, %v6152, %v6156
    %v6158 = vrot.slane %v6130, 4
    %v6159 = vrot.slane %v6132, 4
    %v6160 = vsel %vm2713, %v6158, %v6159
    %v6161 = vrot.slane %v6131, 4
    %v6162 = vrot.slane %v6133, 4
    %v6163 = vsel %vm2713, %v6161, %v6162
    %v6164 = vrot.slane %v6134, 4
    %v6165 = vsel %vm2713, %v6159, %v6164
    %v6166 = vrot.slane %v6135, 4
    %v6167 = vsel %vm2713, %v6162, %v6166
    %6168 = vrot.lane.b32.xlu0 %v6150, 10
    %v6169 = vpop.permute.xlu0 %6168
    %6170 = vrot.lane.b32.xlu0 %v6153, 10
    %v6171 = vpop.permute.xlu0 %6170
    %6172 = vrot.lane.b32.xlu0 %v6155, 10
    %v6173 = vpop.permute.xlu0 %6172
    %6174 = vrot.lane.b32.xlu0 %v6157, 10
    %v6175 = vpop.permute.xlu0 %6174
    %6176 = vrot.lane.b32.xlu0 %v6160, 10
    %v6177 = vpop.permute.xlu0 %6176
    %6178 = vrot.lane.b32.xlu0 %v6163, 10
    %v6179 = vpop.permute.xlu0 %6178
    %6180 = vrot.lane.b32.xlu0 %v6165, 10
    %v6181 = vpop.permute.xlu0 %6180
    %6182 = vrot.lane.b32.xlu0 %v6167, 10
    %v6183 = vpop.permute.xlu0 %6182
    %v6184 = vsel %vm5855, %v6169, %v6171
    %v6185 = vsel %vm5855, %v6173, %v6175
    %v6186 = vsel %vm5855, %v6177, %v6179
    %v6187 = vsel %vm5855, %v6181, %v6183
    %v6196 = vadd.f32 %v6114, %v6169
    %v6197 = vadd.f32 %v6115, %v6184
    %v6198 = vadd.f32 %v6116, %v6173
    %v6199 = vadd.f32 %v6117, %v6185
    %v6200 = vadd.f32 %v6118, %v6177
    %v6201 = vadd.f32 %v6119, %v6186
    %v6202 = vadd.f32 %v6120, %v6181
    %v6203 = vadd.f32 %v6121, %v6187
    %s6204 = sld [smem:[#allocation6 + $0xa]]
    %v6205 = vstv %s6204
    %v6206 = vmul.f32 %v6205, %v2745
    %v6207 = vmul.f32 %v6205, %v2746
    %v6208 = vmul.f32 %v6205, %v2747
    %v6209 = vmul.f32 %v6205, %v2748
    %v6210 = vmul.f32 %v6205, %v2749
    %v6211 = vmul.f32 %v6205, %v2750
    %v6212 = vmul.f32 %v6205, %v2751
    %v6213 = vmul.f32 %v6205, %v2752
    %6222 = vrot.lane.b32.xlu0 %v6206, 2
    %v6223 = vpop.permute.xlu0 %6222
    %6224 = vrot.lane.b32.xlu0 %v6207, 2
    %v6225 = vpop.permute.xlu0 %6224
    %6226 = vrot.lane.b32.xlu0 %v6208, 2
    %v6227 = vpop.permute.xlu0 %6226
    %6228 = vrot.lane.b32.xlu0 %v6209, 2
    %v6229 = vpop.permute.xlu0 %6228
    %6230 = vrot.lane.b32.xlu0 %v6210, 2
    %v6231 = vpop.permute.xlu0 %6230
    %6232 = vrot.lane.b32.xlu0 %v6211, 2
    %v6233 = vpop.permute.xlu0 %6232
    %6234 = vrot.lane.b32.xlu0 %v6212, 2
    %v6235 = vpop.permute.xlu0 %6234
    %6236 = vrot.lane.b32.xlu0 %v6213, 2
    %v6237 = vpop.permute.xlu0 %6236
    %vm6238 = vcmask 15360
    %v6239 = vsel %vm6238, %v6223, %v6225
    %v6240 = vsel %vm6238, %v6227, %v6229
    %v6241 = vsel %vm6238, %v6231, %v6233
    %v6242 = vsel %vm6238, %v6235, %v6237
    %v6251 = vadd.f32 %v6196, %v6223
    %v6252 = vadd.f32 %v6197, %v6239
    %v6253 = vadd.f32 %v6198, %v6227
    %v6254 = vadd.f32 %v6199, %v6240
    %v6255 = vadd.f32 %v6200, %v6231
    %v6256 = vadd.f32 %v6201, %v6241
    %v6257 = vadd.f32 %v6202, %v6235
    %v6258 = vadd.f32 %v6203, %v6242
    %s6259 = sld [smem:[#allocation6 + $0x23]]
    %v6260 = vstv %s6259
    %v6261 = vmul.f32 %v6260, %v323
    %v6262 = vmul.f32 %v6260, %v324
    %v6263 = vmul.f32 %v6260, %v325
    %v6264 = vmul.f32 %v6260, %v326
    %v6265 = vmul.f32 %v6260, %v327
    %v6266 = vmul.f32 %v6260, %v328
    %v6267 = vmul.f32 %v6260, %v329
    %v6268 = vmul.f32 %v6260, %v330
    %v6269 = vmul.f32 %v6260, %v331
    %v6270 = vmul.f32 %v6260, %v332
    %v6271 = vmul.f32 %v6260, %v333
    %v6272 = vmul.f32 %v6260, %v334
    %v6285 = vrot.slane %v6261, 1
    %v6286 = vrot.slane %v6263, 1
    %v6287 = vsel %vm360, %v6285, %v6286
    %v6288 = vrot.slane %v6262, 1
    %v6289 = vrot.slane %v6264, 1
    %v6290 = vsel %vm360, %v6288, %v6289
    %v6291 = vrot.slane %v6265, 1
    %v6292 = vsel %vm360, %v6286, %v6291
    %v6293 = vrot.slane %v6266, 1
    %v6294 = vsel %vm360, %v6289, %v6293
    %v6295 = vrot.slane %v6267, 1
    %v6296 = vrot.slane %v6269, 1
    %v6297 = vsel %vm360, %v6295, %v6296
    %v6298 = vrot.slane %v6268, 1
    %v6299 = vrot.slane %v6270, 1
    %v6300 = vsel %vm360, %v6298, %v6299
    %v6301 = vrot.slane %v6271, 1
    %v6302 = vsel %vm360, %v6296, %v6301
    %v6303 = vrot.slane %v6272, 1
    %v6304 = vsel %vm360, %v6299, %v6303
    %6305 = vrot.lane.b32.xlu0 %v6287, 2
    %v6306 = vpop.permute.xlu0 %6305
    %6307 = vrot.lane.b32.xlu0 %v6290, 2
    %v6308 = vpop.permute.xlu0 %6307
    %6309 = vrot.lane.b32.xlu0 %v6292, 2
    %v6310 = vpop.permute.xlu0 %6309
    %6311 = vrot.lane.b32.xlu0 %v6294, 2
    %v6312 = vpop.permute.xlu0 %6311
    %6313 = vrot.lane.b32.xlu0 %v6297, 2
    %v6314 = vpop.permute.xlu0 %6313
    %6315 = vrot.lane.b32.xlu0 %v6300, 2
    %v6316 = vpop.permute.xlu0 %6315
    %6317 = vrot.lane.b32.xlu0 %v6302, 2
    %v6318 = vpop.permute.xlu0 %6317
    %6319 = vrot.lane.b32.xlu0 %v6304, 2
    %v6320 = vpop.permute.xlu0 %6319
    %v6321 = vsel %vm6238, %v6306, %v6308
    %v6322 = vsel %vm6238, %v6310, %v6312
    %v6323 = vsel %vm6238, %v6314, %v6316
    %v6324 = vsel %vm6238, %v6318, %v6320
    %v6333 = vadd.f32 %v6251, %v6306
    %v6334 = vadd.f32 %v6252, %v6321
    %v6335 = vadd.f32 %v6253, %v6310
    %v6336 = vadd.f32 %v6254, %v6322
    %v6337 = vadd.f32 %v6255, %v6314
    %v6338 = vadd.f32 %v6256, %v6323
    %v6339 = vadd.f32 %v6257, %v6318
    %v6340 = vadd.f32 %v6258, %v6324
    %s6341 = sld [smem:[#allocation6 + $0x3c]]
    %v6342 = vstv %s6341
    %v6343 = vmul.f32 %v6342, %v419
    %v6344 = vmul.f32 %v6342, %v420
    %v6345 = vmul.f32 %v6342, %v325
    %v6346 = vmul.f32 %v6342, %v326
    %v6347 = vmul.f32 %v6342, %v421
    %v6348 = vmul.f32 %v6342, %v422
    %v6349 = vmul.f32 %v6342, %v423
    %v6350 = vmul.f32 %v6342, %v424
    %v6351 = vmul.f32 %v6342, %v331
    %v6352 = vmul.f32 %v6342, %v332
    %v6353 = vmul.f32 %v6342, %v425
    %v6354 = vmul.f32 %v6342, %v426
    %v6367 = vrot.slane %v6343, 2
    %v6368 = vrot.slane %v6345, 2
    %v6369 = vsel %vm452, %v6367, %v6368
    %v6370 = vrot.slane %v6344, 2
    %v6371 = vrot.slane %v6346, 2
    %v6372 = vsel %vm452, %v6370, %v6371
    %v6373 = vrot.slane %v6347, 2
    %v6374 = vsel %vm452, %v6368, %v6373
    %v6375 = vrot.slane %v6348, 2
    %v6376 = vsel %vm452, %v6371, %v6375
    %v6377 = vrot.slane %v6349, 2
    %v6378 = vrot.slane %v6351, 2
    %v6379 = vsel %vm452, %v6377, %v6378
    %v6380 = vrot.slane %v6350, 2
    %v6381 = vrot.slane %v6352, 2
    %v6382 = vsel %vm452, %v6380, %v6381
    %v6383 = vrot.slane %v6353, 2
    %v6384 = vsel %vm452, %v6378, %v6383
    %v6385 = vrot.slane %v6354, 2
    %v6386 = vsel %vm452, %v6381, %v6385
    %6387 = vrot.lane.b32.xlu0 %v6369, 2
    %v6388 = vpop.permute.xlu0 %6387
    %6389 = vrot.lane.b32.xlu0 %v6372, 2
    %v6390 = vpop.permute.xlu0 %6389
    %6391 = vrot.lane.b32.xlu0 %v6374, 2
    %v6392 = vpop.permute.xlu0 %6391
    %6393 = vrot.lane.b32.xlu0 %v6376, 2
    %v6394 = vpop.permute.xlu0 %6393
    %6395 = vrot.lane.b32.xlu0 %v6379, 2
    %v6396 = vpop.permute.xlu0 %6395
    %6397 = vrot.lane.b32.xlu0 %v6382, 2
    %v6398 = vpop.permute.xlu0 %6397
    %6399 = vrot.lane.b32.xlu0 %v6384, 2
    %v6400 = vpop.permute.xlu0 %6399
    %6401 = vrot.lane.b32.xlu0 %v6386, 2
    %v6402 = vpop.permute.xlu0 %6401
    %v6403 = vsel %vm6238, %v6388, %v6390
    %v6404 = vsel %vm6238, %v6392, %v6394
    %v6405 = vsel %vm6238, %v6396, %v6398
    %v6406 = vsel %vm6238, %v6400, %v6402
    %v6415 = vadd.f32 %v6333, %v6388
    %v6416 = vadd.f32 %v6334, %v6403
    %v6417 = vadd.f32 %v6335, %v6392
    %v6418 = vadd.f32 %v6336, %v6404
    %v6419 = vadd.f32 %v6337, %v6396
    %v6420 = vadd.f32 %v6338, %v6405
    %v6421 = vadd.f32 %v6339, %v6400
    %v6422 = vadd.f32 %v6340, %v6406
    %s6423 = sld [smem:[#allocation6 + $0x55]]
    %v6424 = vstv %s6423
    %v6425 = vmul.f32 %v6424, %v510
    %v6426 = vmul.f32 %v6424, %v511
    %v6427 = vmul.f32 %v6424, %v325
    %v6428 = vmul.f32 %v6424, %v326
    %v6429 = vmul.f32 %v6424, %v512
    %v6430 = vmul.f32 %v6424, %v513
    %v6431 = vmul.f32 %v6424, %v514
    %v6432 = vmul.f32 %v6424, %v515
    %v6433 = vmul.f32 %v6424, %v331
    %v6434 = vmul.f32 %v6424, %v332
    %v6435 = vmul.f32 %v6424, %v516
    %v6436 = vmul.f32 %v6424, %v517
    %v6449 = vrot.slane %v6425, 3
    %v6450 = vrot.slane %v6427, 3
    %v6451 = vsel %vm543, %v6449, %v6450
    %v6452 = vrot.slane %v6426, 3
    %v6453 = vrot.slane %v6428, 3
    %v6454 = vsel %vm543, %v6452, %v6453
    %v6455 = vrot.slane %v6429, 3
    %v6456 = vsel %vm543, %v6450, %v6455
    %v6457 = vrot.slane %v6430, 3
    %v6458 = vsel %vm543, %v6453, %v6457
    %v6459 = vrot.slane %v6431, 3
    %v6460 = vrot.slane %v6433, 3
    %v6461 = vsel %vm543, %v6459, %v6460
    %v6462 = vrot.slane %v6432, 3
    %v6463 = vrot.slane %v6434, 3
    %v6464 = vsel %vm543, %v6462, %v6463
    %v6465 = vrot.slane %v6435, 3
    %v6466 = vsel %vm543, %v6460, %v6465
    %v6467 = vrot.slane %v6436, 3
    %v6468 = vsel %vm543, %v6463, %v6467
    %6469 = vrot.lane.b32.xlu0 %v6451, 2
    %v6470 = vpop.permute.xlu0 %6469
    %6471 = vrot.lane.b32.xlu0 %v6454, 2
    %v6472 = vpop.permute.xlu0 %6471
    %6473 = vrot.lane.b32.xlu0 %v6456, 2
    %v6474 = vpop.permute.xlu0 %6473
    %6475 = vrot.lane.b32.xlu0 %v6458, 2
    %v6476 = vpop.permute.xlu0 %6475
    %6477 = vrot.lane.b32.xlu0 %v6461, 2
    %v6478 = vpop.permute.xlu0 %6477
    %6479 = vrot.lane.b32.xlu0 %v6464, 2
    %v6480 = vpop.permute.xlu0 %6479
    %6481 = vrot.lane.b32.xlu0 %v6466, 2
    %v6482 = vpop.permute.xlu0 %6481
    %6483 = vrot.lane.b32.xlu0 %v6468, 2
    %v6484 = vpop.permute.xlu0 %6483
    %v6485 = vsel %vm6238, %v6470, %v6472
    %v6486 = vsel %vm6238, %v6474, %v6476
    %v6487 = vsel %vm6238, %v6478, %v6480
    %v6488 = vsel %vm6238, %v6482, %v6484
    %v6497 = vadd.f32 %v6415, %v6470
    %v6498 = vadd.f32 %v6416, %v6485
    %v6499 = vadd.f32 %v6417, %v6474
    %v6500 = vadd.f32 %v6418, %v6486
    %v6501 = vadd.f32 %v6419, %v6478
    %v6502 = vadd.f32 %v6420, %v6487
    %v6503 = vadd.f32 %v6421, %v6482
    %v6504 = vadd.f32 %v6422, %v6488
    %s6505 = sld [smem:[#allocation6 + $0x6e]]
    %v6506 = vstv %s6505
    %v6507 = vmul.f32 %v6506, %v3054
    %v6508 = vmul.f32 %v6506, %v3055
    %v6509 = vmul.f32 %v6506, %v325
    %v6510 = vmul.f32 %v6506, %v326
    %v6511 = vmul.f32 %v6506, %v3056
    %v6512 = vmul.f32 %v6506, %v3057
    %v6513 = vmul.f32 %v6506, %v3058
    %v6514 = vmul.f32 %v6506, %v3059
    %v6515 = vmul.f32 %v6506, %v331
    %v6516 = vmul.f32 %v6506, %v332
    %v6517 = vmul.f32 %v6506, %v3060
    %v6518 = vmul.f32 %v6506, %v3061
    %v6531 = vrot.slane %v6507, 4
    %v6532 = vrot.slane %v6509, 4
    %v6533 = vsel %vm2713, %v6531, %v6532
    %v6534 = vrot.slane %v6508, 4
    %v6535 = vrot.slane %v6510, 4
    %v6536 = vsel %vm2713, %v6534, %v6535
    %v6537 = vrot.slane %v6511, 4
    %v6538 = vsel %vm2713, %v6532, %v6537
    %v6539 = vrot.slane %v6512, 4
    %v6540 = vsel %vm2713, %v6535, %v6539
    %v6541 = vrot.slane %v6513, 4
    %v6542 = vrot.slane %v6515, 4
    %v6543 = vsel %vm2713, %v6541, %v6542
    %v6544 = vrot.slane %v6514, 4
    %v6545 = vrot.slane %v6516, 4
    %v6546 = vsel %vm2713, %v6544, %v6545
    %v6547 = vrot.slane %v6517, 4
    %v6548 = vsel %vm2713, %v6542, %v6547
    %v6549 = vrot.slane %v6518, 4
    %v6550 = vsel %vm2713, %v6545, %v6549
    %6551 = vrot.lane.b32.xlu0 %v6533, 2
    %v6552 = vpop.permute.xlu0 %6551
    %6553 = vrot.lane.b32.xlu0 %v6536, 2
    %v6554 = vpop.permute.xlu0 %6553
    %6555 = vrot.lane.b32.xlu0 %v6538, 2
    %v6556 = vpop.permute.xlu0 %6555
    %6557 = vrot.lane.b32.xlu0 %v6540, 2
    %v6558 = vpop.permute.xlu0 %6557
    %6559 = vrot.lane.b32.xlu0 %v6543, 2
    %v6560 = vpop.permute.xlu0 %6559
    %6561 = vrot.lane.b32.xlu0 %v6546, 2
    %v6562 = vpop.permute.xlu0 %6561
    %6563 = vrot.lane.b32.xlu0 %v6548, 2
    %v6564 = vpop.permute.xlu0 %6563
    %6565 = vrot.lane.b32.xlu0 %v6550, 2
    %v6566 = vpop.permute.xlu0 %6565
    %v6567 = vsel %vm6238, %v6552, %v6554
    %v6568 = vsel %vm6238, %v6556, %v6558
    %v6569 = vsel %vm6238, %v6560, %v6562
    %v6570 = vsel %vm6238, %v6564, %v6566
    %v6579 = vadd.f32 %v6497, %v6552
    %v6580 = vadd.f32 %v6498, %v6567
    %v6581 = vadd.f32 %v6499, %v6556
    %v6582 = vadd.f32 %v6500, %v6568
    %v6583 = vadd.f32 %v6501, %v6560
    %v6584 = vadd.f32 %v6502, %v6569
    %v6585 = vadd.f32 %v6503, %v6564
    %v6586 = vadd.f32 %v6504, %v6570
    %s6587 = sld [smem:[#allocation6 + $0xb]]
    %v6588 = vstv %s6587
    %v6589 = vmul.f32 %v6588, %v2745
    %v6590 = vmul.f32 %v6588, %v2746
    %v6591 = vmul.f32 %v6588, %v2747
    %v6592 = vmul.f32 %v6588, %v2748
    %v6593 = vmul.f32 %v6588, %v2749
    %v6594 = vmul.f32 %v6588, %v2750
    %v6595 = vmul.f32 %v6588, %v2751
    %v6596 = vmul.f32 %v6588, %v2752
    %6605 = vrot.lane.b32.xlu0 %v6589, 1
    %v6606 = vpop.permute.xlu0 %6605
    %6607 = vrot.lane.b32.xlu0 %v6590, 1
    %v6608 = vpop.permute.xlu0 %6607
    %6609 = vrot.lane.b32.xlu0 %v6591, 1
    %v6610 = vpop.permute.xlu0 %6609
    %6611 = vrot.lane.b32.xlu0 %v6592, 1
    %v6612 = vpop.permute.xlu0 %6611
    %6613 = vrot.lane.b32.xlu0 %v6593, 1
    %v6614 = vpop.permute.xlu0 %6613
    %6615 = vrot.lane.b32.xlu0 %v6594, 1
    %v6616 = vpop.permute.xlu0 %6615
    %6617 = vrot.lane.b32.xlu0 %v6595, 1
    %v6618 = vpop.permute.xlu0 %6617
    %6619 = vrot.lane.b32.xlu0 %v6596, 1
    %v6620 = vpop.permute.xlu0 %6619
    %v6621 = vsel %vm1156, %v6606, %v6608
    %v6622 = vsel %vm1156, %v6610, %v6612
    %v6623 = vsel %vm1156, %v6614, %v6616
    %v6624 = vsel %vm1156, %v6618, %v6620
    %v6633 = vadd.f32 %v6579, %v6606
    %v6634 = vadd.f32 %v6580, %v6621
    %v6635 = vadd.f32 %v6581, %v6610
    %v6636 = vadd.f32 %v6582, %v6622
    %v6637 = vadd.f32 %v6583, %v6614
    %v6638 = vadd.f32 %v6584, %v6623
    %v6639 = vadd.f32 %v6585, %v6618
    %v6640 = vadd.f32 %v6586, %v6624
    %s6641 = sld [smem:[#allocation6 + $0x24]]
    %v6642 = vstv %s6641
    %v6643 = vmul.f32 %v6642, %v323
    %v6644 = vmul.f32 %v6642, %v324
    %v6645 = vmul.f32 %v6642, %v325
    %v6646 = vmul.f32 %v6642, %v326
    %v6647 = vmul.f32 %v6642, %v327
    %v6648 = vmul.f32 %v6642, %v328
    %v6649 = vmul.f32 %v6642, %v329
    %v6650 = vmul.f32 %v6642, %v330
    %v6651 = vmul.f32 %v6642, %v331
    %v6652 = vmul.f32 %v6642, %v332
    %v6653 = vmul.f32 %v6642, %v333
    %v6654 = vmul.f32 %v6642, %v334
    %v6667 = vrot.slane %v6643, 1
    %v6668 = vrot.slane %v6645, 1
    %v6669 = vsel %vm360, %v6667, %v6668
    %v6670 = vrot.slane %v6644, 1
    %v6671 = vrot.slane %v6646, 1
    %v6672 = vsel %vm360, %v6670, %v6671
    %v6673 = vrot.slane %v6647, 1
    %v6674 = vsel %vm360, %v6668, %v6673
    %v6675 = vrot.slane %v6648, 1
    %v6676 = vsel %vm360, %v6671, %v6675
    %v6677 = vrot.slane %v6649, 1
    %v6678 = vrot.slane %v6651, 1
    %v6679 = vsel %vm360, %v6677, %v6678
    %v6680 = vrot.slane %v6650, 1
    %v6681 = vrot.slane %v6652, 1
    %v6682 = vsel %vm360, %v6680, %v6681
    %v6683 = vrot.slane %v6653, 1
    %v6684 = vsel %vm360, %v6678, %v6683
    %v6685 = vrot.slane %v6654, 1
    %v6686 = vsel %vm360, %v6681, %v6685
    %6687 = vrot.lane.b32.xlu0 %v6669, 1
    %v6688 = vpop.permute.xlu0 %6687
    %6689 = vrot.lane.b32.xlu0 %v6672, 1
    %v6690 = vpop.permute.xlu0 %6689
    %6691 = vrot.lane.b32.xlu0 %v6674, 1
    %v6692 = vpop.permute.xlu0 %6691
    %6693 = vrot.lane.b32.xlu0 %v6676, 1
    %v6694 = vpop.permute.xlu0 %6693
    %6695 = vrot.lane.b32.xlu0 %v6679, 1
    %v6696 = vpop.permute.xlu0 %6695
    %6697 = vrot.lane.b32.xlu0 %v6682, 1
    %v6698 = vpop.permute.xlu0 %6697
    %6699 = vrot.lane.b32.xlu0 %v6684, 1
    %v6700 = vpop.permute.xlu0 %6699
    %6701 = vrot.lane.b32.xlu0 %v6686, 1
    %v6702 = vpop.permute.xlu0 %6701
    %v6703 = vsel %vm1156, %v6688, %v6690
    %v6704 = vsel %vm1156, %v6692, %v6694
    %v6705 = vsel %vm1156, %v6696, %v6698
    %v6706 = vsel %vm1156, %v6700, %v6702
    %v6715 = vadd.f32 %v6633, %v6688
    %v6716 = vadd.f32 %v6634, %v6703
    %v6717 = vadd.f32 %v6635, %v6692
    %v6718 = vadd.f32 %v6636, %v6704
    %v6719 = vadd.f32 %v6637, %v6696
    %v6720 = vadd.f32 %v6638, %v6705
    %v6721 = vadd.f32 %v6639, %v6700
    %v6722 = vadd.f32 %v6640, %v6706
    %s6723 = sld [smem:[#allocation6 + $0x3d]]
    %v6724 = vstv %s6723
    %v6725 = vmul.f32 %v6724, %v419
    %v6726 = vmul.f32 %v6724, %v420
    %v6727 = vmul.f32 %v6724, %v325
    %v6728 = vmul.f32 %v6724, %v326
    %v6729 = vmul.f32 %v6724, %v421
    %v6730 = vmul.f32 %v6724, %v422
    %v6731 = vmul.f32 %v6724, %v423
    %v6732 = vmul.f32 %v6724, %v424
    %v6733 = vmul.f32 %v6724, %v331
    %v6734 = vmul.f32 %v6724, %v332
    %v6735 = vmul.f32 %v6724, %v425
    %v6736 = vmul.f32 %v6724, %v426
    %v6749 = vrot.slane %v6725, 2
    %v6750 = vrot.slane %v6727, 2
    %v6751 = vsel %vm452, %v6749, %v6750
    %v6752 = vrot.slane %v6726, 2
    %v6753 = vrot.slane %v6728, 2
    %v6754 = vsel %vm452, %v6752, %v6753
    %v6755 = vrot.slane %v6729, 2
    %v6756 = vsel %vm452, %v6750, %v6755
    %v6757 = vrot.slane %v6730, 2
    %v6758 = vsel %vm452, %v6753, %v6757
    %v6759 = vrot.slane %v6731, 2
    %v6760 = vrot.slane %v6733, 2
    %v6761 = vsel %vm452, %v6759, %v6760
    %v6762 = vrot.slane %v6732, 2
    %v6763 = vrot.slane %v6734, 2
    %v6764 = vsel %vm452, %v6762, %v6763
    %v6765 = vrot.slane %v6735, 2
    %v6766 = vsel %vm452, %v6760, %v6765
    %v6767 = vrot.slane %v6736, 2
    %v6768 = vsel %vm452, %v6763, %v6767
    %6769 = vrot.lane.b32.xlu0 %v6751, 1
    %v6770 = vpop.permute.xlu0 %6769
    %6771 = vrot.lane.b32.xlu0 %v6754, 1
    %v6772 = vpop.permute.xlu0 %6771
    %6773 = vrot.lane.b32.xlu0 %v6756, 1
    %v6774 = vpop.permute.xlu0 %6773
    %6775 = vrot.lane.b32.xlu0 %v6758, 1
    %v6776 = vpop.permute.xlu0 %6775
    %6777 = vrot.lane.b32.xlu0 %v6761, 1
    %v6778 = vpop.permute.xlu0 %6777
    %6779 = vrot.lane.b32.xlu0 %v6764, 1
    %v6780 = vpop.permute.xlu0 %6779
    %6781 = vrot.lane.b32.xlu0 %v6766, 1
    %v6782 = vpop.permute.xlu0 %6781
    %6783 = vrot.lane.b32.xlu0 %v6768, 1
    %v6784 = vpop.permute.xlu0 %6783
    %v6785 = vsel %vm1156, %v6770, %v6772
    %v6786 = vsel %vm1156, %v6774, %v6776
    %v6787 = vsel %vm1156, %v6778, %v6780
    %v6788 = vsel %vm1156, %v6782, %v6784
    %v6797 = vadd.f32 %v6715, %v6770
    %v6798 = vadd.f32 %v6716, %v6785
    %v6799 = vadd.f32 %v6717, %v6774
    %v6800 = vadd.f32 %v6718, %v6786
    %v6801 = vadd.f32 %v6719, %v6778
    %v6802 = vadd.f32 %v6720, %v6787
    %v6803 = vadd.f32 %v6721, %v6782
    %v6804 = vadd.f32 %v6722, %v6788
    %s6805 = sld [smem:[#allocation6 + $0x56]]
    %v6806 = vstv %s6805
    %v6807 = vmul.f32 %v6806, %v510
    %v6808 = vmul.f32 %v6806, %v511
    %v6809 = vmul.f32 %v6806, %v325
    %v6810 = vmul.f32 %v6806, %v326
    %v6811 = vmul.f32 %v6806, %v512
    %v6812 = vmul.f32 %v6806, %v513
    %v6813 = vmul.f32 %v6806, %v514
    %v6814 = vmul.f32 %v6806, %v515
    %v6815 = vmul.f32 %v6806, %v331
    %v6816 = vmul.f32 %v6806, %v332
    %v6817 = vmul.f32 %v6806, %v516
    %v6818 = vmul.f32 %v6806, %v517
    %v6831 = vrot.slane %v6807, 3
    %v6832 = vrot.slane %v6809, 3
    %v6833 = vsel %vm543, %v6831, %v6832
    %v6834 = vrot.slane %v6808, 3
    %v6835 = vrot.slane %v6810, 3
    %v6836 = vsel %vm543, %v6834, %v6835
    %v6837 = vrot.slane %v6811, 3
    %v6838 = vsel %vm543, %v6832, %v6837
    %v6839 = vrot.slane %v6812, 3
    %v6840 = vsel %vm543, %v6835, %v6839
    %v6841 = vrot.slane %v6813, 3
    %v6842 = vrot.slane %v6815, 3
    %v6843 = vsel %vm543, %v6841, %v6842
    %v6844 = vrot.slane %v6814, 3
    %v6845 = vrot.slane %v6816, 3
    %v6846 = vsel %vm543, %v6844, %v6845
    %v6847 = vrot.slane %v6817, 3
    %v6848 = vsel %vm543, %v6842, %v6847
    %v6849 = vrot.slane %v6818, 3
    %v6850 = vsel %vm543, %v6845, %v6849
    %6851 = vrot.lane.b32.xlu0 %v6833, 1
    %v6852 = vpop.permute.xlu0 %6851
    %6853 = vrot.lane.b32.xlu0 %v6836, 1
    %v6854 = vpop.permute.xlu0 %6853
    %6855 = vrot.lane.b32.xlu0 %v6838, 1
    %v6856 = vpop.permute.xlu0 %6855
    %6857 = vrot.lane.b32.xlu0 %v6840, 1
    %v6858 = vpop.permute.xlu0 %6857
    %6859 = vrot.lane.b32.xlu0 %v6843, 1
    %v6860 = vpop.permute.xlu0 %6859
    %6861 = vrot.lane.b32.xlu0 %v6846, 1
    %v6862 = vpop.permute.xlu0 %6861
    %6863 = vrot.lane.b32.xlu0 %v6848, 1
    %v6864 = vpop.permute.xlu0 %6863
    %6865 = vrot.lane.b32.xlu0 %v6850, 1
    %v6866 = vpop.permute.xlu0 %6865
    %v6867 = vsel %vm1156, %v6852, %v6854
    %v6868 = vsel %vm1156, %v6856, %v6858
    %v6869 = vsel %vm1156, %v6860, %v6862
    %v6870 = vsel %vm1156, %v6864, %v6866
    %v6879 = vadd.f32 %v6797, %v6852
    %v6880 = vadd.f32 %v6798, %v6867
    %v6881 = vadd.f32 %v6799, %v6856
    %v6882 = vadd.f32 %v6800, %v6868
    %v6883 = vadd.f32 %v6801, %v6860
    %v6884 = vadd.f32 %v6802, %v6869
    %v6885 = vadd.f32 %v6803, %v6864
    %v6886 = vadd.f32 %v6804, %v6870
    %s6887 = sld [smem:[#allocation6 + $0x6f]]
    %v6888 = vstv %s6887
    %v6889 = vmul.f32 %v6888, %v3054
    %v6890 = vmul.f32 %v6888, %v3055
    %v6891 = vmul.f32 %v6888, %v325
    %v6892 = vmul.f32 %v6888, %v326
    %v6893 = vmul.f32 %v6888, %v3056
    %v6894 = vmul.f32 %v6888, %v3057
    %v6895 = vmul.f32 %v6888, %v3058
    %v6896 = vmul.f32 %v6888, %v3059
    %v6897 = vmul.f32 %v6888, %v331
    %v6898 = vmul.f32 %v6888, %v332
    %v6899 = vmul.f32 %v6888, %v3060
    %v6900 = vmul.f32 %v6888, %v3061
    %v6913 = vrot.slane %v6889, 4
    %v6914 = vrot.slane %v6891, 4
    %v6915 = vsel %vm2713, %v6913, %v6914
    %v6916 = vrot.slane %v6890, 4
    %v6917 = vrot.slane %v6892, 4
    %v6918 = vsel %vm2713, %v6916, %v6917
    %v6919 = vrot.slane %v6893, 4
    %v6920 = vsel %vm2713, %v6914, %v6919
    %v6921 = vrot.slane %v6894, 4
    %v6922 = vsel %vm2713, %v6917, %v6921
    %v6923 = vrot.slane %v6895, 4
    %v6924 = vrot.slane %v6897, 4
    %v6925 = vsel %vm2713, %v6923, %v6924
    %v6926 = vrot.slane %v6896, 4
    %v6927 = vrot.slane %v6898, 4
    %v6928 = vsel %vm2713, %v6926, %v6927
    %v6929 = vrot.slane %v6899, 4
    %v6930 = vsel %vm2713, %v6924, %v6929
    %v6931 = vrot.slane %v6900, 4
    %v6932 = vsel %vm2713, %v6927, %v6931
    %6933 = vrot.lane.b32.xlu0 %v6915, 1
    %v6934 = vpop.permute.xlu0 %6933
    %6935 = vrot.lane.b32.xlu0 %v6918, 1
    %v6936 = vpop.permute.xlu0 %6935
    %6937 = vrot.lane.b32.xlu0 %v6920, 1
    %v6938 = vpop.permute.xlu0 %6937
    %6939 = vrot.lane.b32.xlu0 %v6922, 1
    %v6940 = vpop.permute.xlu0 %6939
    %6941 = vrot.lane.b32.xlu0 %v6925, 1
    %v6942 = vpop.permute.xlu0 %6941
    %6943 = vrot.lane.b32.xlu0 %v6928, 1
    %v6944 = vpop.permute.xlu0 %6943
    %6945 = vrot.lane.b32.xlu0 %v6930, 1
    %v6946 = vpop.permute.xlu0 %6945
    %6947 = vrot.lane.b32.xlu0 %v6932, 1
    %v6948 = vpop.permute.xlu0 %6947
    %v6949 = vsel %vm1156, %v6934, %v6936
    %v6950 = vsel %vm1156, %v6938, %v6940
    %v6951 = vsel %vm1156, %v6942, %v6944
    %v6952 = vsel %vm1156, %v6946, %v6948
    %v6961 = vadd.f32 %v6879, %v6934
    %v6962 = vadd.f32 %v6880, %v6949
    %v6963 = vadd.f32 %v6881, %v6938
    %v6964 = vadd.f32 %v6882, %v6950
    %v6965 = vadd.f32 %v6883, %v6942
    %v6966 = vadd.f32 %v6884, %v6951
    %v6967 = vadd.f32 %v6885, %v6946
    %v6968 = vadd.f32 %v6886, %v6952
    %s6969 = sld [smem:[#allocation6 + $0xc]]
    %v6970 = vstv %s6969
    %v6971 = vmul.f32 %v6970, %v2745
    %v6972 = vmul.f32 %v6970, %v2746
    %v6973 = vmul.f32 %v6970, %v2747
    %v6974 = vmul.f32 %v6970, %v2748
    %v6975 = vmul.f32 %v6970, %v2749
    %v6976 = vmul.f32 %v6970, %v2750
    %v6977 = vmul.f32 %v6970, %v2751
    %v6978 = vmul.f32 %v6970, %v2752
    %v6979 = vadd.f32 %v6961, %v6971
    %v6980 = vadd.f32 %v6962, %v6972
    %v6981 = vadd.f32 %v6963, %v6973
    %v6982 = vadd.f32 %v6964, %v6974
    %v6983 = vadd.f32 %v6965, %v6975
    %v6984 = vadd.f32 %v6966, %v6976
    %v6985 = vadd.f32 %v6967, %v6977
    %v6986 = vadd.f32 %v6968, %v6978
    %s6987 = sld [smem:[#allocation6 + $0x25]]
    %v6988 = vstv %s6987
    %v6989 = vmul.f32 %v6988, %v323
    %v6990 = vmul.f32 %v6988, %v324
    %v6991 = vmul.f32 %v6988, %v325
    %v6992 = vmul.f32 %v6988, %v326
    %v6993 = vmul.f32 %v6988, %v327
    %v6994 = vmul.f32 %v6988, %v328
    %v6995 = vmul.f32 %v6988, %v329
    %v6996 = vmul.f32 %v6988, %v330
    %v6997 = vmul.f32 %v6988, %v331
    %v6998 = vmul.f32 %v6988, %v332
    %v6999 = vmul.f32 %v6988, %v333
    %v7000 = vmul.f32 %v6988, %v334
    %v7013 = vrot.slane %v6989, 1
    %v7014 = vrot.slane %v6991, 1
    %v7015 = vsel %vm360, %v7013, %v7014
    %v7016 = vrot.slane %v6990, 1
    %v7017 = vrot.slane %v6992, 1
    %v7018 = vsel %vm360, %v7016, %v7017
    %v7019 = vrot.slane %v6993, 1
    %v7020 = vsel %vm360, %v7014, %v7019
    %v7021 = vrot.slane %v6994, 1
    %v7022 = vsel %vm360, %v7017, %v7021
    %v7023 = vrot.slane %v6995, 1
    %v7024 = vrot.slane %v6997, 1
    %v7025 = vsel %vm360, %v7023, %v7024
    %v7026 = vrot.slane %v6996, 1
    %v7027 = vrot.slane %v6998, 1
    %v7028 = vsel %vm360, %v7026, %v7027
    %v7029 = vrot.slane %v6999, 1
    %v7030 = vsel %vm360, %v7024, %v7029
    %v7031 = vrot.slane %v7000, 1
    %v7032 = vsel %vm360, %v7027, %v7031
    %v7041 = vadd.f32 %v6979, %v7015
    %v7042 = vadd.f32 %v6980, %v7018
    %v7043 = vadd.f32 %v6981, %v7020
    %v7044 = vadd.f32 %v6982, %v7022
    %v7045 = vadd.f32 %v6983, %v7025
    %v7046 = vadd.f32 %v6984, %v7028
    %v7047 = vadd.f32 %v6985, %v7030
    %v7048 = vadd.f32 %v6986, %v7032
    %s7049 = sld [smem:[#allocation6 + $0x3e]]
    %v7050 = vstv %s7049
    %v7051 = vmul.f32 %v7050, %v419
    %v7052 = vmul.f32 %v7050, %v420
    %v7053 = vmul.f32 %v7050, %v325
    %v7054 = vmul.f32 %v7050, %v326
    %v7055 = vmul.f32 %v7050, %v421
    %v7056 = vmul.f32 %v7050, %v422
    %v7057 = vmul.f32 %v7050, %v423
    %v7058 = vmul.f32 %v7050, %v424
    %v7059 = vmul.f32 %v7050, %v331
    %v7060 = vmul.f32 %v7050, %v332
    %v7061 = vmul.f32 %v7050, %v425
    %v7062 = vmul.f32 %v7050, %v426
    %v7075 = vrot.slane %v7051, 2
    %v7076 = vrot.slane %v7053, 2
    %v7077 = vsel %vm452, %v7075, %v7076
    %v7078 = vrot.slane %v7052, 2
    %v7079 = vrot.slane %v7054, 2
    %v7080 = vsel %vm452, %v7078, %v7079
    %v7081 = vrot.slane %v7055, 2
    %v7082 = vsel %vm452, %v7076, %v7081
    %v7083 = vrot.slane %v7056, 2
    %v7084 = vsel %vm452, %v7079, %v7083
    %v7085 = vrot.slane %v7057, 2
    %v7086 = vrot.slane %v7059, 2
    %v7087 = vsel %vm452, %v7085, %v7086
    %v7088 = vrot.slane %v7058, 2
    %v7089 = vrot.slane %v7060, 2
    %v7090 = vsel %vm452, %v7088, %v7089
    %v7091 = vrot.slane %v7061, 2
    %v7092 = vsel %vm452, %v7086, %v7091
    %v7093 = vrot.slane %v7062, 2
    %v7094 = vsel %vm452, %v7089, %v7093
    %v7103 = vadd.f32 %v7041, %v7077
    %v7104 = vadd.f32 %v7042, %v7080
    %v7105 = vadd.f32 %v7043, %v7082
    %v7106 = vadd.f32 %v7044, %v7084
    %v7107 = vadd.f32 %v7045, %v7087
    %v7108 = vadd.f32 %v7046, %v7090
    %v7109 = vadd.f32 %v7047, %v7092
    %v7110 = vadd.f32 %v7048, %v7094
    %s7111 = sld [smem:[#allocation6 + $0x57]]
    %v7112 = vstv %s7111
    %v7113 = vmul.f32 %v7112, %v510
    %v7114 = vmul.f32 %v7112, %v511
    %v7115 = vmul.f32 %v7112, %v325
    %v7116 = vmul.f32 %v7112, %v326
    %v7117 = vmul.f32 %v7112, %v512
    %v7118 = vmul.f32 %v7112, %v513
    %v7119 = vmul.f32 %v7112, %v514
    %v7120 = vmul.f32 %v7112, %v515
    %v7121 = vmul.f32 %v7112, %v331
    %v7122 = vmul.f32 %v7112, %v332
    %v7123 = vmul.f32 %v7112, %v516
    %v7124 = vmul.f32 %v7112, %v517
    %v7137 = vrot.slane %v7113, 3
    %v7138 = vrot.slane %v7115, 3
    %v7139 = vsel %vm543, %v7137, %v7138
    %v7140 = vrot.slane %v7114, 3
    %v7141 = vrot.slane %v7116, 3
    %v7142 = vsel %vm543, %v7140, %v7141
    %v7143 = vrot.slane %v7117, 3
    %v7144 = vsel %vm543, %v7138, %v7143
    %v7145 = vrot.slane %v7118, 3
    %v7146 = vsel %vm543, %v7141, %v7145
    %v7147 = vrot.slane %v7119, 3
    %v7148 = vrot.slane %v7121, 3
    %v7149 = vsel %vm543, %v7147, %v7148
    %v7150 = vrot.slane %v7120, 3
    %v7151 = vrot.slane %v7122, 3
    %v7152 = vsel %vm543, %v7150, %v7151
    %v7153 = vrot.slane %v7123, 3
    %v7154 = vsel %vm543, %v7148, %v7153
    %v7155 = vrot.slane %v7124, 3
    %v7156 = vsel %vm543, %v7151, %v7155
    %v7165 = vadd.f32 %v7103, %v7139
    %v7166 = vadd.f32 %v7104, %v7142
    %v7167 = vadd.f32 %v7105, %v7144
    %v7168 = vadd.f32 %v7106, %v7146
    %v7169 = vadd.f32 %v7107, %v7149
    %v7170 = vadd.f32 %v7108, %v7152
    %v7171 = vadd.f32 %v7109, %v7154
    %v7172 = vadd.f32 %v7110, %v7156
    %s7173 = sld [smem:[#allocation6 + $0x70]]
    %v7174 = vstv %s7173
    %v7175 = vmul.f32 %v7174, %v3054
    %v7176 = vmul.f32 %v7174, %v3055
    %v7177 = vmul.f32 %v7174, %v325
    %v7178 = vmul.f32 %v7174, %v326
    %v7179 = vmul.f32 %v7174, %v3056
    %v7180 = vmul.f32 %v7174, %v3057
    %v7181 = vmul.f32 %v7174, %v3058
    %v7182 = vmul.f32 %v7174, %v3059
    %v7183 = vmul.f32 %v7174, %v331
    %v7184 = vmul.f32 %v7174, %v332
    %v7185 = vmul.f32 %v7174, %v3060
    %v7186 = vmul.f32 %v7174, %v3061
    %v7199 = vrot.slane %v7175, 4
    %v7200 = vrot.slane %v7177, 4
    %v7201 = vsel %vm2713, %v7199, %v7200
    %v7202 = vrot.slane %v7176, 4
    %v7203 = vrot.slane %v7178, 4
    %v7204 = vsel %vm2713, %v7202, %v7203
    %v7205 = vrot.slane %v7179, 4
    %v7206 = vsel %vm2713, %v7200, %v7205
    %v7207 = vrot.slane %v7180, 4
    %v7208 = vsel %vm2713, %v7203, %v7207
    %v7209 = vrot.slane %v7181, 4
    %v7210 = vrot.slane %v7183, 4
    %v7211 = vsel %vm2713, %v7209, %v7210
    %v7212 = vrot.slane %v7182, 4
    %v7213 = vrot.slane %v7184, 4
    %v7214 = vsel %vm2713, %v7212, %v7213
    %v7215 = vrot.slane %v7185, 4
    %v7216 = vsel %vm2713, %v7210, %v7215
    %v7217 = vrot.slane %v7186, 4
    %v7218 = vsel %vm2713, %v7213, %v7217
    %v7227 = vadd.f32 %v7165, %v7201
    %v7228 = vadd.f32 %v7166, %v7204
    %v7229 = vadd.f32 %v7167, %v7206
    %v7230 = vadd.f32 %v7168, %v7208
    %v7231 = vadd.f32 %v7169, %v7211
    %v7232 = vadd.f32 %v7170, %v7214
    %v7233 = vadd.f32 %v7171, %v7216
    %v7234 = vadd.f32 %v7172, %v7218
    %s7235 = sld [smem:[#allocation6 + $0xd]]
    %v7236 = vstv %s7235
    %v7237 = vmul.f32 %v7236, %v2745
    %v7238 = vmul.f32 %v7236, %v2746
    %v7239 = vmul.f32 %v7236, %v2747
    %v7240 = vmul.f32 %v7236, %v2748
    %v7241 = vmul.f32 %v7236, %v2749
    %v7242 = vmul.f32 %v7236, %v2750
    %v7243 = vmul.f32 %v7236, %v2751
    %v7244 = vmul.f32 %v7236, %v2752
    %7253 = vrot.lane.b32.xlu0 %v7237, 127
    %v7254 = vpop.permute.xlu0 %7253
    %7255 = vrot.lane.b32.xlu0 %v7238, 127
    %v7256 = vpop.permute.xlu0 %7255
    %7257 = vrot.lane.b32.xlu0 %v7239, 127
    %v7258 = vpop.permute.xlu0 %7257
    %7259 = vrot.lane.b32.xlu0 %v7240, 127
    %v7260 = vpop.permute.xlu0 %7259
    %7261 = vrot.lane.b32.xlu0 %v7241, 127
    %v7262 = vpop.permute.xlu0 %7261
    %7263 = vrot.lane.b32.xlu0 %v7242, 127
    %v7264 = vpop.permute.xlu0 %7263
    %7265 = vrot.lane.b32.xlu0 %v7243, 127
    %v7266 = vpop.permute.xlu0 %7265
    %7267 = vrot.lane.b32.xlu0 %v7244, 127
    %v7268 = vpop.permute.xlu0 %7267
    %v7269 = vsel %vm1589, %v7254, %v7256
    %v7270 = vsel %vm1589, %v7258, %v7260
    %v7271 = vsel %vm1589, %v7262, %v7264
    %v7272 = vsel %vm1589, %v7266, %v7268
    %v7281 = vadd.f32 %v7227, %v7269
    %v7282 = vadd.f32 %v7228, %v7256
    %v7283 = vadd.f32 %v7229, %v7270
    %v7284 = vadd.f32 %v7230, %v7260
    %v7285 = vadd.f32 %v7231, %v7271
    %v7286 = vadd.f32 %v7232, %v7264
    %v7287 = vadd.f32 %v7233, %v7272
    %v7288 = vadd.f32 %v7234, %v7268
    %s7289 = sld [smem:[#allocation6 + $0x26]]
    %v7290 = vstv %s7289
    %v7291 = vmul.f32 %v7290, %v323
    %v7292 = vmul.f32 %v7290, %v324
    %v7293 = vmul.f32 %v7290, %v325
    %v7294 = vmul.f32 %v7290, %v326
    %v7295 = vmul.f32 %v7290, %v327
    %v7296 = vmul.f32 %v7290, %v328
    %v7297 = vmul.f32 %v7290, %v329
    %v7298 = vmul.f32 %v7290, %v330
    %v7299 = vmul.f32 %v7290, %v331
    %v7300 = vmul.f32 %v7290, %v332
    %v7301 = vmul.f32 %v7290, %v333
    %v7302 = vmul.f32 %v7290, %v334
    %v7315 = vrot.slane %v7291, 1
    %v7316 = vrot.slane %v7293, 1
    %v7317 = vsel %vm360, %v7315, %v7316
    %v7318 = vrot.slane %v7292, 1
    %v7319 = vrot.slane %v7294, 1
    %v7320 = vsel %vm360, %v7318, %v7319
    %v7321 = vrot.slane %v7295, 1
    %v7322 = vsel %vm360, %v7316, %v7321
    %v7323 = vrot.slane %v7296, 1
    %v7324 = vsel %vm360, %v7319, %v7323
    %v7325 = vrot.slane %v7297, 1
    %v7326 = vrot.slane %v7299, 1
    %v7327 = vsel %vm360, %v7325, %v7326
    %v7328 = vrot.slane %v7298, 1
    %v7329 = vrot.slane %v7300, 1
    %v7330 = vsel %vm360, %v7328, %v7329
    %v7331 = vrot.slane %v7301, 1
    %v7332 = vsel %vm360, %v7326, %v7331
    %v7333 = vrot.slane %v7302, 1
    %v7334 = vsel %vm360, %v7329, %v7333
    %7335 = vrot.lane.b32.xlu0 %v7317, 127
    %v7336 = vpop.permute.xlu0 %7335
    %7337 = vrot.lane.b32.xlu0 %v7320, 127
    %v7338 = vpop.permute.xlu0 %7337
    %7339 = vrot.lane.b32.xlu0 %v7322, 127
    %v7340 = vpop.permute.xlu0 %7339
    %7341 = vrot.lane.b32.xlu0 %v7324, 127
    %v7342 = vpop.permute.xlu0 %7341
    %7343 = vrot.lane.b32.xlu0 %v7327, 127
    %v7344 = vpop.permute.xlu0 %7343
    %7345 = vrot.lane.b32.xlu0 %v7330, 127
    %v7346 = vpop.permute.xlu0 %7345
    %7347 = vrot.lane.b32.xlu0 %v7332, 127
    %v7348 = vpop.permute.xlu0 %7347
    %7349 = vrot.lane.b32.xlu0 %v7334, 127
    %v7350 = vpop.permute.xlu0 %7349
    %v7351 = vsel %vm1589, %v7336, %v7338
    %v7352 = vsel %vm1589, %v7340, %v7342
    %v7353 = vsel %vm1589, %v7344, %v7346
    %v7354 = vsel %vm1589, %v7348, %v7350
    %v7363 = vadd.f32 %v7281, %v7351
    %v7364 = vadd.f32 %v7282, %v7338
    %v7365 = vadd.f32 %v7283, %v7352
    %v7366 = vadd.f32 %v7284, %v7342
    %v7367 = vadd.f32 %v7285, %v7353
    %v7368 = vadd.f32 %v7286, %v7346
    %v7369 = vadd.f32 %v7287, %v7354
    %v7370 = vadd.f32 %v7288, %v7350
    %s7371 = sld [smem:[#allocation6 + $0x3f]]
    %v7372 = vstv %s7371
    %v7373 = vmul.f32 %v7372, %v419
    %v7374 = vmul.f32 %v7372, %v420
    %v7375 = vmul.f32 %v7372, %v325
    %v7376 = vmul.f32 %v7372, %v326
    %v7377 = vmul.f32 %v7372, %v421
    %v7378 = vmul.f32 %v7372, %v422
    %v7379 = vmul.f32 %v7372, %v423
    %v7380 = vmul.f32 %v7372, %v424
    %v7381 = vmul.f32 %v7372, %v331
    %v7382 = vmul.f32 %v7372, %v332
    %v7383 = vmul.f32 %v7372, %v425
    %v7384 = vmul.f32 %v7372, %v426
    %v7397 = vrot.slane %v7373, 2
    %v7398 = vrot.slane %v7375, 2
    %v7399 = vsel %vm452, %v7397, %v7398
    %v7400 = vrot.slane %v7374, 2
    %v7401 = vrot.slane %v7376, 2
    %v7402 = vsel %vm452, %v7400, %v7401
    %v7403 = vrot.slane %v7377, 2
    %v7404 = vsel %vm452, %v7398, %v7403
    %v7405 = vrot.slane %v7378, 2
    %v7406 = vsel %vm452, %v7401, %v7405
    %v7407 = vrot.slane %v7379, 2
    %v7408 = vrot.slane %v7381, 2
    %v7409 = vsel %vm452, %v7407, %v7408
    %v7410 = vrot.slane %v7380, 2
    %v7411 = vrot.slane %v7382, 2
    %v7412 = vsel %vm452, %v7410, %v7411
    %v7413 = vrot.slane %v7383, 2
    %v7414 = vsel %vm452, %v7408, %v7413
    %v7415 = vrot.slane %v7384, 2
    %v7416 = vsel %vm452, %v7411, %v7415
    %7417 = vrot.lane.b32.xlu0 %v7399, 127
    %v7418 = vpop.permute.xlu0 %7417
    %7419 = vrot.lane.b32.xlu0 %v7402, 127
    %v7420 = vpop.permute.xlu0 %7419
    %7421 = vrot.lane.b32.xlu0 %v7404, 127
    %v7422 = vpop.permute.xlu0 %7421
    %7423 = vrot.lane.b32.xlu0 %v7406, 127
    %v7424 = vpop.permute.xlu0 %7423
    %7425 = vrot.lane.b32.xlu0 %v7409, 127
    %v7426 = vpop.permute.xlu0 %7425
    %7427 = vrot.lane.b32.xlu0 %v7412, 127
    %v7428 = vpop.permute.xlu0 %7427
    %7429 = vrot.lane.b32.xlu0 %v7414, 127
    %v7430 = vpop.permute.xlu0 %7429
    %7431 = vrot.lane.b32.xlu0 %v7416, 127
    %v7432 = vpop.permute.xlu0 %7431
    %v7433 = vsel %vm1589, %v7418, %v7420
    %v7434 = vsel %vm1589, %v7422, %v7424
    %v7435 = vsel %vm1589, %v7426, %v7428
    %v7436 = vsel %vm1589, %v7430, %v7432
    %v7445 = vadd.f32 %v7363, %v7433
    %v7446 = vadd.f32 %v7364, %v7420
    %v7447 = vadd.f32 %v7365, %v7434
    %v7448 = vadd.f32 %v7366, %v7424
    %v7449 = vadd.f32 %v7367, %v7435
    %v7450 = vadd.f32 %v7368, %v7428
    %v7451 = vadd.f32 %v7369, %v7436
    %v7452 = vadd.f32 %v7370, %v7432
    %s7453 = sld [smem:[#allocation6 + $0x58]]
    %v7454 = vstv %s7453
    %v7455 = vmul.f32 %v7454, %v510
    %v7456 = vmul.f32 %v7454, %v511
    %v7457 = vmul.f32 %v7454, %v325
    %v7458 = vmul.f32 %v7454, %v326
    %v7459 = vmul.f32 %v7454, %v512
    %v7460 = vmul.f32 %v7454, %v513
    %v7461 = vmul.f32 %v7454, %v514
    %v7462 = vmul.f32 %v7454, %v515
    %v7463 = vmul.f32 %v7454, %v331
    %v7464 = vmul.f32 %v7454, %v332
    %v7465 = vmul.f32 %v7454, %v516
    %v7466 = vmul.f32 %v7454, %v517
    %v7479 = vrot.slane %v7455, 3
    %v7480 = vrot.slane %v7457, 3
    %v7481 = vsel %vm543, %v7479, %v7480
    %v7482 = vrot.slane %v7456, 3
    %v7483 = vrot.slane %v7458, 3
    %v7484 = vsel %vm543, %v7482, %v7483
    %v7485 = vrot.slane %v7459, 3
    %v7486 = vsel %vm543, %v7480, %v7485
    %v7487 = vrot.slane %v7460, 3
    %v7488 = vsel %vm543, %v7483, %v7487
    %v7489 = vrot.slane %v7461, 3
    %v7490 = vrot.slane %v7463, 3
    %v7491 = vsel %vm543, %v7489, %v7490
    %v7492 = vrot.slane %v7462, 3
    %v7493 = vrot.slane %v7464, 3
    %v7494 = vsel %vm543, %v7492, %v7493
    %v7495 = vrot.slane %v7465, 3
    %v7496 = vsel %vm543, %v7490, %v7495
    %v7497 = vrot.slane %v7466, 3
    %v7498 = vsel %vm543, %v7493, %v7497
    %7499 = vrot.lane.b32.xlu0 %v7481, 127
    %v7500 = vpop.permute.xlu0 %7499
    %7501 = vrot.lane.b32.xlu0 %v7484, 127
    %v7502 = vpop.permute.xlu0 %7501
    %7503 = vrot.lane.b32.xlu0 %v7486, 127
    %v7504 = vpop.permute.xlu0 %7503
    %7505 = vrot.lane.b32.xlu0 %v7488, 127
    %v7506 = vpop.permute.xlu0 %7505
    %7507 = vrot.lane.b32.xlu0 %v7491, 127
    %v7508 = vpop.permute.xlu0 %7507
    %7509 = vrot.lane.b32.xlu0 %v7494, 127
    %v7510 = vpop.permute.xlu0 %7509
    %7511 = vrot.lane.b32.xlu0 %v7496, 127
    %v7512 = vpop.permute.xlu0 %7511
    %7513 = vrot.lane.b32.xlu0 %v7498, 127
    %v7514 = vpop.permute.xlu0 %7513
    %v7515 = vsel %vm1589, %v7500, %v7502
    %v7516 = vsel %vm1589, %v7504, %v7506
    %v7517 = vsel %vm1589, %v7508, %v7510
    %v7518 = vsel %vm1589, %v7512, %v7514
    %v7527 = vadd.f32 %v7445, %v7515
    %v7528 = vadd.f32 %v7446, %v7502
    %v7529 = vadd.f32 %v7447, %v7516
    %v7530 = vadd.f32 %v7448, %v7506
    %v7531 = vadd.f32 %v7449, %v7517
    %v7532 = vadd.f32 %v7450, %v7510
    %v7533 = vadd.f32 %v7451, %v7518
    %v7534 = vadd.f32 %v7452, %v7514
    %s7535 = sld [smem:[#allocation6 + $0x71]]
    %v7536 = vstv %s7535
    %v7537 = vmul.f32 %v7536, %v3054
    %v7538 = vmul.f32 %v7536, %v3055
    %v7539 = vmul.f32 %v7536, %v325
    %v7540 = vmul.f32 %v7536, %v326
    %v7541 = vmul.f32 %v7536, %v3056
    %v7542 = vmul.f32 %v7536, %v3057
    %v7543 = vmul.f32 %v7536, %v3058
    %v7544 = vmul.f32 %v7536, %v3059
    %v7545 = vmul.f32 %v7536, %v331
    %v7546 = vmul.f32 %v7536, %v332
    %v7547 = vmul.f32 %v7536, %v3060
    %v7548 = vmul.f32 %v7536, %v3061
    %v7561 = vrot.slane %v7537, 4
    %v7562 = vrot.slane %v7539, 4
    %v7563 = vsel %vm2713, %v7561, %v7562
    %v7564 = vrot.slane %v7538, 4
    %v7565 = vrot.slane %v7540, 4
    %v7566 = vsel %vm2713, %v7564, %v7565
    %v7567 = vrot.slane %v7541, 4
    %v7568 = vsel %vm2713, %v7562, %v7567
    %v7569 = vrot.slane %v7542, 4
    %v7570 = vsel %vm2713, %v7565, %v7569
    %v7571 = vrot.slane %v7543, 4
    %v7572 = vrot.slane %v7545, 4
    %v7573 = vsel %vm2713, %v7571, %v7572
    %v7574 = vrot.slane %v7544, 4
    %v7575 = vrot.slane %v7546, 4
    %v7576 = vsel %vm2713, %v7574, %v7575
    %v7577 = vrot.slane %v7547, 4
    %v7578 = vsel %vm2713, %v7572, %v7577
    %v7579 = vrot.slane %v7548, 4
    %v7580 = vsel %vm2713, %v7575, %v7579
    %7581 = vrot.lane.b32.xlu0 %v7563, 127
    %v7582 = vpop.permute.xlu0 %7581
    %7583 = vrot.lane.b32.xlu0 %v7566, 127
    %v7584 = vpop.permute.xlu0 %7583
    %7585 = vrot.lane.b32.xlu0 %v7568, 127
    %v7586 = vpop.permute.xlu0 %7585
    %7587 = vrot.lane.b32.xlu0 %v7570, 127
    %v7588 = vpop.permute.xlu0 %7587
    %7589 = vrot.lane.b32.xlu0 %v7573, 127
    %v7590 = vpop.permute.xlu0 %7589
    %7591 = vrot.lane.b32.xlu0 %v7576, 127
    %v7592 = vpop.permute.xlu0 %7591
    %7593 = vrot.lane.b32.xlu0 %v7578, 127
    %v7594 = vpop.permute.xlu0 %7593
    %7595 = vrot.lane.b32.xlu0 %v7580, 127
    %v7596 = vpop.permute.xlu0 %7595
    %v7597 = vsel %vm1589, %v7582, %v7584
    %v7598 = vsel %vm1589, %v7586, %v7588
    %v7599 = vsel %vm1589, %v7590, %v7592
    %v7600 = vsel %vm1589, %v7594, %v7596
    %v7609 = vadd.f32 %v7527, %v7597
    %v7610 = vadd.f32 %v7528, %v7584
    %v7611 = vadd.f32 %v7529, %v7598
    %v7612 = vadd.f32 %v7530, %v7588
    %v7613 = vadd.f32 %v7531, %v7599
    %v7614 = vadd.f32 %v7532, %v7592
    %v7615 = vadd.f32 %v7533, %v7600
    %v7616 = vadd.f32 %v7534, %v7596
    %s7617 = sld [smem:[#allocation6 + $0xe]]
    %v7618 = vstv %s7617
    %v7619 = vmul.f32 %v7618, %v2745
    %v7620 = vmul.f32 %v7618, %v2746
    %v7621 = vmul.f32 %v7618, %v2747
    %v7622 = vmul.f32 %v7618, %v2748
    %v7623 = vmul.f32 %v7618, %v2749
    %v7624 = vmul.f32 %v7618, %v2750
    %v7625 = vmul.f32 %v7618, %v2751
    %v7626 = vmul.f32 %v7618, %v2752
    %7635 = vrot.lane.b32.xlu0 %v7619, 126
    %v7636 = vpop.permute.xlu0 %7635
    %7637 = vrot.lane.b32.xlu0 %v7620, 126
    %v7638 = vpop.permute.xlu0 %7637
    %7639 = vrot.lane.b32.xlu0 %v7621, 126
    %v7640 = vpop.permute.xlu0 %7639
    %7641 = vrot.lane.b32.xlu0 %v7622, 126
    %v7642 = vpop.permute.xlu0 %7641
    %7643 = vrot.lane.b32.xlu0 %v7623, 126
    %v7644 = vpop.permute.xlu0 %7643
    %7645 = vrot.lane.b32.xlu0 %v7624, 126
    %v7646 = vpop.permute.xlu0 %7645
    %7647 = vrot.lane.b32.xlu0 %v7625, 126
    %v7648 = vpop.permute.xlu0 %7647
    %7649 = vrot.lane.b32.xlu0 %v7626, 126
    %v7650 = vpop.permute.xlu0 %7649
    %vm7651 = vcmask 1031168
    %v7652 = vsel %vm7651, %v7636, %v7638
    %v7653 = vsel %vm7651, %v7640, %v7642
    %v7654 = vsel %vm7651, %v7644, %v7646
    %v7655 = vsel %vm7651, %v7648, %v7650
    %v7664 = vadd.f32 %v7609, %v7652
    %v7665 = vadd.f32 %v7610, %v7638
    %v7666 = vadd.f32 %v7611, %v7653
    %v7667 = vadd.f32 %v7612, %v7642
    %v7668 = vadd.f32 %v7613, %v7654
    %v7669 = vadd.f32 %v7614, %v7646
    %v7670 = vadd.f32 %v7615, %v7655
    %v7671 = vadd.f32 %v7616, %v7650
    %s7672 = sld [smem:[#allocation6 + $0x27]]
    %v7673 = vstv %s7672
    %v7674 = vmul.f32 %v7673, %v323
    %v7675 = vmul.f32 %v7673, %v324
    %v7676 = vmul.f32 %v7673, %v325
    %v7677 = vmul.f32 %v7673, %v326
    %v7678 = vmul.f32 %v7673, %v327
    %v7679 = vmul.f32 %v7673, %v328
    %v7680 = vmul.f32 %v7673, %v329
    %v7681 = vmul.f32 %v7673, %v330
    %v7682 = vmul.f32 %v7673, %v331
    %v7683 = vmul.f32 %v7673, %v332
    %v7684 = vmul.f32 %v7673, %v333
    %v7685 = vmul.f32 %v7673, %v334
    %v7698 = vrot.slane %v7674, 1
    %v7699 = vrot.slane %v7676, 1
    %v7700 = vsel %vm360, %v7698, %v7699
    %v7701 = vrot.slane %v7675, 1
    %v7702 = vrot.slane %v7677, 1
    %v7703 = vsel %vm360, %v7701, %v7702
    %v7704 = vrot.slane %v7678, 1
    %v7705 = vsel %vm360, %v7699, %v7704
    %v7706 = vrot.slane %v7679, 1
    %v7707 = vsel %vm360, %v7702, %v7706
    %v7708 = vrot.slane %v7680, 1
    %v7709 = vrot.slane %v7682, 1
    %v7710 = vsel %vm360, %v7708, %v7709
    %v7711 = vrot.slane %v7681, 1
    %v7712 = vrot.slane %v7683, 1
    %v7713 = vsel %vm360, %v7711, %v7712
    %v7714 = vrot.slane %v7684, 1
    %v7715 = vsel %vm360, %v7709, %v7714
    %v7716 = vrot.slane %v7685, 1
    %v7717 = vsel %vm360, %v7712, %v7716
    %7718 = vrot.lane.b32.xlu0 %v7700, 126
    %v7719 = vpop.permute.xlu0 %7718
    %7720 = vrot.lane.b32.xlu0 %v7703, 126
    %v7721 = vpop.permute.xlu0 %7720
    %7722 = vrot.lane.b32.xlu0 %v7705, 126
    %v7723 = vpop.permute.xlu0 %7722
    %7724 = vrot.lane.b32.xlu0 %v7707, 126
    %v7725 = vpop.permute.xlu0 %7724
    %7726 = vrot.lane.b32.xlu0 %v7710, 126
    %v7727 = vpop.permute.xlu0 %7726
    %7728 = vrot.lane.b32.xlu0 %v7713, 126
    %v7729 = vpop.permute.xlu0 %7728
    %7730 = vrot.lane.b32.xlu0 %v7715, 126
    %v7731 = vpop.permute.xlu0 %7730
    %7732 = vrot.lane.b32.xlu0 %v7717, 126
    %v7733 = vpop.permute.xlu0 %7732
    %v7734 = vsel %vm7651, %v7719, %v7721
    %v7735 = vsel %vm7651, %v7723, %v7725
    %v7736 = vsel %vm7651, %v7727, %v7729
    %v7737 = vsel %vm7651, %v7731, %v7733
    %v7746 = vadd.f32 %v7664, %v7734
    %v7747 = vadd.f32 %v7665, %v7721
    %v7748 = vadd.f32 %v7666, %v7735
    %v7749 = vadd.f32 %v7667, %v7725
    %v7750 = vadd.f32 %v7668, %v7736
    %v7751 = vadd.f32 %v7669, %v7729
    %v7752 = vadd.f32 %v7670, %v7737
    %v7753 = vadd.f32 %v7671, %v7733
    %s7754 = sld [smem:[#allocation6 + $0x40]]
    %v7755 = vstv %s7754
    %v7756 = vmul.f32 %v7755, %v419
    %v7757 = vmul.f32 %v7755, %v420
    %v7758 = vmul.f32 %v7755, %v325
    %v7759 = vmul.f32 %v7755, %v326
    %v7760 = vmul.f32 %v7755, %v421
    %v7761 = vmul.f32 %v7755, %v422
    %v7762 = vmul.f32 %v7755, %v423
    %v7763 = vmul.f32 %v7755, %v424
    %v7764 = vmul.f32 %v7755, %v331
    %v7765 = vmul.f32 %v7755, %v332
    %v7766 = vmul.f32 %v7755, %v425
    %v7767 = vmul.f32 %v7755, %v426
    %v7780 = vrot.slane %v7756, 2
    %v7781 = vrot.slane %v7758, 2
    %v7782 = vsel %vm452, %v7780, %v7781
    %v7783 = vrot.slane %v7757, 2
    %v7784 = vrot.slane %v7759, 2
    %v7785 = vsel %vm452, %v7783, %v7784
    %v7786 = vrot.slane %v7760, 2
    %v7787 = vsel %vm452, %v7781, %v7786
    %v7788 = vrot.slane %v7761, 2
    %v7789 = vsel %vm452, %v7784, %v7788
    %v7790 = vrot.slane %v7762, 2
    %v7791 = vrot.slane %v7764, 2
    %v7792 = vsel %vm452, %v7790, %v7791
    %v7793 = vrot.slane %v7763, 2
    %v7794 = vrot.slane %v7765, 2
    %v7795 = vsel %vm452, %v7793, %v7794
    %v7796 = vrot.slane %v7766, 2
    %v7797 = vsel %vm452, %v7791, %v7796
    %v7798 = vrot.slane %v7767, 2
    %v7799 = vsel %vm452, %v7794, %v7798
    %7800 = vrot.lane.b32.xlu0 %v7782, 126
    %v7801 = vpop.permute.xlu0 %7800
    %7802 = vrot.lane.b32.xlu0 %v7785, 126
    %v7803 = vpop.permute.xlu0 %7802
    %7804 = vrot.lane.b32.xlu0 %v7787, 126
    %v7805 = vpop.permute.xlu0 %7804
    %7806 = vrot.lane.b32.xlu0 %v7789, 126
    %v7807 = vpop.permute.xlu0 %7806
    %7808 = vrot.lane.b32.xlu0 %v7792, 126
    %v7809 = vpop.permute.xlu0 %7808
    %7810 = vrot.lane.b32.xlu0 %v7795, 126
    %v7811 = vpop.permute.xlu0 %7810
    %7812 = vrot.lane.b32.xlu0 %v7797, 126
    %v7813 = vpop.permute.xlu0 %7812
    %7814 = vrot.lane.b32.xlu0 %v7799, 126
    %v7815 = vpop.permute.xlu0 %7814
    %v7816 = vsel %vm7651, %v7801, %v7803
    %v7817 = vsel %vm7651, %v7805, %v7807
    %v7818 = vsel %vm7651, %v7809, %v7811
    %v7819 = vsel %vm7651, %v7813, %v7815
    %v7828 = vadd.f32 %v7746, %v7816
    %v7829 = vadd.f32 %v7747, %v7803
    %v7830 = vadd.f32 %v7748, %v7817
    %v7831 = vadd.f32 %v7749, %v7807
    %v7832 = vadd.f32 %v7750, %v7818
    %v7833 = vadd.f32 %v7751, %v7811
    %v7834 = vadd.f32 %v7752, %v7819
    %v7835 = vadd.f32 %v7753, %v7815
    %s7836 = sld [smem:[#allocation6 + $0x59]]
    %v7837 = vstv %s7836
    %v7838 = vmul.f32 %v7837, %v510
    %v7839 = vmul.f32 %v7837, %v511
    %v7840 = vmul.f32 %v7837, %v325
    %v7841 = vmul.f32 %v7837, %v326
    %v7842 = vmul.f32 %v7837, %v512
    %v7843 = vmul.f32 %v7837, %v513
    %v7844 = vmul.f32 %v7837, %v514
    %v7845 = vmul.f32 %v7837, %v515
    %v7846 = vmul.f32 %v7837, %v331
    %v7847 = vmul.f32 %v7837, %v332
    %v7848 = vmul.f32 %v7837, %v516
    %v7849 = vmul.f32 %v7837, %v517
    %v7862 = vrot.slane %v7838, 3
    %v7863 = vrot.slane %v7840, 3
    %v7864 = vsel %vm543, %v7862, %v7863
    %v7865 = vrot.slane %v7839, 3
    %v7866 = vrot.slane %v7841, 3
    %v7867 = vsel %vm543, %v7865, %v7866
    %v7868 = vrot.slane %v7842, 3
    %v7869 = vsel %vm543, %v7863, %v7868
    %v7870 = vrot.slane %v7843, 3
    %v7871 = vsel %vm543, %v7866, %v7870
    %v7872 = vrot.slane %v7844, 3
    %v7873 = vrot.slane %v7846, 3
    %v7874 = vsel %vm543, %v7872, %v7873
    %v7875 = vrot.slane %v7845, 3
    %v7876 = vrot.slane %v7847, 3
    %v7877 = vsel %vm543, %v7875, %v7876
    %v7878 = vrot.slane %v7848, 3
    %v7879 = vsel %vm543, %v7873, %v7878
    %v7880 = vrot.slane %v7849, 3
    %v7881 = vsel %vm543, %v7876, %v7880
    %7882 = vrot.lane.b32.xlu0 %v7864, 126
    %v7883 = vpop.permute.xlu0 %7882
    %7884 = vrot.lane.b32.xlu0 %v7867, 126
    %v7885 = vpop.permute.xlu0 %7884
    %7886 = vrot.lane.b32.xlu0 %v7869, 126
    %v7887 = vpop.permute.xlu0 %7886
    %7888 = vrot.lane.b32.xlu0 %v7871, 126
    %v7889 = vpop.permute.xlu0 %7888
    %7890 = vrot.lane.b32.xlu0 %v7874, 126
    %v7891 = vpop.permute.xlu0 %7890
    %7892 = vrot.lane.b32.xlu0 %v7877, 126
    %v7893 = vpop.permute.xlu0 %7892
    %7894 = vrot.lane.b32.xlu0 %v7879, 126
    %v7895 = vpop.permute.xlu0 %7894
    %7896 = vrot.lane.b32.xlu0 %v7881, 126
    %v7897 = vpop.permute.xlu0 %7896
    %v7898 = vsel %vm7651, %v7883, %v7885
    %v7899 = vsel %vm7651, %v7887, %v7889
    %v7900 = vsel %vm7651, %v7891, %v7893
    %v7901 = vsel %vm7651, %v7895, %v7897
    %v7910 = vadd.f32 %v7828, %v7898
    %v7911 = vadd.f32 %v7829, %v7885
    %v7912 = vadd.f32 %v7830, %v7899
    %v7913 = vadd.f32 %v7831, %v7889
    %v7914 = vadd.f32 %v7832, %v7900
    %v7915 = vadd.f32 %v7833, %v7893
    %v7916 = vadd.f32 %v7834, %v7901
    %v7917 = vadd.f32 %v7835, %v7897
    %s7918 = sld [smem:[#allocation6 + $0x72]]
    %v7919 = vstv %s7918
    %v7920 = vmul.f32 %v7919, %v3054
    %v7921 = vmul.f32 %v7919, %v3055
    %v7922 = vmul.f32 %v7919, %v325
    %v7923 = vmul.f32 %v7919, %v326
    %v7924 = vmul.f32 %v7919, %v3056
    %v7925 = vmul.f32 %v7919, %v3057
    %v7926 = vmul.f32 %v7919, %v3058
    %v7927 = vmul.f32 %v7919, %v3059
    %v7928 = vmul.f32 %v7919, %v331
    %v7929 = vmul.f32 %v7919, %v332
    %v7930 = vmul.f32 %v7919, %v3060
    %v7931 = vmul.f32 %v7919, %v3061
    %v7944 = vrot.slane %v7920, 4
    %v7945 = vrot.slane %v7922, 4
    %v7946 = vsel %vm2713, %v7944, %v7945
    %v7947 = vrot.slane %v7921, 4
    %v7948 = vrot.slane %v7923, 4
    %v7949 = vsel %vm2713, %v7947, %v7948
    %v7950 = vrot.slane %v7924, 4
    %v7951 = vsel %vm2713, %v7945, %v7950
    %v7952 = vrot.slane %v7925, 4
    %v7953 = vsel %vm2713, %v7948, %v7952
    %v7954 = vrot.slane %v7926, 4
    %v7955 = vrot.slane %v7928, 4
    %v7956 = vsel %vm2713, %v7954, %v7955
    %v7957 = vrot.slane %v7927, 4
    %v7958 = vrot.slane %v7929, 4
    %v7959 = vsel %vm2713, %v7957, %v7958
    %v7960 = vrot.slane %v7930, 4
    %v7961 = vsel %vm2713, %v7955, %v7960
    %v7962 = vrot.slane %v7931, 4
    %v7963 = vsel %vm2713, %v7958, %v7962
    %7964 = vrot.lane.b32.xlu0 %v7946, 126
    %v7965 = vpop.permute.xlu0 %7964
    %7966 = vrot.lane.b32.xlu0 %v7949, 126
    %v7967 = vpop.permute.xlu0 %7966
    %7968 = vrot.lane.b32.xlu0 %v7951, 126
    %v7969 = vpop.permute.xlu0 %7968
    %7970 = vrot.lane.b32.xlu0 %v7953, 126
    %v7971 = vpop.permute.xlu0 %7970
    %7972 = vrot.lane.b32.xlu0 %v7956, 126
    %v7973 = vpop.permute.xlu0 %7972
    %7974 = vrot.lane.b32.xlu0 %v7959, 126
    %v7975 = vpop.permute.xlu0 %7974
    %7976 = vrot.lane.b32.xlu0 %v7961, 126
    %v7977 = vpop.permute.xlu0 %7976
    %7978 = vrot.lane.b32.xlu0 %v7963, 126
    %v7979 = vpop.permute.xlu0 %7978
    %v7980 = vsel %vm7651, %v7965, %v7967
    %v7981 = vsel %vm7651, %v7969, %v7971
    %v7982 = vsel %vm7651, %v7973, %v7975
    %v7983 = vsel %vm7651, %v7977, %v7979
    %v7992 = vadd.f32 %v7910, %v7980
    %v7993 = vadd.f32 %v7911, %v7967
    %v7994 = vadd.f32 %v7912, %v7981
    %v7995 = vadd.f32 %v7913, %v7971
    %v7996 = vadd.f32 %v7914, %v7982
    %v7997 = vadd.f32 %v7915, %v7975
    %v7998 = vadd.f32 %v7916, %v7983
    %v7999 = vadd.f32 %v7917, %v7979
    %s8000 = sld [smem:[#allocation6 + $0xf]]
    %v8001 = vstv %s8000
    %v8002 = vmul.f32 %v8001, %v2745
    %v8003 = vmul.f32 %v8001, %v2746
    %v8004 = vmul.f32 %v8001, %v2747
    %v8005 = vmul.f32 %v8001, %v2748
    %v8006 = vmul.f32 %v8001, %v2749
    %v8007 = vmul.f32 %v8001, %v2750
    %v8008 = vmul.f32 %v8001, %v2751
    %v8009 = vmul.f32 %v8001, %v2752
    %8018 = vrot.lane.b32.xlu0 %v8002, 118
    %v8019 = vpop.permute.xlu0 %8018
    %8020 = vrot.lane.b32.xlu0 %v8003, 118
    %v8021 = vpop.permute.xlu0 %8020
    %8022 = vrot.lane.b32.xlu0 %v8004, 118
    %v8023 = vpop.permute.xlu0 %8022
    %8024 = vrot.lane.b32.xlu0 %v8005, 118
    %v8025 = vpop.permute.xlu0 %8024
    %8026 = vrot.lane.b32.xlu0 %v8006, 118
    %v8027 = vpop.permute.xlu0 %8026
    %8028 = vrot.lane.b32.xlu0 %v8007, 118
    %v8029 = vpop.permute.xlu0 %8028
    %8030 = vrot.lane.b32.xlu0 %v8008, 118
    %v8031 = vpop.permute.xlu0 %8030
    %8032 = vrot.lane.b32.xlu0 %v8009, 118
    %v8033 = vpop.permute.xlu0 %8032
    %vm8034 = vcmask 965632
    %v8035 = vsel %vm8034, %v8019, %v8021
    %v8036 = vsel %vm8034, %v8023, %v8025
    %v8037 = vsel %vm8034, %v8027, %v8029
    %v8038 = vsel %vm8034, %v8031, %v8033
    %v8047 = vadd.f32 %v7992, %v8035
    %v8048 = vadd.f32 %v7993, %v8021
    %v8049 = vadd.f32 %v7994, %v8036
    %v8050 = vadd.f32 %v7995, %v8025
    %v8051 = vadd.f32 %v7996, %v8037
    %v8052 = vadd.f32 %v7997, %v8029
    %v8053 = vadd.f32 %v7998, %v8038
    %v8054 = vadd.f32 %v7999, %v8033
    %s8055 = sld [smem:[#allocation6 + $0x28]]
    %v8056 = vstv %s8055
    %v8057 = vmul.f32 %v8056, %v323
    %v8058 = vmul.f32 %v8056, %v324
    %v8059 = vmul.f32 %v8056, %v325
    %v8060 = vmul.f32 %v8056, %v326
    %v8061 = vmul.f32 %v8056, %v327
    %v8062 = vmul.f32 %v8056, %v328
    %v8063 = vmul.f32 %v8056, %v329
    %v8064 = vmul.f32 %v8056, %v330
    %v8065 = vmul.f32 %v8056, %v331
    %v8066 = vmul.f32 %v8056, %v332
    %v8067 = vmul.f32 %v8056, %v333
    %v8068 = vmul.f32 %v8056, %v334
    %v8081 = vrot.slane %v8057, 1
    %v8082 = vrot.slane %v8059, 1
    %v8083 = vsel %vm360, %v8081, %v8082
    %v8084 = vrot.slane %v8058, 1
    %v8085 = vrot.slane %v8060, 1
    %v8086 = vsel %vm360, %v8084, %v8085
    %v8087 = vrot.slane %v8061, 1
    %v8088 = vsel %vm360, %v8082, %v8087
    %v8089 = vrot.slane %v8062, 1
    %v8090 = vsel %vm360, %v8085, %v8089
    %v8091 = vrot.slane %v8063, 1
    %v8092 = vrot.slane %v8065, 1
    %v8093 = vsel %vm360, %v8091, %v8092
    %v8094 = vrot.slane %v8064, 1
    %v8095 = vrot.slane %v8066, 1
    %v8096 = vsel %vm360, %v8094, %v8095
    %v8097 = vrot.slane %v8067, 1
    %v8098 = vsel %vm360, %v8092, %v8097
    %v8099 = vrot.slane %v8068, 1
    %v8100 = vsel %vm360, %v8095, %v8099
    %8101 = vrot.lane.b32.xlu0 %v8083, 118
    %v8102 = vpop.permute.xlu0 %8101
    %8103 = vrot.lane.b32.xlu0 %v8086, 118
    %v8104 = vpop.permute.xlu0 %8103
    %8105 = vrot.lane.b32.xlu0 %v8088, 118
    %v8106 = vpop.permute.xlu0 %8105
    %8107 = vrot.lane.b32.xlu0 %v8090, 118
    %v8108 = vpop.permute.xlu0 %8107
    %8109 = vrot.lane.b32.xlu0 %v8093, 118
    %v8110 = vpop.permute.xlu0 %8109
    %8111 = vrot.lane.b32.xlu0 %v8096, 118
    %v8112 = vpop.permute.xlu0 %8111
    %8113 = vrot.lane.b32.xlu0 %v8098, 118
    %v8114 = vpop.permute.xlu0 %8113
    %8115 = vrot.lane.b32.xlu0 %v8100, 118
    %v8116 = vpop.permute.xlu0 %8115
    %v8117 = vsel %vm8034, %v8102, %v8104
    %v8118 = vsel %vm8034, %v8106, %v8108
    %v8119 = vsel %vm8034, %v8110, %v8112
    %v8120 = vsel %vm8034, %v8114, %v8116
    %v8129 = vadd.f32 %v8047, %v8117
    %v8130 = vadd.f32 %v8048, %v8104
    %v8131 = vadd.f32 %v8049, %v8118
    %v8132 = vadd.f32 %v8050, %v8108
    %v8133 = vadd.f32 %v8051, %v8119
    %v8134 = vadd.f32 %v8052, %v8112
    %v8135 = vadd.f32 %v8053, %v8120
    %v8136 = vadd.f32 %v8054, %v8116
    %s8137 = sld [smem:[#allocation6 + $0x41]]
    %v8138 = vstv %s8137
    %v8139 = vmul.f32 %v8138, %v419
    %v8140 = vmul.f32 %v8138, %v420
    %v8141 = vmul.f32 %v8138, %v325
    %v8142 = vmul.f32 %v8138, %v326
    %v8143 = vmul.f32 %v8138, %v421
    %v8144 = vmul.f32 %v8138, %v422
    %v8145 = vmul.f32 %v8138, %v423
    %v8146 = vmul.f32 %v8138, %v424
    %v8147 = vmul.f32 %v8138, %v331
    %v8148 = vmul.f32 %v8138, %v332
    %v8149 = vmul.f32 %v8138, %v425
    %v8150 = vmul.f32 %v8138, %v426
    %v8163 = vrot.slane %v8139, 2
    %v8164 = vrot.slane %v8141, 2
    %v8165 = vsel %vm452, %v8163, %v8164
    %v8166 = vrot.slane %v8140, 2
    %v8167 = vrot.slane %v8142, 2
    %v8168 = vsel %vm452, %v8166, %v8167
    %v8169 = vrot.slane %v8143, 2
    %v8170 = vsel %vm452, %v8164, %v8169
    %v8171 = vrot.slane %v8144, 2
    %v8172 = vsel %vm452, %v8167, %v8171
    %v8173 = vrot.slane %v8145, 2
    %v8174 = vrot.slane %v8147, 2
    %v8175 = vsel %vm452, %v8173, %v8174
    %v8176 = vrot.slane %v8146, 2
    %v8177 = vrot.slane %v8148, 2
    %v8178 = vsel %vm452, %v8176, %v8177
    %v8179 = vrot.slane %v8149, 2
    %v8180 = vsel %vm452, %v8174, %v8179
    %v8181 = vrot.slane %v8150, 2
    %v8182 = vsel %vm452, %v8177, %v8181
    %8183 = vrot.lane.b32.xlu0 %v8165, 118
    %v8184 = vpop.permute.xlu0 %8183
    %8185 = vrot.lane.b32.xlu0 %v8168, 118
    %v8186 = vpop.permute.xlu0 %8185
    %8187 = vrot.lane.b32.xlu0 %v8170, 118
    %v8188 = vpop.permute.xlu0 %8187
    %8189 = vrot.lane.b32.xlu0 %v8172, 118
    %v8190 = vpop.permute.xlu0 %8189
    %8191 = vrot.lane.b32.xlu0 %v8175, 118
    %v8192 = vpop.permute.xlu0 %8191
    %8193 = vrot.lane.b32.xlu0 %v8178, 118
    %v8194 = vpop.permute.xlu0 %8193
    %8195 = vrot.lane.b32.xlu0 %v8180, 118
    %v8196 = vpop.permute.xlu0 %8195
    %8197 = vrot.lane.b32.xlu0 %v8182, 118
    %v8198 = vpop.permute.xlu0 %8197
    %v8199 = vsel %vm8034, %v8184, %v8186
    %v8200 = vsel %vm8034, %v8188, %v8190
    %v8201 = vsel %vm8034, %v8192, %v8194
    %v8202 = vsel %vm8034, %v8196, %v8198
    %v8211 = vadd.f32 %v8129, %v8199
    %v8212 = vadd.f32 %v8130, %v8186
    %v8213 = vadd.f32 %v8131, %v8200
    %v8214 = vadd.f32 %v8132, %v8190
    %v8215 = vadd.f32 %v8133, %v8201
    %v8216 = vadd.f32 %v8134, %v8194
    %v8217 = vadd.f32 %v8135, %v8202
    %v8218 = vadd.f32 %v8136, %v8198
    %s8219 = sld [smem:[#allocation6 + $0x5a]]
    %v8220 = vstv %s8219
    %v8221 = vmul.f32 %v8220, %v510
    %v8222 = vmul.f32 %v8220, %v511
    %v8223 = vmul.f32 %v8220, %v325
    %v8224 = vmul.f32 %v8220, %v326
    %v8225 = vmul.f32 %v8220, %v512
    %v8226 = vmul.f32 %v8220, %v513
    %v8227 = vmul.f32 %v8220, %v514
    %v8228 = vmul.f32 %v8220, %v515
    %v8229 = vmul.f32 %v8220, %v331
    %v8230 = vmul.f32 %v8220, %v332
    %v8231 = vmul.f32 %v8220, %v516
    %v8232 = vmul.f32 %v8220, %v517
    %v8245 = vrot.slane %v8221, 3
    %v8246 = vrot.slane %v8223, 3
    %v8247 = vsel %vm543, %v8245, %v8246
    %v8248 = vrot.slane %v8222, 3
    %v8249 = vrot.slane %v8224, 3
    %v8250 = vsel %vm543, %v8248, %v8249
    %v8251 = vrot.slane %v8225, 3
    %v8252 = vsel %vm543, %v8246, %v8251
    %v8253 = vrot.slane %v8226, 3
    %v8254 = vsel %vm543, %v8249, %v8253
    %v8255 = vrot.slane %v8227, 3
    %v8256 = vrot.slane %v8229, 3
    %v8257 = vsel %vm543, %v8255, %v8256
    %v8258 = vrot.slane %v8228, 3
    %v8259 = vrot.slane %v8230, 3
    %v8260 = vsel %vm543, %v8258, %v8259
    %v8261 = vrot.slane %v8231, 3
    %v8262 = vsel %vm543, %v8256, %v8261
    %v8263 = vrot.slane %v8232, 3
    %v8264 = vsel %vm543, %v8259, %v8263
    %8265 = vrot.lane.b32.xlu0 %v8247, 118
    %v8266 = vpop.permute.xlu0 %8265
    %8267 = vrot.lane.b32.xlu0 %v8250, 118
    %v8268 = vpop.permute.xlu0 %8267
    %8269 = vrot.lane.b32.xlu0 %v8252, 118
    %v8270 = vpop.permute.xlu0 %8269
    %8271 = vrot.lane.b32.xlu0 %v8254, 118
    %v8272 = vpop.permute.xlu0 %8271
    %8273 = vrot.lane.b32.xlu0 %v8257, 118
    %v8274 = vpop.permute.xlu0 %8273
    %8275 = vrot.lane.b32.xlu0 %v8260, 118
    %v8276 = vpop.permute.xlu0 %8275
    %8277 = vrot.lane.b32.xlu0 %v8262, 118
    %v8278 = vpop.permute.xlu0 %8277
    %8279 = vrot.lane.b32.xlu0 %v8264, 118
    %v8280 = vpop.permute.xlu0 %8279
    %v8281 = vsel %vm8034, %v8266, %v8268
    %v8282 = vsel %vm8034, %v8270, %v8272
    %v8283 = vsel %vm8034, %v8274, %v8276
    %v8284 = vsel %vm8034, %v8278, %v8280
    %v8293 = vadd.f32 %v8211, %v8281
    %v8294 = vadd.f32 %v8212, %v8268
    %v8295 = vadd.f32 %v8213, %v8282
    %v8296 = vadd.f32 %v8214, %v8272
    %v8297 = vadd.f32 %v8215, %v8283
    %v8298 = vadd.f32 %v8216, %v8276
    %v8299 = vadd.f32 %v8217, %v8284
    %v8300 = vadd.f32 %v8218, %v8280
    %s8301 = sld [smem:[#allocation6 + $0x73]]
    %v8302 = vstv %s8301
    %v8303 = vmul.f32 %v8302, %v3054
    %v8304 = vmul.f32 %v8302, %v3055
    %v8305 = vmul.f32 %v8302, %v325
    %v8306 = vmul.f32 %v8302, %v326
    %v8307 = vmul.f32 %v8302, %v3056
    %v8308 = vmul.f32 %v8302, %v3057
    %v8309 = vmul.f32 %v8302, %v3058
    %v8310 = vmul.f32 %v8302, %v3059
    %v8311 = vmul.f32 %v8302, %v331
    %v8312 = vmul.f32 %v8302, %v332
    %v8313 = vmul.f32 %v8302, %v3060
    %v8314 = vmul.f32 %v8302, %v3061
    %v8327 = vrot.slane %v8303, 4
    %v8328 = vrot.slane %v8305, 4
    %v8329 = vsel %vm2713, %v8327, %v8328
    %v8330 = vrot.slane %v8304, 4
    %v8331 = vrot.slane %v8306, 4
    %v8332 = vsel %vm2713, %v8330, %v8331
    %v8333 = vrot.slane %v8307, 4
    %v8334 = vsel %vm2713, %v8328, %v8333
    %v8335 = vrot.slane %v8308, 4
    %v8336 = vsel %vm2713, %v8331, %v8335
    %v8337 = vrot.slane %v8309, 4
    %v8338 = vrot.slane %v8311, 4
    %v8339 = vsel %vm2713, %v8337, %v8338
    %v8340 = vrot.slane %v8310, 4
    %v8341 = vrot.slane %v8312, 4
    %v8342 = vsel %vm2713, %v8340, %v8341
    %v8343 = vrot.slane %v8313, 4
    %v8344 = vsel %vm2713, %v8338, %v8343
    %v8345 = vrot.slane %v8314, 4
    %v8346 = vsel %vm2713, %v8341, %v8345
    %8347 = vrot.lane.b32.xlu0 %v8329, 118
    %v8348 = vpop.permute.xlu0 %8347
    %8349 = vrot.lane.b32.xlu0 %v8332, 118
    %v8350 = vpop.permute.xlu0 %8349
    %8351 = vrot.lane.b32.xlu0 %v8334, 118
    %v8352 = vpop.permute.xlu0 %8351
    %8353 = vrot.lane.b32.xlu0 %v8336, 118
    %v8354 = vpop.permute.xlu0 %8353
    %8355 = vrot.lane.b32.xlu0 %v8339, 118
    %v8356 = vpop.permute.xlu0 %8355
    %8357 = vrot.lane.b32.xlu0 %v8342, 118
    %v8358 = vpop.permute.xlu0 %8357
    %8359 = vrot.lane.b32.xlu0 %v8344, 118
    %v8360 = vpop.permute.xlu0 %8359
    %8361 = vrot.lane.b32.xlu0 %v8346, 118
    %v8362 = vpop.permute.xlu0 %8361
    %v8363 = vsel %vm8034, %v8348, %v8350
    %v8364 = vsel %vm8034, %v8352, %v8354
    %v8365 = vsel %vm8034, %v8356, %v8358
    %v8366 = vsel %vm8034, %v8360, %v8362
    %v8375 = vadd.f32 %v8293, %v8363
    %v8376 = vadd.f32 %v8294, %v8350
    %v8377 = vadd.f32 %v8295, %v8364
    %v8378 = vadd.f32 %v8296, %v8354
    %v8379 = vadd.f32 %v8297, %v8365
    %v8380 = vadd.f32 %v8298, %v8358
    %v8381 = vadd.f32 %v8299, %v8366
    %v8382 = vadd.f32 %v8300, %v8362
    %s8383 = sld [smem:[#allocation6 + $0x10]]
    %v8384 = vstv %s8383
    %v8385 = vmul.f32 %v8384, %v2745
    %v8386 = vmul.f32 %v8384, %v2746
    %v8387 = vmul.f32 %v8384, %v2747
    %v8388 = vmul.f32 %v8384, %v2748
    %v8389 = vmul.f32 %v8384, %v2749
    %v8390 = vmul.f32 %v8384, %v2750
    %v8391 = vmul.f32 %v8384, %v2751
    %v8392 = vmul.f32 %v8384, %v2752
    %8401 = vrot.lane.b32.xlu0 %v8385, 117
    %v8402 = vpop.permute.xlu0 %8401
    %8403 = vrot.lane.b32.xlu0 %v8386, 117
    %v8404 = vpop.permute.xlu0 %8403
    %8405 = vrot.lane.b32.xlu0 %v8387, 117
    %v8406 = vpop.permute.xlu0 %8405
    %8407 = vrot.lane.b32.xlu0 %v8388, 117
    %v8408 = vpop.permute.xlu0 %8407
    %8409 = vrot.lane.b32.xlu0 %v8389, 117
    %v8410 = vpop.permute.xlu0 %8409
    %8411 = vrot.lane.b32.xlu0 %v8390, 117
    %v8412 = vpop.permute.xlu0 %8411
    %8413 = vrot.lane.b32.xlu0 %v8391, 117
    %v8414 = vpop.permute.xlu0 %8413
    %8415 = vrot.lane.b32.xlu0 %v8392, 117
    %v8416 = vpop.permute.xlu0 %8415
    %v8417 = vsel %vm1836, %v8402, %v8404
    %v8418 = vsel %vm1836, %v8406, %v8408
    %v8419 = vsel %vm1836, %v8410, %v8412
    %v8420 = vsel %vm1836, %v8414, %v8416
    %v8429 = vadd.f32 %v8375, %v8417
    %v8430 = vadd.f32 %v8376, %v8404
    %v8431 = vadd.f32 %v8377, %v8418
    %v8432 = vadd.f32 %v8378, %v8408
    %v8433 = vadd.f32 %v8379, %v8419
    %v8434 = vadd.f32 %v8380, %v8412
    %v8435 = vadd.f32 %v8381, %v8420
    %v8436 = vadd.f32 %v8382, %v8416
    %s8437 = sld [smem:[#allocation6 + $0x29]]
    %v8438 = vstv %s8437
    %v8439 = vmul.f32 %v8438, %v323
    %v8440 = vmul.f32 %v8438, %v324
    %v8441 = vmul.f32 %v8438, %v325
    %v8442 = vmul.f32 %v8438, %v326
    %v8443 = vmul.f32 %v8438, %v327
    %v8444 = vmul.f32 %v8438, %v328
    %v8445 = vmul.f32 %v8438, %v329
    %v8446 = vmul.f32 %v8438, %v330
    %v8447 = vmul.f32 %v8438, %v331
    %v8448 = vmul.f32 %v8438, %v332
    %v8449 = vmul.f32 %v8438, %v333
    %v8450 = vmul.f32 %v8438, %v334
    %v8463 = vrot.slane %v8439, 1
    %v8464 = vrot.slane %v8441, 1
    %v8465 = vsel %vm360, %v8463, %v8464
    %v8466 = vrot.slane %v8440, 1
    %v8467 = vrot.slane %v8442, 1
    %v8468 = vsel %vm360, %v8466, %v8467
    %v8469 = vrot.slane %v8443, 1
    %v8470 = vsel %vm360, %v8464, %v8469
    %v8471 = vrot.slane %v8444, 1
    %v8472 = vsel %vm360, %v8467, %v8471
    %v8473 = vrot.slane %v8445, 1
    %v8474 = vrot.slane %v8447, 1
    %v8475 = vsel %vm360, %v8473, %v8474
    %v8476 = vrot.slane %v8446, 1
    %v8477 = vrot.slane %v8448, 1
    %v8478 = vsel %vm360, %v8476, %v8477
    %v8479 = vrot.slane %v8449, 1
    %v8480 = vsel %vm360, %v8474, %v8479
    %v8481 = vrot.slane %v8450, 1
    %v8482 = vsel %vm360, %v8477, %v8481
    %8483 = vrot.lane.b32.xlu0 %v8465, 117
    %v8484 = vpop.permute.xlu0 %8483
    %8485 = vrot.lane.b32.xlu0 %v8468, 117
    %v8486 = vpop.permute.xlu0 %8485
    %8487 = vrot.lane.b32.xlu0 %v8470, 117
    %v8488 = vpop.permute.xlu0 %8487
    %8489 = vrot.lane.b32.xlu0 %v8472, 117
    %v8490 = vpop.permute.xlu0 %8489
    %8491 = vrot.lane.b32.xlu0 %v8475, 117
    %v8492 = vpop.permute.xlu0 %8491
    %8493 = vrot.lane.b32.xlu0 %v8478, 117
    %v8494 = vpop.permute.xlu0 %8493
    %8495 = vrot.lane.b32.xlu0 %v8480, 117
    %v8496 = vpop.permute.xlu0 %8495
    %8497 = vrot.lane.b32.xlu0 %v8482, 117
    %v8498 = vpop.permute.xlu0 %8497
    %v8499 = vsel %vm1836, %v8484, %v8486
    %v8500 = vsel %vm1836, %v8488, %v8490
    %v8501 = vsel %vm1836, %v8492, %v8494
    %v8502 = vsel %vm1836, %v8496, %v8498
    %v8511 = vadd.f32 %v8429, %v8499
    %v8512 = vadd.f32 %v8430, %v8486
    %v8513 = vadd.f32 %v8431, %v8500
    %v8514 = vadd.f32 %v8432, %v8490
    %v8515 = vadd.f32 %v8433, %v8501
    %v8516 = vadd.f32 %v8434, %v8494
    %v8517 = vadd.f32 %v8435, %v8502
    %v8518 = vadd.f32 %v8436, %v8498
    %s8519 = sld [smem:[#allocation6 + $0x42]]
    %v8520 = vstv %s8519
    %v8521 = vmul.f32 %v8520, %v419
    %v8522 = vmul.f32 %v8520, %v420
    %v8523 = vmul.f32 %v8520, %v325
    %v8524 = vmul.f32 %v8520, %v326
    %v8525 = vmul.f32 %v8520, %v421
    %v8526 = vmul.f32 %v8520, %v422
    %v8527 = vmul.f32 %v8520, %v423
    %v8528 = vmul.f32 %v8520, %v424
    %v8529 = vmul.f32 %v8520, %v331
    %v8530 = vmul.f32 %v8520, %v332
    %v8531 = vmul.f32 %v8520, %v425
    %v8532 = vmul.f32 %v8520, %v426
    %v8545 = vrot.slane %v8521, 2
    %v8546 = vrot.slane %v8523, 2
    %v8547 = vsel %vm452, %v8545, %v8546
    %v8548 = vrot.slane %v8522, 2
    %v8549 = vrot.slane %v8524, 2
    %v8550 = vsel %vm452, %v8548, %v8549
    %v8551 = vrot.slane %v8525, 2
    %v8552 = vsel %vm452, %v8546, %v8551
    %v8553 = vrot.slane %v8526, 2
    %v8554 = vsel %vm452, %v8549, %v8553
    %v8555 = vrot.slane %v8527, 2
    %v8556 = vrot.slane %v8529, 2
    %v8557 = vsel %vm452, %v8555, %v8556
    %v8558 = vrot.slane %v8528, 2
    %v8559 = vrot.slane %v8530, 2
    %v8560 = vsel %vm452, %v8558, %v8559
    %v8561 = vrot.slane %v8531, 2
    %v8562 = vsel %vm452, %v8556, %v8561
    %v8563 = vrot.slane %v8532, 2
    %v8564 = vsel %vm452, %v8559, %v8563
    %8565 = vrot.lane.b32.xlu0 %v8547, 117
    %v8566 = vpop.permute.xlu0 %8565
    %8567 = vrot.lane.b32.xlu0 %v8550, 117
    %v8568 = vpop.permute.xlu0 %8567
    %8569 = vrot.lane.b32.xlu0 %v8552, 117
    %v8570 = vpop.permute.xlu0 %8569
    %8571 = vrot.lane.b32.xlu0 %v8554, 117
    %v8572 = vpop.permute.xlu0 %8571
    %8573 = vrot.lane.b32.xlu0 %v8557, 117
    %v8574 = vpop.permute.xlu0 %8573
    %8575 = vrot.lane.b32.xlu0 %v8560, 117
    %v8576 = vpop.permute.xlu0 %8575
    %8577 = vrot.lane.b32.xlu0 %v8562, 117
    %v8578 = vpop.permute.xlu0 %8577
    %8579 = vrot.lane.b32.xlu0 %v8564, 117
    %v8580 = vpop.permute.xlu0 %8579
    %v8581 = vsel %vm1836, %v8566, %v8568
    %v8582 = vsel %vm1836, %v8570, %v8572
    %v8583 = vsel %vm1836, %v8574, %v8576
    %v8584 = vsel %vm1836, %v8578, %v8580
    %v8593 = vadd.f32 %v8511, %v8581
    %v8594 = vadd.f32 %v8512, %v8568
    %v8595 = vadd.f32 %v8513, %v8582
    %v8596 = vadd.f32 %v8514, %v8572
    %v8597 = vadd.f32 %v8515, %v8583
    %v8598 = vadd.f32 %v8516, %v8576
    %v8599 = vadd.f32 %v8517, %v8584
    %v8600 = vadd.f32 %v8518, %v8580
    %s8601 = sld [smem:[#allocation6 + $0x5b]]
    %v8602 = vstv %s8601
    %v8603 = vmul.f32 %v8602, %v510
    %v8604 = vmul.f32 %v8602, %v511
    %v8605 = vmul.f32 %v8602, %v325
    %v8606 = vmul.f32 %v8602, %v326
    %v8607 = vmul.f32 %v8602, %v512
    %v8608 = vmul.f32 %v8602, %v513
    %v8609 = vmul.f32 %v8602, %v514
    %v8610 = vmul.f32 %v8602, %v515
    %v8611 = vmul.f32 %v8602, %v331
    %v8612 = vmul.f32 %v8602, %v332
    %v8613 = vmul.f32 %v8602, %v516
    %v8614 = vmul.f32 %v8602, %v517
    %v8627 = vrot.slane %v8603, 3
    %v8628 = vrot.slane %v8605, 3
    %v8629 = vsel %vm543, %v8627, %v8628
    %v8630 = vrot.slane %v8604, 3
    %v8631 = vrot.slane %v8606, 3
    %v8632 = vsel %vm543, %v8630, %v8631
    %v8633 = vrot.slane %v8607, 3
    %v8634 = vsel %vm543, %v8628, %v8633
    %v8635 = vrot.slane %v8608, 3
    %v8636 = vsel %vm543, %v8631, %v8635
    %v8637 = vrot.slane %v8609, 3
    %v8638 = vrot.slane %v8611, 3
    %v8639 = vsel %vm543, %v8637, %v8638
    %v8640 = vrot.slane %v8610, 3
    %v8641 = vrot.slane %v8612, 3
    %v8642 = vsel %vm543, %v8640, %v8641
    %v8643 = vrot.slane %v8613, 3
    %v8644 = vsel %vm543, %v8638, %v8643
    %v8645 = vrot.slane %v8614, 3
    %v8646 = vsel %vm543, %v8641, %v8645
    %8647 = vrot.lane.b32.xlu0 %v8629, 117
    %v8648 = vpop.permute.xlu0 %8647
    %8649 = vrot.lane.b32.xlu0 %v8632, 117
    %v8650 = vpop.permute.xlu0 %8649
    %8651 = vrot.lane.b32.xlu0 %v8634, 117
    %v8652 = vpop.permute.xlu0 %8651
    %8653 = vrot.lane.b32.xlu0 %v8636, 117
    %v8654 = vpop.permute.xlu0 %8653
    %8655 = vrot.lane.b32.xlu0 %v8639, 117
    %v8656 = vpop.permute.xlu0 %8655
    %8657 = vrot.lane.b32.xlu0 %v8642, 117
    %v8658 = vpop.permute.xlu0 %8657
    %8659 = vrot.lane.b32.xlu0 %v8644, 117
    %v8660 = vpop.permute.xlu0 %8659
    %8661 = vrot.lane.b32.xlu0 %v8646, 117
    %v8662 = vpop.permute.xlu0 %8661
    %v8663 = vsel %vm1836, %v8648, %v8650
    %v8664 = vsel %vm1836, %v8652, %v8654
    %v8665 = vsel %vm1836, %v8656, %v8658
    %v8666 = vsel %vm1836, %v8660, %v8662
    %v8675 = vadd.f32 %v8593, %v8663
    %v8676 = vadd.f32 %v8594, %v8650
    %v8677 = vadd.f32 %v8595, %v8664
    %v8678 = vadd.f32 %v8596, %v8654
    %v8679 = vadd.f32 %v8597, %v8665
    %v8680 = vadd.f32 %v8598, %v8658
    %v8681 = vadd.f32 %v8599, %v8666
    %v8682 = vadd.f32 %v8600, %v8662
    %s8683 = sld [smem:[#allocation6 + $0x74]]
    %v8684 = vstv %s8683
    %v8685 = vmul.f32 %v8684, %v3054
    %v8686 = vmul.f32 %v8684, %v3055
    %v8687 = vmul.f32 %v8684, %v325
    %v8688 = vmul.f32 %v8684, %v326
    %v8689 = vmul.f32 %v8684, %v3056
    %v8690 = vmul.f32 %v8684, %v3057
    %v8691 = vmul.f32 %v8684, %v3058
    %v8692 = vmul.f32 %v8684, %v3059
    %v8693 = vmul.f32 %v8684, %v331
    %v8694 = vmul.f32 %v8684, %v332
    %v8695 = vmul.f32 %v8684, %v3060
    %v8696 = vmul.f32 %v8684, %v3061
    %v8709 = vrot.slane %v8685, 4
    %v8710 = vrot.slane %v8687, 4
    %v8711 = vsel %vm2713, %v8709, %v8710
    %v8712 = vrot.slane %v8686, 4
    %v8713 = vrot.slane %v8688, 4
    %v8714 = vsel %vm2713, %v8712, %v8713
    %v8715 = vrot.slane %v8689, 4
    %v8716 = vsel %vm2713, %v8710, %v8715
    %v8717 = vrot.slane %v8690, 4
    %v8718 = vsel %vm2713, %v8713, %v8717
    %v8719 = vrot.slane %v8691, 4
    %v8720 = vrot.slane %v8693, 4
    %v8721 = vsel %vm2713, %v8719, %v8720
    %v8722 = vrot.slane %v8692, 4
    %v8723 = vrot.slane %v8694, 4
    %v8724 = vsel %vm2713, %v8722, %v8723
    %v8725 = vrot.slane %v8695, 4
    %v8726 = vsel %vm2713, %v8720, %v8725
    %v8727 = vrot.slane %v8696, 4
    %v8728 = vsel %vm2713, %v8723, %v8727
    %8729 = vrot.lane.b32.xlu0 %v8711, 117
    %v8730 = vpop.permute.xlu0 %8729
    %8731 = vrot.lane.b32.xlu0 %v8714, 117
    %v8732 = vpop.permute.xlu0 %8731
    %8733 = vrot.lane.b32.xlu0 %v8716, 117
    %v8734 = vpop.permute.xlu0 %8733
    %8735 = vrot.lane.b32.xlu0 %v8718, 117
    %v8736 = vpop.permute.xlu0 %8735
    %8737 = vrot.lane.b32.xlu0 %v8721, 117
    %v8738 = vpop.permute.xlu0 %8737
    %8739 = vrot.lane.b32.xlu0 %v8724, 117
    %v8740 = vpop.permute.xlu0 %8739
    %8741 = vrot.lane.b32.xlu0 %v8726, 117
    %v8742 = vpop.permute.xlu0 %8741
    %8743 = vrot.lane.b32.xlu0 %v8728, 117
    %v8744 = vpop.permute.xlu0 %8743
    %v8745 = vsel %vm1836, %v8730, %v8732
    %v8746 = vsel %vm1836, %v8734, %v8736
    %v8747 = vsel %vm1836, %v8738, %v8740
    %v8748 = vsel %vm1836, %v8742, %v8744
    %v8757 = vadd.f32 %v8675, %v8745
    %v8758 = vadd.f32 %v8676, %v8732
    %v8759 = vadd.f32 %v8677, %v8746
    %v8760 = vadd.f32 %v8678, %v8736
    %v8761 = vadd.f32 %v8679, %v8747
    %v8762 = vadd.f32 %v8680, %v8740
    %v8763 = vadd.f32 %v8681, %v8748
    %v8764 = vadd.f32 %v8682, %v8744
    %s8765 = sld [smem:[#allocation6 + $0x11]]
    %v8766 = vstv %s8765
    %v8767 = vmul.f32 %v8766, %v2745
    %v8768 = vmul.f32 %v8766, %v2746
    %v8769 = vmul.f32 %v8766, %v2747
    %v8770 = vmul.f32 %v8766, %v2748
    %v8771 = vmul.f32 %v8766, %v2749
    %v8772 = vmul.f32 %v8766, %v2750
    %v8773 = vmul.f32 %v8766, %v2751
    %v8774 = vmul.f32 %v8766, %v2752
    %8783 = vrot.lane.b32.xlu0 %v8767, 116
    %v8784 = vpop.permute.xlu0 %8783
    %8785 = vrot.lane.b32.xlu0 %v8768, 116
    %v8786 = vpop.permute.xlu0 %8785
    %8787 = vrot.lane.b32.xlu0 %v8769, 116
    %v8788 = vpop.permute.xlu0 %8787
    %8789 = vrot.lane.b32.xlu0 %v8770, 116
    %v8790 = vpop.permute.xlu0 %8789
    %8791 = vrot.lane.b32.xlu0 %v8771, 116
    %v8792 = vpop.permute.xlu0 %8791
    %8793 = vrot.lane.b32.xlu0 %v8772, 116
    %v8794 = vpop.permute.xlu0 %8793
    %8795 = vrot.lane.b32.xlu0 %v8773, 116
    %v8796 = vpop.permute.xlu0 %8795
    %8797 = vrot.lane.b32.xlu0 %v8774, 116
    %v8798 = vpop.permute.xlu0 %8797
    %v8799 = vsel %vm2083, %v8784, %v8786
    %v8800 = vsel %vm2083, %v8788, %v8790
    %v8801 = vsel %vm2083, %v8792, %v8794
    %v8802 = vsel %vm2083, %v8796, %v8798
    %v8811 = vadd.f32 %v8757, %v8799
    %v8812 = vadd.f32 %v8758, %v8786
    %v8813 = vadd.f32 %v8759, %v8800
    %v8814 = vadd.f32 %v8760, %v8790
    %v8815 = vadd.f32 %v8761, %v8801
    %v8816 = vadd.f32 %v8762, %v8794
    %v8817 = vadd.f32 %v8763, %v8802
    %v8818 = vadd.f32 %v8764, %v8798
    %s8819 = sld [smem:[#allocation6 + $0x2a]]
    %v8820 = vstv %s8819
    %v8821 = vmul.f32 %v8820, %v323
    %v8822 = vmul.f32 %v8820, %v324
    %v8823 = vmul.f32 %v8820, %v325
    %v8824 = vmul.f32 %v8820, %v326
    %v8825 = vmul.f32 %v8820, %v327
    %v8826 = vmul.f32 %v8820, %v328
    %v8827 = vmul.f32 %v8820, %v329
    %v8828 = vmul.f32 %v8820, %v330
    %v8829 = vmul.f32 %v8820, %v331
    %v8830 = vmul.f32 %v8820, %v332
    %v8831 = vmul.f32 %v8820, %v333
    %v8832 = vmul.f32 %v8820, %v334
    %v8845 = vrot.slane %v8821, 1
    %v8846 = vrot.slane %v8823, 1
    %v8847 = vsel %vm360, %v8845, %v8846
    %v8848 = vrot.slane %v8822, 1
    %v8849 = vrot.slane %v8824, 1
    %v8850 = vsel %vm360, %v8848, %v8849
    %v8851 = vrot.slane %v8825, 1
    %v8852 = vsel %vm360, %v8846, %v8851
    %v8853 = vrot.slane %v8826, 1
    %v8854 = vsel %vm360, %v8849, %v8853
    %v8855 = vrot.slane %v8827, 1
    %v8856 = vrot.slane %v8829, 1
    %v8857 = vsel %vm360, %v8855, %v8856
    %v8858 = vrot.slane %v8828, 1
    %v8859 = vrot.slane %v8830, 1
    %v8860 = vsel %vm360, %v8858, %v8859
    %v8861 = vrot.slane %v8831, 1
    %v8862 = vsel %vm360, %v8856, %v8861
    %v8863 = vrot.slane %v8832, 1
    %v8864 = vsel %vm360, %v8859, %v8863
    %8865 = vrot.lane.b32.xlu0 %v8847, 116
    %v8866 = vpop.permute.xlu0 %8865
    %8867 = vrot.lane.b32.xlu0 %v8850, 116
    %v8868 = vpop.permute.xlu0 %8867
    %8869 = vrot.lane.b32.xlu0 %v8852, 116
    %v8870 = vpop.permute.xlu0 %8869
    %8871 = vrot.lane.b32.xlu0 %v8854, 116
    %v8872 = vpop.permute.xlu0 %8871
    %8873 = vrot.lane.b32.xlu0 %v8857, 116
    %v8874 = vpop.permute.xlu0 %8873
    %8875 = vrot.lane.b32.xlu0 %v8860, 116
    %v8876 = vpop.permute.xlu0 %8875
    %8877 = vrot.lane.b32.xlu0 %v8862, 116
    %v8878 = vpop.permute.xlu0 %8877
    %8879 = vrot.lane.b32.xlu0 %v8864, 116
    %v8880 = vpop.permute.xlu0 %8879
    %v8881 = vsel %vm2083, %v8866, %v8868
    %v8882 = vsel %vm2083, %v8870, %v8872
    %v8883 = vsel %vm2083, %v8874, %v8876
    %v8884 = vsel %vm2083, %v8878, %v8880
    %v8893 = vadd.f32 %v8811, %v8881
    %v8894 = vadd.f32 %v8812, %v8868
    %v8895 = vadd.f32 %v8813, %v8882
    %v8896 = vadd.f32 %v8814, %v8872
    %v8897 = vadd.f32 %v8815, %v8883
    %v8898 = vadd.f32 %v8816, %v8876
    %v8899 = vadd.f32 %v8817, %v8884
    %v8900 = vadd.f32 %v8818, %v8880
    %s8901 = sld [smem:[#allocation6 + $0x43]]
    %v8902 = vstv %s8901
    %v8903 = vmul.f32 %v8902, %v419
    %v8904 = vmul.f32 %v8902, %v420
    %v8905 = vmul.f32 %v8902, %v325
    %v8906 = vmul.f32 %v8902, %v326
    %v8907 = vmul.f32 %v8902, %v421
    %v8908 = vmul.f32 %v8902, %v422
    %v8909 = vmul.f32 %v8902, %v423
    %v8910 = vmul.f32 %v8902, %v424
    %v8911 = vmul.f32 %v8902, %v331
    %v8912 = vmul.f32 %v8902, %v332
    %v8913 = vmul.f32 %v8902, %v425
    %v8914 = vmul.f32 %v8902, %v426
    %v8927 = vrot.slane %v8903, 2
    %v8928 = vrot.slane %v8905, 2
    %v8929 = vsel %vm452, %v8927, %v8928
    %v8930 = vrot.slane %v8904, 2
    %v8931 = vrot.slane %v8906, 2
    %v8932 = vsel %vm452, %v8930, %v8931
    %v8933 = vrot.slane %v8907, 2
    %v8934 = vsel %vm452, %v8928, %v8933
    %v8935 = vrot.slane %v8908, 2
    %v8936 = vsel %vm452, %v8931, %v8935
    %v8937 = vrot.slane %v8909, 2
    %v8938 = vrot.slane %v8911, 2
    %v8939 = vsel %vm452, %v8937, %v8938
    %v8940 = vrot.slane %v8910, 2
    %v8941 = vrot.slane %v8912, 2
    %v8942 = vsel %vm452, %v8940, %v8941
    %v8943 = vrot.slane %v8913, 2
    %v8944 = vsel %vm452, %v8938, %v8943
    %v8945 = vrot.slane %v8914, 2
    %v8946 = vsel %vm452, %v8941, %v8945
    %8947 = vrot.lane.b32.xlu0 %v8929, 116
    %v8948 = vpop.permute.xlu0 %8947
    %8949 = vrot.lane.b32.xlu0 %v8932, 116
    %v8950 = vpop.permute.xlu0 %8949
    %8951 = vrot.lane.b32.xlu0 %v8934, 116
    %v8952 = vpop.permute.xlu0 %8951
    %8953 = vrot.lane.b32.xlu0 %v8936, 116
    %v8954 = vpop.permute.xlu0 %8953
    %8955 = vrot.lane.b32.xlu0 %v8939, 116
    %v8956 = vpop.permute.xlu0 %8955
    %8957 = vrot.lane.b32.xlu0 %v8942, 116
    %v8958 = vpop.permute.xlu0 %8957
    %8959 = vrot.lane.b32.xlu0 %v8944, 116
    %v8960 = vpop.permute.xlu0 %8959
    %8961 = vrot.lane.b32.xlu0 %v8946, 116
    %v8962 = vpop.permute.xlu0 %8961
    %v8963 = vsel %vm2083, %v8948, %v8950
    %v8964 = vsel %vm2083, %v8952, %v8954
    %v8965 = vsel %vm2083, %v8956, %v8958
    %v8966 = vsel %vm2083, %v8960, %v8962
    %v8975 = vadd.f32 %v8893, %v8963
    %v8976 = vadd.f32 %v8894, %v8950
    %v8977 = vadd.f32 %v8895, %v8964
    %v8978 = vadd.f32 %v8896, %v8954
    %v8979 = vadd.f32 %v8897, %v8965
    %v8980 = vadd.f32 %v8898, %v8958
    %v8981 = vadd.f32 %v8899, %v8966
    %v8982 = vadd.f32 %v8900, %v8962
    %s8983 = sld [smem:[#allocation6 + $0x5c]]
    %v8984 = vstv %s8983
    %v8985 = vmul.f32 %v8984, %v510
    %v8986 = vmul.f32 %v8984, %v511
    %v8987 = vmul.f32 %v8984, %v325
    %v8988 = vmul.f32 %v8984, %v326
    %v8989 = vmul.f32 %v8984, %v512
    %v8990 = vmul.f32 %v8984, %v513
    %v8991 = vmul.f32 %v8984, %v514
    %v8992 = vmul.f32 %v8984, %v515
    %v8993 = vmul.f32 %v8984, %v331
    %v8994 = vmul.f32 %v8984, %v332
    %v8995 = vmul.f32 %v8984, %v516
    %v8996 = vmul.f32 %v8984, %v517
    %v9009 = vrot.slane %v8985, 3
    %v9010 = vrot.slane %v8987, 3
    %v9011 = vsel %vm543, %v9009, %v9010
    %v9012 = vrot.slane %v8986, 3
    %v9013 = vrot.slane %v8988, 3
    %v9014 = vsel %vm543, %v9012, %v9013
    %v9015 = vrot.slane %v8989, 3
    %v9016 = vsel %vm543, %v9010, %v9015
    %v9017 = vrot.slane %v8990, 3
    %v9018 = vsel %vm543, %v9013, %v9017
    %v9019 = vrot.slane %v8991, 3
    %v9020 = vrot.slane %v8993, 3
    %v9021 = vsel %vm543, %v9019, %v9020
    %v9022 = vrot.slane %v8992, 3
    %v9023 = vrot.slane %v8994, 3
    %v9024 = vsel %vm543, %v9022, %v9023
    %v9025 = vrot.slane %v8995, 3
    %v9026 = vsel %vm543, %v9020, %v9025
    %v9027 = vrot.slane %v8996, 3
    %v9028 = vsel %vm543, %v9023, %v9027
    %9029 = vrot.lane.b32.xlu0 %v9011, 116
    %v9030 = vpop.permute.xlu0 %9029
    %9031 = vrot.lane.b32.xlu0 %v9014, 116
    %v9032 = vpop.permute.xlu0 %9031
    %9033 = vrot.lane.b32.xlu0 %v9016, 116
    %v9034 = vpop.permute.xlu0 %9033
    %9035 = vrot.lane.b32.xlu0 %v9018, 116
    %v9036 = vpop.permute.xlu0 %9035
    %9037 = vrot.lane.b32.xlu0 %v9021, 116
    %v9038 = vpop.permute.xlu0 %9037
    %9039 = vrot.lane.b32.xlu0 %v9024, 116
    %v9040 = vpop.permute.xlu0 %9039
    %9041 = vrot.lane.b32.xlu0 %v9026, 116
    %v9042 = vpop.permute.xlu0 %9041
    %9043 = vrot.lane.b32.xlu0 %v9028, 116
    %v9044 = vpop.permute.xlu0 %9043
    %v9045 = vsel %vm2083, %v9030, %v9032
    %v9046 = vsel %vm2083, %v9034, %v9036
    %v9047 = vsel %vm2083, %v9038, %v9040
    %v9048 = vsel %vm2083, %v9042, %v9044
    %v9057 = vadd.f32 %v8975, %v9045
    %v9058 = vadd.f32 %v8976, %v9032
    %v9059 = vadd.f32 %v8977, %v9046
    %v9060 = vadd.f32 %v8978, %v9036
    %v9061 = vadd.f32 %v8979, %v9047
    %v9062 = vadd.f32 %v8980, %v9040
    %v9063 = vadd.f32 %v8981, %v9048
    %v9064 = vadd.f32 %v8982, %v9044
    %s9065 = sld [smem:[#allocation6 + $0x75]]
    %v9066 = vstv %s9065
    %v9067 = vmul.f32 %v9066, %v3054
    %v9068 = vmul.f32 %v9066, %v3055
    %v9069 = vmul.f32 %v9066, %v325
    %v9070 = vmul.f32 %v9066, %v326
    %v9071 = vmul.f32 %v9066, %v3056
    %v9072 = vmul.f32 %v9066, %v3057
    %v9073 = vmul.f32 %v9066, %v3058
    %v9074 = vmul.f32 %v9066, %v3059
    %v9075 = vmul.f32 %v9066, %v331
    %v9076 = vmul.f32 %v9066, %v332
    %v9077 = vmul.f32 %v9066, %v3060
    %v9078 = vmul.f32 %v9066, %v3061
    %v9091 = vrot.slane %v9067, 4
    %v9092 = vrot.slane %v9069, 4
    %v9093 = vsel %vm2713, %v9091, %v9092
    %v9094 = vrot.slane %v9068, 4
    %v9095 = vrot.slane %v9070, 4
    %v9096 = vsel %vm2713, %v9094, %v9095
    %v9097 = vrot.slane %v9071, 4
    %v9098 = vsel %vm2713, %v9092, %v9097
    %v9099 = vrot.slane %v9072, 4
    %v9100 = vsel %vm2713, %v9095, %v9099
    %v9101 = vrot.slane %v9073, 4
    %v9102 = vrot.slane %v9075, 4
    %v9103 = vsel %vm2713, %v9101, %v9102
    %v9104 = vrot.slane %v9074, 4
    %v9105 = vrot.slane %v9076, 4
    %v9106 = vsel %vm2713, %v9104, %v9105
    %v9107 = vrot.slane %v9077, 4
    %v9108 = vsel %vm2713, %v9102, %v9107
    %v9109 = vrot.slane %v9078, 4
    %v9110 = vsel %vm2713, %v9105, %v9109
    %9111 = vrot.lane.b32.xlu0 %v9093, 116
    %v9112 = vpop.permute.xlu0 %9111
    %9113 = vrot.lane.b32.xlu0 %v9096, 116
    %v9114 = vpop.permute.xlu0 %9113
    %9115 = vrot.lane.b32.xlu0 %v9098, 116
    %v9116 = vpop.permute.xlu0 %9115
    %9117 = vrot.lane.b32.xlu0 %v9100, 116
    %v9118 = vpop.permute.xlu0 %9117
    %9119 = vrot.lane.b32.xlu0 %v9103, 116
    %v9120 = vpop.permute.xlu0 %9119
    %9121 = vrot.lane.b32.xlu0 %v9106, 116
    %v9122 = vpop.permute.xlu0 %9121
    %9123 = vrot.lane.b32.xlu0 %v9108, 116
    %v9124 = vpop.permute.xlu0 %9123
    %9125 = vrot.lane.b32.xlu0 %v9110, 116
    %v9126 = vpop.permute.xlu0 %9125
    %v9127 = vsel %vm2083, %v9112, %v9114
    %v9128 = vsel %vm2083, %v9116, %v9118
    %v9129 = vsel %vm2083, %v9120, %v9122
    %v9130 = vsel %vm2083, %v9124, %v9126
    %v9139 = vadd.f32 %v9057, %v9127
    %v9140 = vadd.f32 %v9058, %v9114
    %v9141 = vadd.f32 %v9059, %v9128
    %v9142 = vadd.f32 %v9060, %v9118
    %v9143 = vadd.f32 %v9061, %v9129
    %v9144 = vadd.f32 %v9062, %v9122
    %v9145 = vadd.f32 %v9063, %v9130
    %v9146 = vadd.f32 %v9064, %v9126
    %s9147 = sld [smem:[#allocation6 + $0x12]]
    %v9148 = vstv %s9147
    %v9149 = vmul.f32 %v9148, %v2745
    %v9150 = vmul.f32 %v9148, %v2746
    %v9151 = vmul.f32 %v9148, %v2747
    %v9152 = vmul.f32 %v9148, %v2748
    %v9153 = vmul.f32 %v9148, %v2749
    %v9154 = vmul.f32 %v9148, %v2750
    %v9155 = vmul.f32 %v9148, %v2751
    %v9156 = vmul.f32 %v9148, %v2752
    %9165 = vrot.lane.b32.xlu0 %v9149, 115
    %v9166 = vpop.permute.xlu0 %9165
    %9167 = vrot.lane.b32.xlu0 %v9150, 115
    %v9168 = vpop.permute.xlu0 %9167
    %9169 = vrot.lane.b32.xlu0 %v9151, 115
    %v9170 = vpop.permute.xlu0 %9169
    %9171 = vrot.lane.b32.xlu0 %v9152, 115
    %v9172 = vpop.permute.xlu0 %9171
    %9173 = vrot.lane.b32.xlu0 %v9153, 115
    %v9174 = vpop.permute.xlu0 %9173
    %9175 = vrot.lane.b32.xlu0 %v9154, 115
    %v9176 = vpop.permute.xlu0 %9175
    %9177 = vrot.lane.b32.xlu0 %v9155, 115
    %v9178 = vpop.permute.xlu0 %9177
    %9179 = vrot.lane.b32.xlu0 %v9156, 115
    %v9180 = vpop.permute.xlu0 %9179
    %v9181 = vsel %vm2330, %v9166, %v9168
    %v9182 = vsel %vm2330, %v9170, %v9172
    %v9183 = vsel %vm2330, %v9174, %v9176
    %v9184 = vsel %vm2330, %v9178, %v9180
    %v9193 = vadd.f32 %v9139, %v9181
    %v9194 = vadd.f32 %v9140, %v9168
    %v9195 = vadd.f32 %v9141, %v9182
    %v9196 = vadd.f32 %v9142, %v9172
    %v9197 = vadd.f32 %v9143, %v9183
    %v9198 = vadd.f32 %v9144, %v9176
    %v9199 = vadd.f32 %v9145, %v9184
    %v9200 = vadd.f32 %v9146, %v9180
    %s9201 = sld [smem:[#allocation6 + $0x2b]]
    %v9202 = vstv %s9201
    %v9203 = vmul.f32 %v9202, %v323
    %v9204 = vmul.f32 %v9202, %v324
    %v9205 = vmul.f32 %v9202, %v325
    %v9206 = vmul.f32 %v9202, %v326
    %v9207 = vmul.f32 %v9202, %v327
    %v9208 = vmul.f32 %v9202, %v328
    %v9209 = vmul.f32 %v9202, %v329
    %v9210 = vmul.f32 %v9202, %v330
    %v9211 = vmul.f32 %v9202, %v331
    %v9212 = vmul.f32 %v9202, %v332
    %v9213 = vmul.f32 %v9202, %v333
    %v9214 = vmul.f32 %v9202, %v334
    %v9227 = vrot.slane %v9203, 1
    %v9228 = vrot.slane %v9205, 1
    %v9229 = vsel %vm360, %v9227, %v9228
    %v9230 = vrot.slane %v9204, 1
    %v9231 = vrot.slane %v9206, 1
    %v9232 = vsel %vm360, %v9230, %v9231
    %v9233 = vrot.slane %v9207, 1
    %v9234 = vsel %vm360, %v9228, %v9233
    %v9235 = vrot.slane %v9208, 1
    %v9236 = vsel %vm360, %v9231, %v9235
    %v9237 = vrot.slane %v9209, 1
    %v9238 = vrot.slane %v9211, 1
    %v9239 = vsel %vm360, %v9237, %v9238
    %v9240 = vrot.slane %v9210, 1
    %v9241 = vrot.slane %v9212, 1
    %v9242 = vsel %vm360, %v9240, %v9241
    %v9243 = vrot.slane %v9213, 1
    %v9244 = vsel %vm360, %v9238, %v9243
    %v9245 = vrot.slane %v9214, 1
    %v9246 = vsel %vm360, %v9241, %v9245
    %9247 = vrot.lane.b32.xlu0 %v9229, 115
    %v9248 = vpop.permute.xlu0 %9247
    %9249 = vrot.lane.b32.xlu0 %v9232, 115
    %v9250 = vpop.permute.xlu0 %9249
    %9251 = vrot.lane.b32.xlu0 %v9234, 115
    %v9252 = vpop.permute.xlu0 %9251
    %9253 = vrot.lane.b32.xlu0 %v9236, 115
    %v9254 = vpop.permute.xlu0 %9253
    %9255 = vrot.lane.b32.xlu0 %v9239, 115
    %v9256 = vpop.permute.xlu0 %9255
    %9257 = vrot.lane.b32.xlu0 %v9242, 115
    %v9258 = vpop.permute.xlu0 %9257
    %9259 = vrot.lane.b32.xlu0 %v9244, 115
    %v9260 = vpop.permute.xlu0 %9259
    %9261 = vrot.lane.b32.xlu0 %v9246, 115
    %v9262 = vpop.permute.xlu0 %9261
    %v9263 = vsel %vm2330, %v9248, %v9250
    %v9264 = vsel %vm2330, %v9252, %v9254
    %v9265 = vsel %vm2330, %v9256, %v9258
    %v9266 = vsel %vm2330, %v9260, %v9262
    %v9275 = vadd.f32 %v9193, %v9263
    %v9276 = vadd.f32 %v9194, %v9250
    %v9277 = vadd.f32 %v9195, %v9264
    %v9278 = vadd.f32 %v9196, %v9254
    %v9279 = vadd.f32 %v9197, %v9265
    %v9280 = vadd.f32 %v9198, %v9258
    %v9281 = vadd.f32 %v9199, %v9266
    %v9282 = vadd.f32 %v9200, %v9262
    %s9283 = sld [smem:[#allocation6 + $0x44]]
    %v9284 = vstv %s9283
    %v9285 = vmul.f32 %v9284, %v419
    %v9286 = vmul.f32 %v9284, %v420
    %v9287 = vmul.f32 %v9284, %v325
    %v9288 = vmul.f32 %v9284, %v326
    %v9289 = vmul.f32 %v9284, %v421
    %v9290 = vmul.f32 %v9284, %v422
    %v9291 = vmul.f32 %v9284, %v423
    %v9292 = vmul.f32 %v9284, %v424
    %v9293 = vmul.f32 %v9284, %v331
    %v9294 = vmul.f32 %v9284, %v332
    %v9295 = vmul.f32 %v9284, %v425
    %v9296 = vmul.f32 %v9284, %v426
    %v9309 = vrot.slane %v9285, 2
    %v9310 = vrot.slane %v9287, 2
    %v9311 = vsel %vm452, %v9309, %v9310
    %v9312 = vrot.slane %v9286, 2
    %v9313 = vrot.slane %v9288, 2
    %v9314 = vsel %vm452, %v9312, %v9313
    %v9315 = vrot.slane %v9289, 2
    %v9316 = vsel %vm452, %v9310, %v9315
    %v9317 = vrot.slane %v9290, 2
    %v9318 = vsel %vm452, %v9313, %v9317
    %v9319 = vrot.slane %v9291, 2
    %v9320 = vrot.slane %v9293, 2
    %v9321 = vsel %vm452, %v9319, %v9320
    %v9322 = vrot.slane %v9292, 2
    %v9323 = vrot.slane %v9294, 2
    %v9324 = vsel %vm452, %v9322, %v9323
    %v9325 = vrot.slane %v9295, 2
    %v9326 = vsel %vm452, %v9320, %v9325
    %v9327 = vrot.slane %v9296, 2
    %v9328 = vsel %vm452, %v9323, %v9327
    %9329 = vrot.lane.b32.xlu0 %v9311, 115
    %v9330 = vpop.permute.xlu0 %9329
    %9331 = vrot.lane.b32.xlu0 %v9314, 115
    %v9332 = vpop.permute.xlu0 %9331
    %9333 = vrot.lane.b32.xlu0 %v9316, 115
    %v9334 = vpop.permute.xlu0 %9333
    %9335 = vrot.lane.b32.xlu0 %v9318, 115
    %v9336 = vpop.permute.xlu0 %9335
    %9337 = vrot.lane.b32.xlu0 %v9321, 115
    %v9338 = vpop.permute.xlu0 %9337
    %9339 = vrot.lane.b32.xlu0 %v9324, 115
    %v9340 = vpop.permute.xlu0 %9339
    %9341 = vrot.lane.b32.xlu0 %v9326, 115
    %v9342 = vpop.permute.xlu0 %9341
    %9343 = vrot.lane.b32.xlu0 %v9328, 115
    %v9344 = vpop.permute.xlu0 %9343
    %v9345 = vsel %vm2330, %v9330, %v9332
    %v9346 = vsel %vm2330, %v9334, %v9336
    %v9347 = vsel %vm2330, %v9338, %v9340
    %v9348 = vsel %vm2330, %v9342, %v9344
    %v9357 = vadd.f32 %v9275, %v9345
    %v9358 = vadd.f32 %v9276, %v9332
    %v9359 = vadd.f32 %v9277, %v9346
    %v9360 = vadd.f32 %v9278, %v9336
    %v9361 = vadd.f32 %v9279, %v9347
    %v9362 = vadd.f32 %v9280, %v9340
    %v9363 = vadd.f32 %v9281, %v9348
    %v9364 = vadd.f32 %v9282, %v9344
    %s9365 = sld [smem:[#allocation6 + $0x5d]]
    %v9366 = vstv %s9365
    %v9367 = vmul.f32 %v9366, %v510
    %v9368 = vmul.f32 %v9366, %v511
    %v9369 = vmul.f32 %v9366, %v325
    %v9370 = vmul.f32 %v9366, %v326
    %v9371 = vmul.f32 %v9366, %v512
    %v9372 = vmul.f32 %v9366, %v513
    %v9373 = vmul.f32 %v9366, %v514
    %v9374 = vmul.f32 %v9366, %v515
    %v9375 = vmul.f32 %v9366, %v331
    %v9376 = vmul.f32 %v9366, %v332
    %v9377 = vmul.f32 %v9366, %v516
    %v9378 = vmul.f32 %v9366, %v517
    %v9391 = vrot.slane %v9367, 3
    %v9392 = vrot.slane %v9369, 3
    %v9393 = vsel %vm543, %v9391, %v9392
    %v9394 = vrot.slane %v9368, 3
    %v9395 = vrot.slane %v9370, 3
    %v9396 = vsel %vm543, %v9394, %v9395
    %v9397 = vrot.slane %v9371, 3
    %v9398 = vsel %vm543, %v9392, %v9397
    %v9399 = vrot.slane %v9372, 3
    %v9400 = vsel %vm543, %v9395, %v9399
    %v9401 = vrot.slane %v9373, 3
    %v9402 = vrot.slane %v9375, 3
    %v9403 = vsel %vm543, %v9401, %v9402
    %v9404 = vrot.slane %v9374, 3
    %v9405 = vrot.slane %v9376, 3
    %v9406 = vsel %vm543, %v9404, %v9405
    %v9407 = vrot.slane %v9377, 3
    %v9408 = vsel %vm543, %v9402, %v9407
    %v9409 = vrot.slane %v9378, 3
    %v9410 = vsel %vm543, %v9405, %v9409
    %9411 = vrot.lane.b32.xlu0 %v9393, 115
    %v9412 = vpop.permute.xlu0 %9411
    %9413 = vrot.lane.b32.xlu0 %v9396, 115
    %v9414 = vpop.permute.xlu0 %9413
    %9415 = vrot.lane.b32.xlu0 %v9398, 115
    %v9416 = vpop.permute.xlu0 %9415
    %9417 = vrot.lane.b32.xlu0 %v9400, 115
    %v9418 = vpop.permute.xlu0 %9417
    %9419 = vrot.lane.b32.xlu0 %v9403, 115
    %v9420 = vpop.permute.xlu0 %9419
    %9421 = vrot.lane.b32.xlu0 %v9406, 115
    %v9422 = vpop.permute.xlu0 %9421
    %9423 = vrot.lane.b32.xlu0 %v9408, 115
    %v9424 = vpop.permute.xlu0 %9423
    %9425 = vrot.lane.b32.xlu0 %v9410, 115
    %v9426 = vpop.permute.xlu0 %9425
    %v9427 = vsel %vm2330, %v9412, %v9414
    %v9428 = vsel %vm2330, %v9416, %v9418
    %v9429 = vsel %vm2330, %v9420, %v9422
    %v9430 = vsel %vm2330, %v9424, %v9426
    %v9439 = vadd.f32 %v9357, %v9427
    %v9440 = vadd.f32 %v9358, %v9414
    %v9441 = vadd.f32 %v9359, %v9428
    %v9442 = vadd.f32 %v9360, %v9418
    %v9443 = vadd.f32 %v9361, %v9429
    %v9444 = vadd.f32 %v9362, %v9422
    %v9445 = vadd.f32 %v9363, %v9430
    %v9446 = vadd.f32 %v9364, %v9426
    %s9447 = sld [smem:[#allocation6 + $0x76]]
    %v9448 = vstv %s9447
    %v9449 = vmul.f32 %v9448, %v3054
    %v9450 = vmul.f32 %v9448, %v3055
    %v9451 = vmul.f32 %v9448, %v325
    %v9452 = vmul.f32 %v9448, %v326
    %v9453 = vmul.f32 %v9448, %v3056
    %v9454 = vmul.f32 %v9448, %v3057
    %v9455 = vmul.f32 %v9448, %v3058
    %v9456 = vmul.f32 %v9448, %v3059
    %v9457 = vmul.f32 %v9448, %v331
    %v9458 = vmul.f32 %v9448, %v332
    %v9459 = vmul.f32 %v9448, %v3060
    %v9460 = vmul.f32 %v9448, %v3061
    %v9473 = vrot.slane %v9449, 4
    %v9474 = vrot.slane %v9451, 4
    %v9475 = vsel %vm2713, %v9473, %v9474
    %v9476 = vrot.slane %v9450, 4
    %v9477 = vrot.slane %v9452, 4
    %v9478 = vsel %vm2713, %v9476, %v9477
    %v9479 = vrot.slane %v9453, 4
    %v9480 = vsel %vm2713, %v9474, %v9479
    %v9481 = vrot.slane %v9454, 4
    %v9482 = vsel %vm2713, %v9477, %v9481
    %v9483 = vrot.slane %v9455, 4
    %v9484 = vrot.slane %v9457, 4
    %v9485 = vsel %vm2713, %v9483, %v9484
    %v9486 = vrot.slane %v9456, 4
    %v9487 = vrot.slane %v9458, 4
    %v9488 = vsel %vm2713, %v9486, %v9487
    %v9489 = vrot.slane %v9459, 4
    %v9490 = vsel %vm2713, %v9484, %v9489
    %v9491 = vrot.slane %v9460, 4
    %v9492 = vsel %vm2713, %v9487, %v9491
    %9493 = vrot.lane.b32.xlu0 %v9475, 115
    %v9494 = vpop.permute.xlu0 %9493
    %9495 = vrot.lane.b32.xlu0 %v9478, 115
    %v9496 = vpop.permute.xlu0 %9495
    %9497 = vrot.lane.b32.xlu0 %v9480, 115
    %v9498 = vpop.permute.xlu0 %9497
    %9499 = vrot.lane.b32.xlu0 %v9482, 115
    %v9500 = vpop.permute.xlu0 %9499
    %9501 = vrot.lane.b32.xlu0 %v9485, 115
    %v9502 = vpop.permute.xlu0 %9501
    %9503 = vrot.lane.b32.xlu0 %v9488, 115
    %v9504 = vpop.permute.xlu0 %9503
    %9505 = vrot.lane.b32.xlu0 %v9490, 115
    %v9506 = vpop.permute.xlu0 %9505
    %9507 = vrot.lane.b32.xlu0 %v9492, 115
    %v9508 = vpop.permute.xlu0 %9507
    %v9509 = vsel %vm2330, %v9494, %v9496
    %v9510 = vsel %vm2330, %v9498, %v9500
    %v9511 = vsel %vm2330, %v9502, %v9504
    %v9512 = vsel %vm2330, %v9506, %v9508
    %v9521 = vadd.f32 %v9439, %v9509
    %v9522 = vadd.f32 %v9440, %v9496
    %v9523 = vadd.f32 %v9441, %v9510
    %v9524 = vadd.f32 %v9442, %v9500
    %v9525 = vadd.f32 %v9443, %v9511
    %v9526 = vadd.f32 %v9444, %v9504
    %v9527 = vadd.f32 %v9445, %v9512
    %v9528 = vadd.f32 %v9446, %v9508
    %s9529 = sld [smem:[#allocation6 + $0x13]]
    %v9530 = vstv %s9529
    %v9531 = vmul.f32 %v9530, %v2745
    %v9532 = vmul.f32 %v9530, %v2746
    %v9533 = vmul.f32 %v9530, %v2747
    %v9534 = vmul.f32 %v9530, %v2748
    %v9535 = vmul.f32 %v9530, %v2749
    %v9536 = vmul.f32 %v9530, %v2750
    %v9537 = vmul.f32 %v9530, %v2751
    %v9538 = vmul.f32 %v9530, %v2752
    %9547 = vrot.lane.b32.xlu0 %v9531, 114
    %v9548 = vpop.permute.xlu0 %9547
    %9549 = vrot.lane.b32.xlu0 %v9532, 114
    %v9550 = vpop.permute.xlu0 %9549
    %9551 = vrot.lane.b32.xlu0 %v9533, 114
    %v9552 = vpop.permute.xlu0 %9551
    %9553 = vrot.lane.b32.xlu0 %v9534, 114
    %v9554 = vpop.permute.xlu0 %9553
    %9555 = vrot.lane.b32.xlu0 %v9535, 114
    %v9556 = vpop.permute.xlu0 %9555
    %9557 = vrot.lane.b32.xlu0 %v9536, 114
    %v9558 = vpop.permute.xlu0 %9557
    %9559 = vrot.lane.b32.xlu0 %v9537, 114
    %v9560 = vpop.permute.xlu0 %9559
    %9561 = vrot.lane.b32.xlu0 %v9538, 114
    %v9562 = vpop.permute.xlu0 %9561
    %vm9563 = vcmask 932864
    %v9564 = vsel %vm9563, %v9548, %v9550
    %v9565 = vsel %vm9563, %v9552, %v9554
    %v9566 = vsel %vm9563, %v9556, %v9558
    %v9567 = vsel %vm9563, %v9560, %v9562
    %v9576 = vadd.f32 %v9521, %v9564
    %v9577 = vadd.f32 %v9522, %v9550
    %v9578 = vadd.f32 %v9523, %v9565
    %v9579 = vadd.f32 %v9524, %v9554
    %v9580 = vadd.f32 %v9525, %v9566
    %v9581 = vadd.f32 %v9526, %v9558
    %v9582 = vadd.f32 %v9527, %v9567
    %v9583 = vadd.f32 %v9528, %v9562
    %s9584 = sld [smem:[#allocation6 + $0x2c]]
    %v9585 = vstv %s9584
    %v9586 = vmul.f32 %v9585, %v323
    %v9587 = vmul.f32 %v9585, %v324
    %v9588 = vmul.f32 %v9585, %v325
    %v9589 = vmul.f32 %v9585, %v326
    %v9590 = vmul.f32 %v9585, %v327
    %v9591 = vmul.f32 %v9585, %v328
    %v9592 = vmul.f32 %v9585, %v329
    %v9593 = vmul.f32 %v9585, %v330
    %v9594 = vmul.f32 %v9585, %v331
    %v9595 = vmul.f32 %v9585, %v332
    %v9596 = vmul.f32 %v9585, %v333
    %v9597 = vmul.f32 %v9585, %v334
    %v9610 = vrot.slane %v9586, 1
    %v9611 = vrot.slane %v9588, 1
    %v9612 = vsel %vm360, %v9610, %v9611
    %v9613 = vrot.slane %v9587, 1
    %v9614 = vrot.slane %v9589, 1
    %v9615 = vsel %vm360, %v9613, %v9614
    %v9616 = vrot.slane %v9590, 1
    %v9617 = vsel %vm360, %v9611, %v9616
    %v9618 = vrot.slane %v9591, 1
    %v9619 = vsel %vm360, %v9614, %v9618
    %v9620 = vrot.slane %v9592, 1
    %v9621 = vrot.slane %v9594, 1
    %v9622 = vsel %vm360, %v9620, %v9621
    %v9623 = vrot.slane %v9593, 1
    %v9624 = vrot.slane %v9595, 1
    %v9625 = vsel %vm360, %v9623, %v9624
    %v9626 = vrot.slane %v9596, 1
    %v9627 = vsel %vm360, %v9621, %v9626
    %v9628 = vrot.slane %v9597, 1
    %v9629 = vsel %vm360, %v9624, %v9628
    %9630 = vrot.lane.b32.xlu0 %v9612, 114
    %v9631 = vpop.permute.xlu0 %9630
    %9632 = vrot.lane.b32.xlu0 %v9615, 114
    %v9633 = vpop.permute.xlu0 %9632
    %9634 = vrot.lane.b32.xlu0 %v9617, 114
    %v9635 = vpop.permute.xlu0 %9634
    %9636 = vrot.lane.b32.xlu0 %v9619, 114
    %v9637 = vpop.permute.xlu0 %9636
    %9638 = vrot.lane.b32.xlu0 %v9622, 114
    %v9639 = vpop.permute.xlu0 %9638
    %9640 = vrot.lane.b32.xlu0 %v9625, 114
    %v9641 = vpop.permute.xlu0 %9640
    %9642 = vrot.lane.b32.xlu0 %v9627, 114
    %v9643 = vpop.permute.xlu0 %9642
    %9644 = vrot.lane.b32.xlu0 %v9629, 114
    %v9645 = vpop.permute.xlu0 %9644
    %v9646 = vsel %vm9563, %v9631, %v9633
    %v9647 = vsel %vm9563, %v9635, %v9637
    %v9648 = vsel %vm9563, %v9639, %v9641
    %v9649 = vsel %vm9563, %v9643, %v9645
    %v9658 = vadd.f32 %v9576, %v9646
    %v9659 = vadd.f32 %v9577, %v9633
    %v9660 = vadd.f32 %v9578, %v9647
    %v9661 = vadd.f32 %v9579, %v9637
    %v9662 = vadd.f32 %v9580, %v9648
    %v9663 = vadd.f32 %v9581, %v9641
    %v9664 = vadd.f32 %v9582, %v9649
    %v9665 = vadd.f32 %v9583, %v9645
    %s9666 = sld [smem:[#allocation6 + $0x45]]
    %v9667 = vstv %s9666
    %v9668 = vmul.f32 %v9667, %v419
    %v9669 = vmul.f32 %v9667, %v420
    %v9670 = vmul.f32 %v9667, %v325
    %v9671 = vmul.f32 %v9667, %v326
    %v9672 = vmul.f32 %v9667, %v421
    %v9673 = vmul.f32 %v9667, %v422
    %v9674 = vmul.f32 %v9667, %v423
    %v9675 = vmul.f32 %v9667, %v424
    %v9676 = vmul.f32 %v9667, %v331
    %v9677 = vmul.f32 %v9667, %v332
    %v9678 = vmul.f32 %v9667, %v425
    %v9679 = vmul.f32 %v9667, %v426
    %v9692 = vrot.slane %v9668, 2
    %v9693 = vrot.slane %v9670, 2
    %v9694 = vsel %vm452, %v9692, %v9693
    %v9695 = vrot.slane %v9669, 2
    %v9696 = vrot.slane %v9671, 2
    %v9697 = vsel %vm452, %v9695, %v9696
    %v9698 = vrot.slane %v9672, 2
    %v9699 = vsel %vm452, %v9693, %v9698
    %v9700 = vrot.slane %v9673, 2
    %v9701 = vsel %vm452, %v9696, %v9700
    %v9702 = vrot.slane %v9674, 2
    %v9703 = vrot.slane %v9676, 2
    %v9704 = vsel %vm452, %v9702, %v9703
    %v9705 = vrot.slane %v9675, 2
    %v9706 = vrot.slane %v9677, 2
    %v9707 = vsel %vm452, %v9705, %v9706
    %v9708 = vrot.slane %v9678, 2
    %v9709 = vsel %vm452, %v9703, %v9708
    %v9710 = vrot.slane %v9679, 2
    %v9711 = vsel %vm452, %v9706, %v9710
    %9712 = vrot.lane.b32.xlu0 %v9694, 114
    %v9713 = vpop.permute.xlu0 %9712
    %9714 = vrot.lane.b32.xlu0 %v9697, 114
    %v9715 = vpop.permute.xlu0 %9714
    %9716 = vrot.lane.b32.xlu0 %v9699, 114
    %v9717 = vpop.permute.xlu0 %9716
    %9718 = vrot.lane.b32.xlu0 %v9701, 114
    %v9719 = vpop.permute.xlu0 %9718
    %9720 = vrot.lane.b32.xlu0 %v9704, 114
    %v9721 = vpop.permute.xlu0 %9720
    %9722 = vrot.lane.b32.xlu0 %v9707, 114
    %v9723 = vpop.permute.xlu0 %9722
    %9724 = vrot.lane.b32.xlu0 %v9709, 114
    %v9725 = vpop.permute.xlu0 %9724
    %9726 = vrot.lane.b32.xlu0 %v9711, 114
    %v9727 = vpop.permute.xlu0 %9726
    %v9728 = vsel %vm9563, %v9713, %v9715
    %v9729 = vsel %vm9563, %v9717, %v9719
    %v9730 = vsel %vm9563, %v9721, %v9723
    %v9731 = vsel %vm9563, %v9725, %v9727
    %v9740 = vadd.f32 %v9658, %v9728
    %v9741 = vadd.f32 %v9659, %v9715
    %v9742 = vadd.f32 %v9660, %v9729
    %v9743 = vadd.f32 %v9661, %v9719
    %v9744 = vadd.f32 %v9662, %v9730
    %v9745 = vadd.f32 %v9663, %v9723
    %v9746 = vadd.f32 %v9664, %v9731
    %v9747 = vadd.f32 %v9665, %v9727
    %s9748 = sld [smem:[#allocation6 + $0x5e]]
    %v9749 = vstv %s9748
    %v9750 = vmul.f32 %v9749, %v510
    %v9751 = vmul.f32 %v9749, %v511
    %v9752 = vmul.f32 %v9749, %v325
    %v9753 = vmul.f32 %v9749, %v326
    %v9754 = vmul.f32 %v9749, %v512
    %v9755 = vmul.f32 %v9749, %v513
    %v9756 = vmul.f32 %v9749, %v514
    %v9757 = vmul.f32 %v9749, %v515
    %v9758 = vmul.f32 %v9749, %v331
    %v9759 = vmul.f32 %v9749, %v332
    %v9760 = vmul.f32 %v9749, %v516
    %v9761 = vmul.f32 %v9749, %v517
    %v9774 = vrot.slane %v9750, 3
    %v9775 = vrot.slane %v9752, 3
    %v9776 = vsel %vm543, %v9774, %v9775
    %v9777 = vrot.slane %v9751, 3
    %v9778 = vrot.slane %v9753, 3
    %v9779 = vsel %vm543, %v9777, %v9778
    %v9780 = vrot.slane %v9754, 3
    %v9781 = vsel %vm543, %v9775, %v9780
    %v9782 = vrot.slane %v9755, 3
    %v9783 = vsel %vm543, %v9778, %v9782
    %v9784 = vrot.slane %v9756, 3
    %v9785 = vrot.slane %v9758, 3
    %v9786 = vsel %vm543, %v9784, %v9785
    %v9787 = vrot.slane %v9757, 3
    %v9788 = vrot.slane %v9759, 3
    %v9789 = vsel %vm543, %v9787, %v9788
    %v9790 = vrot.slane %v9760, 3
    %v9791 = vsel %vm543, %v9785, %v9790
    %v9792 = vrot.slane %v9761, 3
    %v9793 = vsel %vm543, %v9788, %v9792
    %9794 = vrot.lane.b32.xlu0 %v9776, 114
    %v9795 = vpop.permute.xlu0 %9794
    %9796 = vrot.lane.b32.xlu0 %v9779, 114
    %v9797 = vpop.permute.xlu0 %9796
    %9798 = vrot.lane.b32.xlu0 %v9781, 114
    %v9799 = vpop.permute.xlu0 %9798
    %9800 = vrot.lane.b32.xlu0 %v9783, 114
    %v9801 = vpop.permute.xlu0 %9800
    %9802 = vrot.lane.b32.xlu0 %v9786, 114
    %v9803 = vpop.permute.xlu0 %9802
    %9804 = vrot.lane.b32.xlu0 %v9789, 114
    %v9805 = vpop.permute.xlu0 %9804
    %9806 = vrot.lane.b32.xlu0 %v9791, 114
    %v9807 = vpop.permute.xlu0 %9806
    %9808 = vrot.lane.b32.xlu0 %v9793, 114
    %v9809 = vpop.permute.xlu0 %9808
    %v9810 = vsel %vm9563, %v9795, %v9797
    %v9811 = vsel %vm9563, %v9799, %v9801
    %v9812 = vsel %vm9563, %v9803, %v9805
    %v9813 = vsel %vm9563, %v9807, %v9809
    %v9822 = vadd.f32 %v9740, %v9810
    %v9823 = vadd.f32 %v9741, %v9797
    %v9824 = vadd.f32 %v9742, %v9811
    %v9825 = vadd.f32 %v9743, %v9801
    %v9826 = vadd.f32 %v9744, %v9812
    %v9827 = vadd.f32 %v9745, %v9805
    %v9828 = vadd.f32 %v9746, %v9813
    %v9829 = vadd.f32 %v9747, %v9809
    %s9830 = sld [smem:[#allocation6 + $0x77]]
    %v9831 = vstv %s9830
    %v9832 = vmul.f32 %v9831, %v3054
    %v9833 = vmul.f32 %v9831, %v3055
    %v9834 = vmul.f32 %v9831, %v325
    %v9835 = vmul.f32 %v9831, %v326
    %v9836 = vmul.f32 %v9831, %v3056
    %v9837 = vmul.f32 %v9831, %v3057
    %v9838 = vmul.f32 %v9831, %v3058
    %v9839 = vmul.f32 %v9831, %v3059
    %v9840 = vmul.f32 %v9831, %v331
    %v9841 = vmul.f32 %v9831, %v332
    %v9842 = vmul.f32 %v9831, %v3060
    %v9843 = vmul.f32 %v9831, %v3061
    %v9856 = vrot.slane %v9832, 4
    %v9857 = vrot.slane %v9834, 4
    %v9858 = vsel %vm2713, %v9856, %v9857
    %v9859 = vrot.slane %v9833, 4
    %v9860 = vrot.slane %v9835, 4
    %v9861 = vsel %vm2713, %v9859, %v9860
    %v9862 = vrot.slane %v9836, 4
    %v9863 = vsel %vm2713, %v9857, %v9862
    %v9864 = vrot.slane %v9837, 4
    %v9865 = vsel %vm2713, %v9860, %v9864
    %v9866 = vrot.slane %v9838, 4
    %v9867 = vrot.slane %v9840, 4
    %v9868 = vsel %vm2713, %v9866, %v9867
    %v9869 = vrot.slane %v9839, 4
    %v9870 = vrot.slane %v9841, 4
    %v9871 = vsel %vm2713, %v9869, %v9870
    %v9872 = vrot.slane %v9842, 4
    %v9873 = vsel %vm2713, %v9867, %v9872
    %v9874 = vrot.slane %v9843, 4
    %v9875 = vsel %vm2713, %v9870, %v9874
    %9876 = vrot.lane.b32.xlu0 %v9858, 114
    %v9877 = vpop.permute.xlu0 %9876
    %9878 = vrot.lane.b32.xlu0 %v9861, 114
    %v9879 = vpop.permute.xlu0 %9878
    %9880 = vrot.lane.b32.xlu0 %v9863, 114
    %v9881 = vpop.permute.xlu0 %9880
    %9882 = vrot.lane.b32.xlu0 %v9865, 114
    %v9883 = vpop.permute.xlu0 %9882
    %9884 = vrot.lane.b32.xlu0 %v9868, 114
    %v9885 = vpop.permute.xlu0 %9884
    %9886 = vrot.lane.b32.xlu0 %v9871, 114
    %v9887 = vpop.permute.xlu0 %9886
    %9888 = vrot.lane.b32.xlu0 %v9873, 114
    %v9889 = vpop.permute.xlu0 %9888
    %9890 = vrot.lane.b32.xlu0 %v9875, 114
    %v9891 = vpop.permute.xlu0 %9890
    %v9892 = vsel %vm9563, %v9877, %v9879
    %v9893 = vsel %vm9563, %v9881, %v9883
    %v9894 = vsel %vm9563, %v9885, %v9887
    %v9895 = vsel %vm9563, %v9889, %v9891
    %v9904 = vadd.f32 %v9822, %v9892
    %v9905 = vadd.f32 %v9823, %v9879
    %v9906 = vadd.f32 %v9824, %v9893
    %v9907 = vadd.f32 %v9825, %v9883
    %v9908 = vadd.f32 %v9826, %v9894
    %v9909 = vadd.f32 %v9827, %v9887
    %v9910 = vadd.f32 %v9828, %v9895
    %v9911 = vadd.f32 %v9829, %v9891
    %s9912 = sld [smem:[#allocation6 + $0x14]]
    %v9913 = vstv %s9912
    %v9914 = vmul.f32 %v9913, %v2745
    %v9915 = vmul.f32 %v9913, %v2746
    %v9916 = vmul.f32 %v9913, %v2747
    %v9917 = vmul.f32 %v9913, %v2748
    %v9918 = vmul.f32 %v9913, %v2749
    %v9919 = vmul.f32 %v9913, %v2750
    %v9920 = vmul.f32 %v9913, %v2751
    %v9921 = vmul.f32 %v9913, %v2752
    %9930 = vrot.lane.b32.xlu0 %v9914, 106
    %v9931 = vpop.permute.xlu0 %9930
    %9932 = vrot.lane.b32.xlu0 %v9915, 106
    %v9933 = vpop.permute.xlu0 %9932
    %9934 = vrot.lane.b32.xlu0 %v9916, 106
    %v9935 = vpop.permute.xlu0 %9934
    %9936 = vrot.lane.b32.xlu0 %v9917, 106
    %v9937 = vpop.permute.xlu0 %9936
    %9938 = vrot.lane.b32.xlu0 %v9918, 106
    %v9939 = vpop.permute.xlu0 %9938
    %9940 = vrot.lane.b32.xlu0 %v9919, 106
    %v9941 = vpop.permute.xlu0 %9940
    %9942 = vrot.lane.b32.xlu0 %v9920, 106
    %v9943 = vpop.permute.xlu0 %9942
    %9944 = vrot.lane.b32.xlu0 %v9921, 106
    %v9945 = vpop.permute.xlu0 %9944
    %vm9946 = vcmask 867328
    %v9947 = vsel %vm9946, %v9931, %v9933
    %v9948 = vsel %vm9946, %v9935, %v9937
    %v9949 = vsel %vm9946, %v9939, %v9941
    %v9950 = vsel %vm9946, %v9943, %v9945
    %v9959 = vadd.f32 %v9904, %v9947
    %v9960 = vadd.f32 %v9905, %v9933
    %v9961 = vadd.f32 %v9906, %v9948
    %v9962 = vadd.f32 %v9907, %v9937
    %v9963 = vadd.f32 %v9908, %v9949
    %v9964 = vadd.f32 %v9909, %v9941
    %v9965 = vadd.f32 %v9910, %v9950
    %v9966 = vadd.f32 %v9911, %v9945
    %s9967 = sld [smem:[#allocation6 + $0x2d]]
    %v9968 = vstv %s9967
    %v9969 = vmul.f32 %v9968, %v323
    %v9970 = vmul.f32 %v9968, %v324
    %v9971 = vmul.f32 %v9968, %v325
    %v9972 = vmul.f32 %v9968, %v326
    %v9973 = vmul.f32 %v9968, %v327
    %v9974 = vmul.f32 %v9968, %v328
    %v9975 = vmul.f32 %v9968, %v329
    %v9976 = vmul.f32 %v9968, %v330
    %v9977 = vmul.f32 %v9968, %v331
    %v9978 = vmul.f32 %v9968, %v332
    %v9979 = vmul.f32 %v9968, %v333
    %v9980 = vmul.f32 %v9968, %v334
    %v9993 = vrot.slane %v9969, 1
    %v9994 = vrot.slane %v9971, 1
    %v9995 = vsel %vm360, %v9993, %v9994
    %v9996 = vrot.slane %v9970, 1
    %v9997 = vrot.slane %v9972, 1
    %v9998 = vsel %vm360, %v9996, %v9997
    %v9999 = vrot.slane %v9973, 1
    %v10000 = vsel %vm360, %v9994, %v9999
    %v10001 = vrot.slane %v9974, 1
    %v10002 = vsel %vm360, %v9997, %v10001
    %v10003 = vrot.slane %v9975, 1
    %v10004 = vrot.slane %v9977, 1
    %v10005 = vsel %vm360, %v10003, %v10004
    %v10006 = vrot.slane %v9976, 1
    %v10007 = vrot.slane %v9978, 1
    %v10008 = vsel %vm360, %v10006, %v10007
    %v10009 = vrot.slane %v9979, 1
    %v10010 = vsel %vm360, %v10004, %v10009
    %v10011 = vrot.slane %v9980, 1
    %v10012 = vsel %vm360, %v10007, %v10011
    %10013 = vrot.lane.b32.xlu0 %v9995, 106
    %v10014 = vpop.permute.xlu0 %10013
    %10015 = vrot.lane.b32.xlu0 %v9998, 106
    %v10016 = vpop.permute.xlu0 %10015
    %10017 = vrot.lane.b32.xlu0 %v10000, 106
    %v10018 = vpop.permute.xlu0 %10017
    %10019 = vrot.lane.b32.xlu0 %v10002, 106
    %v10020 = vpop.permute.xlu0 %10019
    %10021 = vrot.lane.b32.xlu0 %v10005, 106
    %v10022 = vpop.permute.xlu0 %10021
    %10023 = vrot.lane.b32.xlu0 %v10008, 106
    %v10024 = vpop.permute.xlu0 %10023
    %10025 = vrot.lane.b32.xlu0 %v10010, 106
    %v10026 = vpop.permute.xlu0 %10025
    %10027 = vrot.lane.b32.xlu0 %v10012, 106
    %v10028 = vpop.permute.xlu0 %10027
    %v10029 = vsel %vm9946, %v10014, %v10016
    %v10030 = vsel %vm9946, %v10018, %v10020
    %v10031 = vsel %vm9946, %v10022, %v10024
    %v10032 = vsel %vm9946, %v10026, %v10028
    %v10041 = vadd.f32 %v9959, %v10029
    %v10042 = vadd.f32 %v9960, %v10016
    %v10043 = vadd.f32 %v9961, %v10030
    %v10044 = vadd.f32 %v9962, %v10020
    %v10045 = vadd.f32 %v9963, %v10031
    %v10046 = vadd.f32 %v9964, %v10024
    %v10047 = vadd.f32 %v9965, %v10032
    %v10048 = vadd.f32 %v9966, %v10028
    %s10049 = sld [smem:[#allocation6 + $0x46]]
    %v10050 = vstv %s10049
    %v10051 = vmul.f32 %v10050, %v419
    %v10052 = vmul.f32 %v10050, %v420
    %v10053 = vmul.f32 %v10050, %v325
    %v10054 = vmul.f32 %v10050, %v326
    %v10055 = vmul.f32 %v10050, %v421
    %v10056 = vmul.f32 %v10050, %v422
    %v10057 = vmul.f32 %v10050, %v423
    %v10058 = vmul.f32 %v10050, %v424
    %v10059 = vmul.f32 %v10050, %v331
    %v10060 = vmul.f32 %v10050, %v332
    %v10061 = vmul.f32 %v10050, %v425
    %v10062 = vmul.f32 %v10050, %v426
    %v10075 = vrot.slane %v10051, 2
    %v10076 = vrot.slane %v10053, 2
    %v10077 = vsel %vm452, %v10075, %v10076
    %v10078 = vrot.slane %v10052, 2
    %v10079 = vrot.slane %v10054, 2
    %v10080 = vsel %vm452, %v10078, %v10079
    %v10081 = vrot.slane %v10055, 2
    %v10082 = vsel %vm452, %v10076, %v10081
    %v10083 = vrot.slane %v10056, 2
    %v10084 = vsel %vm452, %v10079, %v10083
    %v10085 = vrot.slane %v10057, 2
    %v10086 = vrot.slane %v10059, 2
    %v10087 = vsel %vm452, %v10085, %v10086
    %v10088 = vrot.slane %v10058, 2
    %v10089 = vrot.slane %v10060, 2
    %v10090 = vsel %vm452, %v10088, %v10089
    %v10091 = vrot.slane %v10061, 2
    %v10092 = vsel %vm452, %v10086, %v10091
    %v10093 = vrot.slane %v10062, 2
    %v10094 = vsel %vm452, %v10089, %v10093
    %10095 = vrot.lane.b32.xlu0 %v10077, 106
    %v10096 = vpop.permute.xlu0 %10095
    %10097 = vrot.lane.b32.xlu0 %v10080, 106
    %v10098 = vpop.permute.xlu0 %10097
    %10099 = vrot.lane.b32.xlu0 %v10082, 106
    %v10100 = vpop.permute.xlu0 %10099
    %10101 = vrot.lane.b32.xlu0 %v10084, 106
    %v10102 = vpop.permute.xlu0 %10101
    %10103 = vrot.lane.b32.xlu0 %v10087, 106
    %v10104 = vpop.permute.xlu0 %10103
    %10105 = vrot.lane.b32.xlu0 %v10090, 106
    %v10106 = vpop.permute.xlu0 %10105
    %10107 = vrot.lane.b32.xlu0 %v10092, 106
    %v10108 = vpop.permute.xlu0 %10107
    %10109 = vrot.lane.b32.xlu0 %v10094, 106
    %v10110 = vpop.permute.xlu0 %10109
    %v10111 = vsel %vm9946, %v10096, %v10098
    %v10112 = vsel %vm9946, %v10100, %v10102
    %v10113 = vsel %vm9946, %v10104, %v10106
    %v10114 = vsel %vm9946, %v10108, %v10110
    %v10123 = vadd.f32 %v10041, %v10111
    %v10124 = vadd.f32 %v10042, %v10098
    %v10125 = vadd.f32 %v10043, %v10112
    %v10126 = vadd.f32 %v10044, %v10102
    %v10127 = vadd.f32 %v10045, %v10113
    %v10128 = vadd.f32 %v10046, %v10106
    %v10129 = vadd.f32 %v10047, %v10114
    %v10130 = vadd.f32 %v10048, %v10110
    %s10131 = sld [smem:[#allocation6 + $0x5f]]
    %v10132 = vstv %s10131
    %v10133 = vmul.f32 %v10132, %v510
    %v10134 = vmul.f32 %v10132, %v511
    %v10135 = vmul.f32 %v10132, %v325
    %v10136 = vmul.f32 %v10132, %v326
    %v10137 = vmul.f32 %v10132, %v512
    %v10138 = vmul.f32 %v10132, %v513
    %v10139 = vmul.f32 %v10132, %v514
    %v10140 = vmul.f32 %v10132, %v515
    %v10141 = vmul.f32 %v10132, %v331
    %v10142 = vmul.f32 %v10132, %v332
    %v10143 = vmul.f32 %v10132, %v516
    %v10144 = vmul.f32 %v10132, %v517
    %v10157 = vrot.slane %v10133, 3
    %v10158 = vrot.slane %v10135, 3
    %v10159 = vsel %vm543, %v10157, %v10158
    %v10160 = vrot.slane %v10134, 3
    %v10161 = vrot.slane %v10136, 3
    %v10162 = vsel %vm543, %v10160, %v10161
    %v10163 = vrot.slane %v10137, 3
    %v10164 = vsel %vm543, %v10158, %v10163
    %v10165 = vrot.slane %v10138, 3
    %v10166 = vsel %vm543, %v10161, %v10165
    %v10167 = vrot.slane %v10139, 3
    %v10168 = vrot.slane %v10141, 3
    %v10169 = vsel %vm543, %v10167, %v10168
    %v10170 = vrot.slane %v10140, 3
    %v10171 = vrot.slane %v10142, 3
    %v10172 = vsel %vm543, %v10170, %v10171
    %v10173 = vrot.slane %v10143, 3
    %v10174 = vsel %vm543, %v10168, %v10173
    %v10175 = vrot.slane %v10144, 3
    %v10176 = vsel %vm543, %v10171, %v10175
    %10177 = vrot.lane.b32.xlu0 %v10159, 106
    %v10178 = vpop.permute.xlu0 %10177
    %10179 = vrot.lane.b32.xlu0 %v10162, 106
    %v10180 = vpop.permute.xlu0 %10179
    %10181 = vrot.lane.b32.xlu0 %v10164, 106
    %v10182 = vpop.permute.xlu0 %10181
    %10183 = vrot.lane.b32.xlu0 %v10166, 106
    %v10184 = vpop.permute.xlu0 %10183
    %10185 = vrot.lane.b32.xlu0 %v10169, 106
    %v10186 = vpop.permute.xlu0 %10185
    %10187 = vrot.lane.b32.xlu0 %v10172, 106
    %v10188 = vpop.permute.xlu0 %10187
    %10189 = vrot.lane.b32.xlu0 %v10174, 106
    %v10190 = vpop.permute.xlu0 %10189
    %10191 = vrot.lane.b32.xlu0 %v10176, 106
    %v10192 = vpop.permute.xlu0 %10191
    %v10193 = vsel %vm9946, %v10178, %v10180
    %v10194 = vsel %vm9946, %v10182, %v10184
    %v10195 = vsel %vm9946, %v10186, %v10188
    %v10196 = vsel %vm9946, %v10190, %v10192
    %v10205 = vadd.f32 %v10123, %v10193
    %v10206 = vadd.f32 %v10124, %v10180
    %v10207 = vadd.f32 %v10125, %v10194
    %v10208 = vadd.f32 %v10126, %v10184
    %v10209 = vadd.f32 %v10127, %v10195
    %v10210 = vadd.f32 %v10128, %v10188
    %v10211 = vadd.f32 %v10129, %v10196
    %v10212 = vadd.f32 %v10130, %v10192
    %s10213 = sld [smem:[#allocation6 + $0x78]]
    %v10214 = vstv %s10213
    %v10215 = vmul.f32 %v10214, %v3054
    %v10216 = vmul.f32 %v10214, %v3055
    %v10217 = vmul.f32 %v10214, %v325
    %v10218 = vmul.f32 %v10214, %v326
    %v10219 = vmul.f32 %v10214, %v3056
    %v10220 = vmul.f32 %v10214, %v3057
    %v10221 = vmul.f32 %v10214, %v3058
    %v10222 = vmul.f32 %v10214, %v3059
    %v10223 = vmul.f32 %v10214, %v331
    %v10224 = vmul.f32 %v10214, %v332
    %v10225 = vmul.f32 %v10214, %v3060
    %v10226 = vmul.f32 %v10214, %v3061
    %v10239 = vrot.slane %v10215, 4
    %v10240 = vrot.slane %v10217, 4
    %v10241 = vsel %vm2713, %v10239, %v10240
    %v10242 = vrot.slane %v10216, 4
    %v10243 = vrot.slane %v10218, 4
    %v10244 = vsel %vm2713, %v10242, %v10243
    %v10245 = vrot.slane %v10219, 4
    %v10246 = vsel %vm2713, %v10240, %v10245
    %v10247 = vrot.slane %v10220, 4
    %v10248 = vsel %vm2713, %v10243, %v10247
    %v10249 = vrot.slane %v10221, 4
    %v10250 = vrot.slane %v10223, 4
    %v10251 = vsel %vm2713, %v10249, %v10250
    %v10252 = vrot.slane %v10222, 4
    %v10253 = vrot.slane %v10224, 4
    %v10254 = vsel %vm2713, %v10252, %v10253
    %v10255 = vrot.slane %v10225, 4
    %v10256 = vsel %vm2713, %v10250, %v10255
    %v10257 = vrot.slane %v10226, 4
    %v10258 = vsel %vm2713, %v10253, %v10257
    %10259 = vrot.lane.b32.xlu0 %v10241, 106
    %v10260 = vpop.permute.xlu0 %10259
    %10261 = vrot.lane.b32.xlu0 %v10244, 106
    %v10262 = vpop.permute.xlu0 %10261
    %10263 = vrot.lane.b32.xlu0 %v10246, 106
    %v10264 = vpop.permute.xlu0 %10263
    %10265 = vrot.lane.b32.xlu0 %v10248, 106
    %v10266 = vpop.permute.xlu0 %10265
    %10267 = vrot.lane.b32.xlu0 %v10251, 106
    %v10268 = vpop.permute.xlu0 %10267
    %10269 = vrot.lane.b32.xlu0 %v10254, 106
    %v10270 = vpop.permute.xlu0 %10269
    %10271 = vrot.lane.b32.xlu0 %v10256, 106
    %v10272 = vpop.permute.xlu0 %10271
    %10273 = vrot.lane.b32.xlu0 %v10258, 106
    %v10274 = vpop.permute.xlu0 %10273
    %v10275 = vsel %vm9946, %v10260, %v10262
    %v10276 = vsel %vm9946, %v10264, %v10266
    %v10277 = vsel %vm9946, %v10268, %v10270
    %v10278 = vsel %vm9946, %v10272, %v10274
    %v10287 = vadd.f32 %v10205, %v10275
    %v10288 = vadd.f32 %v10206, %v10262
    %v10289 = vadd.f32 %v10207, %v10276
    %v10290 = vadd.f32 %v10208, %v10266
    %v10291 = vadd.f32 %v10209, %v10277
    %v10292 = vadd.f32 %v10210, %v10270
    %v10293 = vadd.f32 %v10211, %v10278
    %v10294 = vadd.f32 %v10212, %v10274
    %s10295 = sld [smem:[#allocation6 + $0x15]]
    %v10296 = vstv %s10295
    %v10297 = vmul.f32 %v10296, %v2745
    %v10298 = vmul.f32 %v10296, %v2746
    %v10299 = vmul.f32 %v10296, %v2747
    %v10300 = vmul.f32 %v10296, %v2748
    %v10301 = vmul.f32 %v10296, %v2749
    %v10302 = vmul.f32 %v10296, %v2750
    %v10303 = vmul.f32 %v10296, %v2751
    %v10304 = vmul.f32 %v10296, %v2752
    %10313 = vrot.lane.b32.xlu0 %v10297, 105
    %v10314 = vpop.permute.xlu0 %10313
    %10315 = vrot.lane.b32.xlu0 %v10298, 105
    %v10316 = vpop.permute.xlu0 %10315
    %10317 = vrot.lane.b32.xlu0 %v10299, 105
    %v10318 = vpop.permute.xlu0 %10317
    %10319 = vrot.lane.b32.xlu0 %v10300, 105
    %v10320 = vpop.permute.xlu0 %10319
    %10321 = vrot.lane.b32.xlu0 %v10301, 105
    %v10322 = vpop.permute.xlu0 %10321
    %10323 = vrot.lane.b32.xlu0 %v10302, 105
    %v10324 = vpop.permute.xlu0 %10323
    %10325 = vrot.lane.b32.xlu0 %v10303, 105
    %v10326 = vpop.permute.xlu0 %10325
    %10327 = vrot.lane.b32.xlu0 %v10304, 105
    %v10328 = vpop.permute.xlu0 %10327
    %vm10329 = vcmask 859136
    %v10330 = vsel %vm10329, %v10314, %v10316
    %v10331 = vsel %vm10329, %v10318, %v10320
    %v10332 = vsel %vm10329, %v10322, %v10324
    %v10333 = vsel %vm10329, %v10326, %v10328
    %v10342 = vadd.f32 %v10287, %v10330
    %v10343 = vadd.f32 %v10288, %v10316
    %v10344 = vadd.f32 %v10289, %v10331
    %v10345 = vadd.f32 %v10290, %v10320
    %v10346 = vadd.f32 %v10291, %v10332
    %v10347 = vadd.f32 %v10292, %v10324
    %v10348 = vadd.f32 %v10293, %v10333
    %v10349 = vadd.f32 %v10294, %v10328
    %s10350 = sld [smem:[#allocation6 + $0x2e]]
    %v10351 = vstv %s10350
    %v10352 = vmul.f32 %v10351, %v323
    %v10353 = vmul.f32 %v10351, %v324
    %v10354 = vmul.f32 %v10351, %v325
    %v10355 = vmul.f32 %v10351, %v326
    %v10356 = vmul.f32 %v10351, %v327
    %v10357 = vmul.f32 %v10351, %v328
    %v10358 = vmul.f32 %v10351, %v329
    %v10359 = vmul.f32 %v10351, %v330
    %v10360 = vmul.f32 %v10351, %v331
    %v10361 = vmul.f32 %v10351, %v332
    %v10362 = vmul.f32 %v10351, %v333
    %v10363 = vmul.f32 %v10351, %v334
    %v10376 = vrot.slane %v10352, 1
    %v10377 = vrot.slane %v10354, 1
    %v10378 = vsel %vm360, %v10376, %v10377
    %v10379 = vrot.slane %v10353, 1
    %v10380 = vrot.slane %v10355, 1
    %v10381 = vsel %vm360, %v10379, %v10380
    %v10382 = vrot.slane %v10356, 1
    %v10383 = vsel %vm360, %v10377, %v10382
    %v10384 = vrot.slane %v10357, 1
    %v10385 = vsel %vm360, %v10380, %v10384
    %v10386 = vrot.slane %v10358, 1
    %v10387 = vrot.slane %v10360, 1
    %v10388 = vsel %vm360, %v10386, %v10387
    %v10389 = vrot.slane %v10359, 1
    %v10390 = vrot.slane %v10361, 1
    %v10391 = vsel %vm360, %v10389, %v10390
    %v10392 = vrot.slane %v10362, 1
    %v10393 = vsel %vm360, %v10387, %v10392
    %v10394 = vrot.slane %v10363, 1
    %v10395 = vsel %vm360, %v10390, %v10394
    %10396 = vrot.lane.b32.xlu0 %v10378, 105
    %v10397 = vpop.permute.xlu0 %10396
    %10398 = vrot.lane.b32.xlu0 %v10381, 105
    %v10399 = vpop.permute.xlu0 %10398
    %10400 = vrot.lane.b32.xlu0 %v10383, 105
    %v10401 = vpop.permute.xlu0 %10400
    %10402 = vrot.lane.b32.xlu0 %v10385, 105
    %v10403 = vpop.permute.xlu0 %10402
    %10404 = vrot.lane.b32.xlu0 %v10388, 105
    %v10405 = vpop.permute.xlu0 %10404
    %10406 = vrot.lane.b32.xlu0 %v10391, 105
    %v10407 = vpop.permute.xlu0 %10406
    %10408 = vrot.lane.b32.xlu0 %v10393, 105
    %v10409 = vpop.permute.xlu0 %10408
    %10410 = vrot.lane.b32.xlu0 %v10395, 105
    %v10411 = vpop.permute.xlu0 %10410
    %v10412 = vsel %vm10329, %v10397, %v10399
    %v10413 = vsel %vm10329, %v10401, %v10403
    %v10414 = vsel %vm10329, %v10405, %v10407
    %v10415 = vsel %vm10329, %v10409, %v10411
    %v10424 = vadd.f32 %v10342, %v10412
    %v10425 = vadd.f32 %v10343, %v10399
    %v10426 = vadd.f32 %v10344, %v10413
    %v10427 = vadd.f32 %v10345, %v10403
    %v10428 = vadd.f32 %v10346, %v10414
    %v10429 = vadd.f32 %v10347, %v10407
    %v10430 = vadd.f32 %v10348, %v10415
    %v10431 = vadd.f32 %v10349, %v10411
    %s10432 = sld [smem:[#allocation6 + $0x47]]
    %v10433 = vstv %s10432
    %v10434 = vmul.f32 %v10433, %v419
    %v10435 = vmul.f32 %v10433, %v420
    %v10436 = vmul.f32 %v10433, %v325
    %v10437 = vmul.f32 %v10433, %v326
    %v10438 = vmul.f32 %v10433, %v421
    %v10439 = vmul.f32 %v10433, %v422
    %v10440 = vmul.f32 %v10433, %v423
    %v10441 = vmul.f32 %v10433, %v424
    %v10442 = vmul.f32 %v10433, %v331
    %v10443 = vmul.f32 %v10433, %v332
    %v10444 = vmul.f32 %v10433, %v425
    %v10445 = vmul.f32 %v10433, %v426
    %v10458 = vrot.slane %v10434, 2
    %v10459 = vrot.slane %v10436, 2
    %v10460 = vsel %vm452, %v10458, %v10459
    %v10461 = vrot.slane %v10435, 2
    %v10462 = vrot.slane %v10437, 2
    %v10463 = vsel %vm452, %v10461, %v10462
    %v10464 = vrot.slane %v10438, 2
    %v10465 = vsel %vm452, %v10459, %v10464
    %v10466 = vrot.slane %v10439, 2
    %v10467 = vsel %vm452, %v10462, %v10466
    %v10468 = vrot.slane %v10440, 2
    %v10469 = vrot.slane %v10442, 2
    %v10470 = vsel %vm452, %v10468, %v10469
    %v10471 = vrot.slane %v10441, 2
    %v10472 = vrot.slane %v10443, 2
    %v10473 = vsel %vm452, %v10471, %v10472
    %v10474 = vrot.slane %v10444, 2
    %v10475 = vsel %vm452, %v10469, %v10474
    %v10476 = vrot.slane %v10445, 2
    %v10477 = vsel %vm452, %v10472, %v10476
    %10478 = vrot.lane.b32.xlu0 %v10460, 105
    %v10479 = vpop.permute.xlu0 %10478
    %10480 = vrot.lane.b32.xlu0 %v10463, 105
    %v10481 = vpop.permute.xlu0 %10480
    %10482 = vrot.lane.b32.xlu0 %v10465, 105
    %v10483 = vpop.permute.xlu0 %10482
    %10484 = vrot.lane.b32.xlu0 %v10467, 105
    %v10485 = vpop.permute.xlu0 %10484
    %10486 = vrot.lane.b32.xlu0 %v10470, 105
    %v10487 = vpop.permute.xlu0 %10486
    %10488 = vrot.lane.b32.xlu0 %v10473, 105
    %v10489 = vpop.permute.xlu0 %10488
    %10490 = vrot.lane.b32.xlu0 %v10475, 105
    %v10491 = vpop.permute.xlu0 %10490
    %10492 = vrot.lane.b32.xlu0 %v10477, 105
    %v10493 = vpop.permute.xlu0 %10492
    %v10494 = vsel %vm10329, %v10479, %v10481
    %v10495 = vsel %vm10329, %v10483, %v10485
    %v10496 = vsel %vm10329, %v10487, %v10489
    %v10497 = vsel %vm10329, %v10491, %v10493
    %v10506 = vadd.f32 %v10424, %v10494
    %v10507 = vadd.f32 %v10425, %v10481
    %v10508 = vadd.f32 %v10426, %v10495
    %v10509 = vadd.f32 %v10427, %v10485
    %v10510 = vadd.f32 %v10428, %v10496
    %v10511 = vadd.f32 %v10429, %v10489
    %v10512 = vadd.f32 %v10430, %v10497
    %v10513 = vadd.f32 %v10431, %v10493
    %s10514 = sld [smem:[#allocation6 + $0x60]]
    %v10515 = vstv %s10514
    %v10516 = vmul.f32 %v10515, %v510
    %v10517 = vmul.f32 %v10515, %v511
    %v10518 = vmul.f32 %v10515, %v325
    %v10519 = vmul.f32 %v10515, %v326
    %v10520 = vmul.f32 %v10515, %v512
    %v10521 = vmul.f32 %v10515, %v513
    %v10522 = vmul.f32 %v10515, %v514
    %v10523 = vmul.f32 %v10515, %v515
    %v10524 = vmul.f32 %v10515, %v331
    %v10525 = vmul.f32 %v10515, %v332
    %v10526 = vmul.f32 %v10515, %v516
    %v10527 = vmul.f32 %v10515, %v517
    %v10540 = vrot.slane %v10516, 3
    %v10541 = vrot.slane %v10518, 3
    %v10542 = vsel %vm543, %v10540, %v10541
    %v10543 = vrot.slane %v10517, 3
    %v10544 = vrot.slane %v10519, 3
    %v10545 = vsel %vm543, %v10543, %v10544
    %v10546 = vrot.slane %v10520, 3
    %v10547 = vsel %vm543, %v10541, %v10546
    %v10548 = vrot.slane %v10521, 3
    %v10549 = vsel %vm543, %v10544, %v10548
    %v10550 = vrot.slane %v10522, 3
    %v10551 = vrot.slane %v10524, 3
    %v10552 = vsel %vm543, %v10550, %v10551
    %v10553 = vrot.slane %v10523, 3
    %v10554 = vrot.slane %v10525, 3
    %v10555 = vsel %vm543, %v10553, %v10554
    %v10556 = vrot.slane %v10526, 3
    %v10557 = vsel %vm543, %v10551, %v10556
    %v10558 = vrot.slane %v10527, 3
    %v10559 = vsel %vm543, %v10554, %v10558
    %10560 = vrot.lane.b32.xlu0 %v10542, 105
    %v10561 = vpop.permute.xlu0 %10560
    %10562 = vrot.lane.b32.xlu0 %v10545, 105
    %v10563 = vpop.permute.xlu0 %10562
    %10564 = vrot.lane.b32.xlu0 %v10547, 105
    %v10565 = vpop.permute.xlu0 %10564
    %10566 = vrot.lane.b32.xlu0 %v10549, 105
    %v10567 = vpop.permute.xlu0 %10566
    %10568 = vrot.lane.b32.xlu0 %v10552, 105
    %v10569 = vpop.permute.xlu0 %10568
    %10570 = vrot.lane.b32.xlu0 %v10555, 105
    %v10571 = vpop.permute.xlu0 %10570
    %10572 = vrot.lane.b32.xlu0 %v10557, 105
    %v10573 = vpop.permute.xlu0 %10572
    %10574 = vrot.lane.b32.xlu0 %v10559, 105
    %v10575 = vpop.permute.xlu0 %10574
    %v10576 = vsel %vm10329, %v10561, %v10563
    %v10577 = vsel %vm10329, %v10565, %v10567
    %v10578 = vsel %vm10329, %v10569, %v10571
    %v10579 = vsel %vm10329, %v10573, %v10575
    %v10588 = vadd.f32 %v10506, %v10576
    %v10589 = vadd.f32 %v10507, %v10563
    %v10590 = vadd.f32 %v10508, %v10577
    %v10591 = vadd.f32 %v10509, %v10567
    %v10592 = vadd.f32 %v10510, %v10578
    %v10593 = vadd.f32 %v10511, %v10571
    %v10594 = vadd.f32 %v10512, %v10579
    %v10595 = vadd.f32 %v10513, %v10575
    %s10596 = sld [smem:[#allocation6 + $0x79]]
    %v10597 = vstv %s10596
    %v10598 = vmul.f32 %v10597, %v3054
    %v10599 = vmul.f32 %v10597, %v3055
    %v10600 = vmul.f32 %v10597, %v325
    %v10601 = vmul.f32 %v10597, %v326
    %v10602 = vmul.f32 %v10597, %v3056
    %v10603 = vmul.f32 %v10597, %v3057
    %v10604 = vmul.f32 %v10597, %v3058
    %v10605 = vmul.f32 %v10597, %v3059
    %v10606 = vmul.f32 %v10597, %v331
    %v10607 = vmul.f32 %v10597, %v332
    %v10608 = vmul.f32 %v10597, %v3060
    %v10609 = vmul.f32 %v10597, %v3061
    %v10622 = vrot.slane %v10598, 4
    %v10623 = vrot.slane %v10600, 4
    %v10624 = vsel %vm2713, %v10622, %v10623
    %v10625 = vrot.slane %v10599, 4
    %v10626 = vrot.slane %v10601, 4
    %v10627 = vsel %vm2713, %v10625, %v10626
    %v10628 = vrot.slane %v10602, 4
    %v10629 = vsel %vm2713, %v10623, %v10628
    %v10630 = vrot.slane %v10603, 4
    %v10631 = vsel %vm2713, %v10626, %v10630
    %v10632 = vrot.slane %v10604, 4
    %v10633 = vrot.slane %v10606, 4
    %v10634 = vsel %vm2713, %v10632, %v10633
    %v10635 = vrot.slane %v10605, 4
    %v10636 = vrot.slane %v10607, 4
    %v10637 = vsel %vm2713, %v10635, %v10636
    %v10638 = vrot.slane %v10608, 4
    %v10639 = vsel %vm2713, %v10633, %v10638
    %v10640 = vrot.slane %v10609, 4
    %v10641 = vsel %vm2713, %v10636, %v10640
    %10642 = vrot.lane.b32.xlu0 %v10624, 105
    %v10643 = vpop.permute.xlu0 %10642
    %10644 = vrot.lane.b32.xlu0 %v10627, 105
    %v10645 = vpop.permute.xlu0 %10644
    %10646 = vrot.lane.b32.xlu0 %v10629, 105
    %v10647 = vpop.permute.xlu0 %10646
    %10648 = vrot.lane.b32.xlu0 %v10631, 105
    %v10649 = vpop.permute.xlu0 %10648
    %10650 = vrot.lane.b32.xlu0 %v10634, 105
    %v10651 = vpop.permute.xlu0 %10650
    %10652 = vrot.lane.b32.xlu0 %v10637, 105
    %v10653 = vpop.permute.xlu0 %10652
    %10654 = vrot.lane.b32.xlu0 %v10639, 105
    %v10655 = vpop.permute.xlu0 %10654
    %10656 = vrot.lane.b32.xlu0 %v10641, 105
    %v10657 = vpop.permute.xlu0 %10656
    %v10658 = vsel %vm10329, %v10643, %v10645
    %v10659 = vsel %vm10329, %v10647, %v10649
    %v10660 = vsel %vm10329, %v10651, %v10653
    %v10661 = vsel %vm10329, %v10655, %v10657
    %v10670 = vadd.f32 %v10588, %v10658
    %v10671 = vadd.f32 %v10589, %v10645
    %v10672 = vadd.f32 %v10590, %v10659
    %v10673 = vadd.f32 %v10591, %v10649
    %v10674 = vadd.f32 %v10592, %v10660
    %v10675 = vadd.f32 %v10593, %v10653
    %v10676 = vadd.f32 %v10594, %v10661
    %v10677 = vadd.f32 %v10595, %v10657
    %s10678 = sld [smem:[#allocation6 + $0x16]]
    %v10679 = vstv %s10678
    %v10680 = vmul.f32 %v10679, %v2745
    %v10681 = vmul.f32 %v10679, %v2746
    %v10682 = vmul.f32 %v10679, %v2747
    %v10683 = vmul.f32 %v10679, %v2748
    %v10684 = vmul.f32 %v10679, %v2749
    %v10685 = vmul.f32 %v10679, %v2750
    %v10686 = vmul.f32 %v10679, %v2751
    %v10687 = vmul.f32 %v10679, %v2752
    %10696 = vrot.lane.b32.xlu0 %v10680, 104
    %v10697 = vpop.permute.xlu0 %10696
    %10698 = vrot.lane.b32.xlu0 %v10681, 104
    %v10699 = vpop.permute.xlu0 %10698
    %10700 = vrot.lane.b32.xlu0 %v10682, 104
    %v10701 = vpop.permute.xlu0 %10700
    %10702 = vrot.lane.b32.xlu0 %v10683, 104
    %v10703 = vpop.permute.xlu0 %10702
    %10704 = vrot.lane.b32.xlu0 %v10684, 104
    %v10705 = vpop.permute.xlu0 %10704
    %10706 = vrot.lane.b32.xlu0 %v10685, 104
    %v10707 = vpop.permute.xlu0 %10706
    %10708 = vrot.lane.b32.xlu0 %v10686, 104
    %v10709 = vpop.permute.xlu0 %10708
    %10710 = vrot.lane.b32.xlu0 %v10687, 104
    %v10711 = vpop.permute.xlu0 %10710
    %vm10712 = vcmask 850944
    %v10713 = vsel %vm10712, %v10697, %v10699
    %v10714 = vsel %vm10712, %v10701, %v10703
    %v10715 = vsel %vm10712, %v10705, %v10707
    %v10716 = vsel %vm10712, %v10709, %v10711
    %v10725 = vadd.f32 %v10670, %v10713
    %v10726 = vadd.f32 %v10671, %v10699
    %v10727 = vadd.f32 %v10672, %v10714
    %v10728 = vadd.f32 %v10673, %v10703
    %v10729 = vadd.f32 %v10674, %v10715
    %v10730 = vadd.f32 %v10675, %v10707
    %v10731 = vadd.f32 %v10676, %v10716
    %v10732 = vadd.f32 %v10677, %v10711
    %s10733 = sld [smem:[#allocation6 + $0x2f]]
    %v10734 = vstv %s10733
    %v10735 = vmul.f32 %v10734, %v323
    %v10736 = vmul.f32 %v10734, %v324
    %v10737 = vmul.f32 %v10734, %v325
    %v10738 = vmul.f32 %v10734, %v326
    %v10739 = vmul.f32 %v10734, %v327
    %v10740 = vmul.f32 %v10734, %v328
    %v10741 = vmul.f32 %v10734, %v329
    %v10742 = vmul.f32 %v10734, %v330
    %v10743 = vmul.f32 %v10734, %v331
    %v10744 = vmul.f32 %v10734, %v332
    %v10745 = vmul.f32 %v10734, %v333
    %v10746 = vmul.f32 %v10734, %v334
    %v10759 = vrot.slane %v10735, 1
    %v10760 = vrot.slane %v10737, 1
    %v10761 = vsel %vm360, %v10759, %v10760
    %v10762 = vrot.slane %v10736, 1
    %v10763 = vrot.slane %v10738, 1
    %v10764 = vsel %vm360, %v10762, %v10763
    %v10765 = vrot.slane %v10739, 1
    %v10766 = vsel %vm360, %v10760, %v10765
    %v10767 = vrot.slane %v10740, 1
    %v10768 = vsel %vm360, %v10763, %v10767
    %v10769 = vrot.slane %v10741, 1
    %v10770 = vrot.slane %v10743, 1
    %v10771 = vsel %vm360, %v10769, %v10770
    %v10772 = vrot.slane %v10742, 1
    %v10773 = vrot.slane %v10744, 1
    %v10774 = vsel %vm360, %v10772, %v10773
    %v10775 = vrot.slane %v10745, 1
    %v10776 = vsel %vm360, %v10770, %v10775
    %v10777 = vrot.slane %v10746, 1
    %v10778 = vsel %vm360, %v10773, %v10777
    %10779 = vrot.lane.b32.xlu0 %v10761, 104
    %v10780 = vpop.permute.xlu0 %10779
    %10781 = vrot.lane.b32.xlu0 %v10764, 104
    %v10782 = vpop.permute.xlu0 %10781
    %10783 = vrot.lane.b32.xlu0 %v10766, 104
    %v10784 = vpop.permute.xlu0 %10783
    %10785 = vrot.lane.b32.xlu0 %v10768, 104
    %v10786 = vpop.permute.xlu0 %10785
    %10787 = vrot.lane.b32.xlu0 %v10771, 104
    %v10788 = vpop.permute.xlu0 %10787
    %10789 = vrot.lane.b32.xlu0 %v10774, 104
    %v10790 = vpop.permute.xlu0 %10789
    %10791 = vrot.lane.b32.xlu0 %v10776, 104
    %v10792 = vpop.permute.xlu0 %10791
    %10793 = vrot.lane.b32.xlu0 %v10778, 104
    %v10794 = vpop.permute.xlu0 %10793
    %v10795 = vsel %vm10712, %v10780, %v10782
    %v10796 = vsel %vm10712, %v10784, %v10786
    %v10797 = vsel %vm10712, %v10788, %v10790
    %v10798 = vsel %vm10712, %v10792, %v10794
    %v10807 = vadd.f32 %v10725, %v10795
    %v10808 = vadd.f32 %v10726, %v10782
    %v10809 = vadd.f32 %v10727, %v10796
    %v10810 = vadd.f32 %v10728, %v10786
    %v10811 = vadd.f32 %v10729, %v10797
    %v10812 = vadd.f32 %v10730, %v10790
    %v10813 = vadd.f32 %v10731, %v10798
    %v10814 = vadd.f32 %v10732, %v10794
    %s10815 = sld [smem:[#allocation6 + $0x48]]
    %v10816 = vstv %s10815
    %v10817 = vmul.f32 %v10816, %v419
    %v10818 = vmul.f32 %v10816, %v420
    %v10819 = vmul.f32 %v10816, %v325
    %v10820 = vmul.f32 %v10816, %v326
    %v10821 = vmul.f32 %v10816, %v421
    %v10822 = vmul.f32 %v10816, %v422
    %v10823 = vmul.f32 %v10816, %v423
    %v10824 = vmul.f32 %v10816, %v424
    %v10825 = vmul.f32 %v10816, %v331
    %v10826 = vmul.f32 %v10816, %v332
    %v10827 = vmul.f32 %v10816, %v425
    %v10828 = vmul.f32 %v10816, %v426
    %v10841 = vrot.slane %v10817, 2
    %v10842 = vrot.slane %v10819, 2
    %v10843 = vsel %vm452, %v10841, %v10842
    %v10844 = vrot.slane %v10818, 2
    %v10845 = vrot.slane %v10820, 2
    %v10846 = vsel %vm452, %v10844, %v10845
    %v10847 = vrot.slane %v10821, 2
    %v10848 = vsel %vm452, %v10842, %v10847
    %v10849 = vrot.slane %v10822, 2
    %v10850 = vsel %vm452, %v10845, %v10849
    %v10851 = vrot.slane %v10823, 2
    %v10852 = vrot.slane %v10825, 2
    %v10853 = vsel %vm452, %v10851, %v10852
    %v10854 = vrot.slane %v10824, 2
    %v10855 = vrot.slane %v10826, 2
    %v10856 = vsel %vm452, %v10854, %v10855
    %v10857 = vrot.slane %v10827, 2
    %v10858 = vsel %vm452, %v10852, %v10857
    %v10859 = vrot.slane %v10828, 2
    %v10860 = vsel %vm452, %v10855, %v10859
    %10861 = vrot.lane.b32.xlu0 %v10843, 104
    %v10862 = vpop.permute.xlu0 %10861
    %10863 = vrot.lane.b32.xlu0 %v10846, 104
    %v10864 = vpop.permute.xlu0 %10863
    %10865 = vrot.lane.b32.xlu0 %v10848, 104
    %v10866 = vpop.permute.xlu0 %10865
    %10867 = vrot.lane.b32.xlu0 %v10850, 104
    %v10868 = vpop.permute.xlu0 %10867
    %10869 = vrot.lane.b32.xlu0 %v10853, 104
    %v10870 = vpop.permute.xlu0 %10869
    %10871 = vrot.lane.b32.xlu0 %v10856, 104
    %v10872 = vpop.permute.xlu0 %10871
    %10873 = vrot.lane.b32.xlu0 %v10858, 104
    %v10874 = vpop.permute.xlu0 %10873
    %10875 = vrot.lane.b32.xlu0 %v10860, 104
    %v10876 = vpop.permute.xlu0 %10875
    %v10877 = vsel %vm10712, %v10862, %v10864
    %v10878 = vsel %vm10712, %v10866, %v10868
    %v10879 = vsel %vm10712, %v10870, %v10872
    %v10880 = vsel %vm10712, %v10874, %v10876
    %v10889 = vadd.f32 %v10807, %v10877
    %v10890 = vadd.f32 %v10808, %v10864
    %v10891 = vadd.f32 %v10809, %v10878
    %v10892 = vadd.f32 %v10810, %v10868
    %v10893 = vadd.f32 %v10811, %v10879
    %v10894 = vadd.f32 %v10812, %v10872
    %v10895 = vadd.f32 %v10813, %v10880
    %v10896 = vadd.f32 %v10814, %v10876
    %s10897 = sld [smem:[#allocation6 + $0x61]]
    %v10898 = vstv %s10897
    %v10899 = vmul.f32 %v10898, %v510
    %v10900 = vmul.f32 %v10898, %v511
    %v10901 = vmul.f32 %v10898, %v325
    %v10902 = vmul.f32 %v10898, %v326
    %v10903 = vmul.f32 %v10898, %v512
    %v10904 = vmul.f32 %v10898, %v513
    %v10905 = vmul.f32 %v10898, %v514
    %v10906 = vmul.f32 %v10898, %v515
    %v10907 = vmul.f32 %v10898, %v331
    %v10908 = vmul.f32 %v10898, %v332
    %v10909 = vmul.f32 %v10898, %v516
    %v10910 = vmul.f32 %v10898, %v517
    %v10923 = vrot.slane %v10899, 3
    %v10924 = vrot.slane %v10901, 3
    %v10925 = vsel %vm543, %v10923, %v10924
    %v10926 = vrot.slane %v10900, 3
    %v10927 = vrot.slane %v10902, 3
    %v10928 = vsel %vm543, %v10926, %v10927
    %v10929 = vrot.slane %v10903, 3
    %v10930 = vsel %vm543, %v10924, %v10929
    %v10931 = vrot.slane %v10904, 3
    %v10932 = vsel %vm543, %v10927, %v10931
    %v10933 = vrot.slane %v10905, 3
    %v10934 = vrot.slane %v10907, 3
    %v10935 = vsel %vm543, %v10933, %v10934
    %v10936 = vrot.slane %v10906, 3
    %v10937 = vrot.slane %v10908, 3
    %v10938 = vsel %vm543, %v10936, %v10937
    %v10939 = vrot.slane %v10909, 3
    %v10940 = vsel %vm543, %v10934, %v10939
    %v10941 = vrot.slane %v10910, 3
    %v10942 = vsel %vm543, %v10937, %v10941
    %10943 = vrot.lane.b32.xlu0 %v10925, 104
    %v10944 = vpop.permute.xlu0 %10943
    %10945 = vrot.lane.b32.xlu0 %v10928, 104
    %v10946 = vpop.permute.xlu0 %10945
    %10947 = vrot.lane.b32.xlu0 %v10930, 104
    %v10948 = vpop.permute.xlu0 %10947
    %10949 = vrot.lane.b32.xlu0 %v10932, 104
    %v10950 = vpop.permute.xlu0 %10949
    %10951 = vrot.lane.b32.xlu0 %v10935, 104
    %v10952 = vpop.permute.xlu0 %10951
    %10953 = vrot.lane.b32.xlu0 %v10938, 104
    %v10954 = vpop.permute.xlu0 %10953
    %10955 = vrot.lane.b32.xlu0 %v10940, 104
    %v10956 = vpop.permute.xlu0 %10955
    %10957 = vrot.lane.b32.xlu0 %v10942, 104
    %v10958 = vpop.permute.xlu0 %10957
    %v10959 = vsel %vm10712, %v10944, %v10946
    %v10960 = vsel %vm10712, %v10948, %v10950
    %v10961 = vsel %vm10712, %v10952, %v10954
    %v10962 = vsel %vm10712, %v10956, %v10958
    %v10971 = vadd.f32 %v10889, %v10959
    %v10972 = vadd.f32 %v10890, %v10946
    %v10973 = vadd.f32 %v10891, %v10960
    %v10974 = vadd.f32 %v10892, %v10950
    %v10975 = vadd.f32 %v10893, %v10961
    %v10976 = vadd.f32 %v10894, %v10954
    %v10977 = vadd.f32 %v10895, %v10962
    %v10978 = vadd.f32 %v10896, %v10958
    %s10979 = sld [smem:[#allocation6 + $0x7a]]
    %v10980 = vstv %s10979
    %v10981 = vmul.f32 %v10980, %v3054
    %v10982 = vmul.f32 %v10980, %v3055
    %v10983 = vmul.f32 %v10980, %v325
    %v10984 = vmul.f32 %v10980, %v326
    %v10985 = vmul.f32 %v10980, %v3056
    %v10986 = vmul.f32 %v10980, %v3057
    %v10987 = vmul.f32 %v10980, %v3058
    %v10988 = vmul.f32 %v10980, %v3059
    %v10989 = vmul.f32 %v10980, %v331
    %v10990 = vmul.f32 %v10980, %v332
    %v10991 = vmul.f32 %v10980, %v3060
    %v10992 = vmul.f32 %v10980, %v3061
    %v11005 = vrot.slane %v10981, 4
    %v11006 = vrot.slane %v10983, 4
    %v11007 = vsel %vm2713, %v11005, %v11006
    %v11008 = vrot.slane %v10982, 4
    %v11009 = vrot.slane %v10984, 4
    %v11010 = vsel %vm2713, %v11008, %v11009
    %v11011 = vrot.slane %v10985, 4
    %v11012 = vsel %vm2713, %v11006, %v11011
    %v11013 = vrot.slane %v10986, 4
    %v11014 = vsel %vm2713, %v11009, %v11013
    %v11015 = vrot.slane %v10987, 4
    %v11016 = vrot.slane %v10989, 4
    %v11017 = vsel %vm2713, %v11015, %v11016
    %v11018 = vrot.slane %v10988, 4
    %v11019 = vrot.slane %v10990, 4
    %v11020 = vsel %vm2713, %v11018, %v11019
    %v11021 = vrot.slane %v10991, 4
    %v11022 = vsel %vm2713, %v11016, %v11021
    %v11023 = vrot.slane %v10992, 4
    %v11024 = vsel %vm2713, %v11019, %v11023
    %11025 = vrot.lane.b32.xlu0 %v11007, 104
    %v11026 = vpop.permute.xlu0 %11025
    %11027 = vrot.lane.b32.xlu0 %v11010, 104
    %v11028 = vpop.permute.xlu0 %11027
    %11029 = vrot.lane.b32.xlu0 %v11012, 104
    %v11030 = vpop.permute.xlu0 %11029
    %11031 = vrot.lane.b32.xlu0 %v11014, 104
    %v11032 = vpop.permute.xlu0 %11031
    %11033 = vrot.lane.b32.xlu0 %v11017, 104
    %v11034 = vpop.permute.xlu0 %11033
    %11035 = vrot.lane.b32.xlu0 %v11020, 104
    %v11036 = vpop.permute.xlu0 %11035
    %11037 = vrot.lane.b32.xlu0 %v11022, 104
    %v11038 = vpop.permute.xlu0 %11037
    %11039 = vrot.lane.b32.xlu0 %v11024, 104
    %v11040 = vpop.permute.xlu0 %11039
    %v11041 = vsel %vm10712, %v11026, %v11028
    %v11042 = vsel %vm10712, %v11030, %v11032
    %v11043 = vsel %vm10712, %v11034, %v11036
    %v11044 = vsel %vm10712, %v11038, %v11040
    %v11053 = vadd.f32 %v10971, %v11041
    %v11054 = vadd.f32 %v10972, %v11028
    %v11055 = vadd.f32 %v10973, %v11042
    %v11056 = vadd.f32 %v10974, %v11032
    %v11057 = vadd.f32 %v10975, %v11043
    %v11058 = vadd.f32 %v10976, %v11036
    %v11059 = vadd.f32 %v10977, %v11044
    %v11060 = vadd.f32 %v10978, %v11040
    %s11061 = sld [smem:[#allocation6 + $0x17]]
    %v11062 = vstv %s11061
    %v11063 = vmul.f32 %v11062, %v2745
    %v11064 = vmul.f32 %v11062, %v2746
    %v11065 = vmul.f32 %v11062, %v2747
    %v11066 = vmul.f32 %v11062, %v2748
    %v11067 = vmul.f32 %v11062, %v2749
    %v11068 = vmul.f32 %v11062, %v2750
    %v11069 = vmul.f32 %v11062, %v2751
    %v11070 = vmul.f32 %v11062, %v2752
    %11079 = vrot.lane.b32.xlu0 %v11063, 103
    %v11080 = vpop.permute.xlu0 %11079
    %11081 = vrot.lane.b32.xlu0 %v11064, 103
    %v11082 = vpop.permute.xlu0 %11081
    %11083 = vrot.lane.b32.xlu0 %v11065, 103
    %v11084 = vpop.permute.xlu0 %11083
    %11085 = vrot.lane.b32.xlu0 %v11066, 103
    %v11086 = vpop.permute.xlu0 %11085
    %11087 = vrot.lane.b32.xlu0 %v11067, 103
    %v11088 = vpop.permute.xlu0 %11087
    %11089 = vrot.lane.b32.xlu0 %v11068, 103
    %v11090 = vpop.permute.xlu0 %11089
    %11091 = vrot.lane.b32.xlu0 %v11069, 103
    %v11092 = vpop.permute.xlu0 %11091
    %11093 = vrot.lane.b32.xlu0 %v11070, 103
    %v11094 = vpop.permute.xlu0 %11093
    %vm11095 = vcmask 842752
    %v11096 = vsel %vm11095, %v11080, %v11082
    %v11097 = vsel %vm11095, %v11084, %v11086
    %v11098 = vsel %vm11095, %v11088, %v11090
    %v11099 = vsel %vm11095, %v11092, %v11094
    %v11108 = vadd.f32 %v11053, %v11096
    %v11109 = vadd.f32 %v11054, %v11082
    %v11110 = vadd.f32 %v11055, %v11097
    %v11111 = vadd.f32 %v11056, %v11086
    %v11112 = vadd.f32 %v11057, %v11098
    %v11113 = vadd.f32 %v11058, %v11090
    %v11114 = vadd.f32 %v11059, %v11099
    %v11115 = vadd.f32 %v11060, %v11094
    %s11116 = sld [smem:[#allocation6 + $0x30]]
    %v11117 = vstv %s11116
    %v11118 = vmul.f32 %v11117, %v323
    %v11119 = vmul.f32 %v11117, %v324
    %v11120 = vmul.f32 %v11117, %v325
    %v11121 = vmul.f32 %v11117, %v326
    %v11122 = vmul.f32 %v11117, %v327
    %v11123 = vmul.f32 %v11117, %v328
    %v11124 = vmul.f32 %v11117, %v329
    %v11125 = vmul.f32 %v11117, %v330
    %v11126 = vmul.f32 %v11117, %v331
    %v11127 = vmul.f32 %v11117, %v332
    %v11128 = vmul.f32 %v11117, %v333
    %v11129 = vmul.f32 %v11117, %v334
    %v11142 = vrot.slane %v11118, 1
    %v11143 = vrot.slane %v11120, 1
    %v11144 = vsel %vm360, %v11142, %v11143
    %v11145 = vrot.slane %v11119, 1
    %v11146 = vrot.slane %v11121, 1
    %v11147 = vsel %vm360, %v11145, %v11146
    %v11148 = vrot.slane %v11122, 1
    %v11149 = vsel %vm360, %v11143, %v11148
    %v11150 = vrot.slane %v11123, 1
    %v11151 = vsel %vm360, %v11146, %v11150
    %v11152 = vrot.slane %v11124, 1
    %v11153 = vrot.slane %v11126, 1
    %v11154 = vsel %vm360, %v11152, %v11153
    %v11155 = vrot.slane %v11125, 1
    %v11156 = vrot.slane %v11127, 1
    %v11157 = vsel %vm360, %v11155, %v11156
    %v11158 = vrot.slane %v11128, 1
    %v11159 = vsel %vm360, %v11153, %v11158
    %v11160 = vrot.slane %v11129, 1
    %v11161 = vsel %vm360, %v11156, %v11160
    %11162 = vrot.lane.b32.xlu0 %v11144, 103
    %v11163 = vpop.permute.xlu0 %11162
    %11164 = vrot.lane.b32.xlu0 %v11147, 103
    %v11165 = vpop.permute.xlu0 %11164
    %11166 = vrot.lane.b32.xlu0 %v11149, 103
    %v11167 = vpop.permute.xlu0 %11166
    %11168 = vrot.lane.b32.xlu0 %v11151, 103
    %v11169 = vpop.permute.xlu0 %11168
    %11170 = vrot.lane.b32.xlu0 %v11154, 103
    %v11171 = vpop.permute.xlu0 %11170
    %11172 = vrot.lane.b32.xlu0 %v11157, 103
    %v11173 = vpop.permute.xlu0 %11172
    %11174 = vrot.lane.b32.xlu0 %v11159, 103
    %v11175 = vpop.permute.xlu0 %11174
    %11176 = vrot.lane.b32.xlu0 %v11161, 103
    %v11177 = vpop.permute.xlu0 %11176
    %v11178 = vsel %vm11095, %v11163, %v11165
    %v11179 = vsel %vm11095, %v11167, %v11169
    %v11180 = vsel %vm11095, %v11171, %v11173
    %v11181 = vsel %vm11095, %v11175, %v11177
    %v11190 = vadd.f32 %v11108, %v11178
    %v11191 = vadd.f32 %v11109, %v11165
    %v11192 = vadd.f32 %v11110, %v11179
    %v11193 = vadd.f32 %v11111, %v11169
    %v11194 = vadd.f32 %v11112, %v11180
    %v11195 = vadd.f32 %v11113, %v11173
    %v11196 = vadd.f32 %v11114, %v11181
    %v11197 = vadd.f32 %v11115, %v11177
    %s11198 = sld [smem:[#allocation6 + $0x49]]
    %v11199 = vstv %s11198
    %v11200 = vmul.f32 %v11199, %v419
    %v11201 = vmul.f32 %v11199, %v420
    %v11202 = vmul.f32 %v11199, %v325
    %v11203 = vmul.f32 %v11199, %v326
    %v11204 = vmul.f32 %v11199, %v421
    %v11205 = vmul.f32 %v11199, %v422
    %v11206 = vmul.f32 %v11199, %v423
    %v11207 = vmul.f32 %v11199, %v424
    %v11208 = vmul.f32 %v11199, %v331
    %v11209 = vmul.f32 %v11199, %v332
    %v11210 = vmul.f32 %v11199, %v425
    %v11211 = vmul.f32 %v11199, %v426
    %v11224 = vrot.slane %v11200, 2
    %v11225 = vrot.slane %v11202, 2
    %v11226 = vsel %vm452, %v11224, %v11225
    %v11227 = vrot.slane %v11201, 2
    %v11228 = vrot.slane %v11203, 2
    %v11229 = vsel %vm452, %v11227, %v11228
    %v11230 = vrot.slane %v11204, 2
    %v11231 = vsel %vm452, %v11225, %v11230
    %v11232 = vrot.slane %v11205, 2
    %v11233 = vsel %vm452, %v11228, %v11232
    %v11234 = vrot.slane %v11206, 2
    %v11235 = vrot.slane %v11208, 2
    %v11236 = vsel %vm452, %v11234, %v11235
    %v11237 = vrot.slane %v11207, 2
    %v11238 = vrot.slane %v11209, 2
    %v11239 = vsel %vm452, %v11237, %v11238
    %v11240 = vrot.slane %v11210, 2
    %v11241 = vsel %vm452, %v11235, %v11240
    %v11242 = vrot.slane %v11211, 2
    %v11243 = vsel %vm452, %v11238, %v11242
    %11244 = vrot.lane.b32.xlu0 %v11226, 103
    %v11245 = vpop.permute.xlu0 %11244
    %11246 = vrot.lane.b32.xlu0 %v11229, 103
    %v11247 = vpop.permute.xlu0 %11246
    %11248 = vrot.lane.b32.xlu0 %v11231, 103
    %v11249 = vpop.permute.xlu0 %11248
    %11250 = vrot.lane.b32.xlu0 %v11233, 103
    %v11251 = vpop.permute.xlu0 %11250
    %11252 = vrot.lane.b32.xlu0 %v11236, 103
    %v11253 = vpop.permute.xlu0 %11252
    %11254 = vrot.lane.b32.xlu0 %v11239, 103
    %v11255 = vpop.permute.xlu0 %11254
    %11256 = vrot.lane.b32.xlu0 %v11241, 103
    %v11257 = vpop.permute.xlu0 %11256
    %11258 = vrot.lane.b32.xlu0 %v11243, 103
    %v11259 = vpop.permute.xlu0 %11258
    %v11260 = vsel %vm11095, %v11245, %v11247
    %v11261 = vsel %vm11095, %v11249, %v11251
    %v11262 = vsel %vm11095, %v11253, %v11255
    %v11263 = vsel %vm11095, %v11257, %v11259
    %v11272 = vadd.f32 %v11190, %v11260
    %v11273 = vadd.f32 %v11191, %v11247
    %v11274 = vadd.f32 %v11192, %v11261
    %v11275 = vadd.f32 %v11193, %v11251
    %v11276 = vadd.f32 %v11194, %v11262
    %v11277 = vadd.f32 %v11195, %v11255
    %v11278 = vadd.f32 %v11196, %v11263
    %v11279 = vadd.f32 %v11197, %v11259
    %s11280 = sld [smem:[#allocation6 + $0x62]]
    %v11281 = vstv %s11280
    %v11282 = vmul.f32 %v11281, %v510
    %v11283 = vmul.f32 %v11281, %v511
    %v11284 = vmul.f32 %v11281, %v325
    %v11285 = vmul.f32 %v11281, %v326
    %v11286 = vmul.f32 %v11281, %v512
    %v11287 = vmul.f32 %v11281, %v513
    %v11288 = vmul.f32 %v11281, %v514
    %v11289 = vmul.f32 %v11281, %v515
    %v11290 = vmul.f32 %v11281, %v331
    %v11291 = vmul.f32 %v11281, %v332
    %v11292 = vmul.f32 %v11281, %v516
    %v11293 = vmul.f32 %v11281, %v517
    %v11306 = vrot.slane %v11282, 3
    %v11307 = vrot.slane %v11284, 3
    %v11308 = vsel %vm543, %v11306, %v11307
    %v11309 = vrot.slane %v11283, 3
    %v11310 = vrot.slane %v11285, 3
    %v11311 = vsel %vm543, %v11309, %v11310
    %v11312 = vrot.slane %v11286, 3
    %v11313 = vsel %vm543, %v11307, %v11312
    %v11314 = vrot.slane %v11287, 3
    %v11315 = vsel %vm543, %v11310, %v11314
    %v11316 = vrot.slane %v11288, 3
    %v11317 = vrot.slane %v11290, 3
    %v11318 = vsel %vm543, %v11316, %v11317
    %v11319 = vrot.slane %v11289, 3
    %v11320 = vrot.slane %v11291, 3
    %v11321 = vsel %vm543, %v11319, %v11320
    %v11322 = vrot.slane %v11292, 3
    %v11323 = vsel %vm543, %v11317, %v11322
    %v11324 = vrot.slane %v11293, 3
    %v11325 = vsel %vm543, %v11320, %v11324
    %11326 = vrot.lane.b32.xlu0 %v11308, 103
    %v11327 = vpop.permute.xlu0 %11326
    %11328 = vrot.lane.b32.xlu0 %v11311, 103
    %v11329 = vpop.permute.xlu0 %11328
    %11330 = vrot.lane.b32.xlu0 %v11313, 103
    %v11331 = vpop.permute.xlu0 %11330
    %11332 = vrot.lane.b32.xlu0 %v11315, 103
    %v11333 = vpop.permute.xlu0 %11332
    %11334 = vrot.lane.b32.xlu0 %v11318, 103
    %v11335 = vpop.permute.xlu0 %11334
    %11336 = vrot.lane.b32.xlu0 %v11321, 103
    %v11337 = vpop.permute.xlu0 %11336
    %11338 = vrot.lane.b32.xlu0 %v11323, 103
    %v11339 = vpop.permute.xlu0 %11338
    %11340 = vrot.lane.b32.xlu0 %v11325, 103
    %v11341 = vpop.permute.xlu0 %11340
    %v11342 = vsel %vm11095, %v11327, %v11329
    %v11343 = vsel %vm11095, %v11331, %v11333
    %v11344 = vsel %vm11095, %v11335, %v11337
    %v11345 = vsel %vm11095, %v11339, %v11341
    %v11354 = vadd.f32 %v11272, %v11342
    %v11355 = vadd.f32 %v11273, %v11329
    %v11356 = vadd.f32 %v11274, %v11343
    %v11357 = vadd.f32 %v11275, %v11333
    %v11358 = vadd.f32 %v11276, %v11344
    %v11359 = vadd.f32 %v11277, %v11337
    %v11360 = vadd.f32 %v11278, %v11345
    %v11361 = vadd.f32 %v11279, %v11341
    %s11362 = sld [smem:[#allocation6 + $0x7b]]
    %v11363 = vstv %s11362
    %v11364 = vmul.f32 %v11363, %v3054
    %v11365 = vmul.f32 %v11363, %v3055
    %v11366 = vmul.f32 %v11363, %v325
    %v11367 = vmul.f32 %v11363, %v326
    %v11368 = vmul.f32 %v11363, %v3056
    %v11369 = vmul.f32 %v11363, %v3057
    %v11370 = vmul.f32 %v11363, %v3058
    %v11371 = vmul.f32 %v11363, %v3059
    %v11372 = vmul.f32 %v11363, %v331
    %v11373 = vmul.f32 %v11363, %v332
    %v11374 = vmul.f32 %v11363, %v3060
    %v11375 = vmul.f32 %v11363, %v3061
    %v11388 = vrot.slane %v11364, 4
    %v11389 = vrot.slane %v11366, 4
    %v11390 = vsel %vm2713, %v11388, %v11389
    %v11391 = vrot.slane %v11365, 4
    %v11392 = vrot.slane %v11367, 4
    %v11393 = vsel %vm2713, %v11391, %v11392
    %v11394 = vrot.slane %v11368, 4
    %v11395 = vsel %vm2713, %v11389, %v11394
    %v11396 = vrot.slane %v11369, 4
    %v11397 = vsel %vm2713, %v11392, %v11396
    %v11398 = vrot.slane %v11370, 4
    %v11399 = vrot.slane %v11372, 4
    %v11400 = vsel %vm2713, %v11398, %v11399
    %v11401 = vrot.slane %v11371, 4
    %v11402 = vrot.slane %v11373, 4
    %v11403 = vsel %vm2713, %v11401, %v11402
    %v11404 = vrot.slane %v11374, 4
    %v11405 = vsel %vm2713, %v11399, %v11404
    %v11406 = vrot.slane %v11375, 4
    %v11407 = vsel %vm2713, %v11402, %v11406
    %11408 = vrot.lane.b32.xlu0 %v11390, 103
    %v11409 = vpop.permute.xlu0 %11408
    %11410 = vrot.lane.b32.xlu0 %v11393, 103
    %v11411 = vpop.permute.xlu0 %11410
    %11412 = vrot.lane.b32.xlu0 %v11395, 103
    %v11413 = vpop.permute.xlu0 %11412
    %11414 = vrot.lane.b32.xlu0 %v11397, 103
    %v11415 = vpop.permute.xlu0 %11414
    %11416 = vrot.lane.b32.xlu0 %v11400, 103
    %v11417 = vpop.permute.xlu0 %11416
    %11418 = vrot.lane.b32.xlu0 %v11403, 103
    %v11419 = vpop.permute.xlu0 %11418
    %11420 = vrot.lane.b32.xlu0 %v11405, 103
    %v11421 = vpop.permute.xlu0 %11420
    %11422 = vrot.lane.b32.xlu0 %v11407, 103
    %v11423 = vpop.permute.xlu0 %11422
    %v11424 = vsel %vm11095, %v11409, %v11411
    %v11425 = vsel %vm11095, %v11413, %v11415
    %v11426 = vsel %vm11095, %v11417, %v11419
    %v11427 = vsel %vm11095, %v11421, %v11423
    %v11436 = vadd.f32 %v11354, %v11424
    %v11437 = vadd.f32 %v11355, %v11411
    %v11438 = vadd.f32 %v11356, %v11425
    %v11439 = vadd.f32 %v11357, %v11415
    %v11440 = vadd.f32 %v11358, %v11426
    %v11441 = vadd.f32 %v11359, %v11419
    %v11442 = vadd.f32 %v11360, %v11427
    %v11443 = vadd.f32 %v11361, %v11423
    %s11444 = sld [smem:[#allocation6 + $0x18]]
    %v11445 = vstv %s11444
    %v11446 = vmul.f32 %v11445, %v2745
    %v11447 = vmul.f32 %v11445, %v2746
    %v11448 = vmul.f32 %v11445, %v2747
    %v11449 = vmul.f32 %v11445, %v2748
    %v11450 = vmul.f32 %v11445, %v2749
    %v11451 = vmul.f32 %v11445, %v2750
    %v11452 = vmul.f32 %v11445, %v2751
    %v11453 = vmul.f32 %v11445, %v2752
    %11462 = vrot.lane.b32.xlu0 %v11446, 102
    %v11463 = vpop.permute.xlu0 %11462
    %11464 = vrot.lane.b32.xlu0 %v11447, 102
    %v11465 = vpop.permute.xlu0 %11464
    %11466 = vrot.lane.b32.xlu0 %v11448, 102
    %v11467 = vpop.permute.xlu0 %11466
    %11468 = vrot.lane.b32.xlu0 %v11449, 102
    %v11469 = vpop.permute.xlu0 %11468
    %11470 = vrot.lane.b32.xlu0 %v11450, 102
    %v11471 = vpop.permute.xlu0 %11470
    %11472 = vrot.lane.b32.xlu0 %v11451, 102
    %v11473 = vpop.permute.xlu0 %11472
    %11474 = vrot.lane.b32.xlu0 %v11452, 102
    %v11475 = vpop.permute.xlu0 %11474
    %11476 = vrot.lane.b32.xlu0 %v11453, 102
    %v11477 = vpop.permute.xlu0 %11476
    %vm11478 = vcmask 834560
    %v11479 = vsel %vm11478, %v11463, %v11465
    %v11480 = vsel %vm11478, %v11467, %v11469
    %v11481 = vsel %vm11478, %v11471, %v11473
    %v11482 = vsel %vm11478, %v11475, %v11477
    %v11491 = vadd.f32 %v11436, %v11479
    %v11492 = vadd.f32 %v11437, %v11465
    %v11493 = vadd.f32 %v11438, %v11480
    %v11494 = vadd.f32 %v11439, %v11469
    %v11495 = vadd.f32 %v11440, %v11481
    %v11496 = vadd.f32 %v11441, %v11473
    %v11497 = vadd.f32 %v11442, %v11482
    %v11498 = vadd.f32 %v11443, %v11477
    %s11499 = sld [smem:[#allocation6 + $0x31]]
    %v11500 = vstv %s11499
    %v11501 = vmul.f32 %v11500, %v323
    %v11502 = vmul.f32 %v11500, %v324
    %v11503 = vmul.f32 %v11500, %v325
    %v11504 = vmul.f32 %v11500, %v326
    %v11505 = vmul.f32 %v11500, %v327
    %v11506 = vmul.f32 %v11500, %v328
    %v11507 = vmul.f32 %v11500, %v329
    %v11508 = vmul.f32 %v11500, %v330
    %v11509 = vmul.f32 %v11500, %v331
    %v11510 = vmul.f32 %v11500, %v332
    %v11511 = vmul.f32 %v11500, %v333
    %v11512 = vmul.f32 %v11500, %v334
    %v11525 = vrot.slane %v11501, 1
    %v11526 = vrot.slane %v11503, 1
    %v11527 = vsel %vm360, %v11525, %v11526
    %v11528 = vrot.slane %v11502, 1
    %v11529 = vrot.slane %v11504, 1
    %v11530 = vsel %vm360, %v11528, %v11529
    %v11531 = vrot.slane %v11505, 1
    %v11532 = vsel %vm360, %v11526, %v11531
    %v11533 = vrot.slane %v11506, 1
    %v11534 = vsel %vm360, %v11529, %v11533
    %v11535 = vrot.slane %v11507, 1
    %v11536 = vrot.slane %v11509, 1
    %v11537 = vsel %vm360, %v11535, %v11536
    %v11538 = vrot.slane %v11508, 1
    %v11539 = vrot.slane %v11510, 1
    %v11540 = vsel %vm360, %v11538, %v11539
    %v11541 = vrot.slane %v11511, 1
    %v11542 = vsel %vm360, %v11536, %v11541
    %v11543 = vrot.slane %v11512, 1
    %v11544 = vsel %vm360, %v11539, %v11543
    %11545 = vrot.lane.b32.xlu0 %v11527, 102
    %v11546 = vpop.permute.xlu0 %11545
    %11547 = vrot.lane.b32.xlu0 %v11530, 102
    %v11548 = vpop.permute.xlu0 %11547
    %11549 = vrot.lane.b32.xlu0 %v11532, 102
    %v11550 = vpop.permute.xlu0 %11549
    %11551 = vrot.lane.b32.xlu0 %v11534, 102
    %v11552 = vpop.permute.xlu0 %11551
    %11553 = vrot.lane.b32.xlu0 %v11537, 102
    %v11554 = vpop.permute.xlu0 %11553
    %11555 = vrot.lane.b32.xlu0 %v11540, 102
    %v11556 = vpop.permute.xlu0 %11555
    %11557 = vrot.lane.b32.xlu0 %v11542, 102
    %v11558 = vpop.permute.xlu0 %11557
    %11559 = vrot.lane.b32.xlu0 %v11544, 102
    %v11560 = vpop.permute.xlu0 %11559
    %v11561 = vsel %vm11478, %v11546, %v11548
    %v11562 = vsel %vm11478, %v11550, %v11552
    %v11563 = vsel %vm11478, %v11554, %v11556
    %v11564 = vsel %vm11478, %v11558, %v11560
    %v11573 = vadd.f32 %v11491, %v11561
    %v11574 = vadd.f32 %v11492, %v11548
    %v11575 = vadd.f32 %v11493, %v11562
    %v11576 = vadd.f32 %v11494, %v11552
    %v11577 = vadd.f32 %v11495, %v11563
    %v11578 = vadd.f32 %v11496, %v11556
    %v11579 = vadd.f32 %v11497, %v11564
    %v11580 = vadd.f32 %v11498, %v11560
    %s11581 = sld [smem:[#allocation6 + $0x4a]]
    %v11582 = vstv %s11581
    %v11583 = vmul.f32 %v11582, %v419
    %v11584 = vmul.f32 %v11582, %v420
    %v11585 = vmul.f32 %v11582, %v325
    %v11586 = vmul.f32 %v11582, %v326
    %v11587 = vmul.f32 %v11582, %v421
    %v11588 = vmul.f32 %v11582, %v422
    %v11589 = vmul.f32 %v11582, %v423
    %v11590 = vmul.f32 %v11582, %v424
    %v11591 = vmul.f32 %v11582, %v331
    %v11592 = vmul.f32 %v11582, %v332
    %v11593 = vmul.f32 %v11582, %v425
    %v11594 = vmul.f32 %v11582, %v426
    %v11607 = vrot.slane %v11583, 2
    %v11608 = vrot.slane %v11585, 2
    %v11609 = vsel %vm452, %v11607, %v11608
    %v11610 = vrot.slane %v11584, 2
    %v11611 = vrot.slane %v11586, 2
    %v11612 = vsel %vm452, %v11610, %v11611
    %v11613 = vrot.slane %v11587, 2
    %v11614 = vsel %vm452, %v11608, %v11613
    %v11615 = vrot.slane %v11588, 2
    %v11616 = vsel %vm452, %v11611, %v11615
    %v11617 = vrot.slane %v11589, 2
    %v11618 = vrot.slane %v11591, 2
    %v11619 = vsel %vm452, %v11617, %v11618
    %v11620 = vrot.slane %v11590, 2
    %v11621 = vrot.slane %v11592, 2
    %v11622 = vsel %vm452, %v11620, %v11621
    %v11623 = vrot.slane %v11593, 2
    %v11624 = vsel %vm452, %v11618, %v11623
    %v11625 = vrot.slane %v11594, 2
    %v11626 = vsel %vm452, %v11621, %v11625
    %11627 = vrot.lane.b32.xlu0 %v11609, 102
    %v11628 = vpop.permute.xlu0 %11627
    %11629 = vrot.lane.b32.xlu0 %v11612, 102
    %v11630 = vpop.permute.xlu0 %11629
    %11631 = vrot.lane.b32.xlu0 %v11614, 102
    %v11632 = vpop.permute.xlu0 %11631
    %11633 = vrot.lane.b32.xlu0 %v11616, 102
    %v11634 = vpop.permute.xlu0 %11633
    %11635 = vrot.lane.b32.xlu0 %v11619, 102
    %v11636 = vpop.permute.xlu0 %11635
    %11637 = vrot.lane.b32.xlu0 %v11622, 102
    %v11638 = vpop.permute.xlu0 %11637
    %11639 = vrot.lane.b32.xlu0 %v11624, 102
    %v11640 = vpop.permute.xlu0 %11639
    %11641 = vrot.lane.b32.xlu0 %v11626, 102
    %v11642 = vpop.permute.xlu0 %11641
    %v11643 = vsel %vm11478, %v11628, %v11630
    %v11644 = vsel %vm11478, %v11632, %v11634
    %v11645 = vsel %vm11478, %v11636, %v11638
    %v11646 = vsel %vm11478, %v11640, %v11642
    %v11655 = vadd.f32 %v11573, %v11643
    %v11656 = vadd.f32 %v11574, %v11630
    %v11657 = vadd.f32 %v11575, %v11644
    %v11658 = vadd.f32 %v11576, %v11634
    %v11659 = vadd.f32 %v11577, %v11645
    %v11660 = vadd.f32 %v11578, %v11638
    %v11661 = vadd.f32 %v11579, %v11646
    %v11662 = vadd.f32 %v11580, %v11642
    %s11663 = sld [smem:[#allocation6 + $0x63]]
    %v11664 = vstv %s11663
    %v11665 = vmul.f32 %v11664, %v510
    %v11666 = vmul.f32 %v11664, %v511
    %v11667 = vmul.f32 %v11664, %v325
    %v11668 = vmul.f32 %v11664, %v326
    %v11669 = vmul.f32 %v11664, %v512
    %v11670 = vmul.f32 %v11664, %v513
    %v11671 = vmul.f32 %v11664, %v514
    %v11672 = vmul.f32 %v11664, %v515
    %v11673 = vmul.f32 %v11664, %v331
    %v11674 = vmul.f32 %v11664, %v332
    %v11675 = vmul.f32 %v11664, %v516
    %v11676 = vmul.f32 %v11664, %v517
    %v11689 = vrot.slane %v11665, 3
    %v11690 = vrot.slane %v11667, 3
    %v11691 = vsel %vm543, %v11689, %v11690
    %v11692 = vrot.slane %v11666, 3
    %v11693 = vrot.slane %v11668, 3
    %v11694 = vsel %vm543, %v11692, %v11693
    %v11695 = vrot.slane %v11669, 3
    %v11696 = vsel %vm543, %v11690, %v11695
    %v11697 = vrot.slane %v11670, 3
    %v11698 = vsel %vm543, %v11693, %v11697
    %v11699 = vrot.slane %v11671, 3
    %v11700 = vrot.slane %v11673, 3
    %v11701 = vsel %vm543, %v11699, %v11700
    %v11702 = vrot.slane %v11672, 3
    %v11703 = vrot.slane %v11674, 3
    %v11704 = vsel %vm543, %v11702, %v11703
    %v11705 = vrot.slane %v11675, 3
    %v11706 = vsel %vm543, %v11700, %v11705
    %v11707 = vrot.slane %v11676, 3
    %v11708 = vsel %vm543, %v11703, %v11707
    %11709 = vrot.lane.b32.xlu0 %v11691, 102
    %v11710 = vpop.permute.xlu0 %11709
    %11711 = vrot.lane.b32.xlu0 %v11694, 102
    %v11712 = vpop.permute.xlu0 %11711
    %11713 = vrot.lane.b32.xlu0 %v11696, 102
    %v11714 = vpop.permute.xlu0 %11713
    %11715 = vrot.lane.b32.xlu0 %v11698, 102
    %v11716 = vpop.permute.xlu0 %11715
    %11717 = vrot.lane.b32.xlu0 %v11701, 102
    %v11718 = vpop.permute.xlu0 %11717
    %11719 = vrot.lane.b32.xlu0 %v11704, 102
    %v11720 = vpop.permute.xlu0 %11719
    %11721 = vrot.lane.b32.xlu0 %v11706, 102
    %v11722 = vpop.permute.xlu0 %11721
    %11723 = vrot.lane.b32.xlu0 %v11708, 102
    %v11724 = vpop.permute.xlu0 %11723
    %v11725 = vsel %vm11478, %v11710, %v11712
    %v11726 = vsel %vm11478, %v11714, %v11716
    %v11727 = vsel %vm11478, %v11718, %v11720
    %v11728 = vsel %vm11478, %v11722, %v11724
    %v11737 = vadd.f32 %v11655, %v11725
    %v11738 = vadd.f32 %v11656, %v11712
    %v11739 = vadd.f32 %v11657, %v11726
    %v11740 = vadd.f32 %v11658, %v11716
    %v11741 = vadd.f32 %v11659, %v11727
    %v11742 = vadd.f32 %v11660, %v11720
    %v11743 = vadd.f32 %v11661, %v11728
    %v11744 = vadd.f32 %v11662, %v11724
    %s11745 = sld [smem:[#allocation6 + $0x7c]]
    %v11746 = vstv %s11745
    %v11747 = vmul.f32 %v11746, %v3054
    %v11748 = vmul.f32 %v11746, %v3055
    %v11749 = vmul.f32 %v11746, %v325
    %v11750 = vmul.f32 %v11746, %v326
    %v11751 = vmul.f32 %v11746, %v3056
    %v11752 = vmul.f32 %v11746, %v3057
    %v11753 = vmul.f32 %v11746, %v3058
    %v11754 = vmul.f32 %v11746, %v3059
    %v11755 = vmul.f32 %v11746, %v331
    %v11756 = vmul.f32 %v11746, %v332
    %v11757 = vmul.f32 %v11746, %v3060
    %v11758 = vmul.f32 %v11746, %v3061
    %v11771 = vrot.slane %v11747, 4
    %v11772 = vrot.slane %v11749, 4
    %v11773 = vsel %vm2713, %v11771, %v11772
    %v11774 = vrot.slane %v11748, 4
    %v11775 = vrot.slane %v11750, 4
    %v11776 = vsel %vm2713, %v11774, %v11775
    %v11777 = vrot.slane %v11751, 4
    %v11778 = vsel %vm2713, %v11772, %v11777
    %v11779 = vrot.slane %v11752, 4
    %v11780 = vsel %vm2713, %v11775, %v11779
    %v11781 = vrot.slane %v11753, 4
    %v11782 = vrot.slane %v11755, 4
    %v11783 = vsel %vm2713, %v11781, %v11782
    %v11784 = vrot.slane %v11754, 4
    %v11785 = vrot.slane %v11756, 4
    %v11786 = vsel %vm2713, %v11784, %v11785
    %v11787 = vrot.slane %v11757, 4
    %v11788 = vsel %vm2713, %v11782, %v11787
    %v11789 = vrot.slane %v11758, 4
    %v11790 = vsel %vm2713, %v11785, %v11789
    %11791 = vrot.lane.b32.xlu0 %v11773, 102
    %v11792 = vpop.permute.xlu0 %11791
    %11793 = vrot.lane.b32.xlu0 %v11776, 102
    %v11794 = vpop.permute.xlu0 %11793
    %11795 = vrot.lane.b32.xlu0 %v11778, 102
    %v11796 = vpop.permute.xlu0 %11795
    %11797 = vrot.lane.b32.xlu0 %v11780, 102
    %v11798 = vpop.permute.xlu0 %11797
    %11799 = vrot.lane.b32.xlu0 %v11783, 102
    %v11800 = vpop.permute.xlu0 %11799
    %11801 = vrot.lane.b32.xlu0 %v11786, 102
    %v11802 = vpop.permute.xlu0 %11801
    %11803 = vrot.lane.b32.xlu0 %v11788, 102
    %v11804 = vpop.permute.xlu0 %11803
    %11805 = vrot.lane.b32.xlu0 %v11790, 102
    %v11806 = vpop.permute.xlu0 %11805
    %v11807 = vsel %vm11478, %v11792, %v11794
    %v11808 = vsel %vm11478, %v11796, %v11798
    %v11809 = vsel %vm11478, %v11800, %v11802
    %v11810 = vsel %vm11478, %v11804, %v11806
    %v11819 = vadd.f32 %v11737, %v11807
    %v11820 = vadd.f32 %v11738, %v11794
    %v11821 = vadd.f32 %v11739, %v11808
    %v11822 = vadd.f32 %v11740, %v11798
    %v11823 = vadd.f32 %v11741, %v11809
    %v11824 = vadd.f32 %v11742, %v11802
    %v11825 = vadd.f32 %v11743, %v11810
    %v11826 = vadd.f32 %v11744, %v11806
    %v11827 = vld [vmem:[%s6] sm:$0x1]
    %v11829 = vlaneseq
    %v11830 = vshrl.u32 %v11829, 7
    %v11831 = vsub.s32 0, %v11830
    %v11832 = vrot.slane %v11827, %v11831
    %11833 = vrot.lane.b32.xlu0 %v11832, 26
    %v11834 = vpop.permute.xlu0 %11833
    %v11836 = vmul.f32 %v11819, %v11834
    %v11837 = vmul.f32 %v11820, %v11834
    %v11838 = vmul.f32 %v11821, %v11834
    %v11839 = vmul.f32 %v11822, %v11834
    %v11840 = vmul.f32 %v11823, %v11834
    %v11841 = vmul.f32 %v11824, %v11834
    %v11842 = vmul.f32 %v11825, %v11834
    %v11843 = vmul.f32 %v11826, %v11834
    %vm11844 = vcmask 1047760
    %v11845 = vsel %vm11844, %v11836, 0.0
    %v11846 = vsel %vm11844, %v11840, 0.0
    %v11847 = vadd.f32 %v11845, %v11846
    %vm11848 = vcmask 211968
    %v11849 = vsel %vm11848, %v11837, 0.0
    %v11850 = vsel %vm11848, %v11841, 0.0
    %v11851 = vadd.f32 %v11849, %v11850
    %v11852 = vsel %vm11844, %v11838, 0.0
    %v11853 = vsel %vm11844, %v11842, 0.0
    %v11854 = vadd.f32 %v11852, %v11853
    %v11855 = vsel %vm11848, %v11839, 0.0
    %v11856 = vsel %vm11848, %v11843, 0.0
    %v11857 = vadd.f32 %v11855, %v11856
    %v11858 = vmul.f32 %v11836, %v11836
    %v11859 = vmul.f32 %v11837, %v11837
    %v11860 = vmul.f32 %v11838, %v11838
    %v11861 = vmul.f32 %v11839, %v11839
    %v11862 = vmul.f32 %v11840, %v11840
    %v11863 = vmul.f32 %v11841, %v11841
    %v11864 = vmul.f32 %v11842, %v11842
    %v11865 = vmul.f32 %v11843, %v11843
    %v11866 = vsel %vm11844, %v11858, 0.0
    %v11867 = vsel %vm11844, %v11862, 0.0
    %v11868 = vadd.f32 %v11866, %v11867
    %v11869 = vsel %vm11848, %v11859, 0.0
    %v11870 = vsel %vm11848, %v11863, 0.0
    %v11871 = vadd.f32 %v11869, %v11870
    %v11872 = vsel %vm11844, %v11860, 0.0
    %v11873 = vsel %vm11844, %v11864, 0.0
    %v11874 = vadd.f32 %v11872, %v11873
    %v11875 = vsel %vm11848, %v11861, 0.0
    %v11876 = vsel %vm11848, %v11865, 0.0
    %v11877 = vadd.f32 %v11875, %v11876
    %11882 = vrot.lane.b32.xlu0 %v11847, 102
    %v11883 = vpop.permute.xlu0 %11882
    %11884 = vrot.lane.b32.xlu0 %v11851, 102
    %v11885 = vpop.permute.xlu0 %11884
    %11886 = vrot.lane.b32.xlu0 %v11854, 102
    %v11887 = vpop.permute.xlu0 %11886
    %11888 = vrot.lane.b32.xlu0 %v11857, 102
    %v11889 = vpop.permute.xlu0 %11888
    %v11890 = vsel %vm11478, %v11883, %v11885
    %v11891 = vsel %vm11478, %v11887, %v11889
    %v11894 = vadd.f32 %v11890, %v11891
    %11895 = vadd.xlane.f32.xlu0 %v11894
    %v11896 = vpop.xlane.xlu0 %11895
    %v11897 = vrot.slane %v11896, 4
    %v11898 = vadd.f32 %v11896, %v11897
    %v11899 = vrot.slane %v11898, 2
    %v11900 = vadd.f32 %v11898, %v11899
    %v11901 = vrot.slane %v11900, 1
    %v11902 = vadd.f32 %v11900, %v11901
    %s11903 = vtos %v11902
    %s11904 = smul.f32 %s11903, 0.00048828125
    %11909 = vrot.lane.b32.xlu0 %v11868, 102
    %v11910 = vpop.permute.xlu0 %11909
    %11911 = vrot.lane.b32.xlu0 %v11871, 102
    %v11912 = vpop.permute.xlu0 %11911
    %11913 = vrot.lane.b32.xlu0 %v11874, 102
    %v11914 = vpop.permute.xlu0 %11913
    %11915 = vrot.lane.b32.xlu0 %v11877, 102
    %v11916 = vpop.permute.xlu0 %11915
    %v11917 = vsel %vm11478, %v11910, %v11912
    %v11918 = vsel %vm11478, %v11914, %v11916
    %v11921 = vadd.f32 %v11917, %v11918
    %11922 = vadd.xlane.f32.xlu0 %v11921
    %v11923 = vpop.xlane.xlu0 %11922
    %v11924 = vrot.slane %v11923, 4
    %v11925 = vadd.f32 %v11923, %v11924
    %v11926 = vrot.slane %v11925, 2
    %v11927 = vadd.f32 %v11925, %v11926
    %v11928 = vrot.slane %v11927, 1
    %v11929 = vadd.f32 %v11927, %v11928
    %s11930 = vtos %v11929
    %s11931 = smul.f32 %s11930, 0.00048828125
    %s11932 = smul.f32 %s11904, %s11904
    %s11933 = ssub.f32 %s11931, %s11932
    %v11934 = vstv %s11904
    %v11935 = vsub.f32 %v11819, %v11934
    %v11936 = vsub.f32 %v11820, %v11934
    %v11937 = vsub.f32 %v11821, %v11934
    %v11938 = vsub.f32 %v11822, %v11934
    %v11939 = vsub.f32 %v11823, %v11934
    %v11940 = vsub.f32 %v11824, %v11934
    %v11941 = vsub.f32 %v11825, %v11934
    %v11942 = vsub.f32 %v11826, %v11934
    %s11943 = sadd.f32 %s11933, %s75
    %v11944 = vstv %s11943
    %v11945 = vrsqrt.pop %v11944
    %s11946 = vtos %v11945
    %v11947 = vstv %s11946
    %v11948 = vmul.f32 %v11935, %v11947
    %v11949 = vmul.f32 %v11936, %v11947
    %v11950 = vmul.f32 %v11937, %v11947
    %v11951 = vmul.f32 %v11938, %v11947
    %v11952 = vmul.f32 %v11939, %v11947
    %v11953 = vmul.f32 %v11940, %v11947
    %v11954 = vmul.f32 %v11941, %v11947
    %v11955 = vmul.f32 %v11942, %v11947
    %v11956 = vstv %s73
    %v11957 = vmul.f32 %v11948, %v11956
    %v11958 = vmul.f32 %v11949, %v11956
    %v11959 = vmul.f32 %v11950, %v11956
    %v11960 = vmul.f32 %v11951, %v11956
    %v11961 = vmul.f32 %v11952, %v11956
    %v11962 = vmul.f32 %v11953, %v11956
    %v11963 = vmul.f32 %v11954, %v11956
    %v11964 = vmul.f32 %v11955, %v11956
    %v11965 = vstv %s74
    %v11966 = vadd.f32 %v11957, %v11965
    %v11967 = vadd.f32 %v11958, %v11965
    %v11968 = vadd.f32 %v11959, %v11965
    %v11969 = vadd.f32 %v11960, %v11965
    %v11970 = vadd.f32 %v11961, %v11965
    %v11971 = vadd.f32 %v11962, %v11965
    %v11972 = vadd.f32 %v11963, %v11965
    %v11973 = vadd.f32 %v11964, %v11965
    %v11974 = vmul.f32 %v11966, 0.1
    %v11975 = vmul.f32 %v11967, 0.1
    %v11976 = vmul.f32 %v11968, 0.1
    %v11977 = vmul.f32 %v11969, 0.1
    %v11978 = vmul.f32 %v11970, 0.1
    %v11979 = vmul.f32 %v11971, 0.1
    %v11980 = vmul.f32 %v11972, 0.1
    %v11981 = vmul.f32 %v11973, 0.1
    %v11982 = vadd.f32 %v287, %v11974
    %v11983 = vadd.f32 %v288, %v11975
    %v11984 = vadd.f32 %v289, %v11976
    %v11985 = vadd.f32 %v290, %v11977
    %v11986 = vadd.f32 %v291, %v11978
    %v11987 = vadd.f32 %v292, %v11979
    %v11988 = vadd.f32 %v293, %v11980
    %v11989 = vadd.f32 %v294, %v11981
    %vm11990 = vcmp.ge.f32.partialorder %v11982, 0.0
    %vm11991 = vcmp.ge.f32.partialorder %v11983, 0.0
    %vm11992 = vcmp.ge.f32.partialorder %v11984, 0.0
    %vm11993 = vcmp.ge.f32.partialorder %v11985, 0.0
    %vm11994 = vcmp.ge.f32.partialorder %v11986, 0.0
    %vm11995 = vcmp.ge.f32.partialorder %v11987, 0.0
    %vm11996 = vcmp.ge.f32.partialorder %v11988, 0.0
    %vm11997 = vcmp.ge.f32.partialorder %v11989, 0.0
    %v11998 = vmul.f32 %v11982, 0.01
    %v11999 = vmul.f32 %v11983, 0.01
    %v12000 = vmul.f32 %v11984, 0.01
    %v12001 = vmul.f32 %v11985, 0.01
    %v12002 = vmul.f32 %v11986, 0.01
    %v12003 = vmul.f32 %v11987, 0.01
    %v12004 = vmul.f32 %v11988, 0.01
    %v12005 = vmul.f32 %v11989, 0.01
    %v12006 = vsel %vm11990, %v11982, %v11998
    %v12007 = vsel %vm11991, %v11983, %v11999
    %v12008 = vsel %vm11992, %v11984, %v12000
    %v12009 = vsel %vm11993, %v11985, %v12001
    %v12010 = vsel %vm11994, %v11986, %v12002
    %v12011 = vsel %vm11995, %v11987, %v12003
    %v12012 = vsel %vm11996, %v11988, %v12004
    %v12013 = vsel %vm11997, %v11989, %v12005
    %12022 = vrot.lane.b32.xlu0 %v12006, 102
    %v12023 = vpop.permute.xlu0 %12022
    %12024 = vrot.lane.b32.xlu0 %v12007, 102
    %v12025 = vpop.permute.xlu0 %12024
    %12026 = vrot.lane.b32.xlu0 %v12008, 102
    %v12027 = vpop.permute.xlu0 %12026
    %12028 = vrot.lane.b32.xlu0 %v12009, 102
    %v12029 = vpop.permute.xlu0 %12028
    %12030 = vrot.lane.b32.xlu0 %v12010, 102
    %v12031 = vpop.permute.xlu0 %12030
    %12032 = vrot.lane.b32.xlu0 %v12011, 102
    %v12033 = vpop.permute.xlu0 %12032
    %12034 = vrot.lane.b32.xlu0 %v12012, 102
    %v12035 = vpop.permute.xlu0 %12034
    %12036 = vrot.lane.b32.xlu0 %v12013, 102
    %v12037 = vpop.permute.xlu0 %12036
    %v12038 = vsel %vm11478, %v12023, %v12025
    %v12039 = vsel %vm11478, %v12027, %v12029
    %v12040 = vsel %vm11478, %v12031, %v12033
    %v12041 = vsel %vm11478, %v12035, %v12037
    %12046 = vst [vmem:[%s10] sm:$0xff] %v12038
    %12047 = vst [vmem:[%s10 + $0x8] sm:$0xff] %v12039
    %12048 = vst [vmem:[%s10 + $0x10] sm:$0xff] %v12040
    %12049 = vst [vmem:[%s10 + $0x18] sm:$0xff] %v12041
    // Predicated region
    $region54: #{_lambda_.1} parent=1 // pred_check
      _
    $region55: #{_lambda_.1} parent=1 // pred_check_branch
      %12051 = sbr.rel (0) target = $region57
    $region56: #{_lambda_.1} parent=1 // pred_region
      _
    $region57: #{_lambda_.1} parent=1 // pred_fallthru
      _
    // Predicated region
    $region58: #{_lambda_.1} parent=1 // pred_check
      _
    $region59: #{_lambda_.1} parent=1 // pred_check_branch
      %12053 = sbr.rel (0) target = $region61
    $region60: #{_lambda_.1} parent=1 // pred_region
      _
    $region61: #{_lambda_.1} parent=1 // pred_fallthru
      _
    %12054 = vsyncpa [#allocation5], 1
    %12055 = vsyncpa [#allocation7], 1

</llo_original>
